<compile_context>
chip_gen: v5e
topology: v5e:2x2
jax: 0.10.0
libtpu: 0.0.40
codegen_flags: <defaults>
</compile_context>

<pallas_src>
import jax
import jax.numpy as jnp
from jax import lax
from jax.experimental import pallas as pl
from jax.experimental.pallas import tpu as pltpu

EPS = 1e-5


def _round_up(x, m):
    return ((x + m - 1) // m) * m


def _fold_bn(p):
    """Inference BN -> per-channel (scale, shift), f32."""
    scale = p["gamma"] / jnp.sqrt(p["var"] + EPS)
    shift = p["beta"] - p["mean"] * scale
    return scale.astype(jnp.float32), shift.astype(jnp.float32)


def _const_spec(arr):
    nd = arr.ndim
    return pl.BlockSpec(arr.shape, lambda n, _nd=nd: (0,) * _nd)


# ----------------------------------------------------------------------------
# Kernel 1: row-tiled matmul + bias + ReLU for conv1's im2col matmul.
# Post-conv BN+ReLU are folded into the weights/bias; output stored bf16.
# ----------------------------------------------------------------------------
def _mm_bias_relu_kernel(x_ref, w_ref, b_ref, o_ref):
    acc = jnp.dot(x_ref[...], w_ref[...], preferred_element_type=jnp.float32)
    o_ref[...] = jnp.maximum(acc + b_ref[...], 0.0).astype(o_ref.dtype)


def _im2col(x_nhwc, kh, kw, stride, pad):
    N, H, W, C = x_nhwc.shape
    xp = jnp.pad(x_nhwc, ((0, 0), (pad, pad), (pad, pad), (0, 0)))
    Ho = (H + 2 * pad - kh) // stride + 1
    Wo = (W + 2 * pad - kw) // stride + 1
    cols = []
    for dy in range(kh):
        for dx in range(kw):
            cols.append(xp[:, dy:dy + Ho * stride:stride,
                           dx:dx + Wo * stride:stride, :])
    patches = jnp.stack(cols, axis=3)                  # (N, Ho, Wo, kh*kw, C)
    return patches.reshape(N * Ho * Wo, kh * kw * C), (N, Ho, Wo)


def conv1_bn_relu(x_nhwc, w_oihw, bias, bn, stride, pad, tm=256):
    Cout, Cin, kh, kw = w_oihw.shape
    # cast to bf16 BEFORE im2col so the kh*kw-amplified patches are bf16
    cols, (N, Ho, Wo) = _im2col(x_nhwc.astype(jnp.bfloat16), kh, kw, stride, pad)
    scale, shift = _fold_bn(bn)
    wmat = jnp.transpose(w_oihw, (2, 3, 1, 0)).reshape(kh * kw * Cin, Cout)
    wmat = (wmat * scale[None, :]).astype(jnp.bfloat16)        # fold BN scale
    bvec = (bias * scale + shift).reshape(1, Cout).astype(jnp.float32)

    M, K = cols.shape
    tm = min(tm, _round_up(M, 8))
    Mp = _round_up(M, tm)
    cols = jnp.pad(cols, ((0, Mp - M), (0, 0)))

    y = pl.pallas_call(
        _mm_bias_relu_kernel,
        out_shape=jax.ShapeDtypeStruct((Mp, Cout), jnp.bfloat16),
        grid=(Mp // tm,),
        in_specs=[
            pl.BlockSpec((tm, K), lambda i: (i, 0)),
            pl.BlockSpec((K, Cout), lambda i: (0, 0)),
            pl.BlockSpec((1, Cout), lambda i: (0, 0)),
        ],
        out_specs=pl.BlockSpec((tm, Cout), lambda i: (i, 0)),
        compiler_params=pltpu.CompilerParams(dimension_semantics=("parallel",)),
    )(cols, wmat, bvec)
    return y[:M].reshape(N, Ho, Wo, Cout)


# ----------------------------------------------------------------------------
# Kernel 2: fused dense STAGE (all bottleneck layers + transition / final head),
# one image per grid step.  For each layer:
#   BN1+ReLU -> 1x1 conv (4g) -> BN2+ReLU -> 3x3 conv as 9 accumulated tap
#   matmuls (taps read from a zero-padded bf16 VMEM scratch) -> on-chip concat.
# Epilogue:
#   "trans": AvgPool(2,2) (commuted in front) -> BN -> 1x1 conv, bf16 out.
#   "final": BN + ReLU + global average pool, f32 features out.
# ----------------------------------------------------------------------------
def _make_stage_kernel(H, W, L, mode):
    HW = H * W
    n_epi = 3 if mode == "trans" else 2

    def kernel(*refs):
        x_ref = refs[0]
        w_refs = refs[1:1 + 6 * L]
        epi = refs[1 + 6 * L:1 + 6 * L + n_epi]
        o_ref = refs[1 + 6 * L + n_epi]
        pad_ref = refs[1 + 6 * L + n_epi + 1]
        C4 = pad_ref.shape[-1]

        # Zero only the 1-pixel halo of the 3x3 scratch; the interior is fully
        # overwritten by every layer.  Done per grid step (not program_id-
        # gated) so each core's private scratch is initialized.
        pad_ref[0:1, :, :] = jnp.zeros((1, W + 2, C4), pad_ref.dtype)
        pad_ref[H + 1:H + 2, :, :] = jnp.zeros((1, W + 2, C4), pad_ref.dtype)
        pad_ref[:, 0:1, :] = jnp.zeros((H + 2, 1, C4), pad_ref.dtype)
        pad_ref[:, W + 1:W + 2, :] = jnp.zeros((H + 2, 1, C4), pad_ref.dtype)

        # Growing DenseNet concat activation stays on-chip for the whole stage.
        # TODO(synk): for large feature maps, switch to an explicit VMEM
        # scratch + row tiling instead of a register-carried value.
        act = x_ref[0].astype(jnp.float32)                      # (HW, C0)

        for l in range(L):
            s1, t1, w1, s2, t2, w2 = w_refs[6 * l:6 * l + 6]
            # BN1 + ReLU (f32) -> 1x1 conv on the MXU (bf16 in, f32 acc)
            z = jnp.maximum(act * s1[...] + t1[...], 0.0)
            a = jnp.dot(z.astype(jnp.bfloat16), w1[...],
                        preferred_element_type=jnp.float32)     # (HW, C4)
            # BN2 + ReLU, stash once as bf16 into the zero-padded VMEM scratch.
            a = jnp.maximum(a * s2[...] + t2[...], 0.0)
            pad_ref[1:H + 1, 1:W + 1, :] = (
                a.reshape(H, W, C4).astype(pad_ref.dtype))
            # 3x3 conv = 9 shifted-tap matmuls accumulated in f32
            # (no lane-axis concat of the taps).
            y = None
            for k in range(9):
                dy, dx = divmod(k, 3)
                tap = pad_ref[dy:dy + H, dx:dx + W, :].reshape(HW, C4)
                d = jnp.dot(tap, w2[k], preferred_element_type=jnp.float32)
                y = d if y is None else y + d
            # Fused channel concat — on-chip only, never written to HBM.
            act = jnp.concatenate([act, y], axis=-1)

        if mode == "trans":
            s_t, t_t, w_t = epi
            C = act.shape[-1]
            Hh, Wh = H // 2, W // 2
            # AvgPool(2,2), BN and the 1x1 conv are all affine, so pool first
            # (exact): 4x smaller matmul and 4x smaller HBM writeback.
            x3 = act.reshape(H, W, C)[:Hh * 2, :Wh * 2, :]
            xr = x3.reshape(Hh, 2, Wh * 2, C)
            hs = xr[:, 0] + xr[:, 1]                             # (Hh, 2Wh, C)
            cr = hs.reshape(Hh, Wh, 2, C)
            pooled = (cr[:, :, 0] + cr[:, :, 1]) * 0.25          # (Hh, Wh, C)
            pf = pooled.reshape(Hh * Wh, C)
            zt = pf * s_t[...] + t_t[...]                        # BN (no ReLU)
            yt = jnp.dot(zt.astype(jnp.bfloat16), w_t[...],
                         preferred_element_type=jnp.float32)
            o_ref[0] = yt.astype(o_ref.dtype)
        else:  # final stage: BN + ReLU + global average pool
            s_f, t_f = epi
            zf = jnp.maximum(act * s_f[...] + t_f[...], 0.0)
            o_ref[0] = jnp.mean(zf, axis=0, keepdims=True).astype(o_ref.dtype)

    return kernel


def dense_stage(x_flat, H, W, layer_params, trans=None, final_bn=None):
    """x_flat: (N, H*W, C0) bf16.  Returns next-stage (N, H/2*W/2, Cout) bf16
    or — for the last stage — pooled features (N, 1, C_final) f32."""
    N, HW, C0 = x_flat.shape
    L = len(layer_params)
    g = layer_params[0]["conv2_w"].shape[0]
    C4 = 4 * g

    inputs = [x_flat.astype(jnp.bfloat16)]
    in_specs = [pl.BlockSpec((1, HW, C0), lambda n: (n, 0, 0))]

    c = C0
    for lp in layer_params:
        s1, t1 = _fold_bn(lp["bn1"])
        s2, t2 = _fold_bn(lp["bn2"])
        w1 = jnp.transpose(lp["conv1_w"], (2, 3, 1, 0)).reshape(c, C4)
        w2 = jnp.transpose(lp["conv2_w"], (2, 3, 1, 0)).reshape(9, C4, g)
        new = [s1.reshape(1, c), t1.reshape(1, c), w1.astype(jnp.bfloat16),
               s2.reshape(1, C4), t2.reshape(1, C4), w2.astype(jnp.bfloat16)]
        inputs += new
        in_specs += [_const_spec(a) for a in new]
        c += g

    if trans is not None:
        mode = "trans"
        Cout = trans["conv_w"].shape[0]
        st, tt = _fold_bn(trans["bn"])
        wt = jnp.transpose(trans["conv_w"], (2, 3, 1, 0)).reshape(c, Cout)
        new = [st.reshape(1, c), tt.reshape(1, c), wt.astype(jnp.bfloat16)]
        inputs += new
        in_specs += [_const_spec(a) for a in new]
        Hh, Wh = H // 2, W // 2
        out_shape = jax.ShapeDtypeStruct((N, Hh * Wh, Cout), jnp.bfloat16)
        out_spec = pl.BlockSpec((1, Hh * Wh, Cout), lambda n: (n, 0, 0))
    else:
        mode = "final"
        sf, tf = _fold_bn(final_bn)
        new = [sf.reshape(1, c), tf.reshape(1, c)]
        inputs += new
        in_specs += [_const_spec(a) for a in new]
        out_shape = jax.ShapeDtypeStruct((N, 1, c), jnp.float32)
        out_spec = pl.BlockSpec((1, 1, c), lambda n: (n, 0, 0))

    return pl.pallas_call(
        _make_stage_kernel(H, W, L, mode),
        out_shape=out_shape,
        grid=(N,),
        in_specs=in_specs,
        out_specs=out_spec,
        scratch_shapes=[pltpu.VMEM((H + 2, W + 2, C4), jnp.bfloat16)],
        compiler_params=pltpu.CompilerParams(dimension_semantics=("parallel",)),
    )(*inputs)


# ----------------------------------------------------------------------------
# DenseNet forward
# ----------------------------------------------------------------------------
def densenet_forward(params, x_nchw):
    x = jnp.transpose(x_nchw, (0, 2, 3, 1))                     # NCHW -> NHWC
    # conv1 (7x7, s2, p3, bias) + bn1 + relu, fused into one matmul kernel
    x = conv1_bn_relu(x, params["conv1_w"], params["conv1_b"], params["bn1"],
                      stride=2, pad=3)                           # bf16
    # MaxPool2d(3, stride=2, padding=1) (PyTorch pads with -inf for max).
    # TODO(synk): fold this maxpool into the conv1 kernel epilogue.
    neg_inf = jnp.asarray(-jnp.inf, dtype=x.dtype)
    x = lax.reduce_window(x, neg_inf, lax.max,
                          (1, 3, 3, 1), (1, 2, 2, 1),
                          ((0, 0), (1, 1), (1, 1), (0, 0)))
    N, H, W, C = x.shape
    x = x.reshape(N, H * W, C)                                   # flat spatial

    nb = len(params["blocks"])
    for idx, blk in enumerate(params["blocks"]):
        if idx != nb - 1:
            x = dense_stage(x, H, W, blk["layers"], trans=blk["trans"])
            H, W = H // 2, W // 2
        else:
            x = dense_stage(x, H, W, blk["layers"], final_bn=params["bn_final"])

    feat = x[:, 0, :]                                            # (N, C) f32
    # fc is (N x C) @ (C x num_class) with N=2 — plain XLA (launch > compute).
    return feat @ params["fc_w"].T + params["fc_b"]


# ----------------------------------------------------------------------------
# Deterministic parameter init (shapes follow the PyTorch __init__)
# ----------------------------------------------------------------------------
def _init_bn(key, c):
    k1, k2, k3, k4 = jax.random.split(key, 4)
    return {"gamma": jax.random.uniform(k1, (c,), jnp.float32, 0.5, 1.5),
            "beta": 0.1 * jax.random.normal(k2, (c,), jnp.float32),
            "mean": 0.1 * jax.random.normal(k3, (c,), jnp.float32),
            "var": jax.random.uniform(k4, (c,), jnp.float32, 0.5, 1.5)}


def _init_conv(key, cout, cin, k):
    scale = 1.0 / (cin * k * k) ** 0.5
    return scale * jax.random.normal(key, (cout, cin, k, k), jnp.float32)


def init_densenet(key, nblocks, growth_rate=4, reduction=0.5, num_class=10):
    keys = iter(jax.random.split(key, 256))
    g = growth_rate
    inner = 2 * g
    params = {
        "conv1_w": _init_conv(next(keys), inner, 3, 7),
        "conv1_b": 0.1 * jax.random.normal(next(keys), (inner,), jnp.float32),
        "bn1": _init_bn(next(keys), inner),
        "blocks": [],
    }
    for idx in range(len(nblocks)):
        layers = []
        for _ in range(nblocks[idx]):
            layers.append({
                "bn1": _init_bn(next(keys), inner),
                "conv1_w": _init_conv(next(keys), 4 * g, inner, 1),
                "bn2": _init_bn(next(keys), 4 * g),
                "conv2_w": _init_conv(next(keys), g, 4 * g, 3),
            })
            inner += g
        blk = {"layers": layers}
        if idx != len(nblocks) - 1:
            out_c = int(reduction * inner)
            blk["trans"] = {"bn": _init_bn(next(keys), inner),
                            "conv_w": _init_conv(next(keys), out_c, inner, 1)}
            inner = out_c
        params["blocks"].append(blk)
    params["bn_final"] = _init_bn(next(keys), inner)
    params["fc_w"] = (1.0 / inner ** 0.5) * jax.random.normal(
        next(keys), (num_class, inner), jnp.float32)
    params["fc_b"] = 0.1 * jax.random.normal(next(keys), (num_class,), jnp.float32)
    return params


if __name__ == "__main__":
    key = jax.random.PRNGKey(0)
    k_params, k_x = jax.random.split(key)
    # Small config: growth_rate=4, nblocks=[1,1,1,1], num_class=10, 32x32 input.
    params = init_densenet(k_params, nblocks=[1, 1, 1, 1],
                           growth_rate=4, reduction=0.5, num_class=10)
    x = jax.random.normal(k_x, (2, 3, 32, 32), dtype=jnp.float32)  # NCHW
    fwd = jax.jit(densenet_forward)
    logits = fwd(params, x)
    jax.block_until_ready(logits)
    assert logits.shape == (2, 10)
    print("KERNEL_OK")
</pallas_src>

<mosaic_0001>
module attributes {stable_mosaic.version = 11 : i64} {
  func.func @_mm_bias_relu_kernel(%arg0: i32, %arg1: memref<256x147xbf16, #tpu.memory_space<vmem>>, %arg2: memref<147x8xbf16, #tpu.memory_space<vmem>>, %arg3: memref<1x8xf32, #tpu.memory_space<vmem>>, %arg4: memref<256x8xbf16, #tpu.memory_space<vmem>>) attributes {dimension_semantics = [#tpu.dimension_semantics<parallel>], iteration_bounds = array<i64: 2>, scalar_prefetch = 0 : i64, scratch_operands = 0 : i64, tpu.core_type = #tpu.core_type<tc>, window_params = [{transform_indices = @transform_0, window_bounds = array<i64: 256, 147>}, {pipeline_mode = #tpu.pipeline_mode<synchronous>, transform_indices = @transform_1, window_bounds = array<i64: 147, 8>}, {pipeline_mode = #tpu.pipeline_mode<synchronous>, transform_indices = @transform_2, window_bounds = array<i64: 1, 8>}, {transform_indices = @transform_3, window_bounds = array<i64: 256, 8>}]} {
    %c0 = arith.constant 0 : index
    %c0_0 = arith.constant 0 : index
    %0 = vector.load %arg1[%c0, %c0_0] : memref<256x147xbf16, #tpu.memory_space<vmem>>, vector<256x147xbf16>
    %c0_1 = arith.constant 0 : index
    %c0_2 = arith.constant 0 : index
    %1 = vector.load %arg2[%c0_1, %c0_2] : memref<147x8xbf16, #tpu.memory_space<vmem>>, vector<147x8xbf16>
    %cst = arith.constant dense<0.000000e+00> : vector<256x8xf32>
    %2 = tpu.matmul %0, %1, %cst {dimension_numbers = #tpu.dot_dimension_numbers<[1], [0], [0], [1], [0, 0, 1, 1], [], []>} : vector<256x147xbf16>, vector<147x8xbf16>, vector<256x8xf32> -> vector<256x8xf32>
    %c0_3 = arith.constant 0 : index
    %c0_4 = arith.constant 0 : index
    %3 = vector.load %arg3[%c0_3, %c0_4] : memref<1x8xf32, #tpu.memory_space<vmem>>, vector<1x8xf32>
    %4 = vector.broadcast %3 : vector<1x8xf32> to vector<256x8xf32>
    %5 = arith.addf %2, %4 : vector<256x8xf32>
    %cst_5 = arith.constant 0.000000e+00 : f32
    %6 = vector.broadcast %cst_5 : f32 to vector<256x8xf32>
    %7 = arith.maximumf %5, %6 : vector<256x8xf32>
    %8 = arith.truncf %7 : vector<256x8xf32> to vector<256x8xbf16>
    %c0_6 = arith.constant 0 : index
    %c0_7 = arith.constant 0 : index
    %9 = vector.load %arg4[%c0_6, %c0_7] : memref<256x8xbf16, #tpu.memory_space<vmem>>, vector<256x8xbf16>
    tpu.vector_store %arg4[%c0_6, %c0_7], %8 {strides = array<i32>} : memref<256x8xbf16, #tpu.memory_space<vmem>>, vector<256x8xbf16>,
    return
  }
  func.func @transform_0(%arg0: i32) -> (i32, i32) {
    %c0_i32 = arith.constant 0 : i32
    %c0_i32_0 = arith.constant 0 : i32
    return %arg0, %c0_i32 : i32, i32
  }
  func.func @transform_1(%arg0: i32) -> (i32, i32) {
    %c0_i32 = arith.constant 0 : i32
    %c0_i32_0 = arith.constant 0 : i32
    %c0_i32_1 = arith.constant 0 : i32
    return %c0_i32, %c0_i32_0 : i32, i32
  }
  func.func @transform_2(%arg0: i32) -> (i32, i32) {
    %c0_i32 = arith.constant 0 : i32
    %c0_i32_0 = arith.constant 0 : i32
    %c0_i32_1 = arith.constant 0 : i32
    return %c0_i32, %c0_i32_0 : i32, i32
  }
  func.func @transform_3(%arg0: i32) -> (i32, i32) {
    %c0_i32 = arith.constant 0 : i32
    %c0_i32_0 = arith.constant 0 : i32
    return %arg0, %c0_i32 : i32, i32
  }
}

module attributes {stable_mosaic.version = 11 : i64} {
  func.func @kernel(%arg0: i32, %arg1: memref<1x64x8xbf16, #tpu.memory_space<vmem>>, %arg2: memref<1x8xf32, #tpu.memory_space<vmem>>, %arg3: memref<1x8xf32, #tpu.memory_space<vmem>>, %arg4: memref<8x16xbf16, #tpu.memory_space<vmem>>, %arg5: memref<1x16xf32, #tpu.memory_space<vmem>>, %arg6: memref<1x16xf32, #tpu.memory_space<vmem>>, %arg7: memref<9x16x4xbf16, #tpu.memory_space<vmem>>, %arg8: memref<1x12xf32, #tpu.memory_space<vmem>>, %arg9: memref<1x12xf32, #tpu.memory_space<vmem>>, %arg10: memref<12x6xbf16, #tpu.memory_space<vmem>>, %arg11: memref<1x16x6xbf16, #tpu.memory_space<vmem>>, %arg12: memref<10x10x16xbf16, #tpu.memory_space<vmem>>) attributes {dimension_semantics = [#tpu.dimension_semantics<parallel>], iteration_bounds = array<i64: 2>, scalar_prefetch = 0 : i64, scratch_operands = 1 : i64, tpu.core_type = #tpu.core_type<tc>, window_params = [{transform_indices = @transform_0, window_bounds = array<i64: 1, 64, 8>}, {pipeline_mode = #tpu.pipeline_mode<synchronous>, transform_indices = @transform_1, window_bounds = array<i64: 1, 8>}, {pipeline_mode = #tpu.pipeline_mode<synchronous>, transform_indices = @transform_2, window_bounds = array<i64: 1, 8>}, {pipeline_mode = #tpu.pipeline_mode<synchronous>, transform_indices = @transform_3, window_bounds = array<i64: 8, 16>}, {pipeline_mode = #tpu.pipeline_mode<synchronous>, transform_indices = @transform_4, window_bounds = array<i64: 1, 16>}, {pipeline_mode = #tpu.pipeline_mode<synchronous>, transform_indices = @transform_5, window_bounds = array<i64: 1, 16>}, {pipeline_mode = #tpu.pipeline_mode<synchronous>, transform_indices = @transform_6, window_bounds = array<i64: 9, 16, 4>}, {pipeline_mode = #tpu.pipeline_mode<synchronous>, transform_indices = @transform_7, window_bounds = array<i64: 1, 12>}, {pipeline_mode = #tpu.pipeline_mode<synchronous>, transform_indices = @transform_8, window_bounds = array<i64: 1, 12>}, {pipeline_mode = #tpu.pipeline_mode<synchronous>, transform_indices = @transform_9, window_bounds = array<i64: 12, 6>}, {transform_indices = @transform_10, window_bounds = array<i64: 1, 16, 6>}]} {
    %cst = arith.constant 0.000000e+00 : bf16
    %0 = vector.broadcast %cst : bf16 to vector<1x10x16xbf16>
    %c0 = arith.constant 0 : index
    %c0_0 = arith.constant 0 : index
    %c0_1 = arith.constant 0 : index
    %1 = vector.load %arg12[%c0, %c0_0, %c0_1] : memref<10x10x16xbf16, #tpu.memory_space<vmem>>, vector<1x10x16xbf16>
    tpu.vector_store %arg12[%c0, %c0_0, %c0_1], %0 {strides = array<i32>} : memref<10x10x16xbf16, #tpu.memory_space<vmem>>, vector<1x10x16xbf16>,
    %cst_2 = arith.constant 0.000000e+00 : bf16
    %2 = vector.broadcast %cst_2 : bf16 to vector<1x10x16xbf16>
    %c9 = arith.constant 9 : index
    %c0_3 = arith.constant 0 : index
    %c0_4 = arith.constant 0 : index
    %3 = vector.load %arg12[%c9, %c0_3, %c0_4] : memref<10x10x16xbf16, #tpu.memory_space<vmem>>, vector<1x10x16xbf16>
    tpu.vector_store %arg12[%c9, %c0_3, %c0_4], %2 {strides = array<i32>} : memref<10x10x16xbf16, #tpu.memory_space<vmem>>, vector<1x10x16xbf16>,
    %cst_5 = arith.constant 0.000000e+00 : bf16
    %4 = vector.broadcast %cst_5 : bf16 to vector<10x1x16xbf16>
    %c0_6 = arith.constant 0 : index
    %c0_7 = arith.constant 0 : index
    %c0_8 = arith.constant 0 : index
    %5 = vector.load %arg12[%c0_6, %c0_7, %c0_8] : memref<10x10x16xbf16, #tpu.memory_space<vmem>>, vector<10x1x16xbf16>
    tpu.vector_store %arg12[%c0_6, %c0_7, %c0_8], %4 {strides = array<i32>} : memref<10x10x16xbf16, #tpu.memory_space<vmem>>, vector<10x1x16xbf16>,
    %cst_9 = arith.constant 0.000000e+00 : bf16
    %6 = vector.broadcast %cst_9 : bf16 to vector<10x1x16xbf16>
    %c0_10 = arith.constant 0 : index
    %c9_11 = arith.constant 9 : index
    %c0_12 = arith.constant 0 : index
    %7 = vector.load %arg12[%c0_10, %c9_11, %c0_12] : memref<10x10x16xbf16, #tpu.memory_space<vmem>>, vector<10x1x16xbf16>
    tpu.vector_store %arg12[%c0_10, %c9_11, %c0_12], %6 {strides = array<i32>} : memref<10x10x16xbf16, #tpu.memory_space<vmem>>, vector<10x1x16xbf16>,
    %c0_13 = arith.constant 0 : index
    %c0_14 = arith.constant 0 : index
    %c0_15 = arith.constant 0 : index
    %8 = vector.load %arg1[%c0_13, %c0_14, %c0_15] : memref<1x64x8xbf16, #tpu.memory_space<vmem>>, vector<1x64x8xbf16>
    %9 = vector.shape_cast %8 : vector<1x64x8xbf16> to vector<64x8xbf16>
    %10 = arith.extf %9 : vector<64x8xbf16> to vector<64x8xf32>
    %c0_16 = arith.constant 0 : index
    %c0_17 = arith.constant 0 : index
    %11 = vector.load %arg2[%c0_16, %c0_17] : memref<1x8xf32, #tpu.memory_space<vmem>>, vector<1x8xf32>
    %12 = vector.broadcast %11 : vector<1x8xf32> to vector<64x8xf32>
    %13 = arith.mulf %10, %12 : vector<64x8xf32>
    %c0_18 = arith.constant 0 : index
    %c0_19 = arith.constant 0 : index
    %14 = vector.load %arg3[%c0_18, %c0_19] : memref<1x8xf32, #tpu.memory_space<vmem>>, vector<1x8xf32>
    %15 = vector.broadcast %14 : vector<1x8xf32> to vector<64x8xf32>
    %16 = arith.addf %13, %15 : vector<64x8xf32>
    %cst_20 = arith.constant 0.000000e+00 : f32
    %17 = vector.broadcast %cst_20 : f32 to vector<64x8xf32>
    %18 = arith.maximumf %16, %17 : vector<64x8xf32>
    %19 = arith.truncf %18 : vector<64x8xf32> to vector<64x8xbf16>
    %c0_21 = arith.constant 0 : index
    %c0_22 = arith.constant 0 : index
    %20 = vector.load %arg4[%c0_21, %c0_22] : memref<8x16xbf16, #tpu.memory_space<vmem>>, vector<8x16xbf16>
    %cst_23 = arith.constant dense<0.000000e+00> : vector<64x16xf32>
    %21 = tpu.matmul %19, %20, %cst_23 {dimension_numbers = #tpu.dot_dimension_numbers<[1], [0], [0], [1], [0, 0, 1, 1], [], []>} : vector<64x8xbf16>, vector<8x16xbf16>, vector<64x16xf32> -> vector<64x16xf32>
    %c0_24 = arith.constant 0 : index
    %c0_25 = arith.constant 0 : index
    %22 = vector.load %arg5[%c0_24, %c0_25] : memref<1x16xf32, #tpu.memory_space<vmem>>, vector<1x16xf32>
    %23 = vector.broadcast %22 : vector<1x16xf32> to vector<64x16xf32>
    %24 = arith.mulf %21, %23 : vector<64x16xf32>
    %c0_26 = arith.constant 0 : index
    %c0_27 = arith.constant 0 : index
    %25 = vector.load %arg6[%c0_26, %c0_27] : memref<1x16xf32, #tpu.memory_space<vmem>>, vector<1x16xf32>
    %26 = vector.broadcast %25 : vector<1x16xf32> to vector<64x16xf32>
    %27 = arith.addf %24, %26 : vector<64x16xf32>
    %cst_28 = arith.constant 0.000000e+00 : f32
    %28 = vector.broadcast %cst_28 : f32 to vector<64x16xf32>
    %29 = arith.maximumf %27, %28 : vector<64x16xf32>
    %30 = vector.shape_cast %29 : vector<64x16xf32> to vector<8x8x16xf32>
    %31 = arith.truncf %30 : vector<8x8x16xf32> to vector<8x8x16xbf16>
    %c1 = arith.constant 1 : index
    %c1_29 = arith.constant 1 : index
    %c0_30 = arith.constant 0 : index
    %32 = vector.load %arg12[%c1, %c1_29, %c0_30] : memref<10x10x16xbf16, #tpu.memory_space<vmem>>, vector<8x8x16xbf16>
    tpu.vector_store %arg12[%c1, %c1_29, %c0_30], %31 {strides = array<i32>} : memref<10x10x16xbf16, #tpu.memory_space<vmem>>, vector<8x8x16xbf16>,
    %c0_31 = arith.constant 0 : index
    %c0_32 = arith.constant 0 : index
    %c0_33 = arith.constant 0 : index
    %33 = vector.load %arg12[%c0_31, %c0_32, %c0_33] : memref<10x10x16xbf16, #tpu.memory_space<vmem>>, vector<8x8x16xbf16>
    %34 = vector.shape_cast %33 : vector<8x8x16xbf16> to vector<64x16xbf16>
    %c0_34 = arith.constant 0 : index
    %c0_35 = arith.constant 0 : index
    %c0_36 = arith.constant 0 : index
    %35 = vector.load %arg7[%c0_34, %c0_35, %c0_36] : memref<9x16x4xbf16, #tpu.memory_space<vmem>>, vector<1x16x4xbf16>
    %36 = vector.shape_cast %35 : vector<1x16x4xbf16> to vector<16x4xbf16>
    %cst_37 = arith.constant dense<0.000000e+00> : vector<64x4xf32>
    %37 = tpu.matmul %34, %36, %cst_37 {dimension_numbers = #tpu.dot_dimension_numbers<[1], [0], [0], [1], [0, 0, 1, 1], [], []>} : vector<64x16xbf16>, vector<16x4xbf16>, vector<64x4xf32> -> vector<64x4xf32>
    %c0_38 = arith.constant 0 : index
    %c1_39 = arith.constant 1 : index
    %c0_40 = arith.constant 0 : index
    %38 = vector.load %arg12[%c0_38, %c1_39, %c0_40] : memref<10x10x16xbf16, #tpu.memory_space<vmem>>, vector<8x8x16xbf16>
    %39 = vector.shape_cast %38 : vector<8x8x16xbf16> to vector<64x16xbf16>
    %c1_41 = arith.constant 1 : index
    %c0_42 = arith.constant 0 : index
    %c0_43 = arith.constant 0 : index
    %40 = vector.load %arg7[%c1_41, %c0_42, %c0_43] : memref<9x16x4xbf16, #tpu.memory_space<vmem>>, vector<1x16x4xbf16>
    %41 = vector.shape_cast %40 : vector<1x16x4xbf16> to vector<16x4xbf16>
    %cst_44 = arith.constant dense<0.000000e+00> : vector<64x4xf32>
    %42 = tpu.matmul %39, %41, %cst_44 {dimension_numbers = #tpu.dot_dimension_numbers<[1], [0], [0], [1], [0, 0, 1, 1], [], []>} : vector<64x16xbf16>, vector<16x4xbf16>, vector<64x4xf32> -> vector<64x4xf32>
    %43 = arith.addf %37, %42 : vector<64x4xf32>
    %c0_45 = arith.constant 0 : index
    %c2 = arith.constant 2 : index
    %c0_46 = arith.constant 0 : index
    %44 = vector.load %arg12[%c0_45, %c2, %c0_46] : memref<10x10x16xbf16, #tpu.memory_space<vmem>>, vector<8x8x16xbf16>
    %45 = vector.shape_cast %44 : vector<8x8x16xbf16> to vector<64x16xbf16>
    %c2_47 = arith.constant 2 : index
    %c0_48 = arith.constant 0 : index
    %c0_49 = arith.constant 0 : index
    %46 = vector.load %arg7[%c2_47, %c0_48, %c0_49] : memref<9x16x4xbf16, #tpu.memory_space<vmem>>, vector<1x16x4xbf16>
    %47 = vector.shape_cast %46 : vector<1x16x4xbf16> to vector<16x4xbf16>
    %cst_50 = arith.constant dense<0.000000e+00> : vector<64x4xf32>
    %48 = tpu.matmul %45, %47, %cst_50 {dimension_numbers = #tpu.dot_dimension_numbers<[1], [0], [0], [1], [0, 0, 1, 1], [], []>} : vector<64x16xbf16>, vector<16x4xbf16>, vector<64x4xf32> -> vector<64x4xf32>
    %49 = arith.addf %43, %48 : vector<64x4xf32>
    %c1_51 = arith.constant 1 : index
    %c0_52 = arith.constant 0 : index
    %c0_53 = arith.constant 0 : index
    %50 = vector.load %arg12[%c1_51, %c0_52, %c0_53] : memref<10x10x16xbf16, #tpu.memory_space<vmem>>, vector<8x8x16xbf16>
    %51 = vector.shape_cast %50 : vector<8x8x16xbf16> to vector<64x16xbf16>
    %c3 = arith.constant 3 : index
    %c0_54 = arith.constant 0 : index
    %c0_55 = arith.constant 0 : index
    %52 = vector.load %arg7[%c3, %c0_54, %c0_55] : memref<9x16x4xbf16, #tpu.memory_space<vmem>>, vector<1x16x4xbf16>
    %53 = vector.shape_cast %52 : vector<1x16x4xbf16> to vector<16x4xbf16>
    %cst_56 = arith.constant dense<0.000000e+00> : vector<64x4xf32>
    %54 = tpu.matmul %51, %53, %cst_56 {dimension_numbers = #tpu.dot_dimension_numbers<[1], [0], [0], [1], [0, 0, 1, 1], [], []>} : vector<64x16xbf16>, vector<16x4xbf16>, vector<64x4xf32> -> vector<64x4xf32>
    %55 = arith.addf %49, %54 : vector<64x4xf32>
    %c1_57 = arith.constant 1 : index
    %c1_58 = arith.constant 1 : index
    %c0_59 = arith.constant 0 : index
    %56 = vector.load %arg12[%c1_57, %c1_58, %c0_59] : memref<10x10x16xbf16, #tpu.memory_space<vmem>>, vector<8x8x16xbf16>
    %57 = vector.shape_cast %56 : vector<8x8x16xbf16> to vector<64x16xbf16>
    %c4 = arith.constant 4 : index
    %c0_60 = arith.constant 0 : index
    %c0_61 = arith.constant 0 : index
    %58 = vector.load %arg7[%c4, %c0_60, %c0_61] : memref<9x16x4xbf16, #tpu.memory_space<vmem>>, vector<1x16x4xbf16>
    %59 = vector.shape_cast %58 : vector<1x16x4xbf16> to vector<16x4xbf16>
    %cst_62 = arith.constant dense<0.000000e+00> : vector<64x4xf32>
    %60 = tpu.matmul %57, %59, %cst_62 {dimension_numbers = #tpu.dot_dimension_numbers<[1], [0], [0], [1], [0, 0, 1, 1], [], []>} : vector<64x16xbf16>, vector<16x4xbf16>, vector<64x4xf32> -> vector<64x4xf32>
    %61 = arith.addf %55, %60 : vector<64x4xf32>
    %c1_63 = arith.constant 1 : index
    %c2_64 = arith.constant 2 : index
    %c0_65 = arith.constant 0 : index
    %62 = vector.load %arg12[%c1_63, %c2_64, %c0_65] : memref<10x10x16xbf16, #tpu.memory_space<vmem>>, vector<8x8x16xbf16>
    %63 = vector.shape_cast %62 : vector<8x8x16xbf16> to vector<64x16xbf16>
    %c5 = arith.constant 5 : index
    %c0_66 = arith.constant 0 : index
    %c0_67 = arith.constant 0 : index
    %64 = vector.load %arg7[%c5, %c0_66, %c0_67] : memref<9x16x4xbf16, #tpu.memory_space<vmem>>, vector<1x16x4xbf16>
    %65 = vector.shape_cast %64 : vector<1x16x4xbf16> to vector<16x4xbf16>
    %cst_68 = arith.constant dense<0.000000e+00> : vector<64x4xf32>
    %66 = tpu.matmul %63, %65, %cst_68 {dimension_numbers = #tpu.dot_dimension_numbers<[1], [0], [0], [1], [0, 0, 1, 1], [], []>} : vector<64x16xbf16>, vector<16x4xbf16>, vector<64x4xf32> -> vector<64x4xf32>
    %67 = arith.addf %61, %66 : vector<64x4xf32>
    %c2_69 = arith.constant 2 : index
    %c0_70 = arith.constant 0 : index
    %c0_71 = arith.constant 0 : index
    %68 = vector.load %arg12[%c2_69, %c0_70, %c0_71] : memref<10x10x16xbf16, #tpu.memory_space<vmem>>, vector<8x8x16xbf16>
    %69 = vector.shape_cast %68 : vector<8x8x16xbf16> to vector<64x16xbf16>
    %c6 = arith.constant 6 : index
    %c0_72 = arith.constant 0 : index
    %c0_73 = arith.constant 0 : index
    %70 = vector.load %arg7[%c6, %c0_72, %c0_73] : memref<9x16x4xbf16, #tpu.memory_space<vmem>>, vector<1x16x4xbf16>
    %71 = vector.shape_cast %70 : vector<1x16x4xbf16> to vector<16x4xbf16>
    %cst_74 = arith.constant dense<0.000000e+00> : vector<64x4xf32>
    %72 = tpu.matmul %69, %71, %cst_74 {dimension_numbers = #tpu.dot_dimension_numbers<[1], [0], [0], [1], [0, 0, 1, 1], [], []>} : vector<64x16xbf16>, vector<16x4xbf16>, vector<64x4xf32> -> vector<64x4xf32>
    %73 = arith.addf %67, %72 : vector<64x4xf32>
    %c2_75 = arith.constant 2 : index
    %c1_76 = arith.constant 1 : index
    %c0_77 = arith.constant 0 : index
    %74 = vector.load %arg12[%c2_75, %c1_76, %c0_77] : memref<10x10x16xbf16, #tpu.memory_space<vmem>>, vector<8x8x16xbf16>
    %75 = vector.shape_cast %74 : vector<8x8x16xbf16> to vector<64x16xbf16>
    %c7 = arith.constant 7 : index
    %c0_78 = arith.constant 0 : index
    %c0_79 = arith.constant 0 : index
    %76 = vector.load %arg7[%c7, %c0_78, %c0_79] : memref<9x16x4xbf16, #tpu.memory_space<vmem>>, vector<1x16x4xbf16>
    %77 = vector.shape_cast %76 : vector<1x16x4xbf16> to vector<16x4xbf16>
    %cst_80 = arith.constant dense<0.000000e+00> : vector<64x4xf32>
    %78 = tpu.matmul %75, %77, %cst_80 {dimension_numbers = #tpu.dot_dimension_numbers<[1], [0], [0], [1], [0, 0, 1, 1], [], []>} : vector<64x16xbf16>, vector<16x4xbf16>, vector<64x4xf32> -> vector<64x4xf32>
    %79 = arith.addf %73, %78 : vector<64x4xf32>
    %c2_81 = arith.constant 2 : index
    %c2_82 = arith.constant 2 : index
    %c0_83 = arith.constant 0 : index
    %80 = vector.load %arg12[%c2_81, %c2_82, %c0_83] : memref<10x10x16xbf16, #tpu.memory_space<vmem>>, vector<8x8x16xbf16>
    %81 = vector.shape_cast %80 : vector<8x8x16xbf16> to vector<64x16xbf16>
    %c8 = arith.constant 8 : index
    %c0_84 = arith.constant 0 : index
    %c0_85 = arith.constant 0 : index
    %82 = vector.load %arg7[%c8, %c0_84, %c0_85] : memref<9x16x4xbf16, #tpu.memory_space<vmem>>, vector<1x16x4xbf16>
    %83 = vector.shape_cast %82 : vector<1x16x4xbf16> to vector<16x4xbf16>
    %cst_86 = arith.constant dense<0.000000e+00> : vector<64x4xf32>
    %84 = tpu.matmul %81, %83, %cst_86 {dimension_numbers = #tpu.dot_dimension_numbers<[1], [0], [0], [1], [0, 0, 1, 1], [], []>} : vector<64x16xbf16>, vector<16x4xbf16>, vector<64x4xf32> -> vector<64x4xf32>
    %85 = arith.addf %79, %84 : vector<64x4xf32>
    %86 = tpu.concatenate %10, %85 in 1 : vector<64x8xf32>, vector<64x4xf32> -> vector<64x12xf32>
    %87 = vector.shape_cast %86 : vector<64x12xf32> to vector<8x8x12xf32>
    %88 = vector.shape_cast %87 : vector<8x8x12xf32> to vector<4x2x8x12xf32>
    %89 = vector.extract_strided_slice %88 {offsets = [0, 0, 0, 0], sizes = [4, 1, 8, 12], strides = [1, 1, 1, 1]} : vector<4x2x8x12xf32> to vector<4x1x8x12xf32>
    %90 = vector.shape_cast %89 : vector<4x1x8x12xf32> to vector<4x8x12xf32>
    %91 = vector.extract_strided_slice %88 {offsets = [0, 1, 0, 0], sizes = [4, 1, 8, 12], strides = [1, 1, 1, 1]} : vector<4x2x8x12xf32> to vector<4x1x8x12xf32>
    %92 = vector.shape_cast %91 : vector<4x1x8x12xf32> to vector<4x8x12xf32>
    %93 = arith.addf %90, %92 : vector<4x8x12xf32>
    %94 = vector.shape_cast %93 : vector<4x8x12xf32> to vector<4x4x2x12xf32>
    %95 = vector.extract_strided_slice %94 {offsets = [0, 0, 0, 0], sizes = [4, 4, 1, 12], strides = [1, 1, 1, 1]} : vector<4x4x2x12xf32> to vector<4x4x1x12xf32>
    %96 = vector.shape_cast %95 : vector<4x4x1x12xf32> to vector<4x4x12xf32>
    %97 = vector.extract_strided_slice %94 {offsets = [0, 0, 1, 0], sizes = [4, 4, 1, 12], strides = [1, 1, 1, 1]} : vector<4x4x2x12xf32> to vector<4x4x1x12xf32>
    %98 = vector.shape_cast %97 : vector<4x4x1x12xf32> to vector<4x4x12xf32>
    %99 = arith.addf %96, %98 : vector<4x4x12xf32>
    %cst_87 = arith.constant 2.500000e-01 : f32
    %100 = vector.broadcast %cst_87 : f32 to vector<4x4x12xf32>
    %101 = arith.mulf %99, %100 : vector<4x4x12xf32>
    %102 = vector.shape_cast %101 : vector<4x4x12xf32> to vector<16x12xf32>
    %c0_88 = arith.constant 0 : index
    %c0_89 = arith.constant 0 : index
    %103 = vector.load %arg8[%c0_88, %c0_89] : memref<1x12xf32, #tpu.memory_space<vmem>>, vector<1x12xf32>
    %104 = vector.broadcast %103 : vector<1x12xf32> to vector<16x12xf32>
    %105 = arith.mulf %102, %104 : vector<16x12xf32>
    %c0_90 = arith.constant 0 : index
    %c0_91 = arith.constant 0 : index
    %106 = vector.load %arg9[%c0_90, %c0_91] : memref<1x12xf32, #tpu.memory_space<vmem>>, vector<1x12xf32>
    %107 = vector.broadcast %106 : vector<1x12xf32> to vector<16x12xf32>
    %108 = arith.addf %105, %107 : vector<16x12xf32>
    %109 = arith.truncf %108 : vector<16x12xf32> to vector<16x12xbf16>
    %c0_92 = arith.constant 0 : index
    %c0_93 = arith.constant 0 : index
    %110 = vector.load %arg10[%c0_92, %c0_93] : memref<12x6xbf16, #tpu.memory_space<vmem>>, vector<12x6xbf16>
    %cst_94 = arith.constant dense<0.000000e+00> : vector<16x6xf32>
    %111 = tpu.matmul %109, %110, %cst_94 {dimension_numbers = #tpu.dot_dimension_numbers<[1], [0], [0], [1], [0, 0, 1, 1], [], []>} : vector<16x12xbf16>, vector<12x6xbf16>, vector<16x6xf32> -> vector<16x6xf32>
    %112 = arith.truncf %111 : vector<16x6xf32> to vector<16x6xbf16>
    %c0_95 = arith.constant 0 : index
    %c0_96 = arith.constant 0 : index
    %c0_97 = arith.constant 0 : index
    %113 = vector.load %arg11[%c0_95, %c0_96, %c0_97] : memref<1x16x6xbf16, #tpu.memory_space<vmem>>, vector<1x16x6xbf16>
    %114 = vector.shape_cast %113 : vector<1x16x6xbf16> to vector<16x6xbf16>
    %115 = vector.shape_cast %112 : vector<16x6xbf16> to vector<1x16x6xbf16>
    tpu.vector_store %arg11[%c0_95, %c0_96, %c0_97], %115 {strides = array<i32>} : memref<1x16x6xbf16, #tpu.memory_space<vmem>>, vector<1x16x6xbf16>,
    return
  }
  func.func @transform_0(%arg0: i32) -> (i32, i32, i32) {
    %c0_i32 = arith.constant 0 : i32
    %c0_i32_0 = arith.constant 0 : i32
    %c0_i32_1 = arith.constant 0 : i32
    return %arg0, %c0_i32, %c0_i32_0 : i32, i32, i32
  }
  func.func @transform_1(%arg0: i32) -> (i32, i32) {
    %c0_i32 = arith.constant 0 : i32
    %c0_i32_0 = arith.constant 0 : i32
    %c0_i32_1 = arith.constant 0 : i32
    return %c0_i32, %c0_i32_0 : i32, i32
  }
  func.func @transform_2(%arg0: i32) -> (i32, i32) {
    %c0_i32 = arith.constant 0 : i32
    %c0_i32_0 = arith.constant 0 : i32
    %c0_i32_1 = arith.constant 0 : i32
    return %c0_i32, %c0_i32_0 : i32, i32
  }
  func.func @transform_3(%arg0: i32) -> (i32, i32) {
    %c0_i32 = arith.constant 0 : i32
    %c0_i32_0 = arith.constant 0 : i32
    %c0_i32_1 = arith.constant 0 : i32
    return %c0_i32, %c0_i32_0 : i32, i32
  }
  func.func @transform_4(%arg0: i32) -> (i32, i32) {
    %c0_i32 = arith.constant 0 : i32
    %c0_i32_0 = arith.constant 0 : i32
    %c0_i32_1 = arith.constant 0 : i32
    return %c0_i32, %c0_i32_0 : i32, i32
  }
  func.func @transform_5(%arg0: i32) -> (i32, i32) {
    %c0_i32 = arith.constant 0 : i32
    %c0_i32_0 = arith.constant 0 : i32
    %c0_i32_1 = arith.constant 0 : i32
    return %c0_i32, %c0_i32_0 : i32, i32
  }
  func.func @transform_6(%arg0: i32) -> (i32, i32, i32) {
    %c0_i32 = arith.constant 0 : i32
    %c0_i32_0 = arith.constant 0 : i32
    %c0_i32_1 = arith.constant 0 : i32
    %c0_i32_2 = arith.constant 0 : i32
    return %c0_i32, %c0_i32_0, %c0_i32_1 : i32, i32, i32
  }
  func.func @transform_7(%arg0: i32) -> (i32, i32) {
    %c0_i32 = arith.constant 0 : i32
    %c0_i32_0 = arith.constant 0 : i32
    %c0_i32_1 = arith.constant 0 : i32
    return %c0_i32, %c0_i32_0 : i32, i32
  }
  func.func @transform_8(%arg0: i32) -> (i32, i32) {
    %c0_i32 = arith.constant 0 : i32
    %c0_i32_0 = arith.constant 0 : i32
    %c0_i32_1 = arith.constant 0 : i32
    return %c0_i32, %c0_i32_0 : i32, i32
  }
  func.func @transform_9(%arg0: i32) -> (i32, i32) {
    %c0_i32 = arith.constant 0 : i32
    %c0_i32_0 = arith.constant 0 : i32
    %c0_i32_1 = arith.constant 0 : i32
    return %c0_i32, %c0_i32_0 : i32, i32
  }
  func.func @transform_10(%arg0: i32) -> (i32, i32, i32) {
    %c0_i32 = arith.constant 0 : i32
    %c0_i32_0 = arith.constant 0 : i32
    %c0_i32_1 = arith.constant 0 : i32
    return %arg0, %c0_i32, %c0_i32_0 : i32, i32, i32
  }
}

module attributes {stable_mosaic.version = 11 : i64} {
  func.func @kernel(%arg0: i32, %arg1: memref<1x16x6xbf16, #tpu.memory_space<vmem>>, %arg2: memref<1x6xf32, #tpu.memory_space<vmem>>, %arg3: memref<1x6xf32, #tpu.memory_space<vmem>>, %arg4: memref<6x16xbf16, #tpu.memory_space<vmem>>, %arg5: memref<1x16xf32, #tpu.memory_space<vmem>>, %arg6: memref<1x16xf32, #tpu.memory_space<vmem>>, %arg7: memref<9x16x4xbf16, #tpu.memory_space<vmem>>, %arg8: memref<1x10xf32, #tpu.memory_space<vmem>>, %arg9: memref<1x10xf32, #tpu.memory_space<vmem>>, %arg10: memref<10x5xbf16, #tpu.memory_space<vmem>>, %arg11: memref<1x4x5xbf16, #tpu.memory_space<vmem>>, %arg12: memref<6x6x16xbf16, #tpu.memory_space<vmem>>) attributes {dimension_semantics = [#tpu.dimension_semantics<parallel>], iteration_bounds = array<i64: 2>, scalar_prefetch = 0 : i64, scratch_operands = 1 : i64, tpu.core_type = #tpu.core_type<tc>, window_params = [{transform_indices = @transform_0, window_bounds = array<i64: 1, 16, 6>}, {pipeline_mode = #tpu.pipeline_mode<synchronous>, transform_indices = @transform_1, window_bounds = array<i64: 1, 6>}, {pipeline_mode = #tpu.pipeline_mode<synchronous>, transform_indices = @transform_2, window_bounds = array<i64: 1, 6>}, {pipeline_mode = #tpu.pipeline_mode<synchronous>, transform_indices = @transform_3, window_bounds = array<i64: 6, 16>}, {pipeline_mode = #tpu.pipeline_mode<synchronous>, transform_indices = @transform_4, window_bounds = array<i64: 1, 16>}, {pipeline_mode = #tpu.pipeline_mode<synchronous>, transform_indices = @transform_5, window_bounds = array<i64: 1, 16>}, {pipeline_mode = #tpu.pipeline_mode<synchronous>, transform_indices = @transform_6, window_bounds = array<i64: 9, 16, 4>}, {pipeline_mode = #tpu.pipeline_mode<synchronous>, transform_indices = @transform_7, window_bounds = array<i64: 1, 10>}, {pipeline_mode = #tpu.pipeline_mode<synchronous>, transform_indices = @transform_8, window_bounds = array<i64: 1, 10>}, {pipeline_mode = #tpu.pipeline_mode<synchronous>, transform_indices = @transform_9, window_bounds = array<i64: 10, 5>}, {transform_indices = @transform_10, window_bounds = array<i64: 1, 4, 5>}]} {
    %cst = arith.constant 0.000000e+00 : bf16
    %0 = vector.broadcast %cst : bf16 to vector<1x6x16xbf16>
    %c0 = arith.constant 0 : index
    %c0_0 = arith.constant 0 : index
    %c0_1 = arith.constant 0 : index
    %1 = vector.load %arg12[%c0, %c0_0, %c0_1] : memref<6x6x16xbf16, #tpu.memory_space<vmem>>, vector<1x6x16xbf16>
    tpu.vector_store %arg12[%c0, %c0_0, %c0_1], %0 {strides = array<i32>} : memref<6x6x16xbf16, #tpu.memory_space<vmem>>, vector<1x6x16xbf16>,
    %cst_2 = arith.constant 0.000000e+00 : bf16
    %2 = vector.broadcast %cst_2 : bf16 to vector<1x6x16xbf16>
    %c5 = arith.constant 5 : index
    %c0_3 = arith.constant 0 : index
    %c0_4 = arith.constant 0 : index
    %3 = vector.load %arg12[%c5, %c0_3, %c0_4] : memref<6x6x16xbf16, #tpu.memory_space<vmem>>, vector<1x6x16xbf16>
    tpu.vector_store %arg12[%c5, %c0_3, %c0_4], %2 {strides = array<i32>} : memref<6x6x16xbf16, #tpu.memory_space<vmem>>, vector<1x6x16xbf16>,
    %cst_5 = arith.constant 0.000000e+00 : bf16
    %4 = vector.broadcast %cst_5 : bf16 to vector<6x1x16xbf16>
    %c0_6 = arith.constant 0 : index
    %c0_7 = arith.constant 0 : index
    %c0_8 = arith.constant 0 : index
    %5 = vector.load %arg12[%c0_6, %c0_7, %c0_8] : memref<6x6x16xbf16, #tpu.memory_space<vmem>>, vector<6x1x16xbf16>
    tpu.vector_store %arg12[%c0_6, %c0_7, %c0_8], %4 {strides = array<i32>} : memref<6x6x16xbf16, #tpu.memory_space<vmem>>, vector<6x1x16xbf16>,
    %cst_9 = arith.constant 0.000000e+00 : bf16
    %6 = vector.broadcast %cst_9 : bf16 to vector<6x1x16xbf16>
    %c0_10 = arith.constant 0 : index
    %c5_11 = arith.constant 5 : index
    %c0_12 = arith.constant 0 : index
    %7 = vector.load %arg12[%c0_10, %c5_11, %c0_12] : memref<6x6x16xbf16, #tpu.memory_space<vmem>>, vector<6x1x16xbf16>
    tpu.vector_store %arg12[%c0_10, %c5_11, %c0_12], %6 {strides = array<i32>} : memref<6x6x16xbf16, #tpu.memory_space<vmem>>, vector<6x1x16xbf16>,
    %c0_13 = arith.constant 0 : index
    %c0_14 = arith.constant 0 : index
    %c0_15 = arith.constant 0 : index
    %8 = vector.load %arg1[%c0_13, %c0_14, %c0_15] : memref<1x16x6xbf16, #tpu.memory_space<vmem>>, vector<1x16x6xbf16>
    %9 = vector.shape_cast %8 : vector<1x16x6xbf16> to vector<16x6xbf16>
    %10 = arith.extf %9 : vector<16x6xbf16> to vector<16x6xf32>
    %c0_16 = arith.constant 0 : index
    %c0_17 = arith.constant 0 : index
    %11 = vector.load %arg2[%c0_16, %c0_17] : memref<1x6xf32, #tpu.memory_space<vmem>>, vector<1x6xf32>
    %12 = vector.broadcast %11 : vector<1x6xf32> to vector<16x6xf32>
    %13 = arith.mulf %10, %12 : vector<16x6xf32>
    %c0_18 = arith.constant 0 : index
    %c0_19 = arith.constant 0 : index
    %14 = vector.load %arg3[%c0_18, %c0_19] : memref<1x6xf32, #tpu.memory_space<vmem>>, vector<1x6xf32>
    %15 = vector.broadcast %14 : vector<1x6xf32> to vector<16x6xf32>
    %16 = arith.addf %13, %15 : vector<16x6xf32>
    %cst_20 = arith.constant 0.000000e+00 : f32
    %17 = vector.broadcast %cst_20 : f32 to vector<16x6xf32>
    %18 = arith.maximumf %16, %17 : vector<16x6xf32>
    %19 = arith.truncf %18 : vector<16x6xf32> to vector<16x6xbf16>
    %c0_21 = arith.constant 0 : index
    %c0_22 = arith.constant 0 : index
    %20 = vector.load %arg4[%c0_21, %c0_22] : memref<6x16xbf16, #tpu.memory_space<vmem>>, vector<6x16xbf16>
    %cst_23 = arith.constant dense<0.000000e+00> : vector<16x16xf32>
    %21 = tpu.matmul %19, %20, %cst_23 {dimension_numbers = #tpu.dot_dimension_numbers<[1], [0], [0], [1], [0, 0, 1, 1], [], []>} : vector<16x6xbf16>, vector<6x16xbf16>, vector<16x16xf32> -> vector<16x16xf32>
    %c0_24 = arith.constant 0 : index
    %c0_25 = arith.constant 0 : index
    %22 = vector.load %arg5[%c0_24, %c0_25] : memref<1x16xf32, #tpu.memory_space<vmem>>, vector<1x16xf32>
    %23 = vector.broadcast %22 : vector<1x16xf32> to vector<16x16xf32>
    %24 = arith.mulf %21, %23 : vector<16x16xf32>
    %c0_26 = arith.constant 0 : index
    %c0_27 = arith.constant 0 : index
    %25 = vector.load %arg6[%c0_26, %c0_27] : memref<1x16xf32, #tpu.memory_space<vmem>>, vector<1x16xf32>
    %26 = vector.broadcast %25 : vector<1x16xf32> to vector<16x16xf32>
    %27 = arith.addf %24, %26 : vector<16x16xf32>
    %cst_28 = arith.constant 0.000000e+00 : f32
    %28 = vector.broadcast %cst_28 : f32 to vector<16x16xf32>
    %29 = arith.maximumf %27, %28 : vector<16x16xf32>
    %30 = vector.shape_cast %29 : vector<16x16xf32> to vector<4x4x16xf32>
    %31 = arith.truncf %30 : vector<4x4x16xf32> to vector<4x4x16xbf16>
    %c1 = arith.constant 1 : index
    %c1_29 = arith.constant 1 : index
    %c0_30 = arith.constant 0 : index
    %32 = vector.load %arg12[%c1, %c1_29, %c0_30] : memref<6x6x16xbf16, #tpu.memory_space<vmem>>, vector<4x4x16xbf16>
    tpu.vector_store %arg12[%c1, %c1_29, %c0_30], %31 {strides = array<i32>} : memref<6x6x16xbf16, #tpu.memory_space<vmem>>, vector<4x4x16xbf16>,
    %c0_31 = arith.constant 0 : index
    %c0_32 = arith.constant 0 : index
    %c0_33 = arith.constant 0 : index
    %33 = vector.load %arg12[%c0_31, %c0_32, %c0_33] : memref<6x6x16xbf16, #tpu.memory_space<vmem>>, vector<4x4x16xbf16>
    %34 = vector.shape_cast %33 : vector<4x4x16xbf16> to vector<16x16xbf16>
    %c0_34 = arith.constant 0 : index
    %c0_35 = arith.constant 0 : index
    %c0_36 = arith.constant 0 : index
    %35 = vector.load %arg7[%c0_34, %c0_35, %c0_36] : memref<9x16x4xbf16, #tpu.memory_space<vmem>>, vector<1x16x4xbf16>
    %36 = vector.shape_cast %35 : vector<1x16x4xbf16> to vector<16x4xbf16>
    %cst_37 = arith.constant dense<0.000000e+00> : vector<16x4xf32>
    %37 = tpu.matmul %34, %36, %cst_37 {dimension_numbers = #tpu.dot_dimension_numbers<[1], [0], [0], [1], [0, 0, 1, 1], [], []>} : vector<16x16xbf16>, vector<16x4xbf16>, vector<16x4xf32> -> vector<16x4xf32>
    %c0_38 = arith.constant 0 : index
    %c1_39 = arith.constant 1 : index
    %c0_40 = arith.constant 0 : index
    %38 = vector.load %arg12[%c0_38, %c1_39, %c0_40] : memref<6x6x16xbf16, #tpu.memory_space<vmem>>, vector<4x4x16xbf16>
    %39 = vector.shape_cast %38 : vector<4x4x16xbf16> to vector<16x16xbf16>
    %c1_41 = arith.constant 1 : index
    %c0_42 = arith.constant 0 : index
    %c0_43 = arith.constant 0 : index
    %40 = vector.load %arg7[%c1_41, %c0_42, %c0_43] : memref<9x16x4xbf16, #tpu.memory_space<vmem>>, vector<1x16x4xbf16>
    %41 = vector.shape_cast %40 : vector<1x16x4xbf16> to vector<16x4xbf16>
    %cst_44 = arith.constant dense<0.000000e+00> : vector<16x4xf32>
    %42 = tpu.matmul %39, %41, %cst_44 {dimension_numbers = #tpu.dot_dimension_numbers<[1], [0], [0], [1], [0, 0, 1, 1], [], []>} : vector<16x16xbf16>, vector<16x4xbf16>, vector<16x4xf32> -> vector<16x4xf32>
    %43 = arith.addf %37, %42 : vector<16x4xf32>
    %c0_45 = arith.constant 0 : index
    %c2 = arith.constant 2 : index
    %c0_46 = arith.constant 0 : index
    %44 = vector.load %arg12[%c0_45, %c2, %c0_46] : memref<6x6x16xbf16, #tpu.memory_space<vmem>>, vector<4x4x16xbf16>
    %45 = vector.shape_cast %44 : vector<4x4x16xbf16> to vector<16x16xbf16>
    %c2_47 = arith.constant 2 : index
    %c0_48 = arith.constant 0 : index
    %c0_49 = arith.constant 0 : index
    %46 = vector.load %arg7[%c2_47, %c0_48, %c0_49] : memref<9x16x4xbf16, #tpu.memory_space<vmem>>, vector<1x16x4xbf16>
    %47 = vector.shape_cast %46 : vector<1x16x4xbf16> to vector<16x4xbf16>
    %cst_50 = arith.constant dense<0.000000e+00> : vector<16x4xf32>
    %48 = tpu.matmul %45, %47, %cst_50 {dimension_numbers = #tpu.dot_dimension_numbers<[1], [0], [0], [1], [0, 0, 1, 1], [], []>} : vector<16x16xbf16>, vector<16x4xbf16>, vector<16x4xf32> -> vector<16x4xf32>
    %49 = arith.addf %43, %48 : vector<16x4xf32>
    %c1_51 = arith.constant 1 : index
    %c0_52 = arith.constant 0 : index
    %c0_53 = arith.constant 0 : index
    %50 = vector.load %arg12[%c1_51, %c0_52, %c0_53] : memref<6x6x16xbf16, #tpu.memory_space<vmem>>, vector<4x4x16xbf16>
    %51 = vector.shape_cast %50 : vector<4x4x16xbf16> to vector<16x16xbf16>
    %c3 = arith.constant 3 : index
    %c0_54 = arith.constant 0 : index
    %c0_55 = arith.constant 0 : index
    %52 = vector.load %arg7[%c3, %c0_54, %c0_55] : memref<9x16x4xbf16, #tpu.memory_space<vmem>>, vector<1x16x4xbf16>
    %53 = vector.shape_cast %52 : vector<1x16x4xbf16> to vector<16x4xbf16>
    %cst_56 = arith.constant dense<0.000000e+00> : vector<16x4xf32>
    %54 = tpu.matmul %51, %53, %cst_56 {dimension_numbers = #tpu.dot_dimension_numbers<[1], [0], [0], [1], [0, 0, 1, 1], [], []>} : vector<16x16xbf16>, vector<16x4xbf16>, vector<16x4xf32> -> vector<16x4xf32>
    %55 = arith.addf %49, %54 : vector<16x4xf32>
    %c1_57 = arith.constant 1 : index
    %c1_58 = arith.constant 1 : index
    %c0_59 = arith.constant 0 : index
    %56 = vector.load %arg12[%c1_57, %c1_58, %c0_59] : memref<6x6x16xbf16, #tpu.memory_space<vmem>>, vector<4x4x16xbf16>
    %57 = vector.shape_cast %56 : vector<4x4x16xbf16> to vector<16x16xbf16>
    %c4 = arith.constant 4 : index
    %c0_60 = arith.constant 0 : index
    %c0_61 = arith.constant 0 : index
    %58 = vector.load %arg7[%c4, %c0_60, %c0_61] : memref<9x16x4xbf16, #tpu.memory_space<vmem>>, vector<1x16x4xbf16>
    %59 = vector.shape_cast %58 : vector<1x16x4xbf16> to vector<16x4xbf16>
    %cst_62 = arith.constant dense<0.000000e+00> : vector<16x4xf32>
    %60 = tpu.matmul %57, %59, %cst_62 {dimension_numbers = #tpu.dot_dimension_numbers<[1], [0], [0], [1], [0, 0, 1, 1], [], []>} : vector<16x16xbf16>, vector<16x4xbf16>, vector<16x4xf32> -> vector<16x4xf32>
    %61 = arith.addf %55, %60 : vector<16x4xf32>
    %c1_63 = arith.constant 1 : index
    %c2_64 = arith.constant 2 : index
    %c0_65 = arith.constant 0 : index
    %62 = vector.load %arg12[%c1_63, %c2_64, %c0_65] : memref<6x6x16xbf16, #tpu.memory_space<vmem>>, vector<4x4x16xbf16>
    %63 = vector.shape_cast %62 : vector<4x4x16xbf16> to vector<16x16xbf16>
    %c5_66 = arith.constant 5 : index
    %c0_67 = arith.constant 0 : index
    %c0_68 = arith.constant 0 : index
    %64 = vector.load %arg7[%c5_66, %c0_67, %c0_68] : memref<9x16x4xbf16, #tpu.memory_space<vmem>>, vector<1x16x4xbf16>
    %65 = vector.shape_cast %64 : vector<1x16x4xbf16> to vector<16x4xbf16>
    %cst_69 = arith.constant dense<0.000000e+00> : vector<16x4xf32>
    %66 = tpu.matmul %63, %65, %cst_69 {dimension_numbers = #tpu.dot_dimension_numbers<[1], [0], [0], [1], [0, 0, 1, 1], [], []>} : vector<16x16xbf16>, vector<16x4xbf16>, vector<16x4xf32> -> vector<16x4xf32>
    %67 = arith.addf %61, %66 : vector<16x4xf32>
    %c2_70 = arith.constant 2 : index
    %c0_71 = arith.constant 0 : index
    %c0_72 = arith.constant 0 : index
    %68 = vector.load %arg12[%c2_70, %c0_71, %c0_72] : memref<6x6x16xbf16, #tpu.memory_space<vmem>>, vector<4x4x16xbf16>
    %69 = vector.shape_cast %68 : vector<4x4x16xbf16> to vector<16x16xbf16>
    %c6 = arith.constant 6 : index
    %c0_73 = arith.constant 0 : index
    %c0_74 = arith.constant 0 : index
    %70 = vector.load %arg7[%c6, %c0_73, %c0_74] : memref<9x16x4xbf16, #tpu.memory_space<vmem>>, vector<1x16x4xbf16>
    %71 = vector.shape_cast %70 : vector<1x16x4xbf16> to vector<16x4xbf16>
    %cst_75 = arith.constant dense<0.000000e+00> : vector<16x4xf32>
    %72 = tpu.matmul %69, %71, %cst_75 {dimension_numbers = #tpu.dot_dimension_numbers<[1], [0], [0], [1], [0, 0, 1, 1], [], []>} : vector<16x16xbf16>, vector<16x4xbf16>, vector<16x4xf32> -> vector<16x4xf32>
    %73 = arith.addf %67, %72 : vector<16x4xf32>
    %c2_76 = arith.constant 2 : index
    %c1_77 = arith.constant 1 : index
    %c0_78 = arith.constant 0 : index
    %74 = vector.load %arg12[%c2_76, %c1_77, %c0_78] : memref<6x6x16xbf16, #tpu.memory_space<vmem>>, vector<4x4x16xbf16>
    %75 = vector.shape_cast %74 : vector<4x4x16xbf16> to vector<16x16xbf16>
    %c7 = arith.constant 7 : index
    %c0_79 = arith.constant 0 : index
    %c0_80 = arith.constant 0 : index
    %76 = vector.load %arg7[%c7, %c0_79, %c0_80] : memref<9x16x4xbf16, #tpu.memory_space<vmem>>, vector<1x16x4xbf16>
    %77 = vector.shape_cast %76 : vector<1x16x4xbf16> to vector<16x4xbf16>
    %cst_81 = arith.constant dense<0.000000e+00> : vector<16x4xf32>
    %78 = tpu.matmul %75, %77, %cst_81 {dimension_numbers = #tpu.dot_dimension_numbers<[1], [0], [0], [1], [0, 0, 1, 1], [], []>} : vector<16x16xbf16>, vector<16x4xbf16>, vector<16x4xf32> -> vector<16x4xf32>
    %79 = arith.addf %73, %78 : vector<16x4xf32>
    %c2_82 = arith.constant 2 : index
    %c2_83 = arith.constant 2 : index
    %c0_84 = arith.constant 0 : index
    %80 = vector.load %arg12[%c2_82, %c2_83, %c0_84] : memref<6x6x16xbf16, #tpu.memory_space<vmem>>, vector<4x4x16xbf16>
    %81 = vector.shape_cast %80 : vector<4x4x16xbf16> to vector<16x16xbf16>
    %c8 = arith.constant 8 : index
    %c0_85 = arith.constant 0 : index
    %c0_86 = arith.constant 0 : index
    %82 = vector.load %arg7[%c8, %c0_85, %c0_86] : memref<9x16x4xbf16, #tpu.memory_space<vmem>>, vector<1x16x4xbf16>
    %83 = vector.shape_cast %82 : vector<1x16x4xbf16> to vector<16x4xbf16>
    %cst_87 = arith.constant dense<0.000000e+00> : vector<16x4xf32>
    %84 = tpu.matmul %81, %83, %cst_87 {dimension_numbers = #tpu.dot_dimension_numbers<[1], [0], [0], [1], [0, 0, 1, 1], [], []>} : vector<16x16xbf16>, vector<16x4xbf16>, vector<16x4xf32> -> vector<16x4xf32>
    %85 = arith.addf %79, %84 : vector<16x4xf32>
    %86 = tpu.concatenate %10, %85 in 1 : vector<16x6xf32>, vector<16x4xf32> -> vector<16x10xf32>
    %87 = vector.shape_cast %86 : vector<16x10xf32> to vector<4x4x10xf32>
    %88 = vector.shape_cast %87 : vector<4x4x10xf32> to vector<2x2x4x10xf32>
    %89 = vector.extract_strided_slice %88 {offsets = [0, 0, 0, 0], sizes = [2, 1, 4, 10], strides = [1, 1, 1, 1]} : vector<2x2x4x10xf32> to vector<2x1x4x10xf32>
    %90 = vector.shape_cast %89 : vector<2x1x4x10xf32> to vector<2x4x10xf32>
    %91 = vector.extract_strided_slice %88 {offsets = [0, 1, 0, 0], sizes = [2, 1, 4, 10], strides = [1, 1, 1, 1]} : vector<2x2x4x10xf32> to vector<2x1x4x10xf32>
    %92 = vector.shape_cast %91 : vector<2x1x4x10xf32> to vector<2x4x10xf32>
    %93 = arith.addf %90, %92 : vector<2x4x10xf32>
    %94 = vector.shape_cast %93 : vector<2x4x10xf32> to vector<2x2x2x10xf32>
    %95 = vector.extract_strided_slice %94 {offsets = [0, 0, 0, 0], sizes = [2, 2, 1, 10], strides = [1, 1, 1, 1]} : vector<2x2x2x10xf32> to vector<2x2x1x10xf32>
    %96 = vector.shape_cast %95 : vector<2x2x1x10xf32> to vector<2x2x10xf32>
    %97 = vector.extract_strided_slice %94 {offsets = [0, 0, 1, 0], sizes = [2, 2, 1, 10], strides = [1, 1, 1, 1]} : vector<2x2x2x10xf32> to vector<2x2x1x10xf32>
    %98 = vector.shape_cast %97 : vector<2x2x1x10xf32> to vector<2x2x10xf32>
    %99 = arith.addf %96, %98 : vector<2x2x10xf32>
    %cst_88 = arith.constant 2.500000e-01 : f32
    %100 = vector.broadcast %cst_88 : f32 to vector<2x2x10xf32>
    %101 = arith.mulf %99, %100 : vector<2x2x10xf32>
    %102 = vector.shape_cast %101 : vector<2x2x10xf32> to vector<4x10xf32>
    %c0_89 = arith.constant 0 : index
    %c0_90 = arith.constant 0 : index
    %103 = vector.load %arg8[%c0_89, %c0_90] : memref<1x10xf32, #tpu.memory_space<vmem>>, vector<1x10xf32>
    %104 = vector.broadcast %103 : vector<1x10xf32> to vector<4x10xf32>
    %105 = arith.mulf %102, %104 : vector<4x10xf32>
    %c0_91 = arith.constant 0 : index
    %c0_92 = arith.constant 0 : index
    %106 = vector.load %arg9[%c0_91, %c0_92] : memref<1x10xf32, #tpu.memory_space<vmem>>, vector<1x10xf32>
    %107 = vector.broadcast %106 : vector<1x10xf32> to vector<4x10xf32>
    %108 = arith.addf %105, %107 : vector<4x10xf32>
    %109 = arith.truncf %108 : vector<4x10xf32> to vector<4x10xbf16>
    %c0_93 = arith.constant 0 : index
    %c0_94 = arith.constant 0 : index
    %110 = vector.load %arg10[%c0_93, %c0_94] : memref<10x5xbf16, #tpu.memory_space<vmem>>, vector<10x5xbf16>
    %cst_95 = arith.constant dense<0.000000e+00> : vector<4x5xf32>
    %111 = tpu.matmul %109, %110, %cst_95 {dimension_numbers = #tpu.dot_dimension_numbers<[1], [0], [0], [1], [0, 0, 1, 1], [], []>} : vector<4x10xbf16>, vector<10x5xbf16>, vector<4x5xf32> -> vector<4x5xf32>
    %112 = arith.truncf %111 : vector<4x5xf32> to vector<4x5xbf16>
    %c0_96 = arith.constant 0 : index
    %c0_97 = arith.constant 0 : index
    %c0_98 = arith.constant 0 : index
    %113 = vector.load %arg11[%c0_96, %c0_97, %c0_98] : memref<1x4x5xbf16, #tpu.memory_space<vmem>>, vector<1x4x5xbf16>
    %114 = vector.shape_cast %113 : vector<1x4x5xbf16> to vector<4x5xbf16>
    %115 = vector.shape_cast %112 : vector<4x5xbf16> to vector<1x4x5xbf16>
    tpu.vector_store %arg11[%c0_96, %c0_97, %c0_98], %115 {strides = array<i32>} : memref<1x4x5xbf16, #tpu.memory_space<vmem>>, vector<1x4x5xbf16>,
    return
  }
  func.func @transform_0(%arg0: i32) -> (i32, i32, i32) {
    %c0_i32 = arith.constant 0 : i32
    %c0_i32_0 = arith.constant 0 : i32
    %c0_i32_1 = arith.constant 0 : i32
    return %arg0, %c0_i32, %c0_i32_0 : i32, i32, i32
  }
  func.func @transform_1(%arg0: i32) -> (i32, i32) {
    %c0_i32 = arith.constant 0 : i32
    %c0_i32_0 = arith.constant 0 : i32
    %c0_i32_1 = arith.constant 0 : i32
    return %c0_i32, %c0_i32_0 : i32, i32
  }
  func.func @transform_2(%arg0: i32) -> (i32, i32) {
    %c0_i32 = arith.constant 0 : i32
    %c0_i32_0 = arith.constant 0 : i32
    %c0_i32_1 = arith.constant 0 : i32
    return %c0_i32, %c0_i32_0 : i32, i32
  }
  func.func @transform_3(%arg0: i32) -> (i32, i32) {
    %c0_i32 = arith.constant 0 : i32
    %c0_i32_0 = arith.constant 0 : i32
    %c0_i32_1 = arith.constant 0 : i32
    return %c0_i32, %c0_i32_0 : i32, i32
  }
  func.func @transform_4(%arg0: i32) -> (i32, i32) {
    %c0_i32 = arith.constant 0 : i32
    %c0_i32_0 = arith.constant 0 : i32
    %c0_i32_1 = arith.constant 0 : i32
    return %c0_i32, %c0_i32_0 : i32, i32
  }
  func.func @transform_5(%arg0: i32) -> (i32, i32) {
    %c0_i32 = arith.constant 0 : i32
    %c0_i32_0 = arith.constant 0 : i32
    %c0_i32_1 = arith.constant 0 : i32
    return %c0_i32, %c0_i32_0 : i32, i32
  }
  func.func @transform_6(%arg0: i32) -> (i32, i32, i32) {
    %c0_i32 = arith.constant 0 : i32
    %c0_i32_0 = arith.constant 0 : i32
    %c0_i32_1 = arith.constant 0 : i32
    %c0_i32_2 = arith.constant 0 : i32
    return %c0_i32, %c0_i32_0, %c0_i32_1 : i32, i32, i32
  }
  func.func @transform_7(%arg0: i32) -> (i32, i32) {
    %c0_i32 = arith.constant 0 : i32
    %c0_i32_0 = arith.constant 0 : i32
    %c0_i32_1 = arith.constant 0 : i32
    return %c0_i32, %c0_i32_0 : i32, i32
  }
  func.func @transform_8(%arg0: i32) -> (i32, i32) {
    %c0_i32 = arith.constant 0 : i32
    %c0_i32_0 = arith.constant 0 : i32
    %c0_i32_1 = arith.constant 0 : i32
    return %c0_i32, %c0_i32_0 : i32, i32
  }
  func.func @transform_9(%arg0: i32) -> (i32, i32) {
    %c0_i32 = arith.constant 0 : i32
    %c0_i32_0 = arith.constant 0 : i32
    %c0_i32_1 = arith.constant 0 : i32
    return %c0_i32, %c0_i32_0 : i32, i32
  }
  func.func @transform_10(%arg0: i32) -> (i32, i32, i32) {
    %c0_i32 = arith.constant 0 : i32
    %c0_i32_0 = arith.constant 0 : i32
    %c0_i32_1 = arith.constant 0 : i32
    return %arg0, %c0_i32, %c0_i32_0 : i32, i32, i32
  }
}

module attributes {stable_mosaic.version = 11 : i64} {
  func.func @kernel(%arg0: i32, %arg1: memref<1x4x5xbf16, #tpu.memory_space<vmem>>, %arg2: memref<1x5xf32, #tpu.memory_space<vmem>>, %arg3: memref<1x5xf32, #tpu.memory_space<vmem>>, %arg4: memref<5x16xbf16, #tpu.memory_space<vmem>>, %arg5: memref<1x16xf32, #tpu.memory_space<vmem>>, %arg6: memref<1x16xf32, #tpu.memory_space<vmem>>, %arg7: memref<9x16x4xbf16, #tpu.memory_space<vmem>>, %arg8: memref<1x9xf32, #tpu.memory_space<vmem>>, %arg9: memref<1x9xf32, #tpu.memory_space<vmem>>, %arg10: memref<9x4xbf16, #tpu.memory_space<vmem>>, %arg11: memref<1x1x4xbf16, #tpu.memory_space<vmem>>, %arg12: memref<4x4x16xbf16, #tpu.memory_space<vmem>>) attributes {dimension_semantics = [#tpu.dimension_semantics<parallel>], iteration_bounds = array<i64: 2>, scalar_prefetch = 0 : i64, scratch_operands = 1 : i64, tpu.core_type = #tpu.core_type<tc>, window_params = [{transform_indices = @transform_0, window_bounds = array<i64: 1, 4, 5>}, {pipeline_mode = #tpu.pipeline_mode<synchronous>, transform_indices = @transform_1, window_bounds = array<i64: 1, 5>}, {pipeline_mode = #tpu.pipeline_mode<synchronous>, transform_indices = @transform_2, window_bounds = array<i64: 1, 5>}, {pipeline_mode = #tpu.pipeline_mode<synchronous>, transform_indices = @transform_3, window_bounds = array<i64: 5, 16>}, {pipeline_mode = #tpu.pipeline_mode<synchronous>, transform_indices = @transform_4, window_bounds = array<i64: 1, 16>}, {pipeline_mode = #tpu.pipeline_mode<synchronous>, transform_indices = @transform_5, window_bounds = array<i64: 1, 16>}, {pipeline_mode = #tpu.pipeline_mode<synchronous>, transform_indices = @transform_6, window_bounds = array<i64: 9, 16, 4>}, {pipeline_mode = #tpu.pipeline_mode<synchronous>, transform_indices = @transform_7, window_bounds = array<i64: 1, 9>}, {pipeline_mode = #tpu.pipeline_mode<synchronous>, transform_indices = @transform_8, window_bounds = array<i64: 1, 9>}, {pipeline_mode = #tpu.pipeline_mode<synchronous>, transform_indices = @transform_9, window_bounds = array<i64: 9, 4>}, {transform_indices = @transform_10, window_bounds = array<i64: 1, 1, 4>}]} {
    %cst = arith.constant 0.000000e+00 : bf16
    %0 = vector.broadcast %cst : bf16 to vector<1x4x16xbf16>
    %c0 = arith.constant 0 : index
    %c0_0 = arith.constant 0 : index
    %c0_1 = arith.constant 0 : index
    %1 = vector.load %arg12[%c0, %c0_0, %c0_1] : memref<4x4x16xbf16, #tpu.memory_space<vmem>>, vector<1x4x16xbf16>
    tpu.vector_store %arg12[%c0, %c0_0, %c0_1], %0 {strides = array<i32>} : memref<4x4x16xbf16, #tpu.memory_space<vmem>>, vector<1x4x16xbf16>,
    %cst_2 = arith.constant 0.000000e+00 : bf16
    %2 = vector.broadcast %cst_2 : bf16 to vector<1x4x16xbf16>
    %c3 = arith.constant 3 : index
    %c0_3 = arith.constant 0 : index
    %c0_4 = arith.constant 0 : index
    %3 = vector.load %arg12[%c3, %c0_3, %c0_4] : memref<4x4x16xbf16, #tpu.memory_space<vmem>>, vector<1x4x16xbf16>
    tpu.vector_store %arg12[%c3, %c0_3, %c0_4], %2 {strides = array<i32>} : memref<4x4x16xbf16, #tpu.memory_space<vmem>>, vector<1x4x16xbf16>,
    %cst_5 = arith.constant 0.000000e+00 : bf16
    %4 = vector.broadcast %cst_5 : bf16 to vector<4x1x16xbf16>
    %c0_6 = arith.constant 0 : index
    %c0_7 = arith.constant 0 : index
    %c0_8 = arith.constant 0 : index
    %5 = vector.load %arg12[%c0_6, %c0_7, %c0_8] : memref<4x4x16xbf16, #tpu.memory_space<vmem>>, vector<4x1x16xbf16>
    tpu.vector_store %arg12[%c0_6, %c0_7, %c0_8], %4 {strides = array<i32>} : memref<4x4x16xbf16, #tpu.memory_space<vmem>>, vector<4x1x16xbf16>,
    %cst_9 = arith.constant 0.000000e+00 : bf16
    %6 = vector.broadcast %cst_9 : bf16 to vector<4x1x16xbf16>
    %c0_10 = arith.constant 0 : index
    %c3_11 = arith.constant 3 : index
    %c0_12 = arith.constant 0 : index
    %7 = vector.load %arg12[%c0_10, %c3_11, %c0_12] : memref<4x4x16xbf16, #tpu.memory_space<vmem>>, vector<4x1x16xbf16>
    tpu.vector_store %arg12[%c0_10, %c3_11, %c0_12], %6 {strides = array<i32>} : memref<4x4x16xbf16, #tpu.memory_space<vmem>>, vector<4x1x16xbf16>,
    %c0_13 = arith.constant 0 : index
    %c0_14 = arith.constant 0 : index
    %c0_15 = arith.constant 0 : index
    %8 = vector.load %arg1[%c0_13, %c0_14, %c0_15] : memref<1x4x5xbf16, #tpu.memory_space<vmem>>, vector<1x4x5xbf16>
    %9 = vector.shape_cast %8 : vector<1x4x5xbf16> to vector<4x5xbf16>
    %10 = arith.extf %9 : vector<4x5xbf16> to vector<4x5xf32>
    %c0_16 = arith.constant 0 : index
    %c0_17 = arith.constant 0 : index
    %11 = vector.load %arg2[%c0_16, %c0_17] : memref<1x5xf32, #tpu.memory_space<vmem>>, vector<1x5xf32>
    %12 = vector.broadcast %11 : vector<1x5xf32> to vector<4x5xf32>
    %13 = arith.mulf %10, %12 : vector<4x5xf32>
    %c0_18 = arith.constant 0 : index
    %c0_19 = arith.constant 0 : index
    %14 = vector.load %arg3[%c0_18, %c0_19] : memref<1x5xf32, #tpu.memory_space<vmem>>, vector<1x5xf32>
    %15 = vector.broadcast %14 : vector<1x5xf32> to vector<4x5xf32>
    %16 = arith.addf %13, %15 : vector<4x5xf32>
    %cst_20 = arith.constant 0.000000e+00 : f32
    %17 = vector.broadcast %cst_20 : f32 to vector<4x5xf32>
    %18 = arith.maximumf %16, %17 : vector<4x5xf32>
    %19 = arith.truncf %18 : vector<4x5xf32> to vector<4x5xbf16>
    %c0_21 = arith.constant 0 : index
    %c0_22 = arith.constant 0 : index
    %20 = vector.load %arg4[%c0_21, %c0_22] : memref<5x16xbf16, #tpu.memory_space<vmem>>, vector<5x16xbf16>
    %cst_23 = arith.constant dense<0.000000e+00> : vector<4x16xf32>
    %21 = tpu.matmul %19, %20, %cst_23 {dimension_numbers = #tpu.dot_dimension_numbers<[1], [0], [0], [1], [0, 0, 1, 1], [], []>} : vector<4x5xbf16>, vector<5x16xbf16>, vector<4x16xf32> -> vector<4x16xf32>
    %c0_24 = arith.constant 0 : index
    %c0_25 = arith.constant 0 : index
    %22 = vector.load %arg5[%c0_24, %c0_25] : memref<1x16xf32, #tpu.memory_space<vmem>>, vector<1x16xf32>
    %23 = vector.broadcast %22 : vector<1x16xf32> to vector<4x16xf32>
    %24 = arith.mulf %21, %23 : vector<4x16xf32>
    %c0_26 = arith.constant 0 : index
    %c0_27 = arith.constant 0 : index
    %25 = vector.load %arg6[%c0_26, %c0_27] : memref<1x16xf32, #tpu.memory_space<vmem>>, vector<1x16xf32>
    %26 = vector.broadcast %25 : vector<1x16xf32> to vector<4x16xf32>
    %27 = arith.addf %24, %26 : vector<4x16xf32>
    %cst_28 = arith.constant 0.000000e+00 : f32
    %28 = vector.broadcast %cst_28 : f32 to vector<4x16xf32>
    %29 = arith.maximumf %27, %28 : vector<4x16xf32>
    %30 = vector.shape_cast %29 : vector<4x16xf32> to vector<2x2x16xf32>
    %31 = arith.truncf %30 : vector<2x2x16xf32> to vector<2x2x16xbf16>
    %c1 = arith.constant 1 : index
    %c1_29 = arith.constant 1 : index
    %c0_30 = arith.constant 0 : index
    %32 = vector.load %arg12[%c1, %c1_29, %c0_30] : memref<4x4x16xbf16, #tpu.memory_space<vmem>>, vector<2x2x16xbf16>
    tpu.vector_store %arg12[%c1, %c1_29, %c0_30], %31 {strides = array<i32>} : memref<4x4x16xbf16, #tpu.memory_space<vmem>>, vector<2x2x16xbf16>,
    %c0_31 = arith.constant 0 : index
    %c0_32 = arith.constant 0 : index
    %c0_33 = arith.constant 0 : index
    %33 = vector.load %arg12[%c0_31, %c0_32, %c0_33] : memref<4x4x16xbf16, #tpu.memory_space<vmem>>, vector<2x2x16xbf16>
    %34 = vector.shape_cast %33 : vector<2x2x16xbf16> to vector<4x16xbf16>
    %c0_34 = arith.constant 0 : index
    %c0_35 = arith.constant 0 : index
    %c0_36 = arith.constant 0 : index
    %35 = vector.load %arg7[%c0_34, %c0_35, %c0_36] : memref<9x16x4xbf16, #tpu.memory_space<vmem>>, vector<1x16x4xbf16>
    %36 = vector.shape_cast %35 : vector<1x16x4xbf16> to vector<16x4xbf16>
    %cst_37 = arith.constant dense<0.000000e+00> : vector<4x4xf32>
    %37 = tpu.matmul %34, %36, %cst_37 {dimension_numbers = #tpu.dot_dimension_numbers<[1], [0], [0], [1], [0, 0, 1, 1], [], []>} : vector<4x16xbf16>, vector<16x4xbf16>, vector<4x4xf32> -> vector<4x4xf32>
    %c0_38 = arith.constant 0 : index
    %c1_39 = arith.constant 1 : index
    %c0_40 = arith.constant 0 : index
    %38 = vector.load %arg12[%c0_38, %c1_39, %c0_40] : memref<4x4x16xbf16, #tpu.memory_space<vmem>>, vector<2x2x16xbf16>
    %39 = vector.shape_cast %38 : vector<2x2x16xbf16> to vector<4x16xbf16>
    %c1_41 = arith.constant 1 : index
    %c0_42 = arith.constant 0 : index
    %c0_43 = arith.constant 0 : index
    %40 = vector.load %arg7[%c1_41, %c0_42, %c0_43] : memref<9x16x4xbf16, #tpu.memory_space<vmem>>, vector<1x16x4xbf16>
    %41 = vector.shape_cast %40 : vector<1x16x4xbf16> to vector<16x4xbf16>
    %cst_44 = arith.constant dense<0.000000e+00> : vector<4x4xf32>
    %42 = tpu.matmul %39, %41, %cst_44 {dimension_numbers = #tpu.dot_dimension_numbers<[1], [0], [0], [1], [0, 0, 1, 1], [], []>} : vector<4x16xbf16>, vector<16x4xbf16>, vector<4x4xf32> -> vector<4x4xf32>
    %43 = arith.addf %37, %42 : vector<4x4xf32>
    %c0_45 = arith.constant 0 : index
    %c2 = arith.constant 2 : index
    %c0_46 = arith.constant 0 : index
    %44 = vector.load %arg12[%c0_45, %c2, %c0_46] : memref<4x4x16xbf16, #tpu.memory_space<vmem>>, vector<2x2x16xbf16>
    %45 = vector.shape_cast %44 : vector<2x2x16xbf16> to vector<4x16xbf16>
    %c2_47 = arith.constant 2 : index
    %c0_48 = arith.constant 0 : index
    %c0_49 = arith.constant 0 : index
    %46 = vector.load %arg7[%c2_47, %c0_48, %c0_49] : memref<9x16x4xbf16, #tpu.memory_space<vmem>>, vector<1x16x4xbf16>
    %47 = vector.shape_cast %46 : vector<1x16x4xbf16> to vector<16x4xbf16>
    %cst_50 = arith.constant dense<0.000000e+00> : vector<4x4xf32>
    %48 = tpu.matmul %45, %47, %cst_50 {dimension_numbers = #tpu.dot_dimension_numbers<[1], [0], [0], [1], [0, 0, 1, 1], [], []>} : vector<4x16xbf16>, vector<16x4xbf16>, vector<4x4xf32> -> vector<4x4xf32>
    %49 = arith.addf %43, %48 : vector<4x4xf32>
    %c1_51 = arith.constant 1 : index
    %c0_52 = arith.constant 0 : index
    %c0_53 = arith.constant 0 : index
    %50 = vector.load %arg12[%c1_51, %c0_52, %c0_53] : memref<4x4x16xbf16, #tpu.memory_space<vmem>>, vector<2x2x16xbf16>
    %51 = vector.shape_cast %50 : vector<2x2x16xbf16> to vector<4x16xbf16>
    %c3_54 = arith.constant 3 : index
    %c0_55 = arith.constant 0 : index
    %c0_56 = arith.constant 0 : index
    %52 = vector.load %arg7[%c3_54, %c0_55, %c0_56] : memref<9x16x4xbf16, #tpu.memory_space<vmem>>, vector<1x16x4xbf16>
    %53 = vector.shape_cast %52 : vector<1x16x4xbf16> to vector<16x4xbf16>
    %cst_57 = arith.constant dense<0.000000e+00> : vector<4x4xf32>
    %54 = tpu.matmul %51, %53, %cst_57 {dimension_numbers = #tpu.dot_dimension_numbers<[1], [0], [0], [1], [0, 0, 1, 1], [], []>} : vector<4x16xbf16>, vector<16x4xbf16>, vector<4x4xf32> -> vector<4x4xf32>
    %55 = arith.addf %49, %54 : vector<4x4xf32>
    %c1_58 = arith.constant 1 : index
    %c1_59 = arith.constant 1 : index
    %c0_60 = arith.constant 0 : index
    %56 = vector.load %arg12[%c1_58, %c1_59, %c0_60] : memref<4x4x16xbf16, #tpu.memory_space<vmem>>, vector<2x2x16xbf16>
    %57 = vector.shape_cast %56 : vector<2x2x16xbf16> to vector<4x16xbf16>
    %c4 = arith.constant 4 : index
    %c0_61 = arith.constant 0 : index
    %c0_62 = arith.constant 0 : index
    %58 = vector.load %arg7[%c4, %c0_61, %c0_62] : memref<9x16x4xbf16, #tpu.memory_space<vmem>>, vector<1x16x4xbf16>
    %59 = vector.shape_cast %58 : vector<1x16x4xbf16> to vector<16x4xbf16>
    %cst_63 = arith.constant dense<0.000000e+00> : vector<4x4xf32>
    %60 = tpu.matmul %57, %59, %cst_63 {dimension_numbers = #tpu.dot_dimension_numbers<[1], [0], [0], [1], [0, 0, 1, 1], [], []>} : vector<4x16xbf16>, vector<16x4xbf16>, vector<4x4xf32> -> vector<4x4xf32>
    %61 = arith.addf %55, %60 : vector<4x4xf32>
    %c1_64 = arith.constant 1 : index
    %c2_65 = arith.constant 2 : index
    %c0_66 = arith.constant 0 : index
    %62 = vector.load %arg12[%c1_64, %c2_65, %c0_66] : memref<4x4x16xbf16, #tpu.memory_space<vmem>>, vector<2x2x16xbf16>
    %63 = vector.shape_cast %62 : vector<2x2x16xbf16> to vector<4x16xbf16>
    %c5 = arith.constant 5 : index
    %c0_67 = arith.constant 0 : index
    %c0_68 = arith.constant 0 : index
    %64 = vector.load %arg7[%c5, %c0_67, %c0_68] : memref<9x16x4xbf16, #tpu.memory_space<vmem>>, vector<1x16x4xbf16>
    %65 = vector.shape_cast %64 : vector<1x16x4xbf16> to vector<16x4xbf16>
    %cst_69 = arith.constant dense<0.000000e+00> : vector<4x4xf32>
    %66 = tpu.matmul %63, %65, %cst_69 {dimension_numbers = #tpu.dot_dimension_numbers<[1], [0], [0], [1], [0, 0, 1, 1], [], []>} : vector<4x16xbf16>, vector<16x4xbf16>, vector<4x4xf32> -> vector<4x4xf32>
    %67 = arith.addf %61, %66 : vector<4x4xf32>
    %c2_70 = arith.constant 2 : index
    %c0_71 = arith.constant 0 : index
    %c0_72 = arith.constant 0 : index
    %68 = vector.load %arg12[%c2_70, %c0_71, %c0_72] : memref<4x4x16xbf16, #tpu.memory_space<vmem>>, vector<2x2x16xbf16>
    %69 = vector.shape_cast %68 : vector<2x2x16xbf16> to vector<4x16xbf16>
    %c6 = arith.constant 6 : index
    %c0_73 = arith.constant 0 : index
    %c0_74 = arith.constant 0 : index
    %70 = vector.load %arg7[%c6, %c0_73, %c0_74] : memref<9x16x4xbf16, #tpu.memory_space<vmem>>, vector<1x16x4xbf16>
    %71 = vector.shape_cast %70 : vector<1x16x4xbf16> to vector<16x4xbf16>
    %cst_75 = arith.constant dense<0.000000e+00> : vector<4x4xf32>
    %72 = tpu.matmul %69, %71, %cst_75 {dimension_numbers = #tpu.dot_dimension_numbers<[1], [0], [0], [1], [0, 0, 1, 1], [], []>} : vector<4x16xbf16>, vector<16x4xbf16>, vector<4x4xf32> -> vector<4x4xf32>
    %73 = arith.addf %67, %72 : vector<4x4xf32>
    %c2_76 = arith.constant 2 : index
    %c1_77 = arith.constant 1 : index
    %c0_78 = arith.constant 0 : index
    %74 = vector.load %arg12[%c2_76, %c1_77, %c0_78] : memref<4x4x16xbf16, #tpu.memory_space<vmem>>, vector<2x2x16xbf16>
    %75 = vector.shape_cast %74 : vector<2x2x16xbf16> to vector<4x16xbf16>
    %c7 = arith.constant 7 : index
    %c0_79 = arith.constant 0 : index
    %c0_80 = arith.constant 0 : index
    %76 = vector.load %arg7[%c7, %c0_79, %c0_80] : memref<9x16x4xbf16, #tpu.memory_space<vmem>>, vector<1x16x4xbf16>
    %77 = vector.shape_cast %76 : vector<1x16x4xbf16> to vector<16x4xbf16>
    %cst_81 = arith.constant dense<0.000000e+00> : vector<4x4xf32>
    %78 = tpu.matmul %75, %77, %cst_81 {dimension_numbers = #tpu.dot_dimension_numbers<[1], [0], [0], [1], [0, 0, 1, 1], [], []>} : vector<4x16xbf16>, vector<16x4xbf16>, vector<4x4xf32> -> vector<4x4xf32>
    %79 = arith.addf %73, %78 : vector<4x4xf32>
    %c2_82 = arith.constant 2 : index
    %c2_83 = arith.constant 2 : index
    %c0_84 = arith.constant 0 : index
    %80 = vector.load %arg12[%c2_82, %c2_83, %c0_84] : memref<4x4x16xbf16, #tpu.memory_space<vmem>>, vector<2x2x16xbf16>
    %81 = vector.shape_cast %80 : vector<2x2x16xbf16> to vector<4x16xbf16>
    %c8 = arith.constant 8 : index
    %c0_85 = arith.constant 0 : index
    %c0_86 = arith.constant 0 : index
    %82 = vector.load %arg7[%c8, %c0_85, %c0_86] : memref<9x16x4xbf16, #tpu.memory_space<vmem>>, vector<1x16x4xbf16>
    %83 = vector.shape_cast %82 : vector<1x16x4xbf16> to vector<16x4xbf16>
    %cst_87 = arith.constant dense<0.000000e+00> : vector<4x4xf32>
    %84 = tpu.matmul %81, %83, %cst_87 {dimension_numbers = #tpu.dot_dimension_numbers<[1], [0], [0], [1], [0, 0, 1, 1], [], []>} : vector<4x16xbf16>, vector<16x4xbf16>, vector<4x4xf32> -> vector<4x4xf32>
    %85 = arith.addf %79, %84 : vector<4x4xf32>
    %86 = tpu.concatenate %10, %85 in 1 : vector<4x5xf32>, vector<4x4xf32> -> vector<4x9xf32>
    %87 = vector.shape_cast %86 : vector<4x9xf32> to vector<2x2x9xf32>
    %88 = vector.shape_cast %87 : vector<2x2x9xf32> to vector<1x2x2x9xf32>
    %89 = vector.extract_strided_slice %88 {offsets = [0, 0, 0, 0], sizes = [1, 1, 2, 9], strides = [1, 1, 1, 1]} : vector<1x2x2x9xf32> to vector<1x1x2x9xf32>
    %90 = vector.shape_cast %89 : vector<1x1x2x9xf32> to vector<1x2x9xf32>
    %91 = vector.extract_strided_slice %88 {offsets = [0, 1, 0, 0], sizes = [1, 1, 2, 9], strides = [1, 1, 1, 1]} : vector<1x2x2x9xf32> to vector<1x1x2x9xf32>
    %92 = vector.shape_cast %91 : vector<1x1x2x9xf32> to vector<1x2x9xf32>
    %93 = arith.addf %90, %92 : vector<1x2x9xf32>
    %94 = vector.shape_cast %93 : vector<1x2x9xf32> to vector<1x1x2x9xf32>
    %95 = vector.extract_strided_slice %94 {offsets = [0, 0, 0, 0], sizes = [1, 1, 1, 9], strides = [1, 1, 1, 1]} : vector<1x1x2x9xf32> to vector<1x1x1x9xf32>
    %96 = vector.shape_cast %95 : vector<1x1x1x9xf32> to vector<1x1x9xf32>
    %97 = vector.extract_strided_slice %94 {offsets = [0, 0, 1, 0], sizes = [1, 1, 1, 9], strides = [1, 1, 1, 1]} : vector<1x1x2x9xf32> to vector<1x1x1x9xf32>
    %98 = vector.shape_cast %97 : vector<1x1x1x9xf32> to vector<1x1x9xf32>
    %99 = arith.addf %96, %98 : vector<1x1x9xf32>
    %cst_88 = arith.constant 2.500000e-01 : f32
    %100 = vector.broadcast %cst_88 : f32 to vector<1x1x9xf32>
    %101 = arith.mulf %99, %100 : vector<1x1x9xf32>
    %102 = vector.shape_cast %101 : vector<1x1x9xf32> to vector<1x9xf32>
    %c0_89 = arith.constant 0 : index
    %c0_90 = arith.constant 0 : index
    %103 = vector.load %arg8[%c0_89, %c0_90] : memref<1x9xf32, #tpu.memory_space<vmem>>, vector<1x9xf32>
    %104 = arith.mulf %102, %103 : vector<1x9xf32>
    %c0_91 = arith.constant 0 : index
    %c0_92 = arith.constant 0 : index
    %105 = vector.load %arg9[%c0_91, %c0_92] : memref<1x9xf32, #tpu.memory_space<vmem>>, vector<1x9xf32>
    %106 = arith.addf %104, %105 : vector<1x9xf32>
    %107 = arith.truncf %106 : vector<1x9xf32> to vector<1x9xbf16>
    %c0_93 = arith.constant 0 : index
    %c0_94 = arith.constant 0 : index
    %108 = vector.load %arg10[%c0_93, %c0_94] : memref<9x4xbf16, #tpu.memory_space<vmem>>, vector<9x4xbf16>
    %cst_95 = arith.constant dense<0.000000e+00> : vector<1x4xf32>
    %109 = tpu.matmul %107, %108, %cst_95 {dimension_numbers = #tpu.dot_dimension_numbers<[1], [0], [0], [1], [0, 0, 1, 1], [], []>} : vector<1x9xbf16>, vector<9x4xbf16>, vector<1x4xf32> -> vector<1x4xf32>
    %110 = arith.truncf %109 : vector<1x4xf32> to vector<1x4xbf16>
    %c0_96 = arith.constant 0 : index
    %c0_97 = arith.constant 0 : index
    %c0_98 = arith.constant 0 : index
    %111 = vector.load %arg11[%c0_96, %c0_97, %c0_98] : memref<1x1x4xbf16, #tpu.memory_space<vmem>>, vector<1x1x4xbf16>
    %112 = vector.shape_cast %111 : vector<1x1x4xbf16> to vector<1x4xbf16>
    %113 = vector.shape_cast %110 : vector<1x4xbf16> to vector<1x1x4xbf16>
    tpu.vector_store %arg11[%c0_96, %c0_97, %c0_98], %113 {strides = array<i32>} : memref<1x1x4xbf16, #tpu.memory_space<vmem>>, vector<1x1x4xbf16>,
    return
  }
  func.func @transform_0(%arg0: i32) -> (i32, i32, i32) {
    %c0_i32 = arith.constant 0 : i32
    %c0_i32_0 = arith.constant 0 : i32
    %c0_i32_1 = arith.constant 0 : i32
    return %arg0, %c0_i32, %c0_i32_0 : i32, i32, i32
  }
  func.func @transform_1(%arg0: i32) -> (i32, i32) {
    %c0_i32 = arith.constant 0 : i32
    %c0_i32_0 = arith.constant 0 : i32
    %c0_i32_1 = arith.constant 0 : i32
    return %c0_i32, %c0_i32_0 : i32, i32
  }
  func.func @transform_2(%arg0: i32) -> (i32, i32) {
    %c0_i32 = arith.constant 0 : i32
    %c0_i32_0 = arith.constant 0 : i32
    %c0_i32_1 = arith.constant 0 : i32
    return %c0_i32, %c0_i32_0 : i32, i32
  }
  func.func @transform_3(%arg0: i32) -> (i32, i32) {
    %c0_i32 = arith.constant 0 : i32
    %c0_i32_0 = arith.constant 0 : i32
    %c0_i32_1 = arith.constant 0 : i32
    return %c0_i32, %c0_i32_0 : i32, i32
  }
  func.func @transform_4(%arg0: i32) -> (i32, i32) {
    %c0_i32 = arith.constant 0 : i32
    %c0_i32_0 = arith.constant 0 : i32
    %c0_i32_1 = arith.constant 0 : i32
    return %c0_i32, %c0_i32_0 : i32, i32
  }
  func.func @transform_5(%arg0: i32) -> (i32, i32) {
    %c0_i32 = arith.constant 0 : i32
    %c0_i32_0 = arith.constant 0 : i32
    %c0_i32_1 = arith.constant 0 : i32
    return %c0_i32, %c0_i32_0 : i32, i32
  }
  func.func @transform_6(%arg0: i32) -> (i32, i32, i32) {
    %c0_i32 = arith.constant 0 : i32
    %c0_i32_0 = arith.constant 0 : i32
    %c0_i32_1 = arith.constant 0 : i32
    %c0_i32_2 = arith.constant 0 : i32
    return %c0_i32, %c0_i32_0, %c0_i32_1 : i32, i32, i32
  }
  func.func @transform_7(%arg0: i32) -> (i32, i32) {
    %c0_i32 = arith.constant 0 : i32
    %c0_i32_0 = arith.constant 0 : i32
    %c0_i32_1 = arith.constant 0 : i32
    return %c0_i32, %c0_i32_0 : i32, i32
  }
  func.func @transform_8(%arg0: i32) -> (i32, i32) {
    %c0_i32 = arith.constant 0 : i32
    %c0_i32_0 = arith.constant 0 : i32
    %c0_i32_1 = arith.constant 0 : i32
    return %c0_i32, %c0_i32_0 : i32, i32
  }
  func.func @transform_9(%arg0: i32) -> (i32, i32) {
    %c0_i32 = arith.constant 0 : i32
    %c0_i32_0 = arith.constant 0 : i32
    %c0_i32_1 = arith.constant 0 : i32
    return %c0_i32, %c0_i32_0 : i32, i32
  }
  func.func @transform_10(%arg0: i32) -> (i32, i32, i32) {
    %c0_i32 = arith.constant 0 : i32
    %c0_i32_0 = arith.constant 0 : i32
    %c0_i32_1 = arith.constant 0 : i32
    return %arg0, %c0_i32, %c0_i32_0 : i32, i32, i32
  }
}

module attributes {stable_mosaic.version = 11 : i64} {
  func.func @kernel(%arg0: i32, %arg1: memref<1x1x4xbf16, #tpu.memory_space<vmem>>, %arg2: memref<1x4xf32, #tpu.memory_space<vmem>>, %arg3: memref<1x4xf32, #tpu.memory_space<vmem>>, %arg4: memref<4x16xbf16, #tpu.memory_space<vmem>>, %arg5: memref<1x16xf32, #tpu.memory_space<vmem>>, %arg6: memref<1x16xf32, #tpu.memory_space<vmem>>, %arg7: memref<9x16x4xbf16, #tpu.memory_space<vmem>>, %arg8: memref<1x8xf32, #tpu.memory_space<vmem>>, %arg9: memref<1x8xf32, #tpu.memory_space<vmem>>, %arg10: memref<1x1x8xf32, #tpu.memory_space<vmem>>, %arg11: memref<3x3x16xbf16, #tpu.memory_space<vmem>>) attributes {dimension_semantics = [#tpu.dimension_semantics<parallel>], iteration_bounds = array<i64: 2>, scalar_prefetch = 0 : i64, scratch_operands = 1 : i64, tpu.core_type = #tpu.core_type<tc>, window_params = [{transform_indices = @transform_0, window_bounds = array<i64: 1, 1, 4>}, {pipeline_mode = #tpu.pipeline_mode<synchronous>, transform_indices = @transform_1, window_bounds = array<i64: 1, 4>}, {pipeline_mode = #tpu.pipeline_mode<synchronous>, transform_indices = @transform_2, window_bounds = array<i64: 1, 4>}, {pipeline_mode = #tpu.pipeline_mode<synchronous>, transform_indices = @transform_3, window_bounds = array<i64: 4, 16>}, {pipeline_mode = #tpu.pipeline_mode<synchronous>, transform_indices = @transform_4, window_bounds = array<i64: 1, 16>}, {pipeline_mode = #tpu.pipeline_mode<synchronous>, transform_indices = @transform_5, window_bounds = array<i64: 1, 16>}, {pipeline_mode = #tpu.pipeline_mode<synchronous>, transform_indices = @transform_6, window_bounds = array<i64: 9, 16, 4>}, {pipeline_mode = #tpu.pipeline_mode<synchronous>, transform_indices = @transform_7, window_bounds = array<i64: 1, 8>}, {pipeline_mode = #tpu.pipeline_mode<synchronous>, transform_indices = @transform_8, window_bounds = array<i64: 1, 8>}, {transform_indices = @transform_9, window_bounds = array<i64: 1, 1, 8>}]} {
    %cst = arith.constant 0.000000e+00 : bf16
    %0 = vector.broadcast %cst : bf16 to vector<1x3x16xbf16>
    %c0 = arith.constant 0 : index
    %c0_0 = arith.constant 0 : index
    %c0_1 = arith.constant 0 : index
    %1 = vector.load %arg11[%c0, %c0_0, %c0_1] : memref<3x3x16xbf16, #tpu.memory_space<vmem>>, vector<1x3x16xbf16>
    tpu.vector_store %arg11[%c0, %c0_0, %c0_1], %0 {strides = array<i32>} : memref<3x3x16xbf16, #tpu.memory_space<vmem>>, vector<1x3x16xbf16>,
    %cst_2 = arith.constant 0.000000e+00 : bf16
    %2 = vector.broadcast %cst_2 : bf16 to vector<1x3x16xbf16>
    %c2 = arith.constant 2 : index
    %c0_3 = arith.constant 0 : index
    %c0_4 = arith.constant 0 : index
    %3 = vector.load %arg11[%c2, %c0_3, %c0_4] : memref<3x3x16xbf16, #tpu.memory_space<vmem>>, vector<1x3x16xbf16>
    tpu.vector_store %arg11[%c2, %c0_3, %c0_4], %2 {strides = array<i32>} : memref<3x3x16xbf16, #tpu.memory_space<vmem>>, vector<1x3x16xbf16>,
    %cst_5 = arith.constant 0.000000e+00 : bf16
    %4 = vector.broadcast %cst_5 : bf16 to vector<3x1x16xbf16>
    %c0_6 = arith.constant 0 : index
    %c0_7 = arith.constant 0 : index
    %c0_8 = arith.constant 0 : index
    %5 = vector.load %arg11[%c0_6, %c0_7, %c0_8] : memref<3x3x16xbf16, #tpu.memory_space<vmem>>, vector<3x1x16xbf16>
    tpu.vector_store %arg11[%c0_6, %c0_7, %c0_8], %4 {strides = array<i32>} : memref<3x3x16xbf16, #tpu.memory_space<vmem>>, vector<3x1x16xbf16>,
    %cst_9 = arith.constant 0.000000e+00 : bf16
    %6 = vector.broadcast %cst_9 : bf16 to vector<3x1x16xbf16>
    %c0_10 = arith.constant 0 : index
    %c2_11 = arith.constant 2 : index
    %c0_12 = arith.constant 0 : index
    %7 = vector.load %arg11[%c0_10, %c2_11, %c0_12] : memref<3x3x16xbf16, #tpu.memory_space<vmem>>, vector<3x1x16xbf16>
    tpu.vector_store %arg11[%c0_10, %c2_11, %c0_12], %6 {strides = array<i32>} : memref<3x3x16xbf16, #tpu.memory_space<vmem>>, vector<3x1x16xbf16>,
    %c0_13 = arith.constant 0 : index
    %c0_14 = arith.constant 0 : index
    %c0_15 = arith.constant 0 : index
    %8 = vector.load %arg1[%c0_13, %c0_14, %c0_15] : memref<1x1x4xbf16, #tpu.memory_space<vmem>>, vector<1x1x4xbf16>
    %9 = vector.shape_cast %8 : vector<1x1x4xbf16> to vector<1x4xbf16>
    %10 = arith.extf %9 : vector<1x4xbf16> to vector<1x4xf32>
    %c0_16 = arith.constant 0 : index
    %c0_17 = arith.constant 0 : index
    %11 = vector.load %arg2[%c0_16, %c0_17] : memref<1x4xf32, #tpu.memory_space<vmem>>, vector<1x4xf32>
    %12 = arith.mulf %10, %11 : vector<1x4xf32>
    %c0_18 = arith.constant 0 : index
    %c0_19 = arith.constant 0 : index
    %13 = vector.load %arg3[%c0_18, %c0_19] : memref<1x4xf32, #tpu.memory_space<vmem>>, vector<1x4xf32>
    %14 = arith.addf %12, %13 : vector<1x4xf32>
    %cst_20 = arith.constant 0.000000e+00 : f32
    %15 = vector.broadcast %cst_20 : f32 to vector<1x4xf32>
    %16 = arith.maximumf %14, %15 : vector<1x4xf32>
    %17 = arith.truncf %16 : vector<1x4xf32> to vector<1x4xbf16>
    %c0_21 = arith.constant 0 : index
    %c0_22 = arith.constant 0 : index
    %18 = vector.load %arg4[%c0_21, %c0_22] : memref<4x16xbf16, #tpu.memory_space<vmem>>, vector<4x16xbf16>
    %cst_23 = arith.constant dense<0.000000e+00> : vector<1x16xf32>
    %19 = tpu.matmul %17, %18, %cst_23 {dimension_numbers = #tpu.dot_dimension_numbers<[1], [0], [0], [1], [0, 0, 1, 1], [], []>} : vector<1x4xbf16>, vector<4x16xbf16>, vector<1x16xf32> -> vector<1x16xf32>
    %c0_24 = arith.constant 0 : index
    %c0_25 = arith.constant 0 : index
    %20 = vector.load %arg5[%c0_24, %c0_25] : memref<1x16xf32, #tpu.memory_space<vmem>>, vector<1x16xf32>
    %21 = arith.mulf %19, %20 : vector<1x16xf32>
    %c0_26 = arith.constant 0 : index
    %c0_27 = arith.constant 0 : index
    %22 = vector.load %arg6[%c0_26, %c0_27] : memref<1x16xf32, #tpu.memory_space<vmem>>, vector<1x16xf32>
    %23 = arith.addf %21, %22 : vector<1x16xf32>
    %cst_28 = arith.constant 0.000000e+00 : f32
    %24 = vector.broadcast %cst_28 : f32 to vector<1x16xf32>
    %25 = arith.maximumf %23, %24 : vector<1x16xf32>
    %26 = vector.shape_cast %25 : vector<1x16xf32> to vector<1x1x16xf32>
    %27 = arith.truncf %26 : vector<1x1x16xf32> to vector<1x1x16xbf16>
    %c1 = arith.constant 1 : index
    %c1_29 = arith.constant 1 : index
    %c0_30 = arith.constant 0 : index
    %28 = vector.load %arg11[%c1, %c1_29, %c0_30] : memref<3x3x16xbf16, #tpu.memory_space<vmem>>, vector<1x1x16xbf16>
    tpu.vector_store %arg11[%c1, %c1_29, %c0_30], %27 {strides = array<i32>} : memref<3x3x16xbf16, #tpu.memory_space<vmem>>, vector<1x1x16xbf16>,
    %c0_31 = arith.constant 0 : index
    %c0_32 = arith.constant 0 : index
    %c0_33 = arith.constant 0 : index
    %29 = vector.load %arg11[%c0_31, %c0_32, %c0_33] : memref<3x3x16xbf16, #tpu.memory_space<vmem>>, vector<1x1x16xbf16>
    %30 = vector.shape_cast %29 : vector<1x1x16xbf16> to vector<1x16xbf16>
    %c0_34 = arith.constant 0 : index
    %c0_35 = arith.constant 0 : index
    %c0_36 = arith.constant 0 : index
    %31 = vector.load %arg7[%c0_34, %c0_35, %c0_36] : memref<9x16x4xbf16, #tpu.memory_space<vmem>>, vector<1x16x4xbf16>
    %32 = vector.shape_cast %31 : vector<1x16x4xbf16> to vector<16x4xbf16>
    %cst_37 = arith.constant dense<0.000000e+00> : vector<1x4xf32>
    %33 = tpu.matmul %30, %32, %cst_37 {dimension_numbers = #tpu.dot_dimension_numbers<[1], [0], [0], [1], [0, 0, 1, 1], [], []>} : vector<1x16xbf16>, vector<16x4xbf16>, vector<1x4xf32> -> vector<1x4xf32>
    %c0_38 = arith.constant 0 : index
    %c1_39 = arith.constant 1 : index
    %c0_40 = arith.constant 0 : index
    %34 = vector.load %arg11[%c0_38, %c1_39, %c0_40] : memref<3x3x16xbf16, #tpu.memory_space<vmem>>, vector<1x1x16xbf16>
    %35 = vector.shape_cast %34 : vector<1x1x16xbf16> to vector<1x16xbf16>
    %c1_41 = arith.constant 1 : index
    %c0_42 = arith.constant 0 : index
    %c0_43 = arith.constant 0 : index
    %36 = vector.load %arg7[%c1_41, %c0_42, %c0_43] : memref<9x16x4xbf16, #tpu.memory_space<vmem>>, vector<1x16x4xbf16>
    %37 = vector.shape_cast %36 : vector<1x16x4xbf16> to vector<16x4xbf16>
    %cst_44 = arith.constant dense<0.000000e+00> : vector<1x4xf32>
    %38 = tpu.matmul %35, %37, %cst_44 {dimension_numbers = #tpu.dot_dimension_numbers<[1], [0], [0], [1], [0, 0, 1, 1], [], []>} : vector<1x16xbf16>, vector<16x4xbf16>, vector<1x4xf32> -> vector<1x4xf32>
    %39 = arith.addf %33, %38 : vector<1x4xf32>
    %c0_45 = arith.constant 0 : index
    %c2_46 = arith.constant 2 : index
    %c0_47 = arith.constant 0 : index
    %40 = vector.load %arg11[%c0_45, %c2_46, %c0_47] : memref<3x3x16xbf16, #tpu.memory_space<vmem>>, vector<1x1x16xbf16>
    %41 = vector.shape_cast %40 : vector<1x1x16xbf16> to vector<1x16xbf16>
    %c2_48 = arith.constant 2 : index
    %c0_49 = arith.constant 0 : index
    %c0_50 = arith.constant 0 : index
    %42 = vector.load %arg7[%c2_48, %c0_49, %c0_50] : memref<9x16x4xbf16, #tpu.memory_space<vmem>>, vector<1x16x4xbf16>
    %43 = vector.shape_cast %42 : vector<1x16x4xbf16> to vector<16x4xbf16>
    %cst_51 = arith.constant dense<0.000000e+00> : vector<1x4xf32>
    %44 = tpu.matmul %41, %43, %cst_51 {dimension_numbers = #tpu.dot_dimension_numbers<[1], [0], [0], [1], [0, 0, 1, 1], [], []>} : vector<1x16xbf16>, vector<16x4xbf16>, vector<1x4xf32> -> vector<1x4xf32>
    %45 = arith.addf %39, %44 : vector<1x4xf32>
    %c1_52 = arith.constant 1 : index
    %c0_53 = arith.constant 0 : index
    %c0_54 = arith.constant 0 : index
    %46 = vector.load %arg11[%c1_52, %c0_53, %c0_54] : memref<3x3x16xbf16, #tpu.memory_space<vmem>>, vector<1x1x16xbf16>
    %47 = vector.shape_cast %46 : vector<1x1x16xbf16> to vector<1x16xbf16>
    %c3 = arith.constant 3 : index
    %c0_55 = arith.constant 0 : index
    %c0_56 = arith.constant 0 : index
    %48 = vector.load %arg7[%c3, %c0_55, %c0_56] : memref<9x16x4xbf16, #tpu.memory_space<vmem>>, vector<1x16x4xbf16>
    %49 = vector.shape_cast %48 : vector<1x16x4xbf16> to vector<16x4xbf16>
    %cst_57 = arith.constant dense<0.000000e+00> : vector<1x4xf32>
    %50 = tpu.matmul %47, %49, %cst_57 {dimension_numbers = #tpu.dot_dimension_numbers<[1], [0], [0], [1], [0, 0, 1, 1], [], []>} : vector<1x16xbf16>, vector<16x4xbf16>, vector<1x4xf32> -> vector<1x4xf32>
    %51 = arith.addf %45, %50 : vector<1x4xf32>
    %c1_58 = arith.constant 1 : index
    %c1_59 = arith.constant 1 : index
    %c0_60 = arith.constant 0 : index
    %52 = vector.load %arg11[%c1_58, %c1_59, %c0_60] : memref<3x3x16xbf16, #tpu.memory_space<vmem>>, vector<1x1x16xbf16>
    %53 = vector.shape_cast %52 : vector<1x1x16xbf16> to vector<1x16xbf16>
    %c4 = arith.constant 4 : index
    %c0_61 = arith.constant 0 : index
    %c0_62 = arith.constant 0 : index
    %54 = vector.load %arg7[%c4, %c0_61, %c0_62] : memref<9x16x4xbf16, #tpu.memory_space<vmem>>, vector<1x16x4xbf16>
    %55 = vector.shape_cast %54 : vector<1x16x4xbf16> to vector<16x4xbf16>
    %cst_63 = arith.constant dense<0.000000e+00> : vector<1x4xf32>
    %56 = tpu.matmul %53, %55, %cst_63 {dimension_numbers = #tpu.dot_dimension_numbers<[1], [0], [0], [1], [0, 0, 1, 1], [], []>} : vector<1x16xbf16>, vector<16x4xbf16>, vector<1x4xf32> -> vector<1x4xf32>
    %57 = arith.addf %51, %56 : vector<1x4xf32>
    %c1_64 = arith.constant 1 : index
    %c2_65 = arith.constant 2 : index
    %c0_66 = arith.constant 0 : index
    %58 = vector.load %arg11[%c1_64, %c2_65, %c0_66] : memref<3x3x16xbf16, #tpu.memory_space<vmem>>, vector<1x1x16xbf16>
    %59 = vector.shape_cast %58 : vector<1x1x16xbf16> to vector<1x16xbf16>
    %c5 = arith.constant 5 : index
    %c0_67 = arith.constant 0 : index
    %c0_68 = arith.constant 0 : index
    %60 = vector.load %arg7[%c5, %c0_67, %c0_68] : memref<9x16x4xbf16, #tpu.memory_space<vmem>>, vector<1x16x4xbf16>
    %61 = vector.shape_cast %60 : vector<1x16x4xbf16> to vector<16x4xbf16>
    %cst_69 = arith.constant dense<0.000000e+00> : vector<1x4xf32>
    %62 = tpu.matmul %59, %61, %cst_69 {dimension_numbers = #tpu.dot_dimension_numbers<[1], [0], [0], [1], [0, 0, 1, 1], [], []>} : vector<1x16xbf16>, vector<16x4xbf16>, vector<1x4xf32> -> vector<1x4xf32>
    %63 = arith.addf %57, %62 : vector<1x4xf32>
    %c2_70 = arith.constant 2 : index
    %c0_71 = arith.constant 0 : index
    %c0_72 = arith.constant 0 : index
    %64 = vector.load %arg11[%c2_70, %c0_71, %c0_72] : memref<3x3x16xbf16, #tpu.memory_space<vmem>>, vector<1x1x16xbf16>
    %65 = vector.shape_cast %64 : vector<1x1x16xbf16> to vector<1x16xbf16>
    %c6 = arith.constant 6 : index
    %c0_73 = arith.constant 0 : index
    %c0_74 = arith.constant 0 : index
    %66 = vector.load %arg7[%c6, %c0_73, %c0_74] : memref<9x16x4xbf16, #tpu.memory_space<vmem>>, vector<1x16x4xbf16>
    %67 = vector.shape_cast %66 : vector<1x16x4xbf16> to vector<16x4xbf16>
    %cst_75 = arith.constant dense<0.000000e+00> : vector<1x4xf32>
    %68 = tpu.matmul %65, %67, %cst_75 {dimension_numbers = #tpu.dot_dimension_numbers<[1], [0], [0], [1], [0, 0, 1, 1], [], []>} : vector<1x16xbf16>, vector<16x4xbf16>, vector<1x4xf32> -> vector<1x4xf32>
    %69 = arith.addf %63, %68 : vector<1x4xf32>
    %c2_76 = arith.constant 2 : index
    %c1_77 = arith.constant 1 : index
    %c0_78 = arith.constant 0 : index
    %70 = vector.load %arg11[%c2_76, %c1_77, %c0_78] : memref<3x3x16xbf16, #tpu.memory_space<vmem>>, vector<1x1x16xbf16>
    %71 = vector.shape_cast %70 : vector<1x1x16xbf16> to vector<1x16xbf16>
    %c7 = arith.constant 7 : index
    %c0_79 = arith.constant 0 : index
    %c0_80 = arith.constant 0 : index
    %72 = vector.load %arg7[%c7, %c0_79, %c0_80] : memref<9x16x4xbf16, #tpu.memory_space<vmem>>, vector<1x16x4xbf16>
    %73 = vector.shape_cast %72 : vector<1x16x4xbf16> to vector<16x4xbf16>
    %cst_81 = arith.constant dense<0.000000e+00> : vector<1x4xf32>
    %74 = tpu.matmul %71, %73, %cst_81 {dimension_numbers = #tpu.dot_dimension_numbers<[1], [0], [0], [1], [0, 0, 1, 1], [], []>} : vector<1x16xbf16>, vector<16x4xbf16>, vector<1x4xf32> -> vector<1x4xf32>
    %75 = arith.addf %69, %74 : vector<1x4xf32>
    %c2_82 = arith.constant 2 : index
    %c2_83 = arith.constant 2 : index
    %c0_84 = arith.constant 0 : index
    %76 = vector.load %arg11[%c2_82, %c2_83, %c0_84] : memref<3x3x16xbf16, #tpu.memory_space<vmem>>, vector<1x1x16xbf16>
    %77 = vector.shape_cast %76 : vector<1x1x16xbf16> to vector<1x16xbf16>
    %c8 = arith.constant 8 : index
    %c0_85 = arith.constant 0 : index
    %c0_86 = arith.constant 0 : index
    %78 = vector.load %arg7[%c8, %c0_85, %c0_86] : memref<9x16x4xbf16, #tpu.memory_space<vmem>>, vector<1x16x4xbf16>
    %79 = vector.shape_cast %78 : vector<1x16x4xbf16> to vector<16x4xbf16>
    %cst_87 = arith.constant dense<0.000000e+00> : vector<1x4xf32>
    %80 = tpu.matmul %77, %79, %cst_87 {dimension_numbers = #tpu.dot_dimension_numbers<[1], [0], [0], [1], [0, 0, 1, 1], [], []>} : vector<1x16xbf16>, vector<16x4xbf16>, vector<1x4xf32> -> vector<1x4xf32>
    %81 = arith.addf %75, %80 : vector<1x4xf32>
    %82 = tpu.concatenate %10, %81 in 1 : vector<1x4xf32>, vector<1x4xf32> -> vector<1x8xf32>
    %c0_88 = arith.constant 0 : index
    %c0_89 = arith.constant 0 : index
    %83 = vector.load %arg8[%c0_88, %c0_89] : memref<1x8xf32, #tpu.memory_space<vmem>>, vector<1x8xf32>
    %84 = arith.mulf %82, %83 : vector<1x8xf32>
    %c0_90 = arith.constant 0 : index
    %c0_91 = arith.constant 0 : index
    %85 = vector.load %arg9[%c0_90, %c0_91] : memref<1x8xf32, #tpu.memory_space<vmem>>, vector<1x8xf32>
    %86 = arith.addf %84, %85 : vector<1x8xf32>
    %cst_92 = arith.constant 0.000000e+00 : f32
    %87 = vector.broadcast %cst_92 : f32 to vector<1x8xf32>
    %88 = arith.maximumf %86, %87 : vector<1x8xf32>
    %cst_93 = arith.constant dense<0.000000e+00> : vector<8xf32>
    %89 = vector.multi_reduction <add>, %88, %cst_93 [0] : vector<1x8xf32> to vector<8xf32>
    %90 = vector.shape_cast %89 : vector<8xf32> to vector<1x8xf32>
    %cst_94 = arith.constant 1.000000e+00 : f32
    %91 = vector.broadcast %cst_94 : f32 to vector<1x8xf32>
    %92 = arith.divf %90, %91 : vector<1x8xf32>
    %c0_95 = arith.constant 0 : index
    %c0_96 = arith.constant 0 : index
    %c0_97 = arith.constant 0 : index
    %93 = vector.load %arg10[%c0_95, %c0_96, %c0_97] : memref<1x1x8xf32, #tpu.memory_space<vmem>>, vector<1x1x8xf32>
    %94 = vector.shape_cast %93 : vector<1x1x8xf32> to vector<1x8xf32>
    %95 = vector.shape_cast %92 : vector<1x8xf32> to vector<1x1x8xf32>
    tpu.vector_store %arg10[%c0_95, %c0_96, %c0_97], %95 {strides = array<i32>} : memref<1x1x8xf32, #tpu.memory_space<vmem>>, vector<1x1x8xf32>,
    return
  }
  func.func @transform_0(%arg0: i32) -> (i32, i32, i32) {
    %c0_i32 = arith.constant 0 : i32
    %c0_i32_0 = arith.constant 0 : i32
    %c0_i32_1 = arith.constant 0 : i32
    return %arg0, %c0_i32, %c0_i32_0 : i32, i32, i32
  }
  func.func @transform_1(%arg0: i32) -> (i32, i32) {
    %c0_i32 = arith.constant 0 : i32
    %c0_i32_0 = arith.constant 0 : i32
    %c0_i32_1 = arith.constant 0 : i32
    return %c0_i32, %c0_i32_0 : i32, i32
  }
  func.func @transform_2(%arg0: i32) -> (i32, i32) {
    %c0_i32 = arith.constant 0 : i32
    %c0_i32_0 = arith.constant 0 : i32
    %c0_i32_1 = arith.constant 0 : i32
    return %c0_i32, %c0_i32_0 : i32, i32
  }
  func.func @transform_3(%arg0: i32) -> (i32, i32) {
    %c0_i32 = arith.constant 0 : i32
    %c0_i32_0 = arith.constant 0 : i32
    %c0_i32_1 = arith.constant 0 : i32
    return %c0_i32, %c0_i32_0 : i32, i32
  }
  func.func @transform_4(%arg0: i32) -> (i32, i32) {
    %c0_i32 = arith.constant 0 : i32
    %c0_i32_0 = arith.constant 0 : i32
    %c0_i32_1 = arith.constant 0 : i32
    return %c0_i32, %c0_i32_0 : i32, i32
  }
  func.func @transform_5(%arg0: i32) -> (i32, i32) {
    %c0_i32 = arith.constant 0 : i32
    %c0_i32_0 = arith.constant 0 : i32
    %c0_i32_1 = arith.constant 0 : i32
    return %c0_i32, %c0_i32_0 : i32, i32
  }
  func.func @transform_6(%arg0: i32) -> (i32, i32, i32) {
    %c0_i32 = arith.constant 0 : i32
    %c0_i32_0 = arith.constant 0 : i32
    %c0_i32_1 = arith.constant 0 : i32
    %c0_i32_2 = arith.constant 0 : i32
    return %c0_i32, %c0_i32_0, %c0_i32_1 : i32, i32, i32
  }
  func.func @transform_7(%arg0: i32) -> (i32, i32) {
    %c0_i32 = arith.constant 0 : i32
    %c0_i32_0 = arith.constant 0 : i32
    %c0_i32_1 = arith.constant 0 : i32
    return %c0_i32, %c0_i32_0 : i32, i32
  }
  func.func @transform_8(%arg0: i32) -> (i32, i32) {
    %c0_i32 = arith.constant 0 : i32
    %c0_i32_0 = arith.constant 0 : i32
    %c0_i32_1 = arith.constant 0 : i32
    return %c0_i32, %c0_i32_0 : i32, i32
  }
  func.func @transform_9(%arg0: i32) -> (i32, i32, i32) {
    %c0_i32 = arith.constant 0 : i32
    %c0_i32_0 = arith.constant 0 : i32
    %c0_i32_1 = arith.constant 0 : i32
    return %arg0, %c0_i32, %c0_i32_0 : i32, i32, i32
  }
}

</mosaic_0001>

<llo_original>
// kernel: densenet_forward.5
$region0: #{densenet_forward.5}
  #allocation0 [shape = 'u32[]', space=smem, size = 0x4, offset = 0x4, fixed_abs, tag = 'smem constant byte address 0x4 - core index']
  #allocation1 [shape = 'u32[72,128]{1,0:T(1,128)}', space=vmem, size = 0x9000, scoped, tag = 'internal scratch']
  %s0 = inlined_call_operand.vmem [shape: bf16[512,147], index: 0, kind: input, shape index: {}]
  %s1 = inlined_call_operand.vmem [shape: bf16[147,8], index: 1, kind: input, shape index: {}]
  %s2 = inlined_call_operand.vmem [shape: f32[1,8], index: 2, kind: input, shape index: {}]
  %s3 = inlined_call_operand.vmem [shape: bf16[512,8], index: 3, kind: output, shape index: {}]
  %s4 = sld [smem:[#allocation0]]
  $region45: #{densenet_forward.5} parent=0
    _
  %s6 = ssub.s32 1, %s4
  %s7 = scalar_select 0, %s6, %s4
  loop: start=0, step=1, limit=4
  $region2: #{densenet_forward.5} parent=0 // loop_pre_header
    _
  $region3: #{densenet_forward.5} parent=0 // loop_header
    %s9 = sphi 0, %s13
    %p10 = scmp.ge.s32.totalorder %s9, 4
    %s19 = sphi 0, %s21
    %s22 = sphi 0, %s19
    %s23 = sphi 0, %s22
    %s39 = sphi 0, %s23
    %s43 = sphi 0, %s43
    %s45 = sphi 0, %s43
    %s46 = sphi 0, %s45
    %s60 = sphi 0, %s46
    %s64 = sphi 0, %s64
    %s66 = sphi 0, %s64
    %s67 = sphi 0, %s66
    %s81 = sphi 0, %s67
    %s87 = sphi 0, %s89
    %s90 = sphi 0, %s87
    %s91 = sphi 0, %s90
    %s107 = sphi 0, %s91
  $region4: #{densenet_forward.5} parent=0 // loop_header_branch
    %12 = sbr.rel (%p10) target = $region8
  $region5: #{densenet_forward.5} parent=0 // loop_body
    %s14 = ssub.s32 %s9, 1
    %s15 = ssub.s32 %s9, 2
    %s16 = sadd.s32 %s9, 1
    %s17 = ssub.s32 %s9, %s16
    %p18 = scmp.eq.s32.totalorder %s17, 0
    %s20 = sadd.s32 %s19, 1
    %s21 = scalar_select %p18, %s19, %s20
    %p24 = pneg %p18
    %p25 = scmp.eq.s32.totalorder %s9, 1
    %p26 = por %p24, %p25
    %p27 = scmp.ne.s32.totalorder %s19, %s22
    %p28 = scmp.eq.s32.totalorder %s9, 0
    %p29 = por %p27, %p28
    %p30 = scmp.ne.s32.totalorder %s19, %s22
    %p31 = scmp.eq.s32.totalorder %s14, 1
    %p32 = por %p30, %p31
    %p33 = scmp.ne.s32.totalorder %s22, %s23
    %p34 = scmp.eq.s32.totalorder %s14, 0
    %p35 = por %p33, %p34
    %p36 = scmp.ne.s32.totalorder %s22, %s23
    %p37 = scmp.eq.s32.totalorder %s15, 1
    %p38 = por %p36, %p37
    %p40 = scmp.ne.s32.totalorder %s23, %s39
    %p41 = scmp.eq.s32.totalorder %s15, 0
    %p42 = por %p40, %p41
    %s44 = sadd.s32 %s43, 1
    %p47 = scmp.eq.s32.totalorder %s9, 1
    %p48 = scmp.ne.s32.totalorder %s43, %s45
    %p49 = scmp.eq.s32.totalorder %s9, 0
    %p50 = por %p48, %p49
    %p51 = scmp.ne.s32.totalorder %s43, %s45
    %p52 = scmp.eq.s32.totalorder %s14, 1
    %p53 = por %p51, %p52
    %p54 = scmp.ne.s32.totalorder %s45, %s46
    %p55 = scmp.eq.s32.totalorder %s14, 0
    %p56 = por %p54, %p55
    %p57 = scmp.ne.s32.totalorder %s45, %s46
    %p58 = scmp.eq.s32.totalorder %s15, 1
    %p59 = por %p57, %p58
    %p61 = scmp.ne.s32.totalorder %s46, %s60
    %p62 = scmp.eq.s32.totalorder %s15, 0
    %p63 = por %p61, %p62
    %s65 = sadd.s32 %s64, 1
    %p68 = scmp.eq.s32.totalorder %s9, 1
    %p69 = scmp.ne.s32.totalorder %s64, %s66
    %p70 = scmp.eq.s32.totalorder %s9, 0
    %p71 = por %p69, %p70
    %p72 = scmp.ne.s32.totalorder %s64, %s66
    %p73 = scmp.eq.s32.totalorder %s14, 1
    %p74 = por %p72, %p73
    %p75 = scmp.ne.s32.totalorder %s66, %s67
    %p76 = scmp.eq.s32.totalorder %s14, 0
    %p77 = por %p75, %p76
    %p78 = scmp.ne.s32.totalorder %s66, %s67
    %p79 = scmp.eq.s32.totalorder %s15, 1
    %p80 = por %p78, %p79
    %p82 = scmp.ne.s32.totalorder %s67, %s81
    %p83 = scmp.eq.s32.totalorder %s15, 0
    %p84 = por %p82, %p83
    %s85 = ssub.s32 %s9, %s16
    %p86 = scmp.eq.s32.totalorder %s85, 0
    %s88 = sadd.s32 %s87, 1
    %s89 = scalar_select %p86, %s87, %s88
    %p92 = pneg %p86
    %p93 = scmp.eq.s32.totalorder %s9, 1
    %p94 = por %p92, %p93
    %p95 = scmp.ne.s32.totalorder %s87, %s90
    %p96 = scmp.eq.s32.totalorder %s9, 0
    %p97 = por %p95, %p96
    %p98 = scmp.ne.s32.totalorder %s87, %s90
    %p99 = scmp.eq.s32.totalorder %s14, 1
    %p100 = por %p98, %p99
    %p101 = scmp.ne.s32.totalorder %s90, %s91
    %p102 = scmp.eq.s32.totalorder %s14, 0
    %p103 = por %p101, %p102
    %p104 = scmp.ne.s32.totalorder %s90, %s91
    %p105 = scmp.eq.s32.totalorder %s15, 1
    %p106 = por %p104, %p105
    %p108 = scmp.ne.s32.totalorder %s91, %s107
    %p109 = scmp.eq.s32.totalorder %s15, 0
    %p110 = por %p108, %p109
    %p111 = scmp.le.s32.totalorder 1, %s9
    %p112 = scmp.lt.s32.totalorder %s9, 3
    %p113 = pnand %p111, %p112
    %p114 = pneg %p113
    // Predicated region
    $region9: #{densenet_forward.5} parent=5 // pred_check
      _
    $region10: #{densenet_forward.5} parent=5 // pred_check_branch
      %116 = sbr.rel (%p113) target = $region12
    $region11: #{densenet_forward.5} parent=5 // pred_region
      %s117 = ssub.s32 %s9, 1
      // Predicated region
      $region13: #{densenet_forward.5} parent=11 // pred_check
        %p118 = pneg %p56
      $region14: #{densenet_forward.5} parent=11 // pred_check_branch
        %120 = sbr.rel (%p118) target = $region16
      $region15: #{densenet_forward.5} parent=11 // pred_region
        _
      $region16: #{densenet_forward.5} parent=11 // pred_fallthru
        _
      // Predicated region
      $region17: #{densenet_forward.5} parent=11 // pred_check
        %p121 = pneg %p77
      $region18: #{densenet_forward.5} parent=11 // pred_check_branch
        %123 = sbr.rel (%p121) target = $region20
      $region19: #{densenet_forward.5} parent=11 // pred_region
        _
      $region20: #{densenet_forward.5} parent=11 // pred_fallthru
        _
    $region12: #{densenet_forward.5} parent=5 // pred_fallthru
      _
    %p124 = scmp.lt.s32.totalorder %s9, 2
    // Predicated region
    $region21: #{densenet_forward.5} parent=5 // pred_check
      %p125 = pneg %p124
    $region22: #{densenet_forward.5} parent=5 // pred_check_branch
      %127 = sbr.rel (%p125) target = $region24
    $region23: #{densenet_forward.5} parent=5 // pred_region
      // Predicated region
      $region25: #{densenet_forward.5} parent=23 // pred_check
        %p128 = pneg %p29
      $region26: #{densenet_forward.5} parent=23 // pred_check_branch
        %130 = sbr.rel (%p128) target = $region28
      $region27: #{densenet_forward.5} parent=23 // pred_region
        %s131 = smul.u32 32, %s9
        %p132 = scmp.lt.s32.totalorder %s131, 63
        %s133 = scalar_select %p132, %s131, 63
        %s134 = smul.addr %s133, 2
        %s135 = smul.addr %s134, 4
        %s136 = scalar_lea.vmem %s0, %s135
        %s137 = smul.u32 32, %s9
      $region28: #{densenet_forward.5} parent=23 // pred_fallthru
        _
    $region24: #{densenet_forward.5} parent=5 // pred_fallthru
      _
    %p138 = scmp.le.s32.totalorder 1, %s9
    %p139 = scmp.lt.s32.totalorder %s9, 3
    %p140 = pnand %p138, %p139
    %p141 = pneg %p140
    // Predicated region
    $region29: #{densenet_forward.5} parent=5 // pred_check
      _
    $region30: #{densenet_forward.5} parent=5 // pred_check_branch
      %143 = sbr.rel (%p140) target = $region32
    $region31: #{densenet_forward.5} parent=5 // pred_region
      %s144 = ssub.s32 %s9, 1
      %s145 = smul.u32 32, %s14
      %p146 = scmp.lt.s32.totalorder %s145, 63
      %s147 = scalar_select %p146, %s145, 63
      %s148 = smul.addr %s147, 2
      %s149 = smul.addr %s148, 4
      %s150 = scalar_lea.vmem %s0, %s149
      %p151 = pneg %p35
      %p152 = pneg %p32
      %p153 = pneg %p56
      %p154 = pneg %p53
      %p155 = pneg %p77
      %p156 = pneg %p74
      %p157 = pneg %p103
      %p158 = pneg %p100
      %s159 = smul.u32 32, %s14
      %p160 = scmp.lt.s32.totalorder %s159, 63
      %s161 = scalar_select %p160, %s159, 63
      %s162 = smul.addr %s161, 4
      %s163 = scalar_lea.vmem %s3, %s162
      %s164 = smul.u32 32, %s14
      %p165 = scmp.lt.s32.totalorder %s164, 63
      %s166 = scalar_select %p165, %s164, 63
      %s167 = smul.addr %s166, 2
      %s168 = smul.addr %s167, 4
      %s169 = scalar_lea.vmem %s0, %s168
      %s170 = smul.u32 32, %s14
      %s171 = smul.u32 32, %s14
      %p172 = scmp.lt.s32.totalorder %s171, 63
      %s173 = scalar_select %p172, %s171, 63
      %s174 = smul.addr %s173, 4
      %s175 = scalar_lea.vmem %s3, %s174
      %s176 = smul.u32 32, %s14
      %v178 = vld [vmem:[%s169] sm:$0xff]
      %v179 = vld [vmem:[%s169 + $0x8] sm:$0xff]
      %v180 = vld [vmem:[%s169 + $0x10] sm:$0xff]
      %v181 = vld [vmem:[%s169 + $0x18] sm:$0xff]
      %v182 = vld [vmem:[%s169 + $0x20] sm:$0xff]
      %v183 = vld [vmem:[%s169 + $0x28] sm:$0xff]
      %v184 = vld [vmem:[%s169 + $0x30] sm:$0xff]
      %v185 = vld [vmem:[%s169 + $0x38] sm:$0xff]
      %v186 = vld [vmem:[%s169 + $0x40] sm:$0xff]
      %v187 = vld [vmem:[%s169 + $0x48] sm:$0xff]
      %v188 = vld [vmem:[%s169 + $0x50] sm:$0xff]
      %v189 = vld [vmem:[%s169 + $0x58] sm:$0xff]
      %v190 = vld [vmem:[%s169 + $0x60] sm:$0xff]
      %v191 = vld [vmem:[%s169 + $0x68] sm:$0xff]
      %v192 = vld [vmem:[%s169 + $0x70] sm:$0xff]
      %v193 = vld [vmem:[%s169 + $0x78] sm:$0xff]
      %v194 = vld [vmem:[%s169 + $0x80] sm:$0xff]
      %v195 = vld [vmem:[%s169 + $0x88] sm:$0xff]
      %v196 = vld [vmem:[%s169 + $0x90] sm:$0xff]
      %v197 = vld [vmem:[%s169 + $0x98] sm:$0xff]
      %v198 = vld [vmem:[%s169 + $0xa0] sm:$0xff]
      %v199 = vld [vmem:[%s169 + $0xa8] sm:$0xff]
      %v200 = vld [vmem:[%s169 + $0xb0] sm:$0xff]
      %v201 = vld [vmem:[%s169 + $0xb8] sm:$0xff]
      %v202 = vld [vmem:[%s169 + $0xc0] sm:$0xff]
      %v203 = vld [vmem:[%s169 + $0xc8] sm:$0xff]
      %v204 = vld [vmem:[%s169 + $0xd0] sm:$0xff]
      %v205 = vld [vmem:[%s169 + $0xd8] sm:$0xff]
      %v206 = vld [vmem:[%s169 + $0xe0] sm:$0xff]
      %v207 = vld [vmem:[%s169 + $0xe8] sm:$0xff]
      %v208 = vld [vmem:[%s169 + $0xf0] sm:$0xff]
      %v209 = vld [vmem:[%s169 + $0xf8] sm:$0xff]
      %v210 = vld [vmem:[%s1] sm:$0xf]
      %v211 = vld [vmem:[%s1 + $0x4] sm:$0xf]
      %v212 = vld [vmem:[%s1 + $0x8] sm:$0xf]
      %v213 = vld [vmem:[%s1 + $0xc] sm:$0xf]
      %v214 = vld [vmem:[%s1 + $0x10] sm:$0xf]
      %v215 = vld [vmem:[%s1 + $0x14] sm:$0xf]
      %v216 = vld [vmem:[%s1 + $0x18] sm:$0xf]
      %v217 = vld [vmem:[%s1 + $0x1c] sm:$0xf]
      %v218 = vld [vmem:[%s1 + $0x20] sm:$0xf]
      %v219 = vld [vmem:[%s1 + $0x24] sm:$0xf]
      %v220 = vld [vmem:[%s1 + $0x28] sm:$0xf]
      %v221 = vld [vmem:[%s1 + $0x2c] sm:$0xf]
      %v222 = vld [vmem:[%s1 + $0x30] sm:$0xf]
      %v223 = vld [vmem:[%s1 + $0x34] sm:$0xf]
      %v224 = vld [vmem:[%s1 + $0x38] sm:$0xf]
      %v225 = vld [vmem:[%s1 + $0x3c] sm:$0xf]
      %v226 = vld [vmem:[%s1 + $0x40] sm:$0xf]
      %v227 = vld [vmem:[%s1 + $0x44] sm:$0xf]
      %v228 = vld [vmem:[%s1 + $0x48] sm:$0x3]
      %v229 = vld [vmem:[%s2] sm:$0x1]
      %v231 = vperm.slane %v229, 0
      %v265 = vunpack.c.l.b16 %v178
      %v266 = vunpack.c.h.b16 %v178
      %v267 = vunpack.c.l.b16 %v179
      %v268 = vunpack.c.h.b16 %v179
      %v269 = vunpack.c.l.b16 %v180
      %v270 = vunpack.c.h.b16 %v180
      %v271 = vunpack.c.l.b16 %v181
      %v272 = vunpack.c.h.b16 %v181
      %v273 = vunpack.c.l.b16 %v182
      %v274 = vunpack.c.h.b16 %v182
      %v275 = vunpack.c.l.b16 %v183
      %v276 = vunpack.c.h.b16 %v183
      %v277 = vunpack.c.l.b16 %v184
      %v278 = vunpack.c.h.b16 %v184
      %v279 = vunpack.c.l.b16 %v185
      %v280 = vunpack.c.h.b16 %v185
      %v281 = vunpack.c.l.b16 %v186
      %v282 = vunpack.c.h.b16 %v186
      %v283 = vunpack.c.l.b16 %v187
      %v284 = vunpack.c.h.b16 %v187
      %v285 = vunpack.c.l.b16 %v188
      %v286 = vunpack.c.h.b16 %v188
      %v287 = vunpack.c.l.b16 %v189
      %v288 = vunpack.c.h.b16 %v189
      %v289 = vunpack.c.l.b16 %v190
      %v290 = vunpack.c.h.b16 %v190
      %v291 = vunpack.c.l.b16 %v191
      %v292 = vunpack.c.h.b16 %v191
      %v293 = vunpack.c.l.b16 %v192
      %v294 = vunpack.c.h.b16 %v192
      %v295 = vunpack.c.l.b16 %v193
      %v296 = vunpack.c.h.b16 %v193
      %v297 = vunpack.c.l.b16 %v194
      %v298 = vunpack.c.h.b16 %v194
      %v299 = vunpack.c.l.b16 %v195
      %v300 = vunpack.c.h.b16 %v195
      %v301 = vunpack.c.l.b16 %v196
      %v302 = vunpack.c.h.b16 %v196
      %v303 = vunpack.c.l.b16 %v197
      %v304 = vunpack.c.h.b16 %v197
      %v305 = vunpack.c.l.b16 %v198
      %v306 = vunpack.c.h.b16 %v198
      %v307 = vunpack.c.l.b16 %v199
      %v308 = vunpack.c.h.b16 %v199
      %v309 = vunpack.c.l.b16 %v200
      %v310 = vunpack.c.h.b16 %v200
      %v311 = vunpack.c.l.b16 %v201
      %v312 = vunpack.c.h.b16 %v201
      %v313 = vunpack.c.l.b16 %v202
      %v314 = vunpack.c.h.b16 %v202
      %v315 = vunpack.c.l.b16 %v203
      %v316 = vunpack.c.h.b16 %v203
      %v317 = vunpack.c.l.b16 %v204
      %v318 = vunpack.c.h.b16 %v204
      %v319 = vunpack.c.l.b16 %v205
      %v320 = vunpack.c.h.b16 %v205
      %v321 = vunpack.c.l.b16 %v206
      %v322 = vunpack.c.h.b16 %v206
      %v323 = vunpack.c.l.b16 %v207
      %v324 = vunpack.c.h.b16 %v207
      %v325 = vunpack.c.l.b16 %v208
      %v326 = vunpack.c.h.b16 %v208
      %v327 = vunpack.c.l.b16 %v209
      %v328 = vunpack.c.h.b16 %v209
      %v329 = vpack.c.b16 %v267, %v265
      %v330 = vpack.c.b16 %v268, %v266
      %v331 = vpack.c.b16 %v271, %v269
      %v332 = vpack.c.b16 %v272, %v270
      %v333 = vpack.c.b16 %v275, %v273
      %v334 = vpack.c.b16 %v276, %v274
      %v335 = vpack.c.b16 %v279, %v277
      %v336 = vpack.c.b16 %v280, %v278
      %v337 = vpack.c.b16 %v283, %v281
      %v338 = vpack.c.b16 %v284, %v282
      %v339 = vpack.c.b16 %v287, %v285
      %v340 = vpack.c.b16 %v288, %v286
      %v341 = vpack.c.b16 %v291, %v289
      %v342 = vpack.c.b16 %v292, %v290
      %v343 = vpack.c.b16 %v295, %v293
      %v344 = vpack.c.b16 %v296, %v294
      %v345 = vpack.c.b16 %v299, %v297
      %v346 = vpack.c.b16 %v300, %v298
      %v347 = vpack.c.b16 %v303, %v301
      %v348 = vpack.c.b16 %v304, %v302
      %v349 = vpack.c.b16 %v307, %v305
      %v350 = vpack.c.b16 %v308, %v306
      %v351 = vpack.c.b16 %v311, %v309
      %v352 = vpack.c.b16 %v312, %v310
      %v353 = vpack.c.b16 %v315, %v313
      %v354 = vpack.c.b16 %v316, %v314
      %v355 = vpack.c.b16 %v319, %v317
      %v356 = vpack.c.b16 %v320, %v318
      %v357 = vpack.c.b16 %v323, %v321
      %v358 = vpack.c.b16 %v324, %v322
      %v359 = vpack.c.b16 %v327, %v325
      %v360 = vpack.c.b16 %v328, %v326
      %v396 = vunpack.c.l.b16 %v210
      %v397 = vunpack.c.l.b16 %v211
      %v398 = vunpack.c.l.b16 %v212
      %v399 = vunpack.c.l.b16 %v213
      %v400 = vunpack.c.l.b16 %v214
      %v401 = vunpack.c.l.b16 %v215
      %v402 = vunpack.c.l.b16 %v216
      %v403 = vunpack.c.l.b16 %v217
      %v404 = vunpack.c.l.b16 %v218
      %v405 = vunpack.c.l.b16 %v219
      %v406 = vunpack.c.l.b16 %v220
      %v407 = vunpack.c.l.b16 %v221
      %v408 = vunpack.c.l.b16 %v222
      %v409 = vunpack.c.l.b16 %v223
      %v410 = vunpack.c.l.b16 %v224
      %v411 = vunpack.c.l.b16 %v225
      %v412 = vunpack.c.l.b16 %v226
      %v413 = vunpack.c.l.b16 %v227
      %v414 = vunpack.c.l.b16 %v228
      %v415 = vpack.c.b16 %v397, %v396
      %v416 = vpack.c.b16 %v399, %v398
      %v417 = vpack.c.b16 %v401, %v400
      %v418 = vpack.c.b16 %v403, %v402
      %v419 = vpack.c.b16 %v405, %v404
      %v420 = vpack.c.b16 %v407, %v406
      %v421 = vpack.c.b16 %v409, %v408
      %v422 = vpack.c.b16 %v411, %v410
      %v423 = vpack.c.b16 %v413, %v412
      %v424 = vpack.c.b16 %v414, %v414
      %vm434 = vcmask 154624
      %v436 = vsel %vm434, %v330, 0
      %v439 = vsel %vm434, %v332, 0
      %v442 = vsel %vm434, %v334, 0
      %v445 = vsel %vm434, %v336, 0
      %v448 = vsel %vm434, %v338, 0
      %v451 = vsel %vm434, %v340, 0
      %v454 = vsel %vm434, %v342, 0
      %v457 = vsel %vm434, %v344, 0
      %v460 = vsel %vm434, %v346, 0
      %v463 = vsel %vm434, %v348, 0
      %v466 = vsel %vm434, %v350, 0
      %v469 = vsel %vm434, %v352, 0
      %v472 = vsel %vm434, %v354, 0
      %v475 = vsel %vm434, %v356, 0
      %v478 = vsel %vm434, %v358, 0
      %v481 = vsel %vm434, %v360, 0
      %vm483 = vcmask 1040384
      %vm484 = vcmask 1041408
      %v485 = vsel %vm483, 4294967295, 65535
      %v486 = vsel %vm484, %v485, 0
      %v488 = vand.u32 %v424, %v486
      %490 = vmatpush.bf16.msra.mxu0 %v422
      %491 = vmatpush.bf16.msra.mxu0 %v421
      %492 = vmatpush.bf16.msra.mxu0 %v420
      %493 = vmatpush.bf16.msra.mxu0 %v419
      %494 = vmatpush.bf16.msra.mxu0 %v418
      %495 = vmatpush.bf16.msra.mxu0 %v417
      %496 = vmatpush.bf16.msra.mxu0 %v416
      %497 = vmatpush.bf16.msra.mxu0 %v415
      %498 = vmatmul.bf16.gmra.mxu0 %v329
      %v499 = vpop.f32.mrf.mxu0
      %v500 = vadd.f32 %v231, %v499
      %v501 = vpop.f32.mrf.mxu0
      %v502 = vadd.f32 %v231, %v501
      %503 = vmatmul.bf16.gmra.mxu0 %v331
      %v504 = vpop.f32.mrf.mxu0
      %v505 = vadd.f32 %v231, %v504
      %v506 = vpop.f32.mrf.mxu0
      %v507 = vadd.f32 %v231, %v506
      %508 = vmatmul.bf16.gmra.mxu0 %v333
      %v509 = vpop.f32.mrf.mxu0
      %v510 = vadd.f32 %v231, %v509
      %v511 = vpop.f32.mrf.mxu0
      %v512 = vadd.f32 %v231, %v511
      %513 = vmatmul.bf16.gmra.mxu0 %v335
      %v514 = vpop.f32.mrf.mxu0
      %v515 = vadd.f32 %v231, %v514
      %v516 = vpop.f32.mrf.mxu0
      %v517 = vadd.f32 %v231, %v516
      %518 = vmatmul.bf16.gmra.mxu0 %v337
      %v519 = vpop.f32.mrf.mxu0
      %v520 = vadd.f32 %v231, %v519
      %v521 = vpop.f32.mrf.mxu0
      %v522 = vadd.f32 %v231, %v521
      %523 = vmatmul.bf16.gmra.mxu0 %v339
      %v524 = vpop.f32.mrf.mxu0
      %v525 = vadd.f32 %v231, %v524
      %v526 = vpop.f32.mrf.mxu0
      %v527 = vadd.f32 %v231, %v526
      %528 = vmatmul.bf16.gmra.mxu0 %v341
      %v529 = vpop.f32.mrf.mxu0
      %v530 = vadd.f32 %v231, %v529
      %v531 = vpop.f32.mrf.mxu0
      %v532 = vadd.f32 %v231, %v531
      %533 = vmatmul.bf16.gmra.mxu0 %v343
      %v534 = vpop.f32.mrf.mxu0
      %v535 = vadd.f32 %v231, %v534
      %v536 = vpop.f32.mrf.mxu0
      %v537 = vadd.f32 %v231, %v536
      %538 = vmatmul.bf16.gmra.mxu0 %v345
      %v539 = vpop.f32.mrf.mxu0
      %v540 = vadd.f32 %v231, %v539
      %v541 = vpop.f32.mrf.mxu0
      %v542 = vadd.f32 %v231, %v541
      %543 = vmatmul.bf16.gmra.mxu0 %v347
      %v544 = vpop.f32.mrf.mxu0
      %v545 = vadd.f32 %v231, %v544
      %v546 = vpop.f32.mrf.mxu0
      %v547 = vadd.f32 %v231, %v546
      %548 = vmatmul.bf16.gmra.mxu0 %v349
      %v549 = vpop.f32.mrf.mxu0
      %v550 = vadd.f32 %v231, %v549
      %v551 = vpop.f32.mrf.mxu0
      %v552 = vadd.f32 %v231, %v551
      %553 = vmatmul.bf16.gmra.mxu0 %v351
      %v554 = vpop.f32.mrf.mxu0
      %v555 = vadd.f32 %v231, %v554
      %v556 = vpop.f32.mrf.mxu0
      %v557 = vadd.f32 %v231, %v556
      %558 = vmatmul.bf16.gmra.mxu0 %v353
      %v559 = vpop.f32.mrf.mxu0
      %v560 = vadd.f32 %v231, %v559
      %v561 = vpop.f32.mrf.mxu0
      %v562 = vadd.f32 %v231, %v561
      %563 = vmatmul.bf16.gmra.mxu0 %v355
      %v564 = vpop.f32.mrf.mxu0
      %v565 = vadd.f32 %v231, %v564
      %v566 = vpop.f32.mrf.mxu0
      %v567 = vadd.f32 %v231, %v566
      %568 = vmatmul.bf16.gmra.mxu0 %v357
      %v569 = vpop.f32.mrf.mxu0
      %v570 = vadd.f32 %v231, %v569
      %v571 = vpop.f32.mrf.mxu0
      %v572 = vadd.f32 %v231, %v571
      %573 = vmatmul.bf16.gmra.mxu0 %v359
      %v574 = vpop.f32.mrf.mxu0
      %v575 = vadd.f32 %v231, %v574
      %v576 = vpop.f32.mrf.mxu0
      %v577 = vadd.f32 %v231, %v576
      %578 = vdwg.mxu0
      %579 = vmatpush.bf16.msra.mxu0 0
      %580 = vmatpush.bf16.msra.mxu0 0
      %581 = vmatpush.bf16.msra.mxu0 0
      %582 = vmatpush.bf16.msra.mxu0 0
      %583 = vmatpush.bf16.msra.mxu0 0
      %584 = vmatpush.bf16.msra.mxu0 0
      %585 = vmatpush.bf16.msra.mxu0 %v488
      %586 = vmatpush.bf16.msra.mxu0 %v423
      %587 = vmatmul.bf16.gmra.mxu0 %v436
      %v588 = vpop.f32.mrf.mxu0
      %v589 = vadd.f32 %v500, %v588
      %v590 = vpop.f32.mrf.mxu0
      %v591 = vadd.f32 %v502, %v590
      %592 = vmatmul.bf16.gmra.mxu0 %v439
      %v593 = vpop.f32.mrf.mxu0
      %v594 = vadd.f32 %v505, %v593
      %v595 = vpop.f32.mrf.mxu0
      %v596 = vadd.f32 %v507, %v595
      %597 = vmatmul.bf16.gmra.mxu0 %v442
      %v598 = vpop.f32.mrf.mxu0
      %v599 = vadd.f32 %v510, %v598
      %v600 = vpop.f32.mrf.mxu0
      %v601 = vadd.f32 %v512, %v600
      %602 = vmatmul.bf16.gmra.mxu0 %v445
      %v603 = vpop.f32.mrf.mxu0
      %v604 = vadd.f32 %v515, %v603
      %v605 = vpop.f32.mrf.mxu0
      %v606 = vadd.f32 %v517, %v605
      %607 = vmatmul.bf16.gmra.mxu0 %v448
      %v608 = vpop.f32.mrf.mxu0
      %v609 = vadd.f32 %v520, %v608
      %v610 = vpop.f32.mrf.mxu0
      %v611 = vadd.f32 %v522, %v610
      %612 = vmatmul.bf16.gmra.mxu0 %v451
      %v613 = vpop.f32.mrf.mxu0
      %v614 = vadd.f32 %v525, %v613
      %v615 = vpop.f32.mrf.mxu0
      %v616 = vadd.f32 %v527, %v615
      %617 = vmatmul.bf16.gmra.mxu0 %v454
      %v618 = vpop.f32.mrf.mxu0
      %v619 = vadd.f32 %v530, %v618
      %v620 = vpop.f32.mrf.mxu0
      %v621 = vadd.f32 %v532, %v620
      %622 = vmatmul.bf16.gmra.mxu0 %v457
      %v623 = vpop.f32.mrf.mxu0
      %v624 = vadd.f32 %v535, %v623
      %v625 = vpop.f32.mrf.mxu0
      %v626 = vadd.f32 %v537, %v625
      %627 = vmatmul.bf16.gmra.mxu0 %v460
      %v628 = vpop.f32.mrf.mxu0
      %v629 = vadd.f32 %v540, %v628
      %v630 = vpop.f32.mrf.mxu0
      %v631 = vadd.f32 %v542, %v630
      %632 = vmatmul.bf16.gmra.mxu0 %v463
      %v633 = vpop.f32.mrf.mxu0
      %v634 = vadd.f32 %v545, %v633
      %v635 = vpop.f32.mrf.mxu0
      %v636 = vadd.f32 %v547, %v635
      %637 = vmatmul.bf16.gmra.mxu0 %v466
      %v638 = vpop.f32.mrf.mxu0
      %v639 = vadd.f32 %v550, %v638
      %v640 = vpop.f32.mrf.mxu0
      %v641 = vadd.f32 %v552, %v640
      %642 = vmatmul.bf16.gmra.mxu0 %v469
      %v643 = vpop.f32.mrf.mxu0
      %v644 = vadd.f32 %v555, %v643
      %v645 = vpop.f32.mrf.mxu0
      %v646 = vadd.f32 %v557, %v645
      %647 = vmatmul.bf16.gmra.mxu0 %v472
      %v648 = vpop.f32.mrf.mxu0
      %v649 = vadd.f32 %v560, %v648
      %v650 = vpop.f32.mrf.mxu0
      %v651 = vadd.f32 %v562, %v650
      %652 = vmatmul.bf16.gmra.mxu0 %v475
      %v653 = vpop.f32.mrf.mxu0
      %v654 = vadd.f32 %v565, %v653
      %v655 = vpop.f32.mrf.mxu0
      %v656 = vadd.f32 %v567, %v655
      %657 = vmatmul.bf16.gmra.mxu0 %v478
      %v658 = vpop.f32.mrf.mxu0
      %v659 = vadd.f32 %v570, %v658
      %v660 = vpop.f32.mrf.mxu0
      %v661 = vadd.f32 %v572, %v660
      %662 = vmatmul.bf16.gmra.mxu0 %v481
      %v663 = vpop.f32.mrf.mxu0
      %v664 = vadd.f32 %v575, %v663
      %v665 = vpop.f32.mrf.mxu0
      %v666 = vadd.f32 %v577, %v665
      %667 = vdwg.mxu0
      %v668 = vmax.f32 %v589, 0.0
      %v669 = vmax.f32 %v591, 0.0
      %v670 = vmax.f32 %v594, 0.0
      %v671 = vmax.f32 %v596, 0.0
      %v672 = vmax.f32 %v599, 0.0
      %v673 = vmax.f32 %v601, 0.0
      %v674 = vmax.f32 %v604, 0.0
      %v675 = vmax.f32 %v606, 0.0
      %v676 = vmax.f32 %v609, 0.0
      %v677 = vmax.f32 %v611, 0.0
      %v678 = vmax.f32 %v614, 0.0
      %v679 = vmax.f32 %v616, 0.0
      %v680 = vmax.f32 %v619, 0.0
      %v681 = vmax.f32 %v621, 0.0
      %v682 = vmax.f32 %v624, 0.0
      %v683 = vmax.f32 %v626, 0.0
      %v684 = vmax.f32 %v629, 0.0
      %v685 = vmax.f32 %v631, 0.0
      %v686 = vmax.f32 %v634, 0.0
      %v687 = vmax.f32 %v636, 0.0
      %v688 = vmax.f32 %v639, 0.0
      %v689 = vmax.f32 %v641, 0.0
      %v690 = vmax.f32 %v644, 0.0
      %v691 = vmax.f32 %v646, 0.0
      %v692 = vmax.f32 %v649, 0.0
      %v693 = vmax.f32 %v651, 0.0
      %v694 = vmax.f32 %v654, 0.0
      %v695 = vmax.f32 %v656, 0.0
      %v696 = vmax.f32 %v659, 0.0
      %v697 = vmax.f32 %v661, 0.0
      %v698 = vmax.f32 %v664, 0.0
      %v699 = vmax.f32 %v666, 0.0
      %v700 = vpack.c.bf16 %v668, %v668
      %v701 = vpack.c.bf16 %v669, %v669
      %v702 = vpack.c.bf16 %v670, %v670
      %v703 = vpack.c.bf16 %v671, %v671
      %v704 = vpack.c.bf16 %v672, %v672
      %v705 = vpack.c.bf16 %v673, %v673
      %v706 = vpack.c.bf16 %v674, %v674
      %v707 = vpack.c.bf16 %v675, %v675
      %v708 = vpack.c.bf16 %v676, %v676
      %v709 = vpack.c.bf16 %v677, %v677
      %v710 = vpack.c.bf16 %v678, %v678
      %v711 = vpack.c.bf16 %v679, %v679
      %v712 = vpack.c.bf16 %v680, %v680
      %v713 = vpack.c.bf16 %v681, %v681
      %v714 = vpack.c.bf16 %v682, %v682
      %v715 = vpack.c.bf16 %v683, %v683
      %v716 = vpack.c.bf16 %v684, %v684
      %v717 = vpack.c.bf16 %v685, %v685
      %v718 = vpack.c.bf16 %v686, %v686
      %v719 = vpack.c.bf16 %v687, %v687
      %v720 = vpack.c.bf16 %v688, %v688
      %v721 = vpack.c.bf16 %v689, %v689
      %v722 = vpack.c.bf16 %v690, %v690
      %v723 = vpack.c.bf16 %v691, %v691
      %v724 = vpack.c.bf16 %v692, %v692
      %v725 = vpack.c.bf16 %v693, %v693
      %v726 = vpack.c.bf16 %v694, %v694
      %v727 = vpack.c.bf16 %v695, %v695
      %v728 = vpack.c.bf16 %v696, %v696
      %v729 = vpack.c.bf16 %v697, %v697
      %v730 = vpack.c.bf16 %v698, %v698
      %v731 = vpack.c.bf16 %v699, %v699
      %vm732 = vcmask 60416
      %733 = vst.msk [vmem:[%s175] sm:$0xf] %vm732, %v700
      %734 = vst.msk [vmem:[%s175 + $0x4] sm:$0xf] %vm732, %v701
      %735 = vst.msk [vmem:[%s175 + $0x8] sm:$0xf] %vm732, %v702
      %736 = vst.msk [vmem:[%s175 + $0xc] sm:$0xf] %vm732, %v703
      %737 = vst.msk [vmem:[%s175 + $0x10] sm:$0xf] %vm732, %v704
      %738 = vst.msk [vmem:[%s175 + $0x14] sm:$0xf] %vm732, %v705
      %739 = vst.msk [vmem:[%s175 + $0x18] sm:$0xf] %vm732, %v706
      %740 = vst.msk [vmem:[%s175 + $0x1c] sm:$0xf] %vm732, %v707
      %741 = vst.msk [vmem:[%s175 + $0x20] sm:$0xf] %vm732, %v708
      %742 = vst.msk [vmem:[%s175 + $0x24] sm:$0xf] %vm732, %v709
      %743 = vst.msk [vmem:[%s175 + $0x28] sm:$0xf] %vm732, %v710
      %744 = vst.msk [vmem:[%s175 + $0x2c] sm:$0xf] %vm732, %v711
      %745 = vst.msk [vmem:[%s175 + $0x30] sm:$0xf] %vm732, %v712
      %746 = vst.msk [vmem:[%s175 + $0x34] sm:$0xf] %vm732, %v713
      %747 = vst.msk [vmem:[%s175 + $0x38] sm:$0xf] %vm732, %v714
      %748 = vst.msk [vmem:[%s175 + $0x3c] sm:$0xf] %vm732, %v715
      %749 = vst.msk [vmem:[%s175 + $0x40] sm:$0xf] %vm732, %v716
      %750 = vst.msk [vmem:[%s175 + $0x44] sm:$0xf] %vm732, %v717
      %751 = vst.msk [vmem:[%s175 + $0x48] sm:$0xf] %vm732, %v718
      %752 = vst.msk [vmem:[%s175 + $0x4c] sm:$0xf] %vm732, %v719
      %753 = vst.msk [vmem:[%s175 + $0x50] sm:$0xf] %vm732, %v720
      %754 = vst.msk [vmem:[%s175 + $0x54] sm:$0xf] %vm732, %v721
      %755 = vst.msk [vmem:[%s175 + $0x58] sm:$0xf] %vm732, %v722
      %756 = vst.msk [vmem:[%s175 + $0x5c] sm:$0xf] %vm732, %v723
      %757 = vst.msk [vmem:[%s175 + $0x60] sm:$0xf] %vm732, %v724
      %758 = vst.msk [vmem:[%s175 + $0x64] sm:$0xf] %vm732, %v725
      %759 = vst.msk [vmem:[%s175 + $0x68] sm:$0xf] %vm732, %v726
      %760 = vst.msk [vmem:[%s175 + $0x6c] sm:$0xf] %vm732, %v727
      %761 = vst.msk [vmem:[%s175 + $0x70] sm:$0xf] %vm732, %v728
      %762 = vst.msk [vmem:[%s175 + $0x74] sm:$0xf] %vm732, %v729
      %763 = vst.msk [vmem:[%s175 + $0x78] sm:$0xf] %vm732, %v730
      %764 = vst.msk [vmem:[%s175 + $0x7c] sm:$0xf] %vm732, %v731
      %s765 = smul.u32 32, %s14
      %p766 = scmp.lt.s32.totalorder %s765, 63
      %s767 = scalar_select %p766, %s765, 63
      %s768 = smul.addr %s767, 4
      %s769 = scalar_lea.vmem %s3, %s768
      // Predicated region
      $region33: #{densenet_forward.5} parent=31 // pred_check
        %p770 = pneg %p100
      $region34: #{densenet_forward.5} parent=31 // pred_check_branch
        %772 = sbr.rel (%p770) target = $region36
      $region35: #{densenet_forward.5} parent=31 // pred_region
        %s773 = smul.u32 32, %s14
      $region36: #{densenet_forward.5} parent=31 // pred_fallthru
        _
    $region32: #{densenet_forward.5} parent=5 // pred_fallthru
      _
    %p774 = scmp.le.s32.totalorder 2, %s9
    // Predicated region
    $region37: #{densenet_forward.5} parent=5 // pred_check
      %p775 = pneg %p774
    $region38: #{densenet_forward.5} parent=5 // pred_check_branch
      %777 = sbr.rel (%p775) target = $region40
    $region39: #{densenet_forward.5} parent=5 // pred_region
      %s778 = ssub.s32 %s9, 2
      // Predicated region
      $region41: #{densenet_forward.5} parent=39 // pred_check
        %p779 = pneg %p106
      $region42: #{densenet_forward.5} parent=39 // pred_check_branch
        %781 = sbr.rel (%p779) target = $region44
      $region43: #{densenet_forward.5} parent=39 // pred_region
        %s782 = smul.u32 32, %s15
        %p783 = scmp.lt.s32.totalorder %s782, 63
        %s784 = scalar_select %p783, %s782, 63
        %s785 = smul.addr %s784, 4
        %s786 = scalar_lea.vmem %s3, %s785
      $region44: #{densenet_forward.5} parent=39 // pred_fallthru
        _
    $region40: #{densenet_forward.5} parent=5 // pred_fallthru
      _
  $region6: #{densenet_forward.5} parent=0 // loop_footer
    %s13 = sadd.s32 1, %s9
  $region7: #{densenet_forward.5} parent=0 // loop_footer_branch
    %8 = sbr.rel target = $region3
  $region8: #{densenet_forward.5} parent=0 // loop_exit
    _

// kernel: densenet_forward.6
$region0: #{densenet_forward.6}
  #allocation0 [shape = 'u32[]', space=smem, size = 0x4, offset = 0x4, fixed_abs, tag = 'smem constant byte address 0x4 - core index']
  #allocation1 [shape = 'u32[72,128]{1,0:T(1,128)}', space=vmem, size = 0x9000, scoped, tag = 'internal scratch']
  #allocation2 [shape = 'bf16[10,10,16]{2,1,0:T(8,128)(2,1)}', space=vmem, size = 0xa000, scoped, tag = 'scratch operand']
  %s0 = inlined_call_operand.vmem [shape: bf16[2,64,8], index: 0, kind: input, shape index: {}]
  %s1 = inlined_call_operand.vmem [shape: f32[1,8], index: 1, kind: input, shape index: {}]
  %s2 = inlined_call_operand.vmem [shape: f32[1,8], index: 2, kind: input, shape index: {}]
  %s3 = inlined_call_operand.vmem [shape: bf16[8,16], index: 3, kind: input, shape index: {}]
  %s4 = inlined_call_operand.vmem [shape: f32[1,16], index: 4, kind: input, shape index: {}]
  %s5 = inlined_call_operand.vmem [shape: f32[1,16], index: 5, kind: input, shape index: {}]
  %s6 = inlined_call_operand.vmem [shape: bf16[9,16,4], index: 6, kind: input, shape index: {}]
  %s7 = inlined_call_operand.vmem [shape: f32[1,12], index: 7, kind: input, shape index: {}]
  %s8 = inlined_call_operand.vmem [shape: f32[1,12], index: 8, kind: input, shape index: {}]
  %s9 = inlined_call_operand.vmem [shape: bf16[12,6], index: 9, kind: input, shape index: {}]
  %s10 = inlined_call_operand.vmem [shape: bf16[2,16,6], index: 10, kind: output, shape index: {}]
  %s11 = sld [smem:[#allocation0]]
  $region73: #{densenet_forward.6} parent=0
    _
  %s13 = ssub.s32 1, %s11
  %s14 = scalar_select 0, %s13, %s11
  loop: start=0, step=1, limit=4
  $region2: #{densenet_forward.6} parent=0 // loop_pre_header
    _
  $region3: #{densenet_forward.6} parent=0 // loop_header
    %s16 = sphi 0, %s20
    %p17 = scmp.ge.s32.totalorder %s16, 4
    %s26 = sphi 0, %s28
    %s29 = sphi 0, %s26
    %s30 = sphi 0, %s29
    %s46 = sphi 0, %s30
    %s50 = sphi 0, %s50
    %s52 = sphi 0, %s50
    %s53 = sphi 0, %s52
    %s67 = sphi 0, %s53
    %s71 = sphi 0, %s71
    %s73 = sphi 0, %s71
    %s74 = sphi 0, %s73
    %s88 = sphi 0, %s74
    %s92 = sphi 0, %s92
    %s94 = sphi 0, %s92
    %s95 = sphi 0, %s94
    %s109 = sphi 0, %s95
    %s113 = sphi 0, %s113
    %s115 = sphi 0, %s113
    %s116 = sphi 0, %s115
    %s130 = sphi 0, %s116
    %s134 = sphi 0, %s134
    %s136 = sphi 0, %s134
    %s137 = sphi 0, %s136
    %s151 = sphi 0, %s137
    %s155 = sphi 0, %s155
    %s157 = sphi 0, %s155
    %s158 = sphi 0, %s157
    %s172 = sphi 0, %s158
    %s176 = sphi 0, %s176
    %s178 = sphi 0, %s176
    %s179 = sphi 0, %s178
    %s193 = sphi 0, %s179
    %s197 = sphi 0, %s197
    %s199 = sphi 0, %s197
    %s200 = sphi 0, %s199
    %s214 = sphi 0, %s200
    %s218 = sphi 0, %s218
    %s220 = sphi 0, %s218
    %s221 = sphi 0, %s220
    %s235 = sphi 0, %s221
    %s241 = sphi 0, %s243
    %s244 = sphi 0, %s241
    %s245 = sphi 0, %s244
    %s261 = sphi 0, %s245
  $region4: #{densenet_forward.6} parent=0 // loop_header_branch
    %19 = sbr.rel (%p17) target = $region8
  $region5: #{densenet_forward.6} parent=0 // loop_body
    %s21 = ssub.s32 %s16, 1
    %s22 = ssub.s32 %s16, 2
    %s23 = sadd.s32 %s16, 1
    %s24 = ssub.s32 %s16, %s23
    %p25 = scmp.eq.s32.totalorder %s24, 0
    %s27 = sadd.s32 %s26, 1
    %s28 = scalar_select %p25, %s26, %s27
    %p31 = pneg %p25
    %p32 = scmp.eq.s32.totalorder %s16, 1
    %p33 = por %p31, %p32
    %p34 = scmp.ne.s32.totalorder %s26, %s29
    %p35 = scmp.eq.s32.totalorder %s16, 0
    %p36 = por %p34, %p35
    %p37 = scmp.ne.s32.totalorder %s26, %s29
    %p38 = scmp.eq.s32.totalorder %s21, 1
    %p39 = por %p37, %p38
    %p40 = scmp.ne.s32.totalorder %s29, %s30
    %p41 = scmp.eq.s32.totalorder %s21, 0
    %p42 = por %p40, %p41
    %p43 = scmp.ne.s32.totalorder %s29, %s30
    %p44 = scmp.eq.s32.totalorder %s22, 1
    %p45 = por %p43, %p44
    %p47 = scmp.ne.s32.totalorder %s30, %s46
    %p48 = scmp.eq.s32.totalorder %s22, 0
    %p49 = por %p47, %p48
    %s51 = sadd.s32 %s50, 1
    %p54 = scmp.eq.s32.totalorder %s16, 1
    %p55 = scmp.ne.s32.totalorder %s50, %s52
    %p56 = scmp.eq.s32.totalorder %s16, 0
    %p57 = por %p55, %p56
    %p58 = scmp.ne.s32.totalorder %s50, %s52
    %p59 = scmp.eq.s32.totalorder %s21, 1
    %p60 = por %p58, %p59
    %p61 = scmp.ne.s32.totalorder %s52, %s53
    %p62 = scmp.eq.s32.totalorder %s21, 0
    %p63 = por %p61, %p62
    %p64 = scmp.ne.s32.totalorder %s52, %s53
    %p65 = scmp.eq.s32.totalorder %s22, 1
    %p66 = por %p64, %p65
    %p68 = scmp.ne.s32.totalorder %s53, %s67
    %p69 = scmp.eq.s32.totalorder %s22, 0
    %p70 = por %p68, %p69
    %s72 = sadd.s32 %s71, 1
    %p75 = scmp.eq.s32.totalorder %s16, 1
    %p76 = scmp.ne.s32.totalorder %s71, %s73
    %p77 = scmp.eq.s32.totalorder %s16, 0
    %p78 = por %p76, %p77
    %p79 = scmp.ne.s32.totalorder %s71, %s73
    %p80 = scmp.eq.s32.totalorder %s21, 1
    %p81 = por %p79, %p80
    %p82 = scmp.ne.s32.totalorder %s73, %s74
    %p83 = scmp.eq.s32.totalorder %s21, 0
    %p84 = por %p82, %p83
    %p85 = scmp.ne.s32.totalorder %s73, %s74
    %p86 = scmp.eq.s32.totalorder %s22, 1
    %p87 = por %p85, %p86
    %p89 = scmp.ne.s32.totalorder %s74, %s88
    %p90 = scmp.eq.s32.totalorder %s22, 0
    %p91 = por %p89, %p90
    %s93 = sadd.s32 %s92, 1
    %p96 = scmp.eq.s32.totalorder %s16, 1
    %p97 = scmp.ne.s32.totalorder %s92, %s94
    %p98 = scmp.eq.s32.totalorder %s16, 0
    %p99 = por %p97, %p98
    %p100 = scmp.ne.s32.totalorder %s92, %s94
    %p101 = scmp.eq.s32.totalorder %s21, 1
    %p102 = por %p100, %p101
    %p103 = scmp.ne.s32.totalorder %s94, %s95
    %p104 = scmp.eq.s32.totalorder %s21, 0
    %p105 = por %p103, %p104
    %p106 = scmp.ne.s32.totalorder %s94, %s95
    %p107 = scmp.eq.s32.totalorder %s22, 1
    %p108 = por %p106, %p107
    %p110 = scmp.ne.s32.totalorder %s95, %s109
    %p111 = scmp.eq.s32.totalorder %s22, 0
    %p112 = por %p110, %p111
    %s114 = sadd.s32 %s113, 1
    %p117 = scmp.eq.s32.totalorder %s16, 1
    %p118 = scmp.ne.s32.totalorder %s113, %s115
    %p119 = scmp.eq.s32.totalorder %s16, 0
    %p120 = por %p118, %p119
    %p121 = scmp.ne.s32.totalorder %s113, %s115
    %p122 = scmp.eq.s32.totalorder %s21, 1
    %p123 = por %p121, %p122
    %p124 = scmp.ne.s32.totalorder %s115, %s116
    %p125 = scmp.eq.s32.totalorder %s21, 0
    %p126 = por %p124, %p125
    %p127 = scmp.ne.s32.totalorder %s115, %s116
    %p128 = scmp.eq.s32.totalorder %s22, 1
    %p129 = por %p127, %p128
    %p131 = scmp.ne.s32.totalorder %s116, %s130
    %p132 = scmp.eq.s32.totalorder %s22, 0
    %p133 = por %p131, %p132
    %s135 = sadd.s32 %s134, 1
    %p138 = scmp.eq.s32.totalorder %s16, 1
    %p139 = scmp.ne.s32.totalorder %s134, %s136
    %p140 = scmp.eq.s32.totalorder %s16, 0
    %p141 = por %p139, %p140
    %p142 = scmp.ne.s32.totalorder %s134, %s136
    %p143 = scmp.eq.s32.totalorder %s21, 1
    %p144 = por %p142, %p143
    %p145 = scmp.ne.s32.totalorder %s136, %s137
    %p146 = scmp.eq.s32.totalorder %s21, 0
    %p147 = por %p145, %p146
    %p148 = scmp.ne.s32.totalorder %s136, %s137
    %p149 = scmp.eq.s32.totalorder %s22, 1
    %p150 = por %p148, %p149
    %p152 = scmp.ne.s32.totalorder %s137, %s151
    %p153 = scmp.eq.s32.totalorder %s22, 0
    %p154 = por %p152, %p153
    %s156 = sadd.s32 %s155, 1
    %p159 = scmp.eq.s32.totalorder %s16, 1
    %p160 = scmp.ne.s32.totalorder %s155, %s157
    %p161 = scmp.eq.s32.totalorder %s16, 0
    %p162 = por %p160, %p161
    %p163 = scmp.ne.s32.totalorder %s155, %s157
    %p164 = scmp.eq.s32.totalorder %s21, 1
    %p165 = por %p163, %p164
    %p166 = scmp.ne.s32.totalorder %s157, %s158
    %p167 = scmp.eq.s32.totalorder %s21, 0
    %p168 = por %p166, %p167
    %p169 = scmp.ne.s32.totalorder %s157, %s158
    %p170 = scmp.eq.s32.totalorder %s22, 1
    %p171 = por %p169, %p170
    %p173 = scmp.ne.s32.totalorder %s158, %s172
    %p174 = scmp.eq.s32.totalorder %s22, 0
    %p175 = por %p173, %p174
    %s177 = sadd.s32 %s176, 1
    %p180 = scmp.eq.s32.totalorder %s16, 1
    %p181 = scmp.ne.s32.totalorder %s176, %s178
    %p182 = scmp.eq.s32.totalorder %s16, 0
    %p183 = por %p181, %p182
    %p184 = scmp.ne.s32.totalorder %s176, %s178
    %p185 = scmp.eq.s32.totalorder %s21, 1
    %p186 = por %p184, %p185
    %p187 = scmp.ne.s32.totalorder %s178, %s179
    %p188 = scmp.eq.s32.totalorder %s21, 0
    %p189 = por %p187, %p188
    %p190 = scmp.ne.s32.totalorder %s178, %s179
    %p191 = scmp.eq.s32.totalorder %s22, 1
    %p192 = por %p190, %p191
    %p194 = scmp.ne.s32.totalorder %s179, %s193
    %p195 = scmp.eq.s32.totalorder %s22, 0
    %p196 = por %p194, %p195
    %s198 = sadd.s32 %s197, 1
    %p201 = scmp.eq.s32.totalorder %s16, 1
    %p202 = scmp.ne.s32.totalorder %s197, %s199
    %p203 = scmp.eq.s32.totalorder %s16, 0
    %p204 = por %p202, %p203
    %p205 = scmp.ne.s32.totalorder %s197, %s199
    %p206 = scmp.eq.s32.totalorder %s21, 1
    %p207 = por %p205, %p206
    %p208 = scmp.ne.s32.totalorder %s199, %s200
    %p209 = scmp.eq.s32.totalorder %s21, 0
    %p210 = por %p208, %p209
    %p211 = scmp.ne.s32.totalorder %s199, %s200
    %p212 = scmp.eq.s32.totalorder %s22, 1
    %p213 = por %p211, %p212
    %p215 = scmp.ne.s32.totalorder %s200, %s214
    %p216 = scmp.eq.s32.totalorder %s22, 0
    %p217 = por %p215, %p216
    %s219 = sadd.s32 %s218, 1
    %p222 = scmp.eq.s32.totalorder %s16, 1
    %p223 = scmp.ne.s32.totalorder %s218, %s220
    %p224 = scmp.eq.s32.totalorder %s16, 0
    %p225 = por %p223, %p224
    %p226 = scmp.ne.s32.totalorder %s218, %s220
    %p227 = scmp.eq.s32.totalorder %s21, 1
    %p228 = por %p226, %p227
    %p229 = scmp.ne.s32.totalorder %s220, %s221
    %p230 = scmp.eq.s32.totalorder %s21, 0
    %p231 = por %p229, %p230
    %p232 = scmp.ne.s32.totalorder %s220, %s221
    %p233 = scmp.eq.s32.totalorder %s22, 1
    %p234 = por %p232, %p233
    %p236 = scmp.ne.s32.totalorder %s221, %s235
    %p237 = scmp.eq.s32.totalorder %s22, 0
    %p238 = por %p236, %p237
    %s239 = ssub.s32 %s16, %s23
    %p240 = scmp.eq.s32.totalorder %s239, 0
    %s242 = sadd.s32 %s241, 1
    %s243 = scalar_select %p240, %s241, %s242
    %p246 = pneg %p240
    %p247 = scmp.eq.s32.totalorder %s16, 1
    %p248 = por %p246, %p247
    %p249 = scmp.ne.s32.totalorder %s241, %s244
    %p250 = scmp.eq.s32.totalorder %s16, 0
    %p251 = por %p249, %p250
    %p252 = scmp.ne.s32.totalorder %s241, %s244
    %p253 = scmp.eq.s32.totalorder %s21, 1
    %p254 = por %p252, %p253
    %p255 = scmp.ne.s32.totalorder %s244, %s245
    %p256 = scmp.eq.s32.totalorder %s21, 0
    %p257 = por %p255, %p256
    %p258 = scmp.ne.s32.totalorder %s244, %s245
    %p259 = scmp.eq.s32.totalorder %s22, 1
    %p260 = por %p258, %p259
    %p262 = scmp.ne.s32.totalorder %s245, %s261
    %p263 = scmp.eq.s32.totalorder %s22, 0
    %p264 = por %p262, %p263
    %p265 = scmp.le.s32.totalorder 1, %s16
    %p266 = scmp.lt.s32.totalorder %s16, 3
    %p267 = pnand %p265, %p266
    %p268 = pneg %p267
    // Predicated region
    $region9: #{densenet_forward.6} parent=5 // pred_check
      _
    $region10: #{densenet_forward.6} parent=5 // pred_check_branch
      %270 = sbr.rel (%p267) target = $region12
    $region11: #{densenet_forward.6} parent=5 // pred_region
      %s271 = ssub.s32 %s16, 1
      // Predicated region
      $region13: #{densenet_forward.6} parent=11 // pred_check
        %p272 = pneg %p63
      $region14: #{densenet_forward.6} parent=11 // pred_check_branch
        %274 = sbr.rel (%p272) target = $region16
      $region15: #{densenet_forward.6} parent=11 // pred_region
        _
      $region16: #{densenet_forward.6} parent=11 // pred_fallthru
        _
      // Predicated region
      $region17: #{densenet_forward.6} parent=11 // pred_check
        %p275 = pneg %p84
      $region18: #{densenet_forward.6} parent=11 // pred_check_branch
        %277 = sbr.rel (%p275) target = $region20
      $region19: #{densenet_forward.6} parent=11 // pred_region
        _
      $region20: #{densenet_forward.6} parent=11 // pred_fallthru
        _
      // Predicated region
      $region21: #{densenet_forward.6} parent=11 // pred_check
        %p278 = pneg %p105
      $region22: #{densenet_forward.6} parent=11 // pred_check_branch
        %280 = sbr.rel (%p278) target = $region24
      $region23: #{densenet_forward.6} parent=11 // pred_region
        _
      $region24: #{densenet_forward.6} parent=11 // pred_fallthru
        _
      // Predicated region
      $region25: #{densenet_forward.6} parent=11 // pred_check
        %p281 = pneg %p126
      $region26: #{densenet_forward.6} parent=11 // pred_check_branch
        %283 = sbr.rel (%p281) target = $region28
      $region27: #{densenet_forward.6} parent=11 // pred_region
        _
      $region28: #{densenet_forward.6} parent=11 // pred_fallthru
        _
      // Predicated region
      $region29: #{densenet_forward.6} parent=11 // pred_check
        %p284 = pneg %p147
      $region30: #{densenet_forward.6} parent=11 // pred_check_branch
        %286 = sbr.rel (%p284) target = $region32
      $region31: #{densenet_forward.6} parent=11 // pred_region
        _
      $region32: #{densenet_forward.6} parent=11 // pred_fallthru
        _
      // Predicated region
      $region33: #{densenet_forward.6} parent=11 // pred_check
        %p287 = pneg %p168
      $region34: #{densenet_forward.6} parent=11 // pred_check_branch
        %289 = sbr.rel (%p287) target = $region36
      $region35: #{densenet_forward.6} parent=11 // pred_region
        _
      $region36: #{densenet_forward.6} parent=11 // pred_fallthru
        _
      // Predicated region
      $region37: #{densenet_forward.6} parent=11 // pred_check
        %p290 = pneg %p189
      $region38: #{densenet_forward.6} parent=11 // pred_check_branch
        %292 = sbr.rel (%p290) target = $region40
      $region39: #{densenet_forward.6} parent=11 // pred_region
        _
      $region40: #{densenet_forward.6} parent=11 // pred_fallthru
        _
      // Predicated region
      $region41: #{densenet_forward.6} parent=11 // pred_check
        %p293 = pneg %p210
      $region42: #{densenet_forward.6} parent=11 // pred_check_branch
        %295 = sbr.rel (%p293) target = $region44
      $region43: #{densenet_forward.6} parent=11 // pred_region
        _
      $region44: #{densenet_forward.6} parent=11 // pred_fallthru
        _
      // Predicated region
      $region45: #{densenet_forward.6} parent=11 // pred_check
        %p296 = pneg %p231
      $region46: #{densenet_forward.6} parent=11 // pred_check_branch
        %298 = sbr.rel (%p296) target = $region48
      $region47: #{densenet_forward.6} parent=11 // pred_region
        _
      $region48: #{densenet_forward.6} parent=11 // pred_fallthru
        _
    $region12: #{densenet_forward.6} parent=5 // pred_fallthru
      _
    %p299 = scmp.lt.s32.totalorder %s16, 2
    // Predicated region
    $region49: #{densenet_forward.6} parent=5 // pred_check
      %p300 = pneg %p299
    $region50: #{densenet_forward.6} parent=5 // pred_check_branch
      %302 = sbr.rel (%p300) target = $region52
    $region51: #{densenet_forward.6} parent=5 // pred_region
      // Predicated region
      $region53: #{densenet_forward.6} parent=51 // pred_check
        %p303 = pneg %p36
      $region54: #{densenet_forward.6} parent=51 // pred_check_branch
        %305 = sbr.rel (%p303) target = $region56
      $region55: #{densenet_forward.6} parent=51 // pred_region
        %p306 = scmp.lt.s32.totalorder %s16, 1
        %s307 = scalar_select %p306, %s16, 1
        %s308 = smul.addr %s307, 8
        %s309 = smul.addr %s308, 4
        %s310 = scalar_lea.vmem %s0, %s309
      $region56: #{densenet_forward.6} parent=51 // pred_fallthru
        _
    $region52: #{densenet_forward.6} parent=5 // pred_fallthru
      _
    %p311 = scmp.le.s32.totalorder 1, %s16
    %p312 = scmp.lt.s32.totalorder %s16, 3
    %p313 = pnand %p311, %p312
    %p314 = pneg %p313
    // Predicated region
    $region57: #{densenet_forward.6} parent=5 // pred_check
      _
    $region58: #{densenet_forward.6} parent=5 // pred_check_branch
      %316 = sbr.rel (%p313) target = $region60
    $region59: #{densenet_forward.6} parent=5 // pred_region
      %s317 = ssub.s32 %s16, 1
      %p318 = scmp.lt.s32.totalorder %s21, 1
      %s319 = scalar_select %p318, %s21, 1
      %s320 = smul.addr %s319, 8
      %s321 = smul.addr %s320, 4
      %s322 = scalar_lea.vmem %s0, %s321
      %p323 = pneg %p42
      %p324 = pneg %p39
      %p325 = pneg %p63
      %p326 = pneg %p60
      %p327 = pneg %p84
      %p328 = pneg %p81
      %p329 = pneg %p105
      %p330 = pneg %p102
      %p331 = pneg %p126
      %p332 = pneg %p123
      %p333 = pneg %p147
      %p334 = pneg %p144
      %p335 = pneg %p168
      %p336 = pneg %p165
      %p337 = pneg %p189
      %p338 = pneg %p186
      %p339 = pneg %p210
      %p340 = pneg %p207
      %p341 = pneg %p231
      %p342 = pneg %p228
      %p343 = pneg %p257
      %p344 = pneg %p254
      %p345 = scmp.lt.s32.totalorder %s21, 1
      %s346 = scalar_select %p345, %s21, 1
      %s347 = smul.addr %s346, 2
      %s348 = smul.addr %s347, 4
      %s349 = scalar_lea.vmem %s10, %s348
      %p350 = scmp.lt.s32.totalorder %s21, 1
      %s351 = scalar_select %p350, %s21, 1
      %s352 = smul.addr %s351, 8
      %s353 = smul.addr %s352, 4
      %s354 = scalar_lea.vmem %s0, %s353
      %p355 = scmp.lt.s32.totalorder %s21, 1
      %s356 = scalar_select %p355, %s21, 1
      %s357 = smul.addr %s356, 2
      %s358 = smul.addr %s357, 4
      %s359 = scalar_lea.vmem %s10, %s358
      %vm361 = vcmask 125952
      %362 = vst.msk [vmem:[#allocation2] sm:$0xf] %vm361, 0
      %vm363 = vcmask 122880
      %364 = vst.msk [vmem:[#allocation2 + $0x4] sm:$0x1] %vm363, 0
      %s365 = scalar_lea.vmem [#allocation2], 72
      %366 = vst.msk [vmem:[%s365] sm:$0xf] %vm361, 0
      %367 = vst.msk [vmem:[%s365 + $0x4] sm:$0x1] %vm363, 0
      %vm368 = vcmask 122880
      %vm369 = vsmask.f32 256
      %vm370 = vmand %vm368, %vm369
      %v371 = vld [vmem:[#allocation2] sm:$0x1]
      %v372 = vsel %vm370, 0, %v371
      %373 = vst [vmem:[#allocation2] sm:$0x1] %v372
      %v374 = vld [vmem:[#allocation2 + $0x8] sm:$0x1]
      %v375 = vsel %vm370, 0, %v374
      %376 = vst [vmem:[#allocation2 + $0x8] sm:$0x1] %v375
      %v377 = vld [vmem:[#allocation2 + $0x10] sm:$0x1]
      %v378 = vsel %vm370, 0, %v377
      %379 = vst [vmem:[#allocation2 + $0x10] sm:$0x1] %v378
      %v380 = vld [vmem:[#allocation2 + $0x18] sm:$0x1]
      %v381 = vsel %vm370, 0, %v380
      %382 = vst [vmem:[#allocation2 + $0x18] sm:$0x1] %v381
      %v383 = vld [vmem:[#allocation2 + $0x20] sm:$0x1]
      %v384 = vsel %vm370, 0, %v383
      %385 = vst [vmem:[#allocation2 + $0x20] sm:$0x1] %v384
      %v386 = vld [vmem:[#allocation2 + $0x28] sm:$0x1]
      %v387 = vsel %vm370, 0, %v386
      %388 = vst [vmem:[#allocation2 + $0x28] sm:$0x1] %v387
      %v389 = vld [vmem:[#allocation2 + $0x30] sm:$0x1]
      %v390 = vsel %vm370, 0, %v389
      %391 = vst [vmem:[#allocation2 + $0x30] sm:$0x1] %v390
      %v392 = vld [vmem:[#allocation2 + $0x38] sm:$0x1]
      %v393 = vsel %vm370, 0, %v392
      %394 = vst [vmem:[#allocation2 + $0x38] sm:$0x1] %v393
      %v395 = vld [vmem:[#allocation2 + $0x40] sm:$0x1]
      %v396 = vsel %vm370, 0, %v395
      %397 = vst [vmem:[#allocation2 + $0x40] sm:$0x1] %v396
      %v398 = vld [vmem:[#allocation2 + $0x48] sm:$0x1]
      %v399 = vsel %vm370, 0, %v398
      %400 = vst [vmem:[#allocation2 + $0x48] sm:$0x1] %v399
      %vm401 = vsmask.f32 7938
      %vm402 = vmand %vm368, %vm401
      %v403 = vld [vmem:[#allocation2 + $0x4] sm:$0x1]
      %v404 = vsel %vm402, 0, %v403
      %405 = vst [vmem:[#allocation2 + $0x4] sm:$0x1] %v404
      %v406 = vld [vmem:[#allocation2 + $0xc] sm:$0x1]
      %v407 = vsel %vm402, 0, %v406
      %408 = vst [vmem:[#allocation2 + $0xc] sm:$0x1] %v407
      %v409 = vld [vmem:[#allocation2 + $0x14] sm:$0x1]
      %v410 = vsel %vm402, 0, %v409
      %411 = vst [vmem:[#allocation2 + $0x14] sm:$0x1] %v410
      %v412 = vld [vmem:[#allocation2 + $0x1c] sm:$0x1]
      %v413 = vsel %vm402, 0, %v412
      %414 = vst [vmem:[#allocation2 + $0x1c] sm:$0x1] %v413
      %v415 = vld [vmem:[#allocation2 + $0x24] sm:$0x1]
      %v416 = vsel %vm402, 0, %v415
      %417 = vst [vmem:[#allocation2 + $0x24] sm:$0x1] %v416
      %v418 = vld [vmem:[#allocation2 + $0x2c] sm:$0x1]
      %v419 = vsel %vm402, 0, %v418
      %420 = vst [vmem:[#allocation2 + $0x2c] sm:$0x1] %v419
      %v421 = vld [vmem:[#allocation2 + $0x34] sm:$0x1]
      %v422 = vsel %vm402, 0, %v421
      %423 = vst [vmem:[#allocation2 + $0x34] sm:$0x1] %v422
      %v424 = vld [vmem:[#allocation2 + $0x3c] sm:$0x1]
      %v425 = vsel %vm402, 0, %v424
      %426 = vst [vmem:[#allocation2 + $0x3c] sm:$0x1] %v425
      %v427 = vld [vmem:[#allocation2 + $0x44] sm:$0x1]
      %v428 = vsel %vm402, 0, %v427
      %429 = vst [vmem:[#allocation2 + $0x44] sm:$0x1] %v428
      %v430 = vld [vmem:[#allocation2 + $0x4c] sm:$0x1]
      %v431 = vsel %vm402, 0, %v430
      %432 = vst [vmem:[#allocation2 + $0x4c] sm:$0x1] %v431
      %v433 = vld [vmem:[%s354] sm:$0xf]
      %v434 = vld [vmem:[%s354 + $0x4] sm:$0xf]
      %v435 = vld [vmem:[%s354 + $0x8] sm:$0xf]
      %v436 = vld [vmem:[%s354 + $0xc] sm:$0xf]
      %v437 = vld [vmem:[%s354 + $0x10] sm:$0xf]
      %v438 = vld [vmem:[%s354 + $0x14] sm:$0xf]
      %v439 = vld [vmem:[%s354 + $0x18] sm:$0xf]
      %v440 = vld [vmem:[%s354 + $0x1c] sm:$0xf]
      %v441 = vunpack.c.l.bf16 %v433
      %v442 = vunpack.c.l.bf16 %v434
      %v443 = vunpack.c.l.bf16 %v435
      %v444 = vunpack.c.l.bf16 %v436
      %v445 = vunpack.c.l.bf16 %v437
      %v446 = vunpack.c.l.bf16 %v438
      %v447 = vunpack.c.l.bf16 %v439
      %v448 = vunpack.c.l.bf16 %v440
      %v449 = vld [vmem:[%s1] sm:$0x1]
      %v451 = vperm.slane %v449, 0
      %v453 = vmul.f32 %v441, %v451
      %v454 = vmul.f32 %v442, %v451
      %v455 = vmul.f32 %v443, %v451
      %v456 = vmul.f32 %v444, %v451
      %v457 = vmul.f32 %v445, %v451
      %v458 = vmul.f32 %v446, %v451
      %v459 = vmul.f32 %v447, %v451
      %v460 = vmul.f32 %v448, %v451
      %v461 = vld [vmem:[%s2] sm:$0x1]
      %v463 = vperm.slane %v461, 0
      %v465 = vadd.f32 %v453, %v463
      %v466 = vadd.f32 %v454, %v463
      %v467 = vadd.f32 %v455, %v463
      %v468 = vadd.f32 %v456, %v463
      %v469 = vadd.f32 %v457, %v463
      %v470 = vadd.f32 %v458, %v463
      %v471 = vadd.f32 %v459, %v463
      %v472 = vadd.f32 %v460, %v463
      %v473 = vmax.f32 %v465, 0.0
      %v474 = vmax.f32 %v466, 0.0
      %v475 = vmax.f32 %v467, 0.0
      %v476 = vmax.f32 %v468, 0.0
      %v477 = vmax.f32 %v469, 0.0
      %v478 = vmax.f32 %v470, 0.0
      %v479 = vmax.f32 %v471, 0.0
      %v480 = vmax.f32 %v472, 0.0
      %v481 = vpack.c.bf16 %v474, %v473
      %v482 = vpack.c.bf16 %v476, %v475
      %v483 = vpack.c.bf16 %v478, %v477
      %v484 = vpack.c.bf16 %v480, %v479
      %v485 = vld [vmem:[%s3] sm:$0xf]
      %vm486 = vcmask 64512
      %v488 = vsel %vm486, %v481, 0
      %v491 = vsel %vm486, %v482, 0
      %v494 = vsel %vm486, %v483, 0
      %v497 = vsel %vm486, %v484, 0
      %vm499 = vcmask 1043456
      %v501 = vsel %vm499, %v485, 0
      %503 = vmatpush.bf16.msra.mxu0 0
      %504 = vmatpush.bf16.msra.mxu0 0
      %505 = vmatpush.bf16.msra.mxu0 0
      %506 = vmatpush.bf16.msra.mxu0 0
      %507 = vmatpush.bf16.msra.mxu0 0
      %508 = vmatpush.bf16.msra.mxu0 0
      %509 = vmatpush.bf16.msra.mxu0 0
      %510 = vmatpush.bf16.msra.mxu0 %v501
      %511 = vmatmul.bf16.gmra.mxu0 %v488
      %v512 = vpop.f32.mrf.mxu0
      %v513 = vadd.f32 0.0, %v512
      %v514 = vpop.f32.mrf.mxu0
      %v515 = vadd.f32 0.0, %v514
      %516 = vmatmul.bf16.gmra.mxu0 %v491
      %v517 = vpop.f32.mrf.mxu0
      %v518 = vadd.f32 0.0, %v517
      %v519 = vpop.f32.mrf.mxu0
      %v520 = vadd.f32 0.0, %v519
      %521 = vmatmul.bf16.gmra.mxu0 %v494
      %v522 = vpop.f32.mrf.mxu0
      %v523 = vadd.f32 0.0, %v522
      %v524 = vpop.f32.mrf.mxu0
      %v525 = vadd.f32 0.0, %v524
      %526 = vmatmul.bf16.gmra.mxu0 %v497
      %v527 = vpop.f32.mrf.mxu0
      %v528 = vadd.f32 0.0, %v527
      %v529 = vpop.f32.mrf.mxu0
      %v530 = vadd.f32 0.0, %v529
      %531 = vdwg.mxu0
      %v532 = vld [vmem:[%s4] sm:$0x1]
      %v534 = vperm.slane %v532, 0
      %v536 = vmul.f32 %v513, %v534
      %v537 = vmul.f32 %v515, %v534
      %v538 = vmul.f32 %v518, %v534
      %v539 = vmul.f32 %v520, %v534
      %v540 = vmul.f32 %v523, %v534
      %v541 = vmul.f32 %v525, %v534
      %v542 = vmul.f32 %v528, %v534
      %v543 = vmul.f32 %v530, %v534
      %v544 = vld [vmem:[%s5] sm:$0x1]
      %v546 = vperm.slane %v544, 0
      %v548 = vadd.f32 %v536, %v546
      %v549 = vadd.f32 %v537, %v546
      %v550 = vadd.f32 %v538, %v546
      %v551 = vadd.f32 %v539, %v546
      %v552 = vadd.f32 %v540, %v546
      %v553 = vadd.f32 %v541, %v546
      %v554 = vadd.f32 %v542, %v546
      %v555 = vadd.f32 %v543, %v546
      %v556 = vmax.f32 %v548, 0.0
      %v557 = vmax.f32 %v549, 0.0
      %v558 = vmax.f32 %v550, 0.0
      %v559 = vmax.f32 %v551, 0.0
      %v560 = vmax.f32 %v552, 0.0
      %v561 = vmax.f32 %v553, 0.0
      %v562 = vmax.f32 %v554, 0.0
      %v563 = vmax.f32 %v555, 0.0
      %v564 = vpack.c.bf16 %v556, %v556
      %v565 = vpack.c.bf16 %v557, %v557
      %v566 = vpack.c.bf16 %v558, %v558
      %v567 = vpack.c.bf16 %v559, %v559
      %v568 = vpack.c.bf16 %v560, %v560
      %v569 = vpack.c.bf16 %v561, %v561
      %v570 = vpack.c.bf16 %v562, %v562
      %v571 = vpack.c.bf16 %v563, %v563
      %v573 = vshrl.u32 %v564, 16
      %v575 = vrot.slane %v573, 7
      %v576 = vshll.u32 %v564, 16
      %v578 = vor.u32 %v575, %v576
      %v579 = vrot.slane %v575, 4
      %v581 = vshrl.u32 %v565, 16
      %v583 = vrot.slane %v581, 7
      %v584 = vshll.u32 %v565, 16
      %v586 = vor.u32 %v583, %v584
      %v587 = vrot.slane %v583, 4
      %v589 = vshrl.u32 %v566, 16
      %v591 = vrot.slane %v589, 7
      %v592 = vshll.u32 %v566, 16
      %v594 = vor.u32 %v591, %v592
      %v595 = vrot.slane %v591, 4
      %v597 = vshrl.u32 %v567, 16
      %v599 = vrot.slane %v597, 7
      %v600 = vshll.u32 %v567, 16
      %v602 = vor.u32 %v599, %v600
      %v603 = vrot.slane %v599, 4
      %v605 = vshrl.u32 %v568, 16
      %v607 = vrot.slane %v605, 7
      %v608 = vshll.u32 %v568, 16
      %v610 = vor.u32 %v607, %v608
      %v611 = vrot.slane %v607, 4
      %v613 = vshrl.u32 %v569, 16
      %v615 = vrot.slane %v613, 7
      %v616 = vshll.u32 %v569, 16
      %v618 = vor.u32 %v615, %v616
      %v619 = vrot.slane %v615, 4
      %v621 = vshrl.u32 %v570, 16
      %v623 = vrot.slane %v621, 7
      %v624 = vshll.u32 %v570, 16
      %v626 = vor.u32 %v623, %v624
      %v627 = vrot.slane %v623, 4
      %v629 = vshrl.u32 %v571, 16
      %v631 = vrot.slane %v629, 7
      %v632 = vshll.u32 %v571, 16
      %v634 = vor.u32 %v631, %v632
      %v635 = vrot.slane %v631, 4
      %s652 = scalar_lea.vmem [#allocation2], 8
      %vm653 = vcmask 125952
      %vm654 = vmand %vm653, %vm401
      %v655 = vld [vmem:[%s652] sm:$0xf]
      %v656 = vsel %vm654, %v578, %v655
      %657 = vst [vmem:[%s652] sm:$0xf] %v656
      %v658 = vld [vmem:[%s652 + $0x4] sm:$0x1]
      %v659 = vsel %vm370, %v579, %v658
      %660 = vst [vmem:[%s652 + $0x4] sm:$0x1] %v659
      %v661 = vld [vmem:[%s652 + $0x8] sm:$0xf]
      %v662 = vsel %vm654, %v586, %v661
      %663 = vst [vmem:[%s652 + $0x8] sm:$0xf] %v662
      %v664 = vld [vmem:[%s652 + $0xc] sm:$0x1]
      %v665 = vsel %vm370, %v587, %v664
      %666 = vst [vmem:[%s652 + $0xc] sm:$0x1] %v665
      %v667 = vld [vmem:[%s652 + $0x10] sm:$0xf]
      %v668 = vsel %vm654, %v594, %v667
      %669 = vst [vmem:[%s652 + $0x10] sm:$0xf] %v668
      %v670 = vld [vmem:[%s652 + $0x14] sm:$0x1]
      %v671 = vsel %vm370, %v595, %v670
      %672 = vst [vmem:[%s652 + $0x14] sm:$0x1] %v671
      %v673 = vld [vmem:[%s652 + $0x18] sm:$0xf]
      %v674 = vsel %vm654, %v602, %v673
      %675 = vst [vmem:[%s652 + $0x18] sm:$0xf] %v674
      %v676 = vld [vmem:[%s652 + $0x1c] sm:$0x1]
      %v677 = vsel %vm370, %v603, %v676
      %678 = vst [vmem:[%s652 + $0x1c] sm:$0x1] %v677
      %v679 = vld [vmem:[%s652 + $0x20] sm:$0xf]
      %v680 = vsel %vm654, %v610, %v679
      %681 = vst [vmem:[%s652 + $0x20] sm:$0xf] %v680
      %v682 = vld [vmem:[%s652 + $0x24] sm:$0x1]
      %v683 = vsel %vm370, %v611, %v682
      %684 = vst [vmem:[%s652 + $0x24] sm:$0x1] %v683
      %v685 = vld [vmem:[%s652 + $0x28] sm:$0xf]
      %v686 = vsel %vm654, %v618, %v685
      %687 = vst [vmem:[%s652 + $0x28] sm:$0xf] %v686
      %v688 = vld [vmem:[%s652 + $0x2c] sm:$0x1]
      %v689 = vsel %vm370, %v619, %v688
      %690 = vst [vmem:[%s652 + $0x2c] sm:$0x1] %v689
      %v691 = vld [vmem:[%s652 + $0x30] sm:$0xf]
      %v692 = vsel %vm654, %v626, %v691
      %693 = vst [vmem:[%s652 + $0x30] sm:$0xf] %v692
      %v694 = vld [vmem:[%s652 + $0x34] sm:$0x1]
      %v695 = vsel %vm370, %v627, %v694
      %696 = vst [vmem:[%s652 + $0x34] sm:$0x1] %v695
      %v697 = vld [vmem:[%s652 + $0x38] sm:$0xf]
      %v698 = vsel %vm654, %v634, %v697
      %699 = vst [vmem:[%s652 + $0x38] sm:$0xf] %v698
      %v700 = vld [vmem:[%s652 + $0x3c] sm:$0x1]
      %v701 = vsel %vm370, %v635, %v700
      %702 = vst [vmem:[%s652 + $0x3c] sm:$0x1] %v701
      %v703 = vld [vmem:[#allocation2] sm:$0xf]
      %v704 = vld [vmem:[#allocation2 + $0x8] sm:$0xf]
      %v705 = vld [vmem:[#allocation2 + $0x10] sm:$0xf]
      %v706 = vld [vmem:[#allocation2 + $0x18] sm:$0xf]
      %v707 = vld [vmem:[#allocation2 + $0x20] sm:$0xf]
      %v708 = vld [vmem:[#allocation2 + $0x28] sm:$0xf]
      %v709 = vld [vmem:[#allocation2 + $0x30] sm:$0xf]
      %v710 = vld [vmem:[#allocation2 + $0x38] sm:$0xf]
      %v711 = vld [vmem:[%s6] sm:$0xf]
      %v712 = vld [vmem:[%s6 + $0x4] sm:$0xf]
      %v713 = vld [vmem:[#allocation2 + $0x4] sm:$0x1]
      %v714 = vld [vmem:[#allocation2 + $0xc] sm:$0x1]
      %v715 = vld [vmem:[#allocation2 + $0x14] sm:$0x1]
      %v716 = vld [vmem:[#allocation2 + $0x1c] sm:$0x1]
      %v717 = vld [vmem:[#allocation2 + $0x24] sm:$0x1]
      %v718 = vld [vmem:[#allocation2 + $0x2c] sm:$0x1]
      %v719 = vld [vmem:[#allocation2 + $0x34] sm:$0x1]
      %v720 = vld [vmem:[#allocation2 + $0x3c] sm:$0x1]
      %vm721 = vsmask.f32 3328
      %vm722 = vsmask.f32 7440
      %vm723 = vmor %vm721, %vm722
      %v725 = vshrl.u32 %v703, 16
      %v727 = vrot.slane %v725, 4
      %v728 = vshll.u32 %v703, 16
      %v730 = vrot.slane %v728, 5
      %v731 = vor.u32 %v727, %v730
      %v732 = vrot.slane %v731, 4
      %v734 = vshll.u32 %v713, 16
      %v736 = vrot.slane %v734, 5
      %v737 = vsel %vm723, %v732, %v736
      %v739 = vshrl.u32 %v704, 16
      %v741 = vrot.slane %v739, 4
      %v742 = vshll.u32 %v704, 16
      %v744 = vrot.slane %v742, 5
      %v745 = vor.u32 %v741, %v744
      %v746 = vrot.slane %v745, 4
      %v748 = vshll.u32 %v714, 16
      %v750 = vrot.slane %v748, 5
      %v751 = vsel %vm723, %v746, %v750
      %v753 = vshrl.u32 %v705, 16
      %v755 = vrot.slane %v753, 4
      %v756 = vshll.u32 %v705, 16
      %v758 = vrot.slane %v756, 5
      %v759 = vor.u32 %v755, %v758
      %v760 = vrot.slane %v759, 4
      %v762 = vshll.u32 %v715, 16
      %v764 = vrot.slane %v762, 5
      %v765 = vsel %vm723, %v760, %v764
      %v767 = vshrl.u32 %v706, 16
      %v769 = vrot.slane %v767, 4
      %v770 = vshll.u32 %v706, 16
      %v772 = vrot.slane %v770, 5
      %v773 = vor.u32 %v769, %v772
      %v774 = vrot.slane %v773, 4
      %v776 = vshll.u32 %v716, 16
      %v778 = vrot.slane %v776, 5
      %v779 = vsel %vm723, %v774, %v778
      %v781 = vshrl.u32 %v707, 16
      %v783 = vrot.slane %v781, 4
      %v784 = vshll.u32 %v707, 16
      %v786 = vrot.slane %v784, 5
      %v787 = vor.u32 %v783, %v786
      %v788 = vrot.slane %v787, 4
      %v790 = vshll.u32 %v717, 16
      %v792 = vrot.slane %v790, 5
      %v793 = vsel %vm723, %v788, %v792
      %v795 = vshrl.u32 %v708, 16
      %v797 = vrot.slane %v795, 4
      %v798 = vshll.u32 %v708, 16
      %v800 = vrot.slane %v798, 5
      %v801 = vor.u32 %v797, %v800
      %v802 = vrot.slane %v801, 4
      %v804 = vshll.u32 %v718, 16
      %v806 = vrot.slane %v804, 5
      %v807 = vsel %vm723, %v802, %v806
      %v809 = vshrl.u32 %v709, 16
      %v811 = vrot.slane %v809, 4
      %v812 = vshll.u32 %v709, 16
      %v814 = vrot.slane %v812, 5
      %v815 = vor.u32 %v811, %v814
      %v816 = vrot.slane %v815, 4
      %v818 = vshll.u32 %v719, 16
      %v820 = vrot.slane %v818, 5
      %v821 = vsel %vm723, %v816, %v820
      %v823 = vshrl.u32 %v710, 16
      %v825 = vrot.slane %v823, 4
      %v826 = vshll.u32 %v710, 16
      %v828 = vrot.slane %v826, 5
      %v829 = vor.u32 %v825, %v828
      %v830 = vrot.slane %v829, 4
      %v832 = vshll.u32 %v720, 16
      %v834 = vrot.slane %v832, 5
      %v835 = vsel %vm723, %v830, %v834
      %s836 = scalar_lea.vmem %s6, 8
      %v837 = vld [vmem:[%s836] sm:$0xf]
      %v838 = vld [vmem:[%s836 + $0x4] sm:$0xf]
      %v839 = vunpack.c.l.b16 %v737
      %v840 = vunpack.c.l.b16 %v751
      %v841 = vunpack.c.l.b16 %v765
      %v842 = vunpack.c.l.b16 %v779
      %v843 = vunpack.c.l.b16 %v793
      %v844 = vunpack.c.l.b16 %v807
      %v845 = vunpack.c.l.b16 %v821
      %v846 = vunpack.c.l.b16 %v835
      %v847 = vpack.c.b16 %v840, %v839
      %v848 = vpack.c.b16 %v842, %v841
      %v849 = vpack.c.b16 %v844, %v843
      %v850 = vpack.c.b16 %v846, %v845
      %v853 = vunpack.c.l.b16 %v837
      %v854 = vunpack.c.l.b16 %v838
      %v855 = vpack.c.b16 %v854, %v853
      %vm857 = vcmask 130048
      %v859 = vsel %vm857, %v847, 0
      %v862 = vsel %vm857, %v848, 0
      %v865 = vsel %vm857, %v849, 0
      %v868 = vsel %vm857, %v850, 0
      %870 = vmatpush.bf16.msra.mxu0 0
      %871 = vmatpush.bf16.msra.mxu0 0
      %872 = vmatpush.bf16.msra.mxu0 0
      %873 = vmatpush.bf16.msra.mxu0 0
      %874 = vmatpush.bf16.msra.mxu0 0
      %875 = vmatpush.bf16.msra.mxu0 0
      %876 = vmatpush.bf16.msra.mxu0 0
      %877 = vmatpush.bf16.msra.mxu0 %v855
      %878 = vmatmul.bf16.gmra.mxu0 %v859
      %v879 = vpop.f32.mrf.mxu0
      %v880 = vadd.f32 0.0, %v879
      %v881 = vpop.f32.mrf.mxu0
      %v882 = vadd.f32 0.0, %v881
      %883 = vmatmul.bf16.gmra.mxu0 %v862
      %v884 = vpop.f32.mrf.mxu0
      %v885 = vadd.f32 0.0, %v884
      %v886 = vpop.f32.mrf.mxu0
      %v887 = vadd.f32 0.0, %v886
      %888 = vmatmul.bf16.gmra.mxu0 %v865
      %v889 = vpop.f32.mrf.mxu0
      %v890 = vadd.f32 0.0, %v889
      %v891 = vpop.f32.mrf.mxu0
      %v892 = vadd.f32 0.0, %v891
      %893 = vmatmul.bf16.gmra.mxu0 %v868
      %v894 = vpop.f32.mrf.mxu0
      %v895 = vadd.f32 0.0, %v894
      %v896 = vpop.f32.mrf.mxu0
      %v897 = vadd.f32 0.0, %v896
      %898 = vdwg.mxu0
      %v907 = vunpack.c.l.b16 %v703
      %v908 = vunpack.c.l.b16 %v704
      %v909 = vunpack.c.l.b16 %v705
      %v910 = vunpack.c.l.b16 %v706
      %v911 = vunpack.c.l.b16 %v707
      %v912 = vunpack.c.l.b16 %v708
      %v913 = vunpack.c.l.b16 %v709
      %v914 = vunpack.c.l.b16 %v710
      %v915 = vpack.c.b16 %v908, %v907
      %v916 = vpack.c.b16 %v910, %v909
      %v917 = vpack.c.b16 %v912, %v911
      %v918 = vpack.c.b16 %v914, %v913
      %v921 = vunpack.c.l.b16 %v711
      %v922 = vunpack.c.l.b16 %v712
      %v923 = vpack.c.b16 %v922, %v921
      %v926 = vsel %vm857, %v915, 0
      %v929 = vsel %vm857, %v916, 0
      %v932 = vsel %vm857, %v917, 0
      %v935 = vsel %vm857, %v918, 0
      %937 = vmatpush.bf16.msra.mxu0 0
      %938 = vmatpush.bf16.msra.mxu0 0
      %939 = vmatpush.bf16.msra.mxu0 0
      %940 = vmatpush.bf16.msra.mxu0 0
      %941 = vmatpush.bf16.msra.mxu0 0
      %942 = vmatpush.bf16.msra.mxu0 0
      %943 = vmatpush.bf16.msra.mxu0 0
      %944 = vmatpush.bf16.msra.mxu0 %v923
      %945 = vmatmul.bf16.gmra.mxu0 %v926
      %v946 = vpop.f32.mrf.mxu0
      %v947 = vadd.f32 %v880, %v946
      %v948 = vpop.f32.mrf.mxu0
      %v949 = vadd.f32 %v882, %v948
      %950 = vmatmul.bf16.gmra.mxu0 %v929
      %v951 = vpop.f32.mrf.mxu0
      %v952 = vadd.f32 %v885, %v951
      %v953 = vpop.f32.mrf.mxu0
      %v954 = vadd.f32 %v887, %v953
      %955 = vmatmul.bf16.gmra.mxu0 %v932
      %v956 = vpop.f32.mrf.mxu0
      %v957 = vadd.f32 %v890, %v956
      %v958 = vpop.f32.mrf.mxu0
      %v959 = vadd.f32 %v892, %v958
      %960 = vmatmul.bf16.gmra.mxu0 %v935
      %v961 = vpop.f32.mrf.mxu0
      %v962 = vadd.f32 %v895, %v961
      %v963 = vpop.f32.mrf.mxu0
      %v964 = vadd.f32 %v897, %v963
      %965 = vdwg.mxu0
      %v966 = vld [vmem:[#allocation2] sm:$0xe]
      %v967 = vld [vmem:[#allocation2 + $0x8] sm:$0xe]
      %v968 = vld [vmem:[#allocation2 + $0x10] sm:$0xe]
      %v969 = vld [vmem:[#allocation2 + $0x18] sm:$0xe]
      %v970 = vld [vmem:[#allocation2 + $0x20] sm:$0xe]
      %v971 = vld [vmem:[#allocation2 + $0x28] sm:$0xe]
      %v972 = vld [vmem:[#allocation2 + $0x30] sm:$0xe]
      %v973 = vld [vmem:[#allocation2 + $0x38] sm:$0xe]
      %vm990 = vcmask 1042432
      %vm991 = vcmask 1046532
      %vm992 = vmor %vm990, %vm991
      %v993 = vrot.slane %v966, 5
      %v994 = vrot.slane %v993, 4
      %v995 = vrot.slane %v713, 5
      %v996 = vsel %vm992, %v994, %v995
      %v997 = vrot.slane %v967, 5
      %v998 = vrot.slane %v997, 4
      %v999 = vrot.slane %v714, 5
      %v1000 = vsel %vm992, %v998, %v999
      %v1001 = vrot.slane %v968, 5
      %v1002 = vrot.slane %v1001, 4
      %v1003 = vrot.slane %v715, 5
      %v1004 = vsel %vm992, %v1002, %v1003
      %v1005 = vrot.slane %v969, 5
      %v1006 = vrot.slane %v1005, 4
      %v1007 = vrot.slane %v716, 5
      %v1008 = vsel %vm992, %v1006, %v1007
      %v1009 = vrot.slane %v970, 5
      %v1010 = vrot.slane %v1009, 4
      %v1011 = vrot.slane %v717, 5
      %v1012 = vsel %vm992, %v1010, %v1011
      %v1013 = vrot.slane %v971, 5
      %v1014 = vrot.slane %v1013, 4
      %v1015 = vrot.slane %v718, 5
      %v1016 = vsel %vm992, %v1014, %v1015
      %v1017 = vrot.slane %v972, 5
      %v1018 = vrot.slane %v1017, 4
      %v1019 = vrot.slane %v719, 5
      %v1020 = vsel %vm992, %v1018, %v1019
      %v1021 = vrot.slane %v973, 5
      %v1022 = vrot.slane %v1021, 4
      %v1023 = vrot.slane %v720, 5
      %v1024 = vsel %vm992, %v1022, %v1023
      %s1025 = scalar_lea.vmem %s6, 16
      %v1026 = vld [vmem:[%s1025] sm:$0xf]
      %v1027 = vld [vmem:[%s1025 + $0x4] sm:$0xf]
      %v1028 = vunpack.c.l.b16 %v996
      %v1029 = vunpack.c.l.b16 %v1000
      %v1030 = vunpack.c.l.b16 %v1004
      %v1031 = vunpack.c.l.b16 %v1008
      %v1032 = vunpack.c.l.b16 %v1012
      %v1033 = vunpack.c.l.b16 %v1016
      %v1034 = vunpack.c.l.b16 %v1020
      %v1035 = vunpack.c.l.b16 %v1024
      %v1036 = vpack.c.b16 %v1029, %v1028
      %v1037 = vpack.c.b16 %v1031, %v1030
      %v1038 = vpack.c.b16 %v1033, %v1032
      %v1039 = vpack.c.b16 %v1035, %v1034
      %v1042 = vunpack.c.l.b16 %v1026
      %v1043 = vunpack.c.l.b16 %v1027
      %v1044 = vpack.c.b16 %v1043, %v1042
      %v1047 = vsel %vm857, %v1036, 0
      %v1050 = vsel %vm857, %v1037, 0
      %v1053 = vsel %vm857, %v1038, 0
      %v1056 = vsel %vm857, %v1039, 0
      %1058 = vmatpush.bf16.msra.mxu0 0
      %1059 = vmatpush.bf16.msra.mxu0 0
      %1060 = vmatpush.bf16.msra.mxu0 0
      %1061 = vmatpush.bf16.msra.mxu0 0
      %1062 = vmatpush.bf16.msra.mxu0 0
      %1063 = vmatpush.bf16.msra.mxu0 0
      %1064 = vmatpush.bf16.msra.mxu0 0
      %1065 = vmatpush.bf16.msra.mxu0 %v1044
      %1066 = vmatmul.bf16.gmra.mxu0 %v1047
      %v1067 = vpop.f32.mrf.mxu0
      %v1068 = vadd.f32 0.0, %v1067
      %v1069 = vpop.f32.mrf.mxu0
      %v1070 = vadd.f32 0.0, %v1069
      %1071 = vmatmul.bf16.gmra.mxu0 %v1050
      %v1072 = vpop.f32.mrf.mxu0
      %v1073 = vadd.f32 0.0, %v1072
      %v1074 = vpop.f32.mrf.mxu0
      %v1075 = vadd.f32 0.0, %v1074
      %1076 = vmatmul.bf16.gmra.mxu0 %v1053
      %v1077 = vpop.f32.mrf.mxu0
      %v1078 = vadd.f32 0.0, %v1077
      %v1079 = vpop.f32.mrf.mxu0
      %v1080 = vadd.f32 0.0, %v1079
      %1081 = vmatmul.bf16.gmra.mxu0 %v1056
      %v1082 = vpop.f32.mrf.mxu0
      %v1083 = vadd.f32 0.0, %v1082
      %v1084 = vpop.f32.mrf.mxu0
      %v1085 = vadd.f32 0.0, %v1084
      %1086 = vdwg.mxu0
      %v1087 = vadd.f32 %v947, %v1068
      %v1088 = vadd.f32 %v949, %v1070
      %v1089 = vadd.f32 %v952, %v1073
      %v1090 = vadd.f32 %v954, %v1075
      %v1091 = vadd.f32 %v957, %v1078
      %v1092 = vadd.f32 %v959, %v1080
      %v1093 = vadd.f32 %v962, %v1083
      %v1094 = vadd.f32 %v964, %v1085
      %v1095 = vld [vmem:[%s652] sm:$0xf]
      %v1096 = vld [vmem:[%s652 + $0x8] sm:$0xf]
      %v1097 = vld [vmem:[%s652 + $0x10] sm:$0xf]
      %v1098 = vld [vmem:[%s652 + $0x18] sm:$0xf]
      %v1099 = vld [vmem:[%s652 + $0x20] sm:$0xf]
      %v1100 = vld [vmem:[%s652 + $0x28] sm:$0xf]
      %v1101 = vld [vmem:[%s652 + $0x30] sm:$0xf]
      %v1102 = vld [vmem:[%s652 + $0x38] sm:$0xf]
      %s1103 = scalar_lea.vmem %s6, 24
      %v1104 = vld [vmem:[%s1103] sm:$0xf]
      %v1105 = vld [vmem:[%s1103 + $0x4] sm:$0xf]
      %v1114 = vunpack.c.l.b16 %v1095
      %v1115 = vunpack.c.l.b16 %v1096
      %v1116 = vunpack.c.l.b16 %v1097
      %v1117 = vunpack.c.l.b16 %v1098
      %v1118 = vunpack.c.l.b16 %v1099
      %v1119 = vunpack.c.l.b16 %v1100
      %v1120 = vunpack.c.l.b16 %v1101
      %v1121 = vunpack.c.l.b16 %v1102
      %v1122 = vpack.c.b16 %v1115, %v1114
      %v1123 = vpack.c.b16 %v1117, %v1116
      %v1124 = vpack.c.b16 %v1119, %v1118
      %v1125 = vpack.c.b16 %v1121, %v1120
      %v1128 = vunpack.c.l.b16 %v1104
      %v1129 = vunpack.c.l.b16 %v1105
      %v1130 = vpack.c.b16 %v1129, %v1128
      %v1133 = vsel %vm857, %v1122, 0
      %v1136 = vsel %vm857, %v1123, 0
      %v1139 = vsel %vm857, %v1124, 0
      %v1142 = vsel %vm857, %v1125, 0
      %1144 = vmatpush.bf16.msra.mxu0 0
      %1145 = vmatpush.bf16.msra.mxu0 0
      %1146 = vmatpush.bf16.msra.mxu0 0
      %1147 = vmatpush.bf16.msra.mxu0 0
      %1148 = vmatpush.bf16.msra.mxu0 0
      %1149 = vmatpush.bf16.msra.mxu0 0
      %1150 = vmatpush.bf16.msra.mxu0 0
      %1151 = vmatpush.bf16.msra.mxu0 %v1130
      %1152 = vmatmul.bf16.gmra.mxu0 %v1133
      %v1153 = vpop.f32.mrf.mxu0
      %v1154 = vadd.f32 0.0, %v1153
      %v1155 = vpop.f32.mrf.mxu0
      %v1156 = vadd.f32 0.0, %v1155
      %1157 = vmatmul.bf16.gmra.mxu0 %v1136
      %v1158 = vpop.f32.mrf.mxu0
      %v1159 = vadd.f32 0.0, %v1158
      %v1160 = vpop.f32.mrf.mxu0
      %v1161 = vadd.f32 0.0, %v1160
      %1162 = vmatmul.bf16.gmra.mxu0 %v1139
      %v1163 = vpop.f32.mrf.mxu0
      %v1164 = vadd.f32 0.0, %v1163
      %v1165 = vpop.f32.mrf.mxu0
      %v1166 = vadd.f32 0.0, %v1165
      %1167 = vmatmul.bf16.gmra.mxu0 %v1142
      %v1168 = vpop.f32.mrf.mxu0
      %v1169 = vadd.f32 0.0, %v1168
      %v1170 = vpop.f32.mrf.mxu0
      %v1171 = vadd.f32 0.0, %v1170
      %1172 = vdwg.mxu0
      %v1173 = vadd.f32 %v1087, %v1154
      %v1174 = vadd.f32 %v1088, %v1156
      %v1175 = vadd.f32 %v1089, %v1159
      %v1176 = vadd.f32 %v1090, %v1161
      %v1177 = vadd.f32 %v1091, %v1164
      %v1178 = vadd.f32 %v1092, %v1166
      %v1179 = vadd.f32 %v1093, %v1169
      %v1180 = vadd.f32 %v1094, %v1171
      %v1181 = vld [vmem:[%s652] sm:$0xf]
      %v1182 = vld [vmem:[%s652 + $0x4] sm:$0x1]
      %v1183 = vld [vmem:[%s652 + $0x8] sm:$0xf]
      %v1184 = vld [vmem:[%s652 + $0xc] sm:$0x1]
      %v1185 = vld [vmem:[%s652 + $0x10] sm:$0xf]
      %v1186 = vld [vmem:[%s652 + $0x14] sm:$0x1]
      %v1187 = vld [vmem:[%s652 + $0x18] sm:$0xf]
      %v1188 = vld [vmem:[%s652 + $0x1c] sm:$0x1]
      %v1189 = vld [vmem:[%s652 + $0x20] sm:$0xf]
      %v1190 = vld [vmem:[%s652 + $0x24] sm:$0x1]
      %v1191 = vld [vmem:[%s652 + $0x28] sm:$0xf]
      %v1192 = vld [vmem:[%s652 + $0x2c] sm:$0x1]
      %v1193 = vld [vmem:[%s652 + $0x30] sm:$0xf]
      %v1194 = vld [vmem:[%s652 + $0x34] sm:$0x1]
      %v1195 = vld [vmem:[%s652 + $0x38] sm:$0xf]
      %v1196 = vld [vmem:[%s652 + $0x3c] sm:$0x1]
      %v1198 = vshrl.u32 %v1181, 16
      %v1200 = vrot.slane %v1198, 4
      %v1201 = vshll.u32 %v1181, 16
      %v1203 = vrot.slane %v1201, 5
      %v1204 = vor.u32 %v1200, %v1203
      %v1205 = vrot.slane %v1204, 4
      %v1207 = vshll.u32 %v1182, 16
      %v1209 = vrot.slane %v1207, 5
      %v1210 = vsel %vm723, %v1205, %v1209
      %v1212 = vshrl.u32 %v1183, 16
      %v1214 = vrot.slane %v1212, 4
      %v1215 = vshll.u32 %v1183, 16
      %v1217 = vrot.slane %v1215, 5
      %v1218 = vor.u32 %v1214, %v1217
      %v1219 = vrot.slane %v1218, 4
      %v1221 = vshll.u32 %v1184, 16
      %v1223 = vrot.slane %v1221, 5
      %v1224 = vsel %vm723, %v1219, %v1223
      %v1226 = vshrl.u32 %v1185, 16
      %v1228 = vrot.slane %v1226, 4
      %v1229 = vshll.u32 %v1185, 16
      %v1231 = vrot.slane %v1229, 5
      %v1232 = vor.u32 %v1228, %v1231
      %v1233 = vrot.slane %v1232, 4
      %v1235 = vshll.u32 %v1186, 16
      %v1237 = vrot.slane %v1235, 5
      %v1238 = vsel %vm723, %v1233, %v1237
      %v1240 = vshrl.u32 %v1187, 16
      %v1242 = vrot.slane %v1240, 4
      %v1243 = vshll.u32 %v1187, 16
      %v1245 = vrot.slane %v1243, 5
      %v1246 = vor.u32 %v1242, %v1245
      %v1247 = vrot.slane %v1246, 4
      %v1249 = vshll.u32 %v1188, 16
      %v1251 = vrot.slane %v1249, 5
      %v1252 = vsel %vm723, %v1247, %v1251
      %v1254 = vshrl.u32 %v1189, 16
      %v1256 = vrot.slane %v1254, 4
      %v1257 = vshll.u32 %v1189, 16
      %v1259 = vrot.slane %v1257, 5
      %v1260 = vor.u32 %v1256, %v1259
      %v1261 = vrot.slane %v1260, 4
      %v1263 = vshll.u32 %v1190, 16
      %v1265 = vrot.slane %v1263, 5
      %v1266 = vsel %vm723, %v1261, %v1265
      %v1268 = vshrl.u32 %v1191, 16
      %v1270 = vrot.slane %v1268, 4
      %v1271 = vshll.u32 %v1191, 16
      %v1273 = vrot.slane %v1271, 5
      %v1274 = vor.u32 %v1270, %v1273
      %v1275 = vrot.slane %v1274, 4
      %v1277 = vshll.u32 %v1192, 16
      %v1279 = vrot.slane %v1277, 5
      %v1280 = vsel %vm723, %v1275, %v1279
      %v1282 = vshrl.u32 %v1193, 16
      %v1284 = vrot.slane %v1282, 4
      %v1285 = vshll.u32 %v1193, 16
      %v1287 = vrot.slane %v1285, 5
      %v1288 = vor.u32 %v1284, %v1287
      %v1289 = vrot.slane %v1288, 4
      %v1291 = vshll.u32 %v1194, 16
      %v1293 = vrot.slane %v1291, 5
      %v1294 = vsel %vm723, %v1289, %v1293
      %v1296 = vshrl.u32 %v1195, 16
      %v1298 = vrot.slane %v1296, 4
      %v1299 = vshll.u32 %v1195, 16
      %v1301 = vrot.slane %v1299, 5
      %v1302 = vor.u32 %v1298, %v1301
      %v1303 = vrot.slane %v1302, 4
      %v1305 = vshll.u32 %v1196, 16
      %v1307 = vrot.slane %v1305, 5
      %v1308 = vsel %vm723, %v1303, %v1307
      %s1309 = scalar_lea.vmem %s6, 32
      %v1310 = vld [vmem:[%s1309] sm:$0xf]
      %v1311 = vld [vmem:[%s1309 + $0x4] sm:$0xf]
      %v1312 = vunpack.c.l.b16 %v1210
      %v1313 = vunpack.c.l.b16 %v1224
      %v1314 = vunpack.c.l.b16 %v1238
      %v1315 = vunpack.c.l.b16 %v1252
      %v1316 = vunpack.c.l.b16 %v1266
      %v1317 = vunpack.c.l.b16 %v1280
      %v1318 = vunpack.c.l.b16 %v1294
      %v1319 = vunpack.c.l.b16 %v1308
      %v1320 = vpack.c.b16 %v1313, %v1312
      %v1321 = vpack.c.b16 %v1315, %v1314
      %v1322 = vpack.c.b16 %v1317, %v1316
      %v1323 = vpack.c.b16 %v1319, %v1318
      %v1326 = vunpack.c.l.b16 %v1310
      %v1327 = vunpack.c.l.b16 %v1311
      %v1328 = vpack.c.b16 %v1327, %v1326
      %v1331 = vsel %vm857, %v1320, 0
      %v1334 = vsel %vm857, %v1321, 0
      %v1337 = vsel %vm857, %v1322, 0
      %v1340 = vsel %vm857, %v1323, 0
      %1342 = vmatpush.bf16.msra.mxu0 0
      %1343 = vmatpush.bf16.msra.mxu0 0
      %1344 = vmatpush.bf16.msra.mxu0 0
      %1345 = vmatpush.bf16.msra.mxu0 0
      %1346 = vmatpush.bf16.msra.mxu0 0
      %1347 = vmatpush.bf16.msra.mxu0 0
      %1348 = vmatpush.bf16.msra.mxu0 0
      %1349 = vmatpush.bf16.msra.mxu0 %v1328
      %1350 = vmatmul.bf16.gmra.mxu0 %v1331
      %v1351 = vpop.f32.mrf.mxu0
      %v1352 = vadd.f32 0.0, %v1351
      %v1353 = vpop.f32.mrf.mxu0
      %v1354 = vadd.f32 0.0, %v1353
      %1355 = vmatmul.bf16.gmra.mxu0 %v1334
      %v1356 = vpop.f32.mrf.mxu0
      %v1357 = vadd.f32 0.0, %v1356
      %v1358 = vpop.f32.mrf.mxu0
      %v1359 = vadd.f32 0.0, %v1358
      %1360 = vmatmul.bf16.gmra.mxu0 %v1337
      %v1361 = vpop.f32.mrf.mxu0
      %v1362 = vadd.f32 0.0, %v1361
      %v1363 = vpop.f32.mrf.mxu0
      %v1364 = vadd.f32 0.0, %v1363
      %1365 = vmatmul.bf16.gmra.mxu0 %v1340
      %v1366 = vpop.f32.mrf.mxu0
      %v1367 = vadd.f32 0.0, %v1366
      %v1368 = vpop.f32.mrf.mxu0
      %v1369 = vadd.f32 0.0, %v1368
      %1370 = vdwg.mxu0
      %v1371 = vadd.f32 %v1173, %v1352
      %v1372 = vadd.f32 %v1174, %v1354
      %v1373 = vadd.f32 %v1175, %v1357
      %v1374 = vadd.f32 %v1176, %v1359
      %v1375 = vadd.f32 %v1177, %v1362
      %v1376 = vadd.f32 %v1178, %v1364
      %v1377 = vadd.f32 %v1179, %v1367
      %v1378 = vadd.f32 %v1180, %v1369
      %v1379 = vld [vmem:[%s652] sm:$0xe]
      %v1380 = vld [vmem:[%s652 + $0x8] sm:$0xe]
      %v1381 = vld [vmem:[%s652 + $0x10] sm:$0xe]
      %v1382 = vld [vmem:[%s652 + $0x18] sm:$0xe]
      %v1383 = vld [vmem:[%s652 + $0x20] sm:$0xe]
      %v1384 = vld [vmem:[%s652 + $0x28] sm:$0xe]
      %v1385 = vld [vmem:[%s652 + $0x30] sm:$0xe]
      %v1386 = vld [vmem:[%s652 + $0x38] sm:$0xe]
      %v1403 = vrot.slane %v1379, 5
      %v1404 = vrot.slane %v1403, 4
      %v1405 = vrot.slane %v1182, 5
      %v1406 = vsel %vm992, %v1404, %v1405
      %v1407 = vrot.slane %v1380, 5
      %v1408 = vrot.slane %v1407, 4
      %v1409 = vrot.slane %v1184, 5
      %v1410 = vsel %vm992, %v1408, %v1409
      %v1411 = vrot.slane %v1381, 5
      %v1412 = vrot.slane %v1411, 4
      %v1413 = vrot.slane %v1186, 5
      %v1414 = vsel %vm992, %v1412, %v1413
      %v1415 = vrot.slane %v1382, 5
      %v1416 = vrot.slane %v1415, 4
      %v1417 = vrot.slane %v1188, 5
      %v1418 = vsel %vm992, %v1416, %v1417
      %v1419 = vrot.slane %v1383, 5
      %v1420 = vrot.slane %v1419, 4
      %v1421 = vrot.slane %v1190, 5
      %v1422 = vsel %vm992, %v1420, %v1421
      %v1423 = vrot.slane %v1384, 5
      %v1424 = vrot.slane %v1423, 4
      %v1425 = vrot.slane %v1192, 5
      %v1426 = vsel %vm992, %v1424, %v1425
      %v1427 = vrot.slane %v1385, 5
      %v1428 = vrot.slane %v1427, 4
      %v1429 = vrot.slane %v1194, 5
      %v1430 = vsel %vm992, %v1428, %v1429
      %v1431 = vrot.slane %v1386, 5
      %v1432 = vrot.slane %v1431, 4
      %v1433 = vrot.slane %v1196, 5
      %v1434 = vsel %vm992, %v1432, %v1433
      %s1435 = scalar_lea.vmem %s6, 40
      %v1436 = vld [vmem:[%s1435] sm:$0xf]
      %v1437 = vld [vmem:[%s1435 + $0x4] sm:$0xf]
      %v1438 = vunpack.c.l.b16 %v1406
      %v1439 = vunpack.c.l.b16 %v1410
      %v1440 = vunpack.c.l.b16 %v1414
      %v1441 = vunpack.c.l.b16 %v1418
      %v1442 = vunpack.c.l.b16 %v1422
      %v1443 = vunpack.c.l.b16 %v1426
      %v1444 = vunpack.c.l.b16 %v1430
      %v1445 = vunpack.c.l.b16 %v1434
      %v1446 = vpack.c.b16 %v1439, %v1438
      %v1447 = vpack.c.b16 %v1441, %v1440
      %v1448 = vpack.c.b16 %v1443, %v1442
      %v1449 = vpack.c.b16 %v1445, %v1444
      %v1452 = vunpack.c.l.b16 %v1436
      %v1453 = vunpack.c.l.b16 %v1437
      %v1454 = vpack.c.b16 %v1453, %v1452
      %v1457 = vsel %vm857, %v1446, 0
      %v1460 = vsel %vm857, %v1447, 0
      %v1463 = vsel %vm857, %v1448, 0
      %v1466 = vsel %vm857, %v1449, 0
      %1468 = vmatpush.bf16.msra.mxu0 0
      %1469 = vmatpush.bf16.msra.mxu0 0
      %1470 = vmatpush.bf16.msra.mxu0 0
      %1471 = vmatpush.bf16.msra.mxu0 0
      %1472 = vmatpush.bf16.msra.mxu0 0
      %1473 = vmatpush.bf16.msra.mxu0 0
      %1474 = vmatpush.bf16.msra.mxu0 0
      %1475 = vmatpush.bf16.msra.mxu0 %v1454
      %1476 = vmatmul.bf16.gmra.mxu0 %v1457
      %v1477 = vpop.f32.mrf.mxu0
      %v1478 = vadd.f32 0.0, %v1477
      %v1479 = vpop.f32.mrf.mxu0
      %v1480 = vadd.f32 0.0, %v1479
      %1481 = vmatmul.bf16.gmra.mxu0 %v1460
      %v1482 = vpop.f32.mrf.mxu0
      %v1483 = vadd.f32 0.0, %v1482
      %v1484 = vpop.f32.mrf.mxu0
      %v1485 = vadd.f32 0.0, %v1484
      %1486 = vmatmul.bf16.gmra.mxu0 %v1463
      %v1487 = vpop.f32.mrf.mxu0
      %v1488 = vadd.f32 0.0, %v1487
      %v1489 = vpop.f32.mrf.mxu0
      %v1490 = vadd.f32 0.0, %v1489
      %1491 = vmatmul.bf16.gmra.mxu0 %v1466
      %v1492 = vpop.f32.mrf.mxu0
      %v1493 = vadd.f32 0.0, %v1492
      %v1494 = vpop.f32.mrf.mxu0
      %v1495 = vadd.f32 0.0, %v1494
      %1496 = vdwg.mxu0
      %v1497 = vadd.f32 %v1371, %v1478
      %v1498 = vadd.f32 %v1372, %v1480
      %v1499 = vadd.f32 %v1373, %v1483
      %v1500 = vadd.f32 %v1374, %v1485
      %v1501 = vadd.f32 %v1375, %v1488
      %v1502 = vadd.f32 %v1376, %v1490
      %v1503 = vadd.f32 %v1377, %v1493
      %v1504 = vadd.f32 %v1378, %v1495
      %s1505 = scalar_lea.vmem [#allocation2], 16
      %v1506 = vld [vmem:[%s1505] sm:$0xf]
      %v1507 = vld [vmem:[%s1505 + $0x8] sm:$0xf]
      %v1508 = vld [vmem:[%s1505 + $0x10] sm:$0xf]
      %v1509 = vld [vmem:[%s1505 + $0x18] sm:$0xf]
      %v1510 = vld [vmem:[%s1505 + $0x20] sm:$0xf]
      %v1511 = vld [vmem:[%s1505 + $0x28] sm:$0xf]
      %v1512 = vld [vmem:[%s1505 + $0x30] sm:$0xf]
      %v1513 = vld [vmem:[%s1505 + $0x38] sm:$0xf]
      %s1514 = scalar_lea.vmem %s6, 48
      %v1515 = vld [vmem:[%s1514] sm:$0xf]
      %v1516 = vld [vmem:[%s1514 + $0x4] sm:$0xf]
      %v1525 = vunpack.c.l.b16 %v1506
      %v1526 = vunpack.c.l.b16 %v1507
      %v1527 = vunpack.c.l.b16 %v1508
      %v1528 = vunpack.c.l.b16 %v1509
      %v1529 = vunpack.c.l.b16 %v1510
      %v1530 = vunpack.c.l.b16 %v1511
      %v1531 = vunpack.c.l.b16 %v1512
      %v1532 = vunpack.c.l.b16 %v1513
      %v1533 = vpack.c.b16 %v1526, %v1525
      %v1534 = vpack.c.b16 %v1528, %v1527
      %v1535 = vpack.c.b16 %v1530, %v1529
      %v1536 = vpack.c.b16 %v1532, %v1531
      %v1539 = vunpack.c.l.b16 %v1515
      %v1540 = vunpack.c.l.b16 %v1516
      %v1541 = vpack.c.b16 %v1540, %v1539
      %v1544 = vsel %vm857, %v1533, 0
      %v1547 = vsel %vm857, %v1534, 0
      %v1550 = vsel %vm857, %v1535, 0
      %v1553 = vsel %vm857, %v1536, 0
      %1555 = vmatpush.bf16.msra.mxu0 0
      %1556 = vmatpush.bf16.msra.mxu0 0
      %1557 = vmatpush.bf16.msra.mxu0 0
      %1558 = vmatpush.bf16.msra.mxu0 0
      %1559 = vmatpush.bf16.msra.mxu0 0
      %1560 = vmatpush.bf16.msra.mxu0 0
      %1561 = vmatpush.bf16.msra.mxu0 0
      %1562 = vmatpush.bf16.msra.mxu0 %v1541
      %1563 = vmatmul.bf16.gmra.mxu0 %v1544
      %v1564 = vpop.f32.mrf.mxu0
      %v1565 = vadd.f32 0.0, %v1564
      %v1566 = vpop.f32.mrf.mxu0
      %v1567 = vadd.f32 0.0, %v1566
      %1568 = vmatmul.bf16.gmra.mxu0 %v1547
      %v1569 = vpop.f32.mrf.mxu0
      %v1570 = vadd.f32 0.0, %v1569
      %v1571 = vpop.f32.mrf.mxu0
      %v1572 = vadd.f32 0.0, %v1571
      %1573 = vmatmul.bf16.gmra.mxu0 %v1550
      %v1574 = vpop.f32.mrf.mxu0
      %v1575 = vadd.f32 0.0, %v1574
      %v1576 = vpop.f32.mrf.mxu0
      %v1577 = vadd.f32 0.0, %v1576
      %1578 = vmatmul.bf16.gmra.mxu0 %v1553
      %v1579 = vpop.f32.mrf.mxu0
      %v1580 = vadd.f32 0.0, %v1579
      %v1581 = vpop.f32.mrf.mxu0
      %v1582 = vadd.f32 0.0, %v1581
      %1583 = vdwg.mxu0
      %v1584 = vadd.f32 %v1497, %v1565
      %v1585 = vadd.f32 %v1498, %v1567
      %v1586 = vadd.f32 %v1499, %v1570
      %v1587 = vadd.f32 %v1500, %v1572
      %v1588 = vadd.f32 %v1501, %v1575
      %v1589 = vadd.f32 %v1502, %v1577
      %v1590 = vadd.f32 %v1503, %v1580
      %v1591 = vadd.f32 %v1504, %v1582
      %v1592 = vld [vmem:[%s1505] sm:$0xf]
      %v1593 = vld [vmem:[%s1505 + $0x4] sm:$0x1]
      %v1594 = vld [vmem:[%s1505 + $0x8] sm:$0xf]
      %v1595 = vld [vmem:[%s1505 + $0xc] sm:$0x1]
      %v1596 = vld [vmem:[%s1505 + $0x10] sm:$0xf]
      %v1597 = vld [vmem:[%s1505 + $0x14] sm:$0x1]
      %v1598 = vld [vmem:[%s1505 + $0x18] sm:$0xf]
      %v1599 = vld [vmem:[%s1505 + $0x1c] sm:$0x1]
      %v1600 = vld [vmem:[%s1505 + $0x20] sm:$0xf]
      %v1601 = vld [vmem:[%s1505 + $0x24] sm:$0x1]
      %v1602 = vld [vmem:[%s1505 + $0x28] sm:$0xf]
      %v1603 = vld [vmem:[%s1505 + $0x2c] sm:$0x1]
      %v1604 = vld [vmem:[%s1505 + $0x30] sm:$0xf]
      %v1605 = vld [vmem:[%s1505 + $0x34] sm:$0x1]
      %v1606 = vld [vmem:[%s1505 + $0x38] sm:$0xf]
      %v1607 = vld [vmem:[%s1505 + $0x3c] sm:$0x1]
      %v1609 = vshrl.u32 %v1592, 16
      %v1611 = vrot.slane %v1609, 4
      %v1612 = vshll.u32 %v1592, 16
      %v1614 = vrot.slane %v1612, 5
      %v1615 = vor.u32 %v1611, %v1614
      %v1616 = vrot.slane %v1615, 4
      %v1618 = vshll.u32 %v1593, 16
      %v1620 = vrot.slane %v1618, 5
      %v1621 = vsel %vm723, %v1616, %v1620
      %v1623 = vshrl.u32 %v1594, 16
      %v1625 = vrot.slane %v1623, 4
      %v1626 = vshll.u32 %v1594, 16
      %v1628 = vrot.slane %v1626, 5
      %v1629 = vor.u32 %v1625, %v1628
      %v1630 = vrot.slane %v1629, 4
      %v1632 = vshll.u32 %v1595, 16
      %v1634 = vrot.slane %v1632, 5
      %v1635 = vsel %vm723, %v1630, %v1634
      %v1637 = vshrl.u32 %v1596, 16
      %v1639 = vrot.slane %v1637, 4
      %v1640 = vshll.u32 %v1596, 16
      %v1642 = vrot.slane %v1640, 5
      %v1643 = vor.u32 %v1639, %v1642
      %v1644 = vrot.slane %v1643, 4
      %v1646 = vshll.u32 %v1597, 16
      %v1648 = vrot.slane %v1646, 5
      %v1649 = vsel %vm723, %v1644, %v1648
      %v1651 = vshrl.u32 %v1598, 16
      %v1653 = vrot.slane %v1651, 4
      %v1654 = vshll.u32 %v1598, 16
      %v1656 = vrot.slane %v1654, 5
      %v1657 = vor.u32 %v1653, %v1656
      %v1658 = vrot.slane %v1657, 4
      %v1660 = vshll.u32 %v1599, 16
      %v1662 = vrot.slane %v1660, 5
      %v1663 = vsel %vm723, %v1658, %v1662
      %v1665 = vshrl.u32 %v1600, 16
      %v1667 = vrot.slane %v1665, 4
      %v1668 = vshll.u32 %v1600, 16
      %v1670 = vrot.slane %v1668, 5
      %v1671 = vor.u32 %v1667, %v1670
      %v1672 = vrot.slane %v1671, 4
      %v1674 = vshll.u32 %v1601, 16
      %v1676 = vrot.slane %v1674, 5
      %v1677 = vsel %vm723, %v1672, %v1676
      %v1679 = vshrl.u32 %v1602, 16
      %v1681 = vrot.slane %v1679, 4
      %v1682 = vshll.u32 %v1602, 16
      %v1684 = vrot.slane %v1682, 5
      %v1685 = vor.u32 %v1681, %v1684
      %v1686 = vrot.slane %v1685, 4
      %v1688 = vshll.u32 %v1603, 16
      %v1690 = vrot.slane %v1688, 5
      %v1691 = vsel %vm723, %v1686, %v1690
      %v1693 = vshrl.u32 %v1604, 16
      %v1695 = vrot.slane %v1693, 4
      %v1696 = vshll.u32 %v1604, 16
      %v1698 = vrot.slane %v1696, 5
      %v1699 = vor.u32 %v1695, %v1698
      %v1700 = vrot.slane %v1699, 4
      %v1702 = vshll.u32 %v1605, 16
      %v1704 = vrot.slane %v1702, 5
      %v1705 = vsel %vm723, %v1700, %v1704
      %v1707 = vshrl.u32 %v1606, 16
      %v1709 = vrot.slane %v1707, 4
      %v1710 = vshll.u32 %v1606, 16
      %v1712 = vrot.slane %v1710, 5
      %v1713 = vor.u32 %v1709, %v1712
      %v1714 = vrot.slane %v1713, 4
      %v1716 = vshll.u32 %v1607, 16
      %v1718 = vrot.slane %v1716, 5
      %v1719 = vsel %vm723, %v1714, %v1718
      %s1720 = scalar_lea.vmem %s6, 56
      %v1721 = vld [vmem:[%s1720] sm:$0xf]
      %v1722 = vld [vmem:[%s1720 + $0x4] sm:$0xf]
      %v1723 = vunpack.c.l.b16 %v1621
      %v1724 = vunpack.c.l.b16 %v1635
      %v1725 = vunpack.c.l.b16 %v1649
      %v1726 = vunpack.c.l.b16 %v1663
      %v1727 = vunpack.c.l.b16 %v1677
      %v1728 = vunpack.c.l.b16 %v1691
      %v1729 = vunpack.c.l.b16 %v1705
      %v1730 = vunpack.c.l.b16 %v1719
      %v1731 = vpack.c.b16 %v1724, %v1723
      %v1732 = vpack.c.b16 %v1726, %v1725
      %v1733 = vpack.c.b16 %v1728, %v1727
      %v1734 = vpack.c.b16 %v1730, %v1729
      %v1737 = vunpack.c.l.b16 %v1721
      %v1738 = vunpack.c.l.b16 %v1722
      %v1739 = vpack.c.b16 %v1738, %v1737
      %v1742 = vsel %vm857, %v1731, 0
      %v1745 = vsel %vm857, %v1732, 0
      %v1748 = vsel %vm857, %v1733, 0
      %v1751 = vsel %vm857, %v1734, 0
      %1753 = vmatpush.bf16.msra.mxu0 0
      %1754 = vmatpush.bf16.msra.mxu0 0
      %1755 = vmatpush.bf16.msra.mxu0 0
      %1756 = vmatpush.bf16.msra.mxu0 0
      %1757 = vmatpush.bf16.msra.mxu0 0
      %1758 = vmatpush.bf16.msra.mxu0 0
      %1759 = vmatpush.bf16.msra.mxu0 0
      %1760 = vmatpush.bf16.msra.mxu0 %v1739
      %1761 = vmatmul.bf16.gmra.mxu0 %v1742
      %v1762 = vpop.f32.mrf.mxu0
      %v1763 = vadd.f32 0.0, %v1762
      %v1764 = vpop.f32.mrf.mxu0
      %v1765 = vadd.f32 0.0, %v1764
      %1766 = vmatmul.bf16.gmra.mxu0 %v1745
      %v1767 = vpop.f32.mrf.mxu0
      %v1768 = vadd.f32 0.0, %v1767
      %v1769 = vpop.f32.mrf.mxu0
      %v1770 = vadd.f32 0.0, %v1769
      %1771 = vmatmul.bf16.gmra.mxu0 %v1748
      %v1772 = vpop.f32.mrf.mxu0
      %v1773 = vadd.f32 0.0, %v1772
      %v1774 = vpop.f32.mrf.mxu0
      %v1775 = vadd.f32 0.0, %v1774
      %1776 = vmatmul.bf16.gmra.mxu0 %v1751
      %v1777 = vpop.f32.mrf.mxu0
      %v1778 = vadd.f32 0.0, %v1777
      %v1779 = vpop.f32.mrf.mxu0
      %v1780 = vadd.f32 0.0, %v1779
      %1781 = vdwg.mxu0
      %v1782 = vadd.f32 %v1584, %v1763
      %v1783 = vadd.f32 %v1585, %v1765
      %v1784 = vadd.f32 %v1586, %v1768
      %v1785 = vadd.f32 %v1587, %v1770
      %v1786 = vadd.f32 %v1588, %v1773
      %v1787 = vadd.f32 %v1589, %v1775
      %v1788 = vadd.f32 %v1590, %v1778
      %v1789 = vadd.f32 %v1591, %v1780
      %v1790 = vld [vmem:[%s1505] sm:$0xe]
      %v1791 = vld [vmem:[%s1505 + $0x8] sm:$0xe]
      %v1792 = vld [vmem:[%s1505 + $0x10] sm:$0xe]
      %v1793 = vld [vmem:[%s1505 + $0x18] sm:$0xe]
      %v1794 = vld [vmem:[%s1505 + $0x20] sm:$0xe]
      %v1795 = vld [vmem:[%s1505 + $0x28] sm:$0xe]
      %v1796 = vld [vmem:[%s1505 + $0x30] sm:$0xe]
      %v1797 = vld [vmem:[%s1505 + $0x38] sm:$0xe]
      %v1814 = vrot.slane %v1790, 5
      %v1815 = vrot.slane %v1814, 4
      %v1816 = vrot.slane %v1593, 5
      %v1817 = vsel %vm992, %v1815, %v1816
      %v1818 = vrot.slane %v1791, 5
      %v1819 = vrot.slane %v1818, 4
      %v1820 = vrot.slane %v1595, 5
      %v1821 = vsel %vm992, %v1819, %v1820
      %v1822 = vrot.slane %v1792, 5
      %v1823 = vrot.slane %v1822, 4
      %v1824 = vrot.slane %v1597, 5
      %v1825 = vsel %vm992, %v1823, %v1824
      %v1826 = vrot.slane %v1793, 5
      %v1827 = vrot.slane %v1826, 4
      %v1828 = vrot.slane %v1599, 5
      %v1829 = vsel %vm992, %v1827, %v1828
      %v1830 = vrot.slane %v1794, 5
      %v1831 = vrot.slane %v1830, 4
      %v1832 = vrot.slane %v1601, 5
      %v1833 = vsel %vm992, %v1831, %v1832
      %v1834 = vrot.slane %v1795, 5
      %v1835 = vrot.slane %v1834, 4
      %v1836 = vrot.slane %v1603, 5
      %v1837 = vsel %vm992, %v1835, %v1836
      %v1838 = vrot.slane %v1796, 5
      %v1839 = vrot.slane %v1838, 4
      %v1840 = vrot.slane %v1605, 5
      %v1841 = vsel %vm992, %v1839, %v1840
      %v1842 = vrot.slane %v1797, 5
      %v1843 = vrot.slane %v1842, 4
      %v1844 = vrot.slane %v1607, 5
      %v1845 = vsel %vm992, %v1843, %v1844
      %s1846 = scalar_lea.vmem %s6, 64
      %v1847 = vld [vmem:[%s1846] sm:$0xf]
      %v1848 = vld [vmem:[%s1846 + $0x4] sm:$0xf]
      %v1849 = vunpack.c.l.b16 %v1817
      %v1850 = vunpack.c.l.b16 %v1821
      %v1851 = vunpack.c.l.b16 %v1825
      %v1852 = vunpack.c.l.b16 %v1829
      %v1853 = vunpack.c.l.b16 %v1833
      %v1854 = vunpack.c.l.b16 %v1837
      %v1855 = vunpack.c.l.b16 %v1841
      %v1856 = vunpack.c.l.b16 %v1845
      %v1857 = vpack.c.b16 %v1850, %v1849
      %v1858 = vpack.c.b16 %v1852, %v1851
      %v1859 = vpack.c.b16 %v1854, %v1853
      %v1860 = vpack.c.b16 %v1856, %v1855
      %v1863 = vunpack.c.l.b16 %v1847
      %v1864 = vunpack.c.l.b16 %v1848
      %v1865 = vpack.c.b16 %v1864, %v1863
      %v1868 = vsel %vm857, %v1857, 0
      %v1871 = vsel %vm857, %v1858, 0
      %v1874 = vsel %vm857, %v1859, 0
      %v1877 = vsel %vm857, %v1860, 0
      %1879 = vmatpush.bf16.msra.mxu0 0
      %1880 = vmatpush.bf16.msra.mxu0 0
      %1881 = vmatpush.bf16.msra.mxu0 0
      %1882 = vmatpush.bf16.msra.mxu0 0
      %1883 = vmatpush.bf16.msra.mxu0 0
      %1884 = vmatpush.bf16.msra.mxu0 0
      %1885 = vmatpush.bf16.msra.mxu0 0
      %1886 = vmatpush.bf16.msra.mxu0 %v1865
      %1887 = vmatmul.bf16.gmra.mxu0 %v1868
      %v1888 = vpop.f32.mrf.mxu0
      %v1889 = vadd.f32 0.0, %v1888
      %v1890 = vpop.f32.mrf.mxu0
      %v1891 = vadd.f32 0.0, %v1890
      %1892 = vmatmul.bf16.gmra.mxu0 %v1871
      %v1893 = vpop.f32.mrf.mxu0
      %v1894 = vadd.f32 0.0, %v1893
      %v1895 = vpop.f32.mrf.mxu0
      %v1896 = vadd.f32 0.0, %v1895
      %1897 = vmatmul.bf16.gmra.mxu0 %v1874
      %v1898 = vpop.f32.mrf.mxu0
      %v1899 = vadd.f32 0.0, %v1898
      %v1900 = vpop.f32.mrf.mxu0
      %v1901 = vadd.f32 0.0, %v1900
      %1902 = vmatmul.bf16.gmra.mxu0 %v1877
      %v1903 = vpop.f32.mrf.mxu0
      %v1904 = vadd.f32 0.0, %v1903
      %v1905 = vpop.f32.mrf.mxu0
      %v1906 = vadd.f32 0.0, %v1905
      %1907 = vdwg.mxu0
      %v1908 = vadd.f32 %v1782, %v1889
      %v1909 = vadd.f32 %v1783, %v1891
      %v1910 = vadd.f32 %v1784, %v1894
      %v1911 = vadd.f32 %v1785, %v1896
      %v1912 = vadd.f32 %v1786, %v1899
      %v1913 = vadd.f32 %v1787, %v1901
      %v1914 = vadd.f32 %v1788, %v1904
      %v1915 = vadd.f32 %v1789, %v1906
      %1924 = vrot.lane.b32.xlu0 %v1908, 8
      %v1925 = vpop.permute.xlu0 %1924
      %1926 = vrot.lane.b32.xlu0 %v1909, 8
      %v1927 = vpop.permute.xlu0 %1926
      %1928 = vrot.lane.b32.xlu0 %v1910, 8
      %v1929 = vpop.permute.xlu0 %1928
      %1930 = vrot.lane.b32.xlu0 %v1911, 8
      %v1931 = vpop.permute.xlu0 %1930
      %1932 = vrot.lane.b32.xlu0 %v1912, 8
      %v1933 = vpop.permute.xlu0 %1932
      %1934 = vrot.lane.b32.xlu0 %v1913, 8
      %v1935 = vpop.permute.xlu0 %1934
      %1936 = vrot.lane.b32.xlu0 %v1914, 8
      %v1937 = vpop.permute.xlu0 %1936
      %1938 = vrot.lane.b32.xlu0 %v1915, 8
      %v1939 = vpop.permute.xlu0 %1938
      %v1948 = vsel %vm486, %v441, %v1925
      %v1949 = vsel %vm486, %v442, %v1927
      %v1950 = vsel %vm486, %v443, %v1929
      %v1951 = vsel %vm486, %v444, %v1931
      %v1952 = vsel %vm486, %v445, %v1933
      %v1953 = vsel %vm486, %v446, %v1935
      %v1954 = vsel %vm486, %v447, %v1937
      %v1955 = vsel %vm486, %v448, %v1939
      %v1956 = vadd.f32 %v1948, %v1949
      %v1957 = vadd.f32 %v1950, %v1951
      %v1958 = vadd.f32 %v1952, %v1953
      %v1959 = vadd.f32 %v1954, %v1955
      %v1964 = vrot.slane %v1956, 2
      %v1965 = vrot.slane %v1956, 4
      %v1966 = vrot.slane %v1956, 6
      %v1967 = vrot.slane %v1957, 2
      %v1968 = vrot.slane %v1957, 4
      %v1969 = vrot.slane %v1957, 6
      %v1970 = vrot.slane %v1958, 2
      %v1971 = vrot.slane %v1958, 4
      %v1972 = vrot.slane %v1958, 6
      %v1973 = vrot.slane %v1959, 2
      %v1974 = vrot.slane %v1959, 4
      %v1975 = vrot.slane %v1959, 6
      %v1988 = vrot.slane %v1956, 7
      %v1989 = vrot.slane %v1988, 2
      %v1990 = vrot.slane %v1964, 7
      %v1991 = vrot.slane %v1990, 2
      %v1992 = vrot.slane %v1965, 7
      %v1993 = vrot.slane %v1992, 2
      %v1994 = vrot.slane %v1966, 7
      %v1995 = vrot.slane %v1994, 2
      %v1996 = vrot.slane %v1957, 7
      %v1997 = vrot.slane %v1996, 2
      %v1998 = vrot.slane %v1967, 7
      %v1999 = vrot.slane %v1998, 2
      %v2000 = vrot.slane %v1968, 7
      %v2001 = vrot.slane %v2000, 2
      %v2002 = vrot.slane %v1969, 7
      %v2003 = vrot.slane %v2002, 2
      %v2004 = vrot.slane %v1958, 7
      %v2005 = vrot.slane %v2004, 2
      %v2006 = vrot.slane %v1970, 7
      %v2007 = vrot.slane %v2006, 2
      %v2008 = vrot.slane %v1971, 7
      %v2009 = vrot.slane %v2008, 2
      %v2010 = vrot.slane %v1972, 7
      %v2011 = vrot.slane %v2010, 2
      %v2012 = vrot.slane %v1959, 7
      %v2013 = vrot.slane %v2012, 2
      %v2014 = vrot.slane %v1973, 7
      %v2015 = vrot.slane %v2014, 2
      %v2016 = vrot.slane %v1974, 7
      %v2017 = vrot.slane %v2016, 2
      %v2018 = vrot.slane %v1975, 7
      %v2019 = vrot.slane %v2018, 2
      %v2036 = vadd.f32 %v1956, %v1989
      %v2037 = vadd.f32 %v1964, %v1991
      %v2038 = vadd.f32 %v1965, %v1993
      %v2039 = vadd.f32 %v1966, %v1995
      %v2040 = vadd.f32 %v1957, %v1997
      %v2041 = vadd.f32 %v1967, %v1999
      %v2042 = vadd.f32 %v1968, %v2001
      %v2043 = vadd.f32 %v1969, %v2003
      %v2044 = vadd.f32 %v1958, %v2005
      %v2045 = vadd.f32 %v1970, %v2007
      %v2046 = vadd.f32 %v1971, %v2009
      %v2047 = vadd.f32 %v1972, %v2011
      %v2048 = vadd.f32 %v1959, %v2013
      %v2049 = vadd.f32 %v1973, %v2015
      %v2050 = vadd.f32 %v1974, %v2017
      %v2051 = vadd.f32 %v1975, %v2019
      %v2052 = vmul.f32 %v2036, 0.25
      %v2053 = vmul.f32 %v2037, 0.25
      %v2054 = vmul.f32 %v2038, 0.25
      %v2055 = vmul.f32 %v2039, 0.25
      %v2056 = vmul.f32 %v2040, 0.25
      %v2057 = vmul.f32 %v2041, 0.25
      %v2058 = vmul.f32 %v2042, 0.25
      %v2059 = vmul.f32 %v2043, 0.25
      %v2060 = vmul.f32 %v2044, 0.25
      %v2061 = vmul.f32 %v2045, 0.25
      %v2062 = vmul.f32 %v2046, 0.25
      %v2063 = vmul.f32 %v2047, 0.25
      %v2064 = vmul.f32 %v2048, 0.25
      %v2065 = vmul.f32 %v2049, 0.25
      %v2066 = vmul.f32 %v2050, 0.25
      %v2067 = vmul.f32 %v2051, 0.25
      %v2068 = vld [vmem:[%s7] sm:$0x1]
      %v2070 = vperm.slane %v2068, 0
      %v2071 = vrot.slane %v2070, 2
      %v2072 = vrot.slane %v2070, 4
      %v2073 = vrot.slane %v2070, 6
      %v2074 = vrot.slane %v2070, 1
      %v2075 = vrot.slane %v2071, 1
      %v2076 = vrot.slane %v2072, 1
      %v2077 = vrot.slane %v2073, 1
      %v2086 = vmul.f32 %v2052, %v2070
      %v2087 = vmul.f32 %v2053, %v2074
      %v2088 = vmul.f32 %v2054, %v2071
      %v2089 = vmul.f32 %v2055, %v2075
      %v2090 = vmul.f32 %v2056, %v2072
      %v2091 = vmul.f32 %v2057, %v2076
      %v2092 = vmul.f32 %v2058, %v2073
      %v2093 = vmul.f32 %v2059, %v2077
      %v2094 = vmul.f32 %v2060, %v2070
      %v2095 = vmul.f32 %v2061, %v2074
      %v2096 = vmul.f32 %v2062, %v2071
      %v2097 = vmul.f32 %v2063, %v2075
      %v2098 = vmul.f32 %v2064, %v2072
      %v2099 = vmul.f32 %v2065, %v2076
      %v2100 = vmul.f32 %v2066, %v2073
      %v2101 = vmul.f32 %v2067, %v2077
      %v2102 = vld [vmem:[%s8] sm:$0x1]
      %v2104 = vperm.slane %v2102, 0
      %v2105 = vrot.slane %v2104, 2
      %v2106 = vrot.slane %v2104, 4
      %v2107 = vrot.slane %v2104, 6
      %v2108 = vrot.slane %v2104, 1
      %v2109 = vrot.slane %v2105, 1
      %v2110 = vrot.slane %v2106, 1
      %v2111 = vrot.slane %v2107, 1
      %v2120 = vadd.f32 %v2086, %v2104
      %v2121 = vadd.f32 %v2087, %v2108
      %v2122 = vadd.f32 %v2088, %v2105
      %v2123 = vadd.f32 %v2089, %v2109
      %v2124 = vadd.f32 %v2090, %v2106
      %v2125 = vadd.f32 %v2091, %v2110
      %v2126 = vadd.f32 %v2092, %v2107
      %v2127 = vadd.f32 %v2093, %v2111
      %v2128 = vadd.f32 %v2094, %v2104
      %v2129 = vadd.f32 %v2095, %v2108
      %v2130 = vadd.f32 %v2096, %v2105
      %v2131 = vadd.f32 %v2097, %v2109
      %v2132 = vadd.f32 %v2098, %v2106
      %v2133 = vadd.f32 %v2099, %v2110
      %v2134 = vadd.f32 %v2100, %v2107
      %v2135 = vadd.f32 %v2101, %v2111
      %v2136 = vpack.c.bf16 %v2120, %v2120
      %v2137 = vpack.c.bf16 %v2121, %v2121
      %v2138 = vpack.c.bf16 %v2122, %v2122
      %v2139 = vpack.c.bf16 %v2123, %v2123
      %v2140 = vpack.c.bf16 %v2124, %v2124
      %v2141 = vpack.c.bf16 %v2125, %v2125
      %v2142 = vpack.c.bf16 %v2126, %v2126
      %v2143 = vpack.c.bf16 %v2127, %v2127
      %v2144 = vpack.c.bf16 %v2128, %v2128
      %v2145 = vpack.c.bf16 %v2129, %v2129
      %v2146 = vpack.c.bf16 %v2130, %v2130
      %v2147 = vpack.c.bf16 %v2131, %v2131
      %v2148 = vpack.c.bf16 %v2132, %v2132
      %v2149 = vpack.c.bf16 %v2133, %v2133
      %v2150 = vpack.c.bf16 %v2134, %v2134
      %v2151 = vpack.c.bf16 %v2135, %v2135
      %v2152 = vld [vmem:[%s9] sm:$0xf]
      %v2153 = vld [vmem:[%s9 + $0x4] sm:$0x3]
      %v2170 = vunpack.c.l.b16 %v2136
      %v2171 = vunpack.c.l.b16 %v2137
      %v2172 = vunpack.c.l.b16 %v2138
      %v2173 = vunpack.c.l.b16 %v2139
      %v2174 = vunpack.c.l.b16 %v2140
      %v2175 = vunpack.c.l.b16 %v2141
      %v2176 = vunpack.c.l.b16 %v2142
      %v2177 = vunpack.c.l.b16 %v2143
      %v2178 = vunpack.c.l.b16 %v2144
      %v2179 = vunpack.c.l.b16 %v2145
      %v2180 = vunpack.c.l.b16 %v2146
      %v2181 = vunpack.c.l.b16 %v2147
      %v2182 = vunpack.c.l.b16 %v2148
      %v2183 = vunpack.c.l.b16 %v2149
      %v2184 = vunpack.c.l.b16 %v2150
      %v2185 = vunpack.c.l.b16 %v2151
      %v2186 = vrot.slane %v2171, 7
      %vm2187 = vcmask 1041409
      %v2188 = vsel %vm2187, %v2186, %v2170
      %v2189 = vrot.slane %v2172, 6
      %vm2190 = vcmask 1042434
      %v2191 = vsel %vm2190, %v2189, %v2188
      %v2192 = vrot.slane %v2173, 5
      %vm2193 = vcmask 1043459
      %v2194 = vsel %vm2193, %v2192, %v2191
      %v2195 = vrot.slane %v2174, 4
      %vm2196 = vcmask 1044484
      %v2197 = vsel %vm2196, %v2195, %v2194
      %v2198 = vrot.slane %v2175, 3
      %vm2199 = vcmask 1045509
      %v2200 = vsel %vm2199, %v2198, %v2197
      %v2201 = vrot.slane %v2176, 2
      %vm2202 = vcmask 1046534
      %v2203 = vsel %vm2202, %v2201, %v2200
      %v2204 = vrot.slane %v2177, 1
      %vm2205 = vcmask 1047559
      %v2206 = vsel %vm2205, %v2204, %v2203
      %v2207 = vrot.slane %v2179, 7
      %v2208 = vsel %vm2187, %v2207, %v2178
      %v2209 = vrot.slane %v2180, 6
      %v2210 = vsel %vm2190, %v2209, %v2208
      %v2211 = vrot.slane %v2181, 5
      %v2212 = vsel %vm2193, %v2211, %v2210
      %v2213 = vrot.slane %v2182, 4
      %v2214 = vsel %vm2196, %v2213, %v2212
      %v2215 = vrot.slane %v2183, 3
      %v2216 = vsel %vm2199, %v2215, %v2214
      %v2217 = vrot.slane %v2184, 2
      %v2218 = vsel %vm2202, %v2217, %v2216
      %v2219 = vrot.slane %v2185, 1
      %v2220 = vsel %vm2205, %v2219, %v2218
      %v2221 = vpack.c.b16 %v2220, %v2206
      %v2224 = vunpack.c.l.b16 %v2152
      %v2225 = vunpack.c.l.b16 %v2153
      %v2226 = vpack.c.b16 %v2225, %v2224
      %vm2227 = vcmask 97280
      %v2229 = vsel %vm2227, %v2221, 0
      %vm2231 = vcmask 1045504
      %v2233 = vsel %vm2231, %v2226, 0
      %2235 = vmatpush.bf16.msra.mxu0 0
      %2236 = vmatpush.bf16.msra.mxu0 0
      %2237 = vmatpush.bf16.msra.mxu0 0
      %2238 = vmatpush.bf16.msra.mxu0 0
      %2239 = vmatpush.bf16.msra.mxu0 0
      %2240 = vmatpush.bf16.msra.mxu0 0
      %2241 = vmatpush.bf16.msra.mxu0 0
      %2242 = vmatpush.bf16.msra.mxu0 %v2233
      %2243 = vmatmul.bf16.gmra.mxu0 %v2229
      %v2244 = vpop.f32.mrf.mxu0
      %v2245 = vadd.f32 0.0, %v2244
      %v2246 = vpop.f32.mrf.mxu0
      %v2247 = vadd.f32 0.0, %v2246
      %2248 = vdwg.mxu0
      %v2249 = vpack.c.bf16 %v2245, %v2245
      %v2250 = vpack.c.bf16 %v2247, %v2247
      %vm2251 = vcmask 44032
      %2252 = vst.msk [vmem:[%s359] sm:$0xf] %vm2251, %v2249
      %2253 = vst.msk [vmem:[%s359 + $0x4] sm:$0xf] %vm2251, %v2250
      %p2254 = scmp.lt.s32.totalorder %s21, 1
      %s2255 = scalar_select %p2254, %s21, 1
      %s2256 = smul.addr %s2255, 2
      %s2257 = smul.addr %s2256, 4
      %s2258 = scalar_lea.vmem %s10, %s2257
      // Predicated region
      $region61: #{densenet_forward.6} parent=59 // pred_check
        %p2259 = pneg %p254
      $region62: #{densenet_forward.6} parent=59 // pred_check_branch
        %2261 = sbr.rel (%p2259) target = $region64
      $region63: #{densenet_forward.6} parent=59 // pred_region
        _
      $region64: #{densenet_forward.6} parent=59 // pred_fallthru
        _
    $region60: #{densenet_forward.6} parent=5 // pred_fallthru
      _
    %p2262 = scmp.le.s32.totalorder 2, %s16
    // Predicated region
    $region65: #{densenet_forward.6} parent=5 // pred_check
      %p2263 = pneg %p2262
    $region66: #{densenet_forward.6} parent=5 // pred_check_branch
      %2265 = sbr.rel (%p2263) target = $region68
    $region67: #{densenet_forward.6} parent=5 // pred_region
      %s2266 = ssub.s32 %s16, 2
      // Predicated region
      $region69: #{densenet_forward.6} parent=67 // pred_check
        %p2267 = pneg %p260
      $region70: #{densenet_forward.6} parent=67 // pred_check_branch
        %2269 = sbr.rel (%p2267) target = $region72
      $region71: #{densenet_forward.6} parent=67 // pred_region
        %p2270 = scmp.lt.s32.totalorder %s22, 1
        %s2271 = scalar_select %p2270, %s22, 1
        %s2272 = smul.addr %s2271, 2
        %s2273 = smul.addr %s2272, 4
        %s2274 = scalar_lea.vmem %s10, %s2273
      $region72: #{densenet_forward.6} parent=67 // pred_fallthru
        _
    $region68: #{densenet_forward.6} parent=5 // pred_fallthru
      _
  $region6: #{densenet_forward.6} parent=0 // loop_footer
    %s20 = sadd.s32 1, %s16
  $region7: #{densenet_forward.6} parent=0 // loop_footer_branch
    %15 = sbr.rel target = $region3
  $region8: #{densenet_forward.6} parent=0 // loop_exit
    _

// kernel: densenet_forward.7
$region0: #{densenet_forward.7}
  #allocation0 [shape = 'u32[]', space=smem, size = 0x4, offset = 0x4, fixed_abs, tag = 'smem constant byte address 0x4 - core index']
  #allocation1 [shape = 'u32[72,128]{1,0:T(1,128)}', space=vmem, size = 0x9000, scoped, tag = 'internal scratch']
  #allocation2 [shape = 'bf16[6,6,16]{2,1,0:T(8,128)(2,1)}', space=vmem, size = 0x3000, scoped, tag = 'scratch operand']
  %s0 = inlined_call_operand.vmem [shape: bf16[2,16,6], index: 0, kind: input, shape index: {}]
  %s1 = inlined_call_operand.vmem [shape: f32[1,6], index: 1, kind: input, shape index: {}]
  %s2 = inlined_call_operand.vmem [shape: f32[1,6], index: 2, kind: input, shape index: {}]
  %s3 = inlined_call_operand.vmem [shape: bf16[6,16], index: 3, kind: input, shape index: {}]
  %s4 = inlined_call_operand.vmem [shape: f32[1,16], index: 4, kind: input, shape index: {}]
  %s5 = inlined_call_operand.vmem [shape: f32[1,16], index: 5, kind: input, shape index: {}]
  %s6 = inlined_call_operand.vmem [shape: bf16[9,16,4], index: 6, kind: input, shape index: {}]
  %s7 = inlined_call_operand.vmem [shape: f32[1,10], index: 7, kind: input, shape index: {}]
  %s8 = inlined_call_operand.vmem [shape: f32[1,10], index: 8, kind: input, shape index: {}]
  %s9 = inlined_call_operand.vmem [shape: bf16[10,5], index: 9, kind: input, shape index: {}]
  %s10 = inlined_call_operand.vmem [shape: bf16[2,4,5], index: 10, kind: output, shape index: {}]
  %s11 = sld [smem:[#allocation0]]
  $region73: #{densenet_forward.7} parent=0
    _
  %s13 = ssub.s32 1, %s11
  %s14 = scalar_select 0, %s13, %s11
  loop: start=0, step=1, limit=4
  $region2: #{densenet_forward.7} parent=0 // loop_pre_header
    _
  $region3: #{densenet_forward.7} parent=0 // loop_header
    %s16 = sphi 0, %s20
    %p17 = scmp.ge.s32.totalorder %s16, 4
    %s26 = sphi 0, %s28
    %s29 = sphi 0, %s26
    %s30 = sphi 0, %s29
    %s46 = sphi 0, %s30
    %s50 = sphi 0, %s50
    %s52 = sphi 0, %s50
    %s53 = sphi 0, %s52
    %s67 = sphi 0, %s53
    %s71 = sphi 0, %s71
    %s73 = sphi 0, %s71
    %s74 = sphi 0, %s73
    %s88 = sphi 0, %s74
    %s92 = sphi 0, %s92
    %s94 = sphi 0, %s92
    %s95 = sphi 0, %s94
    %s109 = sphi 0, %s95
    %s113 = sphi 0, %s113
    %s115 = sphi 0, %s113
    %s116 = sphi 0, %s115
    %s130 = sphi 0, %s116
    %s134 = sphi 0, %s134
    %s136 = sphi 0, %s134
    %s137 = sphi 0, %s136
    %s151 = sphi 0, %s137
    %s155 = sphi 0, %s155
    %s157 = sphi 0, %s155
    %s158 = sphi 0, %s157
    %s172 = sphi 0, %s158
    %s176 = sphi 0, %s176
    %s178 = sphi 0, %s176
    %s179 = sphi 0, %s178
    %s193 = sphi 0, %s179
    %s197 = sphi 0, %s197
    %s199 = sphi 0, %s197
    %s200 = sphi 0, %s199
    %s214 = sphi 0, %s200
    %s218 = sphi 0, %s218
    %s220 = sphi 0, %s218
    %s221 = sphi 0, %s220
    %s235 = sphi 0, %s221
    %s241 = sphi 0, %s243
    %s244 = sphi 0, %s241
    %s245 = sphi 0, %s244
    %s261 = sphi 0, %s245
  $region4: #{densenet_forward.7} parent=0 // loop_header_branch
    %19 = sbr.rel (%p17) target = $region8
  $region5: #{densenet_forward.7} parent=0 // loop_body
    %s21 = ssub.s32 %s16, 1
    %s22 = ssub.s32 %s16, 2
    %s23 = sadd.s32 %s16, 1
    %s24 = ssub.s32 %s16, %s23
    %p25 = scmp.eq.s32.totalorder %s24, 0
    %s27 = sadd.s32 %s26, 1
    %s28 = scalar_select %p25, %s26, %s27
    %p31 = pneg %p25
    %p32 = scmp.eq.s32.totalorder %s16, 1
    %p33 = por %p31, %p32
    %p34 = scmp.ne.s32.totalorder %s26, %s29
    %p35 = scmp.eq.s32.totalorder %s16, 0
    %p36 = por %p34, %p35
    %p37 = scmp.ne.s32.totalorder %s26, %s29
    %p38 = scmp.eq.s32.totalorder %s21, 1
    %p39 = por %p37, %p38
    %p40 = scmp.ne.s32.totalorder %s29, %s30
    %p41 = scmp.eq.s32.totalorder %s21, 0
    %p42 = por %p40, %p41
    %p43 = scmp.ne.s32.totalorder %s29, %s30
    %p44 = scmp.eq.s32.totalorder %s22, 1
    %p45 = por %p43, %p44
    %p47 = scmp.ne.s32.totalorder %s30, %s46
    %p48 = scmp.eq.s32.totalorder %s22, 0
    %p49 = por %p47, %p48
    %s51 = sadd.s32 %s50, 1
    %p54 = scmp.eq.s32.totalorder %s16, 1
    %p55 = scmp.ne.s32.totalorder %s50, %s52
    %p56 = scmp.eq.s32.totalorder %s16, 0
    %p57 = por %p55, %p56
    %p58 = scmp.ne.s32.totalorder %s50, %s52
    %p59 = scmp.eq.s32.totalorder %s21, 1
    %p60 = por %p58, %p59
    %p61 = scmp.ne.s32.totalorder %s52, %s53
    %p62 = scmp.eq.s32.totalorder %s21, 0
    %p63 = por %p61, %p62
    %p64 = scmp.ne.s32.totalorder %s52, %s53
    %p65 = scmp.eq.s32.totalorder %s22, 1
    %p66 = por %p64, %p65
    %p68 = scmp.ne.s32.totalorder %s53, %s67
    %p69 = scmp.eq.s32.totalorder %s22, 0
    %p70 = por %p68, %p69
    %s72 = sadd.s32 %s71, 1
    %p75 = scmp.eq.s32.totalorder %s16, 1
    %p76 = scmp.ne.s32.totalorder %s71, %s73
    %p77 = scmp.eq.s32.totalorder %s16, 0
    %p78 = por %p76, %p77
    %p79 = scmp.ne.s32.totalorder %s71, %s73
    %p80 = scmp.eq.s32.totalorder %s21, 1
    %p81 = por %p79, %p80
    %p82 = scmp.ne.s32.totalorder %s73, %s74
    %p83 = scmp.eq.s32.totalorder %s21, 0
    %p84 = por %p82, %p83
    %p85 = scmp.ne.s32.totalorder %s73, %s74
    %p86 = scmp.eq.s32.totalorder %s22, 1
    %p87 = por %p85, %p86
    %p89 = scmp.ne.s32.totalorder %s74, %s88
    %p90 = scmp.eq.s32.totalorder %s22, 0
    %p91 = por %p89, %p90
    %s93 = sadd.s32 %s92, 1
    %p96 = scmp.eq.s32.totalorder %s16, 1
    %p97 = scmp.ne.s32.totalorder %s92, %s94
    %p98 = scmp.eq.s32.totalorder %s16, 0
    %p99 = por %p97, %p98
    %p100 = scmp.ne.s32.totalorder %s92, %s94
    %p101 = scmp.eq.s32.totalorder %s21, 1
    %p102 = por %p100, %p101
    %p103 = scmp.ne.s32.totalorder %s94, %s95
    %p104 = scmp.eq.s32.totalorder %s21, 0
    %p105 = por %p103, %p104
    %p106 = scmp.ne.s32.totalorder %s94, %s95
    %p107 = scmp.eq.s32.totalorder %s22, 1
    %p108 = por %p106, %p107
    %p110 = scmp.ne.s32.totalorder %s95, %s109
    %p111 = scmp.eq.s32.totalorder %s22, 0
    %p112 = por %p110, %p111
    %s114 = sadd.s32 %s113, 1
    %p117 = scmp.eq.s32.totalorder %s16, 1
    %p118 = scmp.ne.s32.totalorder %s113, %s115
    %p119 = scmp.eq.s32.totalorder %s16, 0
    %p120 = por %p118, %p119
    %p121 = scmp.ne.s32.totalorder %s113, %s115
    %p122 = scmp.eq.s32.totalorder %s21, 1
    %p123 = por %p121, %p122
    %p124 = scmp.ne.s32.totalorder %s115, %s116
    %p125 = scmp.eq.s32.totalorder %s21, 0
    %p126 = por %p124, %p125
    %p127 = scmp.ne.s32.totalorder %s115, %s116
    %p128 = scmp.eq.s32.totalorder %s22, 1
    %p129 = por %p127, %p128
    %p131 = scmp.ne.s32.totalorder %s116, %s130
    %p132 = scmp.eq.s32.totalorder %s22, 0
    %p133 = por %p131, %p132
    %s135 = sadd.s32 %s134, 1
    %p138 = scmp.eq.s32.totalorder %s16, 1
    %p139 = scmp.ne.s32.totalorder %s134, %s136
    %p140 = scmp.eq.s32.totalorder %s16, 0
    %p141 = por %p139, %p140
    %p142 = scmp.ne.s32.totalorder %s134, %s136
    %p143 = scmp.eq.s32.totalorder %s21, 1
    %p144 = por %p142, %p143
    %p145 = scmp.ne.s32.totalorder %s136, %s137
    %p146 = scmp.eq.s32.totalorder %s21, 0
    %p147 = por %p145, %p146
    %p148 = scmp.ne.s32.totalorder %s136, %s137
    %p149 = scmp.eq.s32.totalorder %s22, 1
    %p150 = por %p148, %p149
    %p152 = scmp.ne.s32.totalorder %s137, %s151
    %p153 = scmp.eq.s32.totalorder %s22, 0
    %p154 = por %p152, %p153
    %s156 = sadd.s32 %s155, 1
    %p159 = scmp.eq.s32.totalorder %s16, 1
    %p160 = scmp.ne.s32.totalorder %s155, %s157
    %p161 = scmp.eq.s32.totalorder %s16, 0
    %p162 = por %p160, %p161
    %p163 = scmp.ne.s32.totalorder %s155, %s157
    %p164 = scmp.eq.s32.totalorder %s21, 1
    %p165 = por %p163, %p164
    %p166 = scmp.ne.s32.totalorder %s157, %s158
    %p167 = scmp.eq.s32.totalorder %s21, 0
    %p168 = por %p166, %p167
    %p169 = scmp.ne.s32.totalorder %s157, %s158
    %p170 = scmp.eq.s32.totalorder %s22, 1
    %p171 = por %p169, %p170
    %p173 = scmp.ne.s32.totalorder %s158, %s172
    %p174 = scmp.eq.s32.totalorder %s22, 0
    %p175 = por %p173, %p174
    %s177 = sadd.s32 %s176, 1
    %p180 = scmp.eq.s32.totalorder %s16, 1
    %p181 = scmp.ne.s32.totalorder %s176, %s178
    %p182 = scmp.eq.s32.totalorder %s16, 0
    %p183 = por %p181, %p182
    %p184 = scmp.ne.s32.totalorder %s176, %s178
    %p185 = scmp.eq.s32.totalorder %s21, 1
    %p186 = por %p184, %p185
    %p187 = scmp.ne.s32.totalorder %s178, %s179
    %p188 = scmp.eq.s32.totalorder %s21, 0
    %p189 = por %p187, %p188
    %p190 = scmp.ne.s32.totalorder %s178, %s179
    %p191 = scmp.eq.s32.totalorder %s22, 1
    %p192 = por %p190, %p191
    %p194 = scmp.ne.s32.totalorder %s179, %s193
    %p195 = scmp.eq.s32.totalorder %s22, 0
    %p196 = por %p194, %p195
    %s198 = sadd.s32 %s197, 1
    %p201 = scmp.eq.s32.totalorder %s16, 1
    %p202 = scmp.ne.s32.totalorder %s197, %s199
    %p203 = scmp.eq.s32.totalorder %s16, 0
    %p204 = por %p202, %p203
    %p205 = scmp.ne.s32.totalorder %s197, %s199
    %p206 = scmp.eq.s32.totalorder %s21, 1
    %p207 = por %p205, %p206
    %p208 = scmp.ne.s32.totalorder %s199, %s200
    %p209 = scmp.eq.s32.totalorder %s21, 0
    %p210 = por %p208, %p209
    %p211 = scmp.ne.s32.totalorder %s199, %s200
    %p212 = scmp.eq.s32.totalorder %s22, 1
    %p213 = por %p211, %p212
    %p215 = scmp.ne.s32.totalorder %s200, %s214
    %p216 = scmp.eq.s32.totalorder %s22, 0
    %p217 = por %p215, %p216
    %s219 = sadd.s32 %s218, 1
    %p222 = scmp.eq.s32.totalorder %s16, 1
    %p223 = scmp.ne.s32.totalorder %s218, %s220
    %p224 = scmp.eq.s32.totalorder %s16, 0
    %p225 = por %p223, %p224
    %p226 = scmp.ne.s32.totalorder %s218, %s220
    %p227 = scmp.eq.s32.totalorder %s21, 1
    %p228 = por %p226, %p227
    %p229 = scmp.ne.s32.totalorder %s220, %s221
    %p230 = scmp.eq.s32.totalorder %s21, 0
    %p231 = por %p229, %p230
    %p232 = scmp.ne.s32.totalorder %s220, %s221
    %p233 = scmp.eq.s32.totalorder %s22, 1
    %p234 = por %p232, %p233
    %p236 = scmp.ne.s32.totalorder %s221, %s235
    %p237 = scmp.eq.s32.totalorder %s22, 0
    %p238 = por %p236, %p237
    %s239 = ssub.s32 %s16, %s23
    %p240 = scmp.eq.s32.totalorder %s239, 0
    %s242 = sadd.s32 %s241, 1
    %s243 = scalar_select %p240, %s241, %s242
    %p246 = pneg %p240
    %p247 = scmp.eq.s32.totalorder %s16, 1
    %p248 = por %p246, %p247
    %p249 = scmp.ne.s32.totalorder %s241, %s244
    %p250 = scmp.eq.s32.totalorder %s16, 0
    %p251 = por %p249, %p250
    %p252 = scmp.ne.s32.totalorder %s241, %s244
    %p253 = scmp.eq.s32.totalorder %s21, 1
    %p254 = por %p252, %p253
    %p255 = scmp.ne.s32.totalorder %s244, %s245
    %p256 = scmp.eq.s32.totalorder %s21, 0
    %p257 = por %p255, %p256
    %p258 = scmp.ne.s32.totalorder %s244, %s245
    %p259 = scmp.eq.s32.totalorder %s22, 1
    %p260 = por %p258, %p259
    %p262 = scmp.ne.s32.totalorder %s245, %s261
    %p263 = scmp.eq.s32.totalorder %s22, 0
    %p264 = por %p262, %p263
    %p265 = scmp.le.s32.totalorder 1, %s16
    %p266 = scmp.lt.s32.totalorder %s16, 3
    %p267 = pnand %p265, %p266
    %p268 = pneg %p267
    // Predicated region
    $region9: #{densenet_forward.7} parent=5 // pred_check
      _
    $region10: #{densenet_forward.7} parent=5 // pred_check_branch
      %270 = sbr.rel (%p267) target = $region12
    $region11: #{densenet_forward.7} parent=5 // pred_region
      %s271 = ssub.s32 %s16, 1
      // Predicated region
      $region13: #{densenet_forward.7} parent=11 // pred_check
        %p272 = pneg %p63
      $region14: #{densenet_forward.7} parent=11 // pred_check_branch
        %274 = sbr.rel (%p272) target = $region16
      $region15: #{densenet_forward.7} parent=11 // pred_region
        _
      $region16: #{densenet_forward.7} parent=11 // pred_fallthru
        _
      // Predicated region
      $region17: #{densenet_forward.7} parent=11 // pred_check
        %p275 = pneg %p84
      $region18: #{densenet_forward.7} parent=11 // pred_check_branch
        %277 = sbr.rel (%p275) target = $region20
      $region19: #{densenet_forward.7} parent=11 // pred_region
        _
      $region20: #{densenet_forward.7} parent=11 // pred_fallthru
        _
      // Predicated region
      $region21: #{densenet_forward.7} parent=11 // pred_check
        %p278 = pneg %p105
      $region22: #{densenet_forward.7} parent=11 // pred_check_branch
        %280 = sbr.rel (%p278) target = $region24
      $region23: #{densenet_forward.7} parent=11 // pred_region
        _
      $region24: #{densenet_forward.7} parent=11 // pred_fallthru
        _
      // Predicated region
      $region25: #{densenet_forward.7} parent=11 // pred_check
        %p281 = pneg %p126
      $region26: #{densenet_forward.7} parent=11 // pred_check_branch
        %283 = sbr.rel (%p281) target = $region28
      $region27: #{densenet_forward.7} parent=11 // pred_region
        _
      $region28: #{densenet_forward.7} parent=11 // pred_fallthru
        _
      // Predicated region
      $region29: #{densenet_forward.7} parent=11 // pred_check
        %p284 = pneg %p147
      $region30: #{densenet_forward.7} parent=11 // pred_check_branch
        %286 = sbr.rel (%p284) target = $region32
      $region31: #{densenet_forward.7} parent=11 // pred_region
        _
      $region32: #{densenet_forward.7} parent=11 // pred_fallthru
        _
      // Predicated region
      $region33: #{densenet_forward.7} parent=11 // pred_check
        %p287 = pneg %p168
      $region34: #{densenet_forward.7} parent=11 // pred_check_branch
        %289 = sbr.rel (%p287) target = $region36
      $region35: #{densenet_forward.7} parent=11 // pred_region
        _
      $region36: #{densenet_forward.7} parent=11 // pred_fallthru
        _
      // Predicated region
      $region37: #{densenet_forward.7} parent=11 // pred_check
        %p290 = pneg %p189
      $region38: #{densenet_forward.7} parent=11 // pred_check_branch
        %292 = sbr.rel (%p290) target = $region40
      $region39: #{densenet_forward.7} parent=11 // pred_region
        _
      $region40: #{densenet_forward.7} parent=11 // pred_fallthru
        _
      // Predicated region
      $region41: #{densenet_forward.7} parent=11 // pred_check
        %p293 = pneg %p210
      $region42: #{densenet_forward.7} parent=11 // pred_check_branch
        %295 = sbr.rel (%p293) target = $region44
      $region43: #{densenet_forward.7} parent=11 // pred_region
        _
      $region44: #{densenet_forward.7} parent=11 // pred_fallthru
        _
      // Predicated region
      $region45: #{densenet_forward.7} parent=11 // pred_check
        %p296 = pneg %p231
      $region46: #{densenet_forward.7} parent=11 // pred_check_branch
        %298 = sbr.rel (%p296) target = $region48
      $region47: #{densenet_forward.7} parent=11 // pred_region
        _
      $region48: #{densenet_forward.7} parent=11 // pred_fallthru
        _
    $region12: #{densenet_forward.7} parent=5 // pred_fallthru
      _
    %p299 = scmp.lt.s32.totalorder %s16, 2
    // Predicated region
    $region49: #{densenet_forward.7} parent=5 // pred_check
      %p300 = pneg %p299
    $region50: #{densenet_forward.7} parent=5 // pred_check_branch
      %302 = sbr.rel (%p300) target = $region52
    $region51: #{densenet_forward.7} parent=5 // pred_region
      // Predicated region
      $region53: #{densenet_forward.7} parent=51 // pred_check
        %p303 = pneg %p36
      $region54: #{densenet_forward.7} parent=51 // pred_check_branch
        %305 = sbr.rel (%p303) target = $region56
      $region55: #{densenet_forward.7} parent=51 // pred_region
        %p306 = scmp.lt.s32.totalorder %s16, 1
        %s307 = scalar_select %p306, %s16, 1
        %s308 = smul.addr %s307, 2
        %s309 = smul.addr %s308, 4
        %s310 = scalar_lea.vmem %s0, %s309
      $region56: #{densenet_forward.7} parent=51 // pred_fallthru
        _
    $region52: #{densenet_forward.7} parent=5 // pred_fallthru
      _
    %p311 = scmp.le.s32.totalorder 1, %s16
    %p312 = scmp.lt.s32.totalorder %s16, 3
    %p313 = pnand %p311, %p312
    %p314 = pneg %p313
    // Predicated region
    $region57: #{densenet_forward.7} parent=5 // pred_check
      _
    $region58: #{densenet_forward.7} parent=5 // pred_check_branch
      %316 = sbr.rel (%p313) target = $region60
    $region59: #{densenet_forward.7} parent=5 // pred_region
      %s317 = ssub.s32 %s16, 1
      %p318 = scmp.lt.s32.totalorder %s21, 1
      %s319 = scalar_select %p318, %s21, 1
      %s320 = smul.addr %s319, 2
      %s321 = smul.addr %s320, 4
      %s322 = scalar_lea.vmem %s0, %s321
      %p323 = pneg %p42
      %p324 = pneg %p39
      %p325 = pneg %p63
      %p326 = pneg %p60
      %p327 = pneg %p84
      %p328 = pneg %p81
      %p329 = pneg %p105
      %p330 = pneg %p102
      %p331 = pneg %p126
      %p332 = pneg %p123
      %p333 = pneg %p147
      %p334 = pneg %p144
      %p335 = pneg %p168
      %p336 = pneg %p165
      %p337 = pneg %p189
      %p338 = pneg %p186
      %p339 = pneg %p210
      %p340 = pneg %p207
      %p341 = pneg %p231
      %p342 = pneg %p228
      %p343 = pneg %p257
      %p344 = pneg %p254
      %p345 = scmp.lt.s32.totalorder %s21, 1
      %s346 = scalar_select %p345, %s21, 1
      %s347 = smul.addr %s346, 2
      %s348 = scalar_lea.vmem %s10, %s347
      %p349 = scmp.lt.s32.totalorder %s21, 1
      %s350 = scalar_select %p349, %s21, 1
      %s351 = smul.addr %s350, 2
      %s352 = smul.addr %s351, 4
      %s353 = scalar_lea.vmem %s0, %s352
      %p354 = scmp.lt.s32.totalorder %s21, 1
      %s355 = scalar_select %p354, %s21, 1
      %s356 = smul.addr %s355, 2
      %s357 = scalar_lea.vmem %s10, %s356
      %vm359 = vcmask 124928
      %360 = vst.msk [vmem:[#allocation2] sm:$0x7] %vm359, 0
      %s361 = scalar_lea.vmem [#allocation2], 20
      %362 = vst.msk [vmem:[%s361] sm:$0x7] %vm359, 0
      %vm363 = vcmask 122880
      %vm364 = vsmask.f32 256
      %vm365 = vmand %vm363, %vm364
      %v366 = vld [vmem:[#allocation2] sm:$0x1]
      %v367 = vsel %vm365, 0, %v366
      %368 = vst [vmem:[#allocation2] sm:$0x1] %v367
      %v369 = vld [vmem:[#allocation2 + $0x4] sm:$0x1]
      %v370 = vsel %vm365, 0, %v369
      %371 = vst [vmem:[#allocation2 + $0x4] sm:$0x1] %v370
      %v372 = vld [vmem:[#allocation2 + $0x8] sm:$0x1]
      %v373 = vsel %vm365, 0, %v372
      %374 = vst [vmem:[#allocation2 + $0x8] sm:$0x1] %v373
      %v375 = vld [vmem:[#allocation2 + $0xc] sm:$0x1]
      %v376 = vsel %vm365, 0, %v375
      %377 = vst [vmem:[#allocation2 + $0xc] sm:$0x1] %v376
      %v378 = vld [vmem:[#allocation2 + $0x10] sm:$0x1]
      %v379 = vsel %vm365, 0, %v378
      %380 = vst [vmem:[#allocation2 + $0x10] sm:$0x1] %v379
      %v381 = vld [vmem:[#allocation2 + $0x14] sm:$0x1]
      %v382 = vsel %vm365, 0, %v381
      %383 = vst [vmem:[#allocation2 + $0x14] sm:$0x1] %v382
      %vm384 = vcmask 124930
      %vm385 = vsmask.f32 7946
      %vm386 = vmand %vm384, %vm385
      %v387 = vld [vmem:[#allocation2] sm:$0x4]
      %v388 = vsel %vm386, 0, %v387
      %389 = vst [vmem:[#allocation2] sm:$0x4] %v388
      %v390 = vld [vmem:[#allocation2 + $0x4] sm:$0x4]
      %v391 = vsel %vm386, 0, %v390
      %392 = vst [vmem:[#allocation2 + $0x4] sm:$0x4] %v391
      %v393 = vld [vmem:[#allocation2 + $0x8] sm:$0x4]
      %v394 = vsel %vm386, 0, %v393
      %395 = vst [vmem:[#allocation2 + $0x8] sm:$0x4] %v394
      %v396 = vld [vmem:[#allocation2 + $0xc] sm:$0x4]
      %v397 = vsel %vm386, 0, %v396
      %398 = vst [vmem:[#allocation2 + $0xc] sm:$0x4] %v397
      %v399 = vld [vmem:[#allocation2 + $0x10] sm:$0x4]
      %v400 = vsel %vm386, 0, %v399
      %401 = vst [vmem:[#allocation2 + $0x10] sm:$0x4] %v400
      %v402 = vld [vmem:[#allocation2 + $0x14] sm:$0x4]
      %v403 = vsel %vm386, 0, %v402
      %404 = vst [vmem:[#allocation2 + $0x14] sm:$0x4] %v403
      %v405 = vld [vmem:[%s353] sm:$0xf]
      %v406 = vld [vmem:[%s353 + $0x4] sm:$0xf]
      %v407 = vunpack.c.l.bf16 %v405
      %v408 = vunpack.c.l.bf16 %v406
      %v409 = vld [vmem:[%s1] sm:$0x1]
      %v411 = vperm.slane %v409, 0
      %v413 = vmul.f32 %v407, %v411
      %v414 = vmul.f32 %v408, %v411
      %v415 = vld [vmem:[%s2] sm:$0x1]
      %v417 = vperm.slane %v415, 0
      %v419 = vadd.f32 %v413, %v417
      %v420 = vadd.f32 %v414, %v417
      %v421 = vmax.f32 %v419, 0.0
      %v422 = vmax.f32 %v420, 0.0
      %v423 = vpack.c.bf16 %v422, %v421
      %v424 = vld [vmem:[%s3] sm:$0x7]
      %vm425 = vcmask 48128
      %v427 = vsel %vm425, %v423, 0
      %vm429 = vcmask 1042432
      %v431 = vsel %vm429, %v424, 0
      %433 = vmatpush.bf16.msra.mxu0 0
      %434 = vmatpush.bf16.msra.mxu0 0
      %435 = vmatpush.bf16.msra.mxu0 0
      %436 = vmatpush.bf16.msra.mxu0 0
      %437 = vmatpush.bf16.msra.mxu0 0
      %438 = vmatpush.bf16.msra.mxu0 0
      %439 = vmatpush.bf16.msra.mxu0 0
      %440 = vmatpush.bf16.msra.mxu0 %v431
      %441 = vmatmul.bf16.gmra.mxu0 %v427
      %v442 = vpop.f32.mrf.mxu0
      %v443 = vadd.f32 0.0, %v442
      %v444 = vpop.f32.mrf.mxu0
      %v445 = vadd.f32 0.0, %v444
      %446 = vdwg.mxu0
      %v447 = vld [vmem:[%s4] sm:$0x1]
      %v449 = vperm.slane %v447, 0
      %v451 = vmul.f32 %v443, %v449
      %v452 = vmul.f32 %v445, %v449
      %v453 = vld [vmem:[%s5] sm:$0x1]
      %v455 = vperm.slane %v453, 0
      %v457 = vadd.f32 %v451, %v455
      %v458 = vadd.f32 %v452, %v455
      %v459 = vmax.f32 %v457, 0.0
      %v460 = vmax.f32 %v458, 0.0
      %v463 = vrot.slane %v459, 4
      %v464 = vrot.slane %v460, 4
      %v467 = vpack.c.bf16 %v459, %v459
      %v468 = vpack.c.bf16 %v463, %v463
      %v469 = vpack.c.bf16 %v460, %v460
      %v470 = vpack.c.bf16 %v464, %v464
      %v472 = vshrl.u32 %v467, 16
      %v474 = vrot.slane %v472, 7
      %v475 = vshll.u32 %v467, 16
      %v477 = vor.u32 %v474, %v475
      %v479 = vshrl.u32 %v468, 16
      %v481 = vrot.slane %v479, 7
      %v482 = vshll.u32 %v468, 16
      %v484 = vor.u32 %v481, %v482
      %v486 = vshrl.u32 %v469, 16
      %v488 = vrot.slane %v486, 7
      %v489 = vshll.u32 %v469, 16
      %v491 = vor.u32 %v488, %v489
      %v493 = vshrl.u32 %v470, 16
      %v495 = vrot.slane %v493, 7
      %v496 = vshll.u32 %v470, 16
      %v498 = vor.u32 %v495, %v496
      %s503 = scalar_lea.vmem [#allocation2], 4
      %vm504 = vcmask 124928
      %vm505 = vsmask.f32 2306
      %vm506 = vmand %vm504, %vm505
      %v507 = vld [vmem:[%s503] sm:$0x7]
      %v508 = vsel %vm506, %v477, %v507
      %509 = vst [vmem:[%s503] sm:$0x7] %v508
      %v510 = vld [vmem:[%s503 + $0x4] sm:$0x7]
      %v511 = vsel %vm506, %v484, %v510
      %512 = vst [vmem:[%s503 + $0x4] sm:$0x7] %v511
      %v513 = vld [vmem:[%s503 + $0x8] sm:$0x7]
      %v514 = vsel %vm506, %v491, %v513
      %515 = vst [vmem:[%s503 + $0x8] sm:$0x7] %v514
      %v516 = vld [vmem:[%s503 + $0xc] sm:$0x7]
      %v517 = vsel %vm506, %v498, %v516
      %518 = vst [vmem:[%s503 + $0xc] sm:$0x7] %v517
      %v519 = vld [vmem:[#allocation2] sm:$0x3]
      %v520 = vld [vmem:[#allocation2 + $0x4] sm:$0x3]
      %v521 = vld [vmem:[#allocation2 + $0x8] sm:$0x3]
      %v522 = vld [vmem:[#allocation2 + $0xc] sm:$0x3]
      %v523 = vld [vmem:[%s6] sm:$0xf]
      %v524 = vld [vmem:[%s6 + $0x4] sm:$0xf]
      %v525 = vld [vmem:[#allocation2] sm:$0x7]
      %v526 = vld [vmem:[#allocation2 + $0x4] sm:$0x7]
      %v527 = vld [vmem:[#allocation2 + $0x8] sm:$0x7]
      %v528 = vld [vmem:[#allocation2 + $0xc] sm:$0x7]
      %v533 = vrot.slane %v525, 2
      %v534 = vrot.slane %v526, 2
      %v535 = vrot.slane %v527, 2
      %v536 = vrot.slane %v528, 2
      %vm537 = vcmask 1041408
      %v540 = vsel %vm537, %v525, %v533
      %vm541 = vcmask 1043458
      %v542 = vsel %vm541, %v525, %v533
      %v544 = vrot.slane %v542, 2
      %v547 = vsel %vm537, %v526, %v534
      %v548 = vsel %vm541, %v526, %v534
      %v550 = vrot.slane %v548, 2
      %v553 = vsel %vm537, %v527, %v535
      %v554 = vsel %vm541, %v527, %v535
      %v556 = vrot.slane %v554, 2
      %v559 = vsel %vm537, %v528, %v536
      %v560 = vsel %vm541, %v528, %v536
      %v562 = vrot.slane %v560, 2
      %vm563 = vsmask.f32 1280
      %vm564 = vsmask.f32 3336
      %vm565 = vmor %vm563, %vm564
      %vm566 = vsmask.f32 5392
      %vm567 = vmor %vm565, %vm566
      %vm568 = vsmask.f32 7448
      %vm569 = vmor %vm567, %vm568
      %v570 = vshrl.u32 %v540, 16
      %v572 = vrot.slane %v570, 6
      %v573 = vshll.u32 %v540, 16
      %v575 = vrot.slane %v573, 7
      %v576 = vor.u32 %v572, %v575
      %v577 = vrot.slane %v576, 2
      %v579 = vshll.u32 %v544, 16
      %v581 = vrot.slane %v579, 7
      %v582 = vsel %vm569, %v577, %v581
      %v583 = vshrl.u32 %v547, 16
      %v585 = vrot.slane %v583, 6
      %v586 = vshll.u32 %v547, 16
      %v588 = vrot.slane %v586, 7
      %v589 = vor.u32 %v585, %v588
      %v590 = vrot.slane %v589, 2
      %v592 = vshll.u32 %v550, 16
      %v594 = vrot.slane %v592, 7
      %v595 = vsel %vm569, %v590, %v594
      %v596 = vshrl.u32 %v553, 16
      %v598 = vrot.slane %v596, 6
      %v599 = vshll.u32 %v553, 16
      %v601 = vrot.slane %v599, 7
      %v602 = vor.u32 %v598, %v601
      %v603 = vrot.slane %v602, 2
      %v605 = vshll.u32 %v556, 16
      %v607 = vrot.slane %v605, 7
      %v608 = vsel %vm569, %v603, %v607
      %v609 = vshrl.u32 %v559, 16
      %v611 = vrot.slane %v609, 6
      %v612 = vshll.u32 %v559, 16
      %v614 = vrot.slane %v612, 7
      %v615 = vor.u32 %v611, %v614
      %v616 = vrot.slane %v615, 2
      %v618 = vshll.u32 %v562, 16
      %v620 = vrot.slane %v618, 7
      %v621 = vsel %vm569, %v616, %v620
      %s622 = scalar_lea.vmem %s6, 8
      %v623 = vld [vmem:[%s622] sm:$0xf]
      %v624 = vld [vmem:[%s622 + $0x4] sm:$0xf]
      %626 = vst [vmem:[#allocation1] ss:$4 sm:$0xff] %v582
      %s628 = scalar_lea.vmem [#allocation1], 1
      %629 = vst [vmem:[%s628] ss:$4 sm:$0xff] %v595
      %s631 = scalar_lea.vmem [#allocation1], 2
      %632 = vst [vmem:[%s631] ss:$4 sm:$0xff] %v608
      %s634 = scalar_lea.vmem [#allocation1], 3
      %635 = vst [vmem:[%s634] ss:$4 sm:$0xff] %v621
      %v636 = vld.sshfl [vmem:[#allocation1] sm:$0xff pattern:$0x73625140]
      %v639 = vunpack.c.l.b16 %v623
      %v640 = vunpack.c.l.b16 %v624
      %v641 = vpack.c.b16 %v640, %v639
      %vm643 = vcmask 130048
      %v644 = vsel %vm643, %v636, 0
      %646 = vmatpush.bf16.msra.mxu0 0
      %647 = vmatpush.bf16.msra.mxu0 0
      %648 = vmatpush.bf16.msra.mxu0 0
      %649 = vmatpush.bf16.msra.mxu0 0
      %650 = vmatpush.bf16.msra.mxu0 0
      %651 = vmatpush.bf16.msra.mxu0 0
      %652 = vmatpush.bf16.msra.mxu0 0
      %653 = vmatpush.bf16.msra.mxu0 %v641
      %654 = vmatmul.bf16.gmra.mxu0 %v644
      %v655 = vpop.f32.mrf.mxu0
      %v656 = vadd.f32 0.0, %v655
      %v657 = vpop.f32.mrf.mxu0
      %v658 = vadd.f32 0.0, %v657
      %659 = vdwg.mxu0
      %661 = vst [vmem:[#allocation1] ss:$4 sm:$0xff] %v519
      %s663 = scalar_lea.vmem [#allocation1], 1
      %664 = vst [vmem:[%s663] ss:$4 sm:$0xff] %v520
      %s666 = scalar_lea.vmem [#allocation1], 2
      %667 = vst [vmem:[%s666] ss:$4 sm:$0xff] %v521
      %s669 = scalar_lea.vmem [#allocation1], 3
      %670 = vst [vmem:[%s669] ss:$4 sm:$0xff] %v522
      %v671 = vld.sshfl [vmem:[#allocation1] sm:$0xff pattern:$0x73625140]
      %v674 = vunpack.c.l.b16 %v523
      %v675 = vunpack.c.l.b16 %v524
      %v676 = vpack.c.b16 %v675, %v674
      %v678 = vsel %vm643, %v671, 0
      %680 = vmatpush.bf16.msra.mxu0 0
      %681 = vmatpush.bf16.msra.mxu0 0
      %682 = vmatpush.bf16.msra.mxu0 0
      %683 = vmatpush.bf16.msra.mxu0 0
      %684 = vmatpush.bf16.msra.mxu0 0
      %685 = vmatpush.bf16.msra.mxu0 0
      %686 = vmatpush.bf16.msra.mxu0 0
      %687 = vmatpush.bf16.msra.mxu0 %v676
      %688 = vmatmul.bf16.gmra.mxu0 %v678
      %v689 = vpop.f32.mrf.mxu0
      %v690 = vadd.f32 %v656, %v689
      %v691 = vpop.f32.mrf.mxu0
      %v692 = vadd.f32 %v658, %v691
      %693 = vdwg.mxu0
      %v694 = vld [vmem:[#allocation2] sm:$0x6]
      %v695 = vld [vmem:[#allocation2 + $0x4] sm:$0x6]
      %v696 = vld [vmem:[#allocation2 + $0x8] sm:$0x6]
      %v697 = vld [vmem:[#allocation2 + $0xc] sm:$0x6]
      %v702 = vrot.slane %v694, 2
      %v703 = vrot.slane %v695, 2
      %v704 = vrot.slane %v696, 2
      %v705 = vrot.slane %v697, 2
      %v708 = vsel %vm537, %v694, %v702
      %v710 = vsel %vm541, %v694, %v702
      %v712 = vrot.slane %v710, 2
      %v715 = vsel %vm537, %v695, %v703
      %v717 = vsel %vm541, %v695, %v703
      %v719 = vrot.slane %v717, 2
      %v722 = vsel %vm537, %v696, %v704
      %v724 = vsel %vm541, %v696, %v704
      %v726 = vrot.slane %v724, 2
      %v729 = vsel %vm537, %v697, %v705
      %v731 = vsel %vm541, %v697, %v705
      %v733 = vrot.slane %v731, 2
      %vm734 = vcmask 1040384
      %vm735 = vcmask 1042434
      %vm736 = vmor %vm734, %vm735
      %vm737 = vcmask 1044484
      %vm738 = vmor %vm736, %vm737
      %vm739 = vcmask 1046534
      %vm740 = vmor %vm738, %vm739
      %v741 = vrot.slane %v708, 7
      %v742 = vrot.slane %v741, 2
      %v743 = vrot.slane %v712, 7
      %v744 = vsel %vm740, %v742, %v743
      %v745 = vrot.slane %v715, 7
      %v746 = vrot.slane %v745, 2
      %v747 = vrot.slane %v719, 7
      %v748 = vsel %vm740, %v746, %v747
      %v749 = vrot.slane %v722, 7
      %v750 = vrot.slane %v749, 2
      %v751 = vrot.slane %v726, 7
      %v752 = vsel %vm740, %v750, %v751
      %v753 = vrot.slane %v729, 7
      %v754 = vrot.slane %v753, 2
      %v755 = vrot.slane %v733, 7
      %v756 = vsel %vm740, %v754, %v755
      %s757 = scalar_lea.vmem %s6, 16
      %v758 = vld [vmem:[%s757] sm:$0xf]
      %v759 = vld [vmem:[%s757 + $0x4] sm:$0xf]
      %761 = vst [vmem:[#allocation1] ss:$4 sm:$0xff] %v744
      %s763 = scalar_lea.vmem [#allocation1], 1
      %764 = vst [vmem:[%s763] ss:$4 sm:$0xff] %v748
      %s766 = scalar_lea.vmem [#allocation1], 2
      %767 = vst [vmem:[%s766] ss:$4 sm:$0xff] %v752
      %s769 = scalar_lea.vmem [#allocation1], 3
      %770 = vst [vmem:[%s769] ss:$4 sm:$0xff] %v756
      %v771 = vld.sshfl [vmem:[#allocation1] sm:$0xff pattern:$0x73625140]
      %v774 = vunpack.c.l.b16 %v758
      %v775 = vunpack.c.l.b16 %v759
      %v776 = vpack.c.b16 %v775, %v774
      %v778 = vsel %vm643, %v771, 0
      %780 = vmatpush.bf16.msra.mxu0 0
      %781 = vmatpush.bf16.msra.mxu0 0
      %782 = vmatpush.bf16.msra.mxu0 0
      %783 = vmatpush.bf16.msra.mxu0 0
      %784 = vmatpush.bf16.msra.mxu0 0
      %785 = vmatpush.bf16.msra.mxu0 0
      %786 = vmatpush.bf16.msra.mxu0 0
      %787 = vmatpush.bf16.msra.mxu0 %v776
      %788 = vmatmul.bf16.gmra.mxu0 %v778
      %v789 = vpop.f32.mrf.mxu0
      %v790 = vadd.f32 0.0, %v789
      %v791 = vpop.f32.mrf.mxu0
      %v792 = vadd.f32 0.0, %v791
      %793 = vdwg.mxu0
      %v794 = vadd.f32 %v690, %v790
      %v795 = vadd.f32 %v692, %v792
      %v796 = vld [vmem:[%s503] sm:$0x3]
      %v797 = vld [vmem:[%s503 + $0x4] sm:$0x3]
      %v798 = vld [vmem:[%s503 + $0x8] sm:$0x3]
      %v799 = vld [vmem:[%s503 + $0xc] sm:$0x3]
      %s800 = scalar_lea.vmem %s6, 24
      %v801 = vld [vmem:[%s800] sm:$0xf]
      %v802 = vld [vmem:[%s800 + $0x4] sm:$0xf]
      %804 = vst [vmem:[#allocation1] ss:$4 sm:$0xff] %v796
      %s806 = scalar_lea.vmem [#allocation1], 1
      %807 = vst [vmem:[%s806] ss:$4 sm:$0xff] %v797
      %s809 = scalar_lea.vmem [#allocation1], 2
      %810 = vst [vmem:[%s809] ss:$4 sm:$0xff] %v798
      %s812 = scalar_lea.vmem [#allocation1], 3
      %813 = vst [vmem:[%s812] ss:$4 sm:$0xff] %v799
      %v814 = vld.sshfl [vmem:[#allocation1] sm:$0xff pattern:$0x73625140]
      %v817 = vunpack.c.l.b16 %v801
      %v818 = vunpack.c.l.b16 %v802
      %v819 = vpack.c.b16 %v818, %v817
      %v821 = vsel %vm643, %v814, 0
      %823 = vmatpush.bf16.msra.mxu0 0
      %824 = vmatpush.bf16.msra.mxu0 0
      %825 = vmatpush.bf16.msra.mxu0 0
      %826 = vmatpush.bf16.msra.mxu0 0
      %827 = vmatpush.bf16.msra.mxu0 0
      %828 = vmatpush.bf16.msra.mxu0 0
      %829 = vmatpush.bf16.msra.mxu0 0
      %830 = vmatpush.bf16.msra.mxu0 %v819
      %831 = vmatmul.bf16.gmra.mxu0 %v821
      %v832 = vpop.f32.mrf.mxu0
      %v833 = vadd.f32 0.0, %v832
      %v834 = vpop.f32.mrf.mxu0
      %v835 = vadd.f32 0.0, %v834
      %836 = vdwg.mxu0
      %v837 = vadd.f32 %v794, %v833
      %v838 = vadd.f32 %v795, %v835
      %v839 = vld [vmem:[%s503] sm:$0x7]
      %v840 = vld [vmem:[%s503 + $0x4] sm:$0x7]
      %v841 = vld [vmem:[%s503 + $0x8] sm:$0x7]
      %v842 = vld [vmem:[%s503 + $0xc] sm:$0x7]
      %v847 = vrot.slane %v839, 2
      %v848 = vrot.slane %v840, 2
      %v849 = vrot.slane %v841, 2
      %v850 = vrot.slane %v842, 2
      %v853 = vsel %vm537, %v839, %v847
      %v854 = vsel %vm541, %v839, %v847
      %v856 = vrot.slane %v854, 2
      %v859 = vsel %vm537, %v840, %v848
      %v860 = vsel %vm541, %v840, %v848
      %v862 = vrot.slane %v860, 2
      %v865 = vsel %vm537, %v841, %v849
      %v866 = vsel %vm541, %v841, %v849
      %v868 = vrot.slane %v866, 2
      %v871 = vsel %vm537, %v842, %v850
      %v872 = vsel %vm541, %v842, %v850
      %v874 = vrot.slane %v872, 2
      %v875 = vshrl.u32 %v853, 16
      %v877 = vrot.slane %v875, 6
      %v878 = vshll.u32 %v853, 16
      %v880 = vrot.slane %v878, 7
      %v881 = vor.u32 %v877, %v880
      %v882 = vrot.slane %v881, 2
      %v884 = vshll.u32 %v856, 16
      %v886 = vrot.slane %v884, 7
      %v887 = vsel %vm569, %v882, %v886
      %v888 = vshrl.u32 %v859, 16
      %v890 = vrot.slane %v888, 6
      %v891 = vshll.u32 %v859, 16
      %v893 = vrot.slane %v891, 7
      %v894 = vor.u32 %v890, %v893
      %v895 = vrot.slane %v894, 2
      %v897 = vshll.u32 %v862, 16
      %v899 = vrot.slane %v897, 7
      %v900 = vsel %vm569, %v895, %v899
      %v901 = vshrl.u32 %v865, 16
      %v903 = vrot.slane %v901, 6
      %v904 = vshll.u32 %v865, 16
      %v906 = vrot.slane %v904, 7
      %v907 = vor.u32 %v903, %v906
      %v908 = vrot.slane %v907, 2
      %v910 = vshll.u32 %v868, 16
      %v912 = vrot.slane %v910, 7
      %v913 = vsel %vm569, %v908, %v912
      %v914 = vshrl.u32 %v871, 16
      %v916 = vrot.slane %v914, 6
      %v917 = vshll.u32 %v871, 16
      %v919 = vrot.slane %v917, 7
      %v920 = vor.u32 %v916, %v919
      %v921 = vrot.slane %v920, 2
      %v923 = vshll.u32 %v874, 16
      %v925 = vrot.slane %v923, 7
      %v926 = vsel %vm569, %v921, %v925
      %s927 = scalar_lea.vmem %s6, 32
      %v928 = vld [vmem:[%s927] sm:$0xf]
      %v929 = vld [vmem:[%s927 + $0x4] sm:$0xf]
      %931 = vst [vmem:[#allocation1] ss:$4 sm:$0xff] %v887
      %s933 = scalar_lea.vmem [#allocation1], 1
      %934 = vst [vmem:[%s933] ss:$4 sm:$0xff] %v900
      %s936 = scalar_lea.vmem [#allocation1], 2
      %937 = vst [vmem:[%s936] ss:$4 sm:$0xff] %v913
      %s939 = scalar_lea.vmem [#allocation1], 3
      %940 = vst [vmem:[%s939] ss:$4 sm:$0xff] %v926
      %v941 = vld.sshfl [vmem:[#allocation1] sm:$0xff pattern:$0x73625140]
      %v944 = vunpack.c.l.b16 %v928
      %v945 = vunpack.c.l.b16 %v929
      %v946 = vpack.c.b16 %v945, %v944
      %v948 = vsel %vm643, %v941, 0
      %950 = vmatpush.bf16.msra.mxu0 0
      %951 = vmatpush.bf16.msra.mxu0 0
      %952 = vmatpush.bf16.msra.mxu0 0
      %953 = vmatpush.bf16.msra.mxu0 0
      %954 = vmatpush.bf16.msra.mxu0 0
      %955 = vmatpush.bf16.msra.mxu0 0
      %956 = vmatpush.bf16.msra.mxu0 0
      %957 = vmatpush.bf16.msra.mxu0 %v946
      %958 = vmatmul.bf16.gmra.mxu0 %v948
      %v959 = vpop.f32.mrf.mxu0
      %v960 = vadd.f32 0.0, %v959
      %v961 = vpop.f32.mrf.mxu0
      %v962 = vadd.f32 0.0, %v961
      %963 = vdwg.mxu0
      %v964 = vadd.f32 %v837, %v960
      %v965 = vadd.f32 %v838, %v962
      %v966 = vld [vmem:[%s503] sm:$0x6]
      %v967 = vld [vmem:[%s503 + $0x4] sm:$0x6]
      %v968 = vld [vmem:[%s503 + $0x8] sm:$0x6]
      %v969 = vld [vmem:[%s503 + $0xc] sm:$0x6]
      %v974 = vrot.slane %v966, 2
      %v975 = vrot.slane %v967, 2
      %v976 = vrot.slane %v968, 2
      %v977 = vrot.slane %v969, 2
      %v980 = vsel %vm537, %v966, %v974
      %v982 = vsel %vm541, %v966, %v974
      %v984 = vrot.slane %v982, 2
      %v987 = vsel %vm537, %v967, %v975
      %v989 = vsel %vm541, %v967, %v975
      %v991 = vrot.slane %v989, 2
      %v994 = vsel %vm537, %v968, %v976
      %v996 = vsel %vm541, %v968, %v976
      %v998 = vrot.slane %v996, 2
      %v1001 = vsel %vm537, %v969, %v977
      %v1003 = vsel %vm541, %v969, %v977
      %v1005 = vrot.slane %v1003, 2
      %v1006 = vrot.slane %v980, 7
      %v1007 = vrot.slane %v1006, 2
      %v1008 = vrot.slane %v984, 7
      %v1009 = vsel %vm740, %v1007, %v1008
      %v1010 = vrot.slane %v987, 7
      %v1011 = vrot.slane %v1010, 2
      %v1012 = vrot.slane %v991, 7
      %v1013 = vsel %vm740, %v1011, %v1012
      %v1014 = vrot.slane %v994, 7
      %v1015 = vrot.slane %v1014, 2
      %v1016 = vrot.slane %v998, 7
      %v1017 = vsel %vm740, %v1015, %v1016
      %v1018 = vrot.slane %v1001, 7
      %v1019 = vrot.slane %v1018, 2
      %v1020 = vrot.slane %v1005, 7
      %v1021 = vsel %vm740, %v1019, %v1020
      %s1022 = scalar_lea.vmem %s6, 40
      %v1023 = vld [vmem:[%s1022] sm:$0xf]
      %v1024 = vld [vmem:[%s1022 + $0x4] sm:$0xf]
      %1026 = vst [vmem:[#allocation1] ss:$4 sm:$0xff] %v1009
      %s1028 = scalar_lea.vmem [#allocation1], 1
      %1029 = vst [vmem:[%s1028] ss:$4 sm:$0xff] %v1013
      %s1031 = scalar_lea.vmem [#allocation1], 2
      %1032 = vst [vmem:[%s1031] ss:$4 sm:$0xff] %v1017
      %s1034 = scalar_lea.vmem [#allocation1], 3
      %1035 = vst [vmem:[%s1034] ss:$4 sm:$0xff] %v1021
      %v1036 = vld.sshfl [vmem:[#allocation1] sm:$0xff pattern:$0x73625140]
      %v1039 = vunpack.c.l.b16 %v1023
      %v1040 = vunpack.c.l.b16 %v1024
      %v1041 = vpack.c.b16 %v1040, %v1039
      %v1043 = vsel %vm643, %v1036, 0
      %1045 = vmatpush.bf16.msra.mxu0 0
      %1046 = vmatpush.bf16.msra.mxu0 0
      %1047 = vmatpush.bf16.msra.mxu0 0
      %1048 = vmatpush.bf16.msra.mxu0 0
      %1049 = vmatpush.bf16.msra.mxu0 0
      %1050 = vmatpush.bf16.msra.mxu0 0
      %1051 = vmatpush.bf16.msra.mxu0 0
      %1052 = vmatpush.bf16.msra.mxu0 %v1041
      %1053 = vmatmul.bf16.gmra.mxu0 %v1043
      %v1054 = vpop.f32.mrf.mxu0
      %v1055 = vadd.f32 0.0, %v1054
      %v1056 = vpop.f32.mrf.mxu0
      %v1057 = vadd.f32 0.0, %v1056
      %1058 = vdwg.mxu0
      %v1059 = vadd.f32 %v964, %v1055
      %v1060 = vadd.f32 %v965, %v1057
      %s1061 = scalar_lea.vmem [#allocation2], 8
      %v1062 = vld [vmem:[%s1061] sm:$0x3]
      %v1063 = vld [vmem:[%s1061 + $0x4] sm:$0x3]
      %v1064 = vld [vmem:[%s1061 + $0x8] sm:$0x3]
      %v1065 = vld [vmem:[%s1061 + $0xc] sm:$0x3]
      %s1066 = scalar_lea.vmem %s6, 48
      %v1067 = vld [vmem:[%s1066] sm:$0xf]
      %v1068 = vld [vmem:[%s1066 + $0x4] sm:$0xf]
      %1070 = vst [vmem:[#allocation1] ss:$4 sm:$0xff] %v1062
      %s1072 = scalar_lea.vmem [#allocation1], 1
      %1073 = vst [vmem:[%s1072] ss:$4 sm:$0xff] %v1063
      %s1075 = scalar_lea.vmem [#allocation1], 2
      %1076 = vst [vmem:[%s1075] ss:$4 sm:$0xff] %v1064
      %s1078 = scalar_lea.vmem [#allocation1], 3
      %1079 = vst [vmem:[%s1078] ss:$4 sm:$0xff] %v1065
      %v1080 = vld.sshfl [vmem:[#allocation1] sm:$0xff pattern:$0x73625140]
      %v1083 = vunpack.c.l.b16 %v1067
      %v1084 = vunpack.c.l.b16 %v1068
      %v1085 = vpack.c.b16 %v1084, %v1083
      %v1087 = vsel %vm643, %v1080, 0
      %1089 = vmatpush.bf16.msra.mxu0 0
      %1090 = vmatpush.bf16.msra.mxu0 0
      %1091 = vmatpush.bf16.msra.mxu0 0
      %1092 = vmatpush.bf16.msra.mxu0 0
      %1093 = vmatpush.bf16.msra.mxu0 0
      %1094 = vmatpush.bf16.msra.mxu0 0
      %1095 = vmatpush.bf16.msra.mxu0 0
      %1096 = vmatpush.bf16.msra.mxu0 %v1085
      %1097 = vmatmul.bf16.gmra.mxu0 %v1087
      %v1098 = vpop.f32.mrf.mxu0
      %v1099 = vadd.f32 0.0, %v1098
      %v1100 = vpop.f32.mrf.mxu0
      %v1101 = vadd.f32 0.0, %v1100
      %1102 = vdwg.mxu0
      %v1103 = vadd.f32 %v1059, %v1099
      %v1104 = vadd.f32 %v1060, %v1101
      %v1105 = vld [vmem:[%s1061] sm:$0x7]
      %v1106 = vld [vmem:[%s1061 + $0x4] sm:$0x7]
      %v1107 = vld [vmem:[%s1061 + $0x8] sm:$0x7]
      %v1108 = vld [vmem:[%s1061 + $0xc] sm:$0x7]
      %v1113 = vrot.slane %v1105, 2
      %v1114 = vrot.slane %v1106, 2
      %v1115 = vrot.slane %v1107, 2
      %v1116 = vrot.slane %v1108, 2
      %v1119 = vsel %vm537, %v1105, %v1113
      %v1120 = vsel %vm541, %v1105, %v1113
      %v1122 = vrot.slane %v1120, 2
      %v1125 = vsel %vm537, %v1106, %v1114
      %v1126 = vsel %vm541, %v1106, %v1114
      %v1128 = vrot.slane %v1126, 2
      %v1131 = vsel %vm537, %v1107, %v1115
      %v1132 = vsel %vm541, %v1107, %v1115
      %v1134 = vrot.slane %v1132, 2
      %v1137 = vsel %vm537, %v1108, %v1116
      %v1138 = vsel %vm541, %v1108, %v1116
      %v1140 = vrot.slane %v1138, 2
      %v1141 = vshrl.u32 %v1119, 16
      %v1143 = vrot.slane %v1141, 6
      %v1144 = vshll.u32 %v1119, 16
      %v1146 = vrot.slane %v1144, 7
      %v1147 = vor.u32 %v1143, %v1146
      %v1148 = vrot.slane %v1147, 2
      %v1150 = vshll.u32 %v1122, 16
      %v1152 = vrot.slane %v1150, 7
      %v1153 = vsel %vm569, %v1148, %v1152
      %v1154 = vshrl.u32 %v1125, 16
      %v1156 = vrot.slane %v1154, 6
      %v1157 = vshll.u32 %v1125, 16
      %v1159 = vrot.slane %v1157, 7
      %v1160 = vor.u32 %v1156, %v1159
      %v1161 = vrot.slane %v1160, 2
      %v1163 = vshll.u32 %v1128, 16
      %v1165 = vrot.slane %v1163, 7
      %v1166 = vsel %vm569, %v1161, %v1165
      %v1167 = vshrl.u32 %v1131, 16
      %v1169 = vrot.slane %v1167, 6
      %v1170 = vshll.u32 %v1131, 16
      %v1172 = vrot.slane %v1170, 7
      %v1173 = vor.u32 %v1169, %v1172
      %v1174 = vrot.slane %v1173, 2
      %v1176 = vshll.u32 %v1134, 16
      %v1178 = vrot.slane %v1176, 7
      %v1179 = vsel %vm569, %v1174, %v1178
      %v1180 = vshrl.u32 %v1137, 16
      %v1182 = vrot.slane %v1180, 6
      %v1183 = vshll.u32 %v1137, 16
      %v1185 = vrot.slane %v1183, 7
      %v1186 = vor.u32 %v1182, %v1185
      %v1187 = vrot.slane %v1186, 2
      %v1189 = vshll.u32 %v1140, 16
      %v1191 = vrot.slane %v1189, 7
      %v1192 = vsel %vm569, %v1187, %v1191
      %s1193 = scalar_lea.vmem %s6, 56
      %v1194 = vld [vmem:[%s1193] sm:$0xf]
      %v1195 = vld [vmem:[%s1193 + $0x4] sm:$0xf]
      %1197 = vst [vmem:[#allocation1] ss:$4 sm:$0xff] %v1153
      %s1199 = scalar_lea.vmem [#allocation1], 1
      %1200 = vst [vmem:[%s1199] ss:$4 sm:$0xff] %v1166
      %s1202 = scalar_lea.vmem [#allocation1], 2
      %1203 = vst [vmem:[%s1202] ss:$4 sm:$0xff] %v1179
      %s1205 = scalar_lea.vmem [#allocation1], 3
      %1206 = vst [vmem:[%s1205] ss:$4 sm:$0xff] %v1192
      %v1207 = vld.sshfl [vmem:[#allocation1] sm:$0xff pattern:$0x73625140]
      %v1210 = vunpack.c.l.b16 %v1194
      %v1211 = vunpack.c.l.b16 %v1195
      %v1212 = vpack.c.b16 %v1211, %v1210
      %v1214 = vsel %vm643, %v1207, 0
      %1216 = vmatpush.bf16.msra.mxu0 0
      %1217 = vmatpush.bf16.msra.mxu0 0
      %1218 = vmatpush.bf16.msra.mxu0 0
      %1219 = vmatpush.bf16.msra.mxu0 0
      %1220 = vmatpush.bf16.msra.mxu0 0
      %1221 = vmatpush.bf16.msra.mxu0 0
      %1222 = vmatpush.bf16.msra.mxu0 0
      %1223 = vmatpush.bf16.msra.mxu0 %v1212
      %1224 = vmatmul.bf16.gmra.mxu0 %v1214
      %v1225 = vpop.f32.mrf.mxu0
      %v1226 = vadd.f32 0.0, %v1225
      %v1227 = vpop.f32.mrf.mxu0
      %v1228 = vadd.f32 0.0, %v1227
      %1229 = vdwg.mxu0
      %v1230 = vadd.f32 %v1103, %v1226
      %v1231 = vadd.f32 %v1104, %v1228
      %v1232 = vld [vmem:[%s1061] sm:$0x6]
      %v1233 = vld [vmem:[%s1061 + $0x4] sm:$0x6]
      %v1234 = vld [vmem:[%s1061 + $0x8] sm:$0x6]
      %v1235 = vld [vmem:[%s1061 + $0xc] sm:$0x6]
      %v1240 = vrot.slane %v1232, 2
      %v1241 = vrot.slane %v1233, 2
      %v1242 = vrot.slane %v1234, 2
      %v1243 = vrot.slane %v1235, 2
      %v1246 = vsel %vm537, %v1232, %v1240
      %v1248 = vsel %vm541, %v1232, %v1240
      %v1250 = vrot.slane %v1248, 2
      %v1253 = vsel %vm537, %v1233, %v1241
      %v1255 = vsel %vm541, %v1233, %v1241
      %v1257 = vrot.slane %v1255, 2
      %v1260 = vsel %vm537, %v1234, %v1242
      %v1262 = vsel %vm541, %v1234, %v1242
      %v1264 = vrot.slane %v1262, 2
      %v1267 = vsel %vm537, %v1235, %v1243
      %v1269 = vsel %vm541, %v1235, %v1243
      %v1271 = vrot.slane %v1269, 2
      %v1272 = vrot.slane %v1246, 7
      %v1273 = vrot.slane %v1272, 2
      %v1274 = vrot.slane %v1250, 7
      %v1275 = vsel %vm740, %v1273, %v1274
      %v1276 = vrot.slane %v1253, 7
      %v1277 = vrot.slane %v1276, 2
      %v1278 = vrot.slane %v1257, 7
      %v1279 = vsel %vm740, %v1277, %v1278
      %v1280 = vrot.slane %v1260, 7
      %v1281 = vrot.slane %v1280, 2
      %v1282 = vrot.slane %v1264, 7
      %v1283 = vsel %vm740, %v1281, %v1282
      %v1284 = vrot.slane %v1267, 7
      %v1285 = vrot.slane %v1284, 2
      %v1286 = vrot.slane %v1271, 7
      %v1287 = vsel %vm740, %v1285, %v1286
      %s1288 = scalar_lea.vmem %s6, 64
      %v1289 = vld [vmem:[%s1288] sm:$0xf]
      %v1290 = vld [vmem:[%s1288 + $0x4] sm:$0xf]
      %1292 = vst [vmem:[#allocation1] ss:$4 sm:$0xff] %v1275
      %s1294 = scalar_lea.vmem [#allocation1], 1
      %1295 = vst [vmem:[%s1294] ss:$4 sm:$0xff] %v1279
      %s1297 = scalar_lea.vmem [#allocation1], 2
      %1298 = vst [vmem:[%s1297] ss:$4 sm:$0xff] %v1283
      %s1300 = scalar_lea.vmem [#allocation1], 3
      %1301 = vst [vmem:[%s1300] ss:$4 sm:$0xff] %v1287
      %v1302 = vld.sshfl [vmem:[#allocation1] sm:$0xff pattern:$0x73625140]
      %v1305 = vunpack.c.l.b16 %v1289
      %v1306 = vunpack.c.l.b16 %v1290
      %v1307 = vpack.c.b16 %v1306, %v1305
      %v1309 = vsel %vm643, %v1302, 0
      %1311 = vmatpush.bf16.msra.mxu0 0
      %1312 = vmatpush.bf16.msra.mxu0 0
      %1313 = vmatpush.bf16.msra.mxu0 0
      %1314 = vmatpush.bf16.msra.mxu0 0
      %1315 = vmatpush.bf16.msra.mxu0 0
      %1316 = vmatpush.bf16.msra.mxu0 0
      %1317 = vmatpush.bf16.msra.mxu0 0
      %1318 = vmatpush.bf16.msra.mxu0 %v1307
      %1319 = vmatmul.bf16.gmra.mxu0 %v1309
      %v1320 = vpop.f32.mrf.mxu0
      %v1321 = vadd.f32 0.0, %v1320
      %v1322 = vpop.f32.mrf.mxu0
      %v1323 = vadd.f32 0.0, %v1322
      %1324 = vdwg.mxu0
      %v1325 = vadd.f32 %v1230, %v1321
      %v1326 = vadd.f32 %v1231, %v1323
      %1329 = vrot.lane.b32.xlu0 %v1325, 6
      %v1330 = vpop.permute.xlu0 %1329
      %1331 = vrot.lane.b32.xlu0 %v1326, 6
      %v1332 = vpop.permute.xlu0 %1331
      %v1335 = vsel %vm425, %v407, %v1330
      %v1336 = vsel %vm425, %v408, %v1332
      %v1339 = vrot.slane %v1335, 4
      %v1340 = vrot.slane %v1336, 4
      %v1343 = vadd.f32 %v1335, %v1339
      %v1344 = vadd.f32 %v1336, %v1340
      %v1347 = vrot.slane %v1343, 2
      %v1348 = vrot.slane %v1344, 2
      %v1349 = vsel %vm537, %v1343, %v1347
      %v1350 = vsel %vm541, %v1343, %v1347
      %v1351 = vrot.slane %v1350, 2
      %v1352 = vsel %vm537, %v1344, %v1348
      %v1353 = vsel %vm541, %v1344, %v1348
      %v1354 = vrot.slane %v1353, 2
      %v1359 = vrot.slane %v1349, 7
      %v1360 = vrot.slane %v1359, 2
      %v1361 = vrot.slane %v1351, 7
      %v1362 = vrot.slane %v1361, 2
      %v1363 = vrot.slane %v1352, 7
      %v1364 = vrot.slane %v1363, 2
      %v1365 = vrot.slane %v1354, 7
      %v1366 = vrot.slane %v1365, 2
      %v1371 = vadd.f32 %v1349, %v1360
      %v1372 = vadd.f32 %v1351, %v1362
      %v1373 = vadd.f32 %v1352, %v1364
      %v1374 = vadd.f32 %v1354, %v1366
      %v1375 = vmul.f32 %v1371, 0.25
      %v1376 = vmul.f32 %v1372, 0.25
      %v1377 = vmul.f32 %v1373, 0.25
      %v1378 = vmul.f32 %v1374, 0.25
      %v1379 = vld [vmem:[%s7] sm:$0x1]
      %v1381 = vperm.slane %v1379, 0
      %v1382 = vrot.slane %v1381, 2
      %v1383 = vrot.slane %v1381, 1
      %v1384 = vrot.slane %v1382, 1
      %v1389 = vmul.f32 %v1375, %v1381
      %v1390 = vmul.f32 %v1376, %v1383
      %v1391 = vmul.f32 %v1377, %v1382
      %v1392 = vmul.f32 %v1378, %v1384
      %v1393 = vld [vmem:[%s8] sm:$0x1]
      %v1395 = vperm.slane %v1393, 0
      %v1396 = vrot.slane %v1395, 2
      %v1397 = vrot.slane %v1395, 1
      %v1398 = vrot.slane %v1396, 1
      %v1403 = vadd.f32 %v1389, %v1395
      %v1404 = vadd.f32 %v1390, %v1397
      %v1405 = vadd.f32 %v1391, %v1396
      %v1406 = vadd.f32 %v1392, %v1398
      %v1407 = vpack.c.bf16 %v1403, %v1403
      %v1408 = vpack.c.bf16 %v1404, %v1404
      %v1409 = vpack.c.bf16 %v1405, %v1405
      %v1410 = vpack.c.bf16 %v1406, %v1406
      %v1411 = vld [vmem:[%s9] sm:$0xf]
      %v1412 = vld [vmem:[%s9 + $0x4] sm:$0x1]
      %v1417 = vunpack.c.l.b16 %v1407
      %v1418 = vunpack.c.l.b16 %v1408
      %v1419 = vunpack.c.l.b16 %v1409
      %v1420 = vunpack.c.l.b16 %v1410
      %v1421 = vrot.slane %v1418, 7
      %vm1422 = vcmask 1041409
      %v1423 = vsel %vm1422, %v1421, %v1417
      %v1424 = vrot.slane %v1419, 6
      %vm1425 = vcmask 1042434
      %v1426 = vsel %vm1425, %v1424, %v1423
      %v1427 = vrot.slane %v1420, 5
      %vm1428 = vcmask 1043459
      %v1429 = vsel %vm1428, %v1427, %v1426
      %v1430 = vpack.c.b16 %v1429, %v1429
      %v1433 = vunpack.c.l.b16 %v1411
      %v1434 = vunpack.c.l.b16 %v1412
      %v1435 = vpack.c.b16 %v1434, %v1433
      %vm1436 = vcmask 80896
      %v1438 = vsel %vm1436, %v1430, 0
      %vm1440 = vcmask 1044480
      %v1442 = vsel %vm1440, %v1435, 0
      %1444 = vmatpush.bf16.msra.mxu0 0
      %1445 = vmatpush.bf16.msra.mxu0 0
      %1446 = vmatpush.bf16.msra.mxu0 0
      %1447 = vmatpush.bf16.msra.mxu0 0
      %1448 = vmatpush.bf16.msra.mxu0 0
      %1449 = vmatpush.bf16.msra.mxu0 0
      %1450 = vmatpush.bf16.msra.mxu0 0
      %1451 = vmatpush.bf16.msra.mxu0 %v1442
      %1452 = vmatmul.bf16.gmra.mxu0 %v1438
      %v1453 = vpop.f32.mrf.mxu0
      %v1454 = vadd.f32 0.0, %v1453
      %v1455 = vpop.f32.mrf.mxu0
      %1456 = vdwg.mxu0
      %v1457 = vpack.c.bf16 %v1454, %v1454
      %vm1458 = vcmask 33792
      %1459 = vst.msk [vmem:[%s357] sm:$0x3] %vm1458, %v1457
      %p1460 = scmp.lt.s32.totalorder %s21, 1
      %s1461 = scalar_select %p1460, %s21, 1
      %s1462 = smul.addr %s1461, 2
      %s1463 = scalar_lea.vmem %s10, %s1462
      // Predicated region
      $region61: #{densenet_forward.7} parent=59 // pred_check
        %p1464 = pneg %p254
      $region62: #{densenet_forward.7} parent=59 // pred_check_branch
        %1466 = sbr.rel (%p1464) target = $region64
      $region63: #{densenet_forward.7} parent=59 // pred_region
        _
      $region64: #{densenet_forward.7} parent=59 // pred_fallthru
        _
    $region60: #{densenet_forward.7} parent=5 // pred_fallthru
      _
    %p1467 = scmp.le.s32.totalorder 2, %s16
    // Predicated region
    $region65: #{densenet_forward.7} parent=5 // pred_check
      %p1468 = pneg %p1467
    $region66: #{densenet_forward.7} parent=5 // pred_check_branch
      %1470 = sbr.rel (%p1468) target = $region68
    $region67: #{densenet_forward.7} parent=5 // pred_region
      %s1471 = ssub.s32 %s16, 2
      // Predicated region
      $region69: #{densenet_forward.7} parent=67 // pred_check
        %p1472 = pneg %p260
      $region70: #{densenet_forward.7} parent=67 // pred_check_branch
        %1474 = sbr.rel (%p1472) target = $region72
      $region71: #{densenet_forward.7} parent=67 // pred_region
        %p1475 = scmp.lt.s32.totalorder %s22, 1
        %s1476 = scalar_select %p1475, %s22, 1
        %s1477 = smul.addr %s1476, 2
        %s1478 = scalar_lea.vmem %s10, %s1477
      $region72: #{densenet_forward.7} parent=67 // pred_fallthru
        _
    $region68: #{densenet_forward.7} parent=5 // pred_fallthru
      _
  $region6: #{densenet_forward.7} parent=0 // loop_footer
    %s20 = sadd.s32 1, %s16
  $region7: #{densenet_forward.7} parent=0 // loop_footer_branch
    %15 = sbr.rel target = $region3
  $region8: #{densenet_forward.7} parent=0 // loop_exit
    _

// kernel: densenet_forward.8
$region0: #{densenet_forward.8}
  #allocation0 [shape = 'u32[]', space=smem, size = 0x4, offset = 0x4, fixed_abs, tag = 'smem constant byte address 0x4 - core index']
  #allocation1 [shape = 'u32[72,128]{1,0:T(1,128)}', space=vmem, size = 0x9000, scoped, tag = 'internal scratch']
  #allocation2 [shape = 'bf16[4,4,16]{2,1,0:T(4,128)(2,1)}', space=vmem, size = 0x1000, scoped, tag = 'scratch operand']
  %s0 = inlined_call_operand.vmem [shape: bf16[2,4,5], index: 0, kind: input, shape index: {}]
  %s1 = inlined_call_operand.vmem [shape: f32[1,5], index: 1, kind: input, shape index: {}]
  %s2 = inlined_call_operand.vmem [shape: f32[1,5], index: 2, kind: input, shape index: {}]
  %s3 = inlined_call_operand.vmem [shape: bf16[5,16], index: 3, kind: input, shape index: {}]
  %s4 = inlined_call_operand.vmem [shape: f32[1,16], index: 4, kind: input, shape index: {}]
  %s5 = inlined_call_operand.vmem [shape: f32[1,16], index: 5, kind: input, shape index: {}]
  %s6 = inlined_call_operand.vmem [shape: bf16[9,16,4], index: 6, kind: input, shape index: {}]
  %s7 = inlined_call_operand.vmem [shape: f32[1,9], index: 7, kind: input, shape index: {}]
  %s8 = inlined_call_operand.vmem [shape: f32[1,9], index: 8, kind: input, shape index: {}]
  %s9 = inlined_call_operand.vmem [shape: bf16[9,4], index: 9, kind: input, shape index: {}]
  %s10 = inlined_call_operand.vmem [shape: bf16[2,1,4], index: 10, kind: output, shape index: {}]
  %s11 = sld [smem:[#allocation0]]
  $region73: #{densenet_forward.8} parent=0
    _
  %s13 = ssub.s32 1, %s11
  %s14 = scalar_select 0, %s13, %s11
  loop: start=0, step=1, limit=4
  $region2: #{densenet_forward.8} parent=0 // loop_pre_header
    _
  $region3: #{densenet_forward.8} parent=0 // loop_header
    %s16 = sphi 0, %s20
    %p17 = scmp.ge.s32.totalorder %s16, 4
    %s26 = sphi 0, %s28
    %s29 = sphi 0, %s26
    %s30 = sphi 0, %s29
    %s46 = sphi 0, %s30
    %s50 = sphi 0, %s50
    %s52 = sphi 0, %s50
    %s53 = sphi 0, %s52
    %s67 = sphi 0, %s53
    %s71 = sphi 0, %s71
    %s73 = sphi 0, %s71
    %s74 = sphi 0, %s73
    %s88 = sphi 0, %s74
    %s92 = sphi 0, %s92
    %s94 = sphi 0, %s92
    %s95 = sphi 0, %s94
    %s109 = sphi 0, %s95
    %s113 = sphi 0, %s113
    %s115 = sphi 0, %s113
    %s116 = sphi 0, %s115
    %s130 = sphi 0, %s116
    %s134 = sphi 0, %s134
    %s136 = sphi 0, %s134
    %s137 = sphi 0, %s136
    %s151 = sphi 0, %s137
    %s155 = sphi 0, %s155
    %s157 = sphi 0, %s155
    %s158 = sphi 0, %s157
    %s172 = sphi 0, %s158
    %s176 = sphi 0, %s176
    %s178 = sphi 0, %s176
    %s179 = sphi 0, %s178
    %s193 = sphi 0, %s179
    %s197 = sphi 0, %s197
    %s199 = sphi 0, %s197
    %s200 = sphi 0, %s199
    %s214 = sphi 0, %s200
    %s218 = sphi 0, %s218
    %s220 = sphi 0, %s218
    %s221 = sphi 0, %s220
    %s235 = sphi 0, %s221
    %s241 = sphi 0, %s243
    %s244 = sphi 0, %s241
    %s245 = sphi 0, %s244
    %s261 = sphi 0, %s245
  $region4: #{densenet_forward.8} parent=0 // loop_header_branch
    %19 = sbr.rel (%p17) target = $region8
  $region5: #{densenet_forward.8} parent=0 // loop_body
    %s21 = ssub.s32 %s16, 1
    %s22 = ssub.s32 %s16, 2
    %s23 = sadd.s32 %s16, 1
    %s24 = ssub.s32 %s16, %s23
    %p25 = scmp.eq.s32.totalorder %s24, 0
    %s27 = sadd.s32 %s26, 1
    %s28 = scalar_select %p25, %s26, %s27
    %p31 = pneg %p25
    %p32 = scmp.eq.s32.totalorder %s16, 1
    %p33 = por %p31, %p32
    %p34 = scmp.ne.s32.totalorder %s26, %s29
    %p35 = scmp.eq.s32.totalorder %s16, 0
    %p36 = por %p34, %p35
    %p37 = scmp.ne.s32.totalorder %s26, %s29
    %p38 = scmp.eq.s32.totalorder %s21, 1
    %p39 = por %p37, %p38
    %p40 = scmp.ne.s32.totalorder %s29, %s30
    %p41 = scmp.eq.s32.totalorder %s21, 0
    %p42 = por %p40, %p41
    %p43 = scmp.ne.s32.totalorder %s29, %s30
    %p44 = scmp.eq.s32.totalorder %s22, 1
    %p45 = por %p43, %p44
    %p47 = scmp.ne.s32.totalorder %s30, %s46
    %p48 = scmp.eq.s32.totalorder %s22, 0
    %p49 = por %p47, %p48
    %s51 = sadd.s32 %s50, 1
    %p54 = scmp.eq.s32.totalorder %s16, 1
    %p55 = scmp.ne.s32.totalorder %s50, %s52
    %p56 = scmp.eq.s32.totalorder %s16, 0
    %p57 = por %p55, %p56
    %p58 = scmp.ne.s32.totalorder %s50, %s52
    %p59 = scmp.eq.s32.totalorder %s21, 1
    %p60 = por %p58, %p59
    %p61 = scmp.ne.s32.totalorder %s52, %s53
    %p62 = scmp.eq.s32.totalorder %s21, 0
    %p63 = por %p61, %p62
    %p64 = scmp.ne.s32.totalorder %s52, %s53
    %p65 = scmp.eq.s32.totalorder %s22, 1
    %p66 = por %p64, %p65
    %p68 = scmp.ne.s32.totalorder %s53, %s67
    %p69 = scmp.eq.s32.totalorder %s22, 0
    %p70 = por %p68, %p69
    %s72 = sadd.s32 %s71, 1
    %p75 = scmp.eq.s32.totalorder %s16, 1
    %p76 = scmp.ne.s32.totalorder %s71, %s73
    %p77 = scmp.eq.s32.totalorder %s16, 0
    %p78 = por %p76, %p77
    %p79 = scmp.ne.s32.totalorder %s71, %s73
    %p80 = scmp.eq.s32.totalorder %s21, 1
    %p81 = por %p79, %p80
    %p82 = scmp.ne.s32.totalorder %s73, %s74
    %p83 = scmp.eq.s32.totalorder %s21, 0
    %p84 = por %p82, %p83
    %p85 = scmp.ne.s32.totalorder %s73, %s74
    %p86 = scmp.eq.s32.totalorder %s22, 1
    %p87 = por %p85, %p86
    %p89 = scmp.ne.s32.totalorder %s74, %s88
    %p90 = scmp.eq.s32.totalorder %s22, 0
    %p91 = por %p89, %p90
    %s93 = sadd.s32 %s92, 1
    %p96 = scmp.eq.s32.totalorder %s16, 1
    %p97 = scmp.ne.s32.totalorder %s92, %s94
    %p98 = scmp.eq.s32.totalorder %s16, 0
    %p99 = por %p97, %p98
    %p100 = scmp.ne.s32.totalorder %s92, %s94
    %p101 = scmp.eq.s32.totalorder %s21, 1
    %p102 = por %p100, %p101
    %p103 = scmp.ne.s32.totalorder %s94, %s95
    %p104 = scmp.eq.s32.totalorder %s21, 0
    %p105 = por %p103, %p104
    %p106 = scmp.ne.s32.totalorder %s94, %s95
    %p107 = scmp.eq.s32.totalorder %s22, 1
    %p108 = por %p106, %p107
    %p110 = scmp.ne.s32.totalorder %s95, %s109
    %p111 = scmp.eq.s32.totalorder %s22, 0
    %p112 = por %p110, %p111
    %s114 = sadd.s32 %s113, 1
    %p117 = scmp.eq.s32.totalorder %s16, 1
    %p118 = scmp.ne.s32.totalorder %s113, %s115
    %p119 = scmp.eq.s32.totalorder %s16, 0
    %p120 = por %p118, %p119
    %p121 = scmp.ne.s32.totalorder %s113, %s115
    %p122 = scmp.eq.s32.totalorder %s21, 1
    %p123 = por %p121, %p122
    %p124 = scmp.ne.s32.totalorder %s115, %s116
    %p125 = scmp.eq.s32.totalorder %s21, 0
    %p126 = por %p124, %p125
    %p127 = scmp.ne.s32.totalorder %s115, %s116
    %p128 = scmp.eq.s32.totalorder %s22, 1
    %p129 = por %p127, %p128
    %p131 = scmp.ne.s32.totalorder %s116, %s130
    %p132 = scmp.eq.s32.totalorder %s22, 0
    %p133 = por %p131, %p132
    %s135 = sadd.s32 %s134, 1
    %p138 = scmp.eq.s32.totalorder %s16, 1
    %p139 = scmp.ne.s32.totalorder %s134, %s136
    %p140 = scmp.eq.s32.totalorder %s16, 0
    %p141 = por %p139, %p140
    %p142 = scmp.ne.s32.totalorder %s134, %s136
    %p143 = scmp.eq.s32.totalorder %s21, 1
    %p144 = por %p142, %p143
    %p145 = scmp.ne.s32.totalorder %s136, %s137
    %p146 = scmp.eq.s32.totalorder %s21, 0
    %p147 = por %p145, %p146
    %p148 = scmp.ne.s32.totalorder %s136, %s137
    %p149 = scmp.eq.s32.totalorder %s22, 1
    %p150 = por %p148, %p149
    %p152 = scmp.ne.s32.totalorder %s137, %s151
    %p153 = scmp.eq.s32.totalorder %s22, 0
    %p154 = por %p152, %p153
    %s156 = sadd.s32 %s155, 1
    %p159 = scmp.eq.s32.totalorder %s16, 1
    %p160 = scmp.ne.s32.totalorder %s155, %s157
    %p161 = scmp.eq.s32.totalorder %s16, 0
    %p162 = por %p160, %p161
    %p163 = scmp.ne.s32.totalorder %s155, %s157
    %p164 = scmp.eq.s32.totalorder %s21, 1
    %p165 = por %p163, %p164
    %p166 = scmp.ne.s32.totalorder %s157, %s158
    %p167 = scmp.eq.s32.totalorder %s21, 0
    %p168 = por %p166, %p167
    %p169 = scmp.ne.s32.totalorder %s157, %s158
    %p170 = scmp.eq.s32.totalorder %s22, 1
    %p171 = por %p169, %p170
    %p173 = scmp.ne.s32.totalorder %s158, %s172
    %p174 = scmp.eq.s32.totalorder %s22, 0
    %p175 = por %p173, %p174
    %s177 = sadd.s32 %s176, 1
    %p180 = scmp.eq.s32.totalorder %s16, 1
    %p181 = scmp.ne.s32.totalorder %s176, %s178
    %p182 = scmp.eq.s32.totalorder %s16, 0
    %p183 = por %p181, %p182
    %p184 = scmp.ne.s32.totalorder %s176, %s178
    %p185 = scmp.eq.s32.totalorder %s21, 1
    %p186 = por %p184, %p185
    %p187 = scmp.ne.s32.totalorder %s178, %s179
    %p188 = scmp.eq.s32.totalorder %s21, 0
    %p189 = por %p187, %p188
    %p190 = scmp.ne.s32.totalorder %s178, %s179
    %p191 = scmp.eq.s32.totalorder %s22, 1
    %p192 = por %p190, %p191
    %p194 = scmp.ne.s32.totalorder %s179, %s193
    %p195 = scmp.eq.s32.totalorder %s22, 0
    %p196 = por %p194, %p195
    %s198 = sadd.s32 %s197, 1
    %p201 = scmp.eq.s32.totalorder %s16, 1
    %p202 = scmp.ne.s32.totalorder %s197, %s199
    %p203 = scmp.eq.s32.totalorder %s16, 0
    %p204 = por %p202, %p203
    %p205 = scmp.ne.s32.totalorder %s197, %s199
    %p206 = scmp.eq.s32.totalorder %s21, 1
    %p207 = por %p205, %p206
    %p208 = scmp.ne.s32.totalorder %s199, %s200
    %p209 = scmp.eq.s32.totalorder %s21, 0
    %p210 = por %p208, %p209
    %p211 = scmp.ne.s32.totalorder %s199, %s200
    %p212 = scmp.eq.s32.totalorder %s22, 1
    %p213 = por %p211, %p212
    %p215 = scmp.ne.s32.totalorder %s200, %s214
    %p216 = scmp.eq.s32.totalorder %s22, 0
    %p217 = por %p215, %p216
    %s219 = sadd.s32 %s218, 1
    %p222 = scmp.eq.s32.totalorder %s16, 1
    %p223 = scmp.ne.s32.totalorder %s218, %s220
    %p224 = scmp.eq.s32.totalorder %s16, 0
    %p225 = por %p223, %p224
    %p226 = scmp.ne.s32.totalorder %s218, %s220
    %p227 = scmp.eq.s32.totalorder %s21, 1
    %p228 = por %p226, %p227
    %p229 = scmp.ne.s32.totalorder %s220, %s221
    %p230 = scmp.eq.s32.totalorder %s21, 0
    %p231 = por %p229, %p230
    %p232 = scmp.ne.s32.totalorder %s220, %s221
    %p233 = scmp.eq.s32.totalorder %s22, 1
    %p234 = por %p232, %p233
    %p236 = scmp.ne.s32.totalorder %s221, %s235
    %p237 = scmp.eq.s32.totalorder %s22, 0
    %p238 = por %p236, %p237
    %s239 = ssub.s32 %s16, %s23
    %p240 = scmp.eq.s32.totalorder %s239, 0
    %s242 = sadd.s32 %s241, 1
    %s243 = scalar_select %p240, %s241, %s242
    %p246 = pneg %p240
    %p247 = scmp.eq.s32.totalorder %s16, 1
    %p248 = por %p246, %p247
    %p249 = scmp.ne.s32.totalorder %s241, %s244
    %p250 = scmp.eq.s32.totalorder %s16, 0
    %p251 = por %p249, %p250
    %p252 = scmp.ne.s32.totalorder %s241, %s244
    %p253 = scmp.eq.s32.totalorder %s21, 1
    %p254 = por %p252, %p253
    %p255 = scmp.ne.s32.totalorder %s244, %s245
    %p256 = scmp.eq.s32.totalorder %s21, 0
    %p257 = por %p255, %p256
    %p258 = scmp.ne.s32.totalorder %s244, %s245
    %p259 = scmp.eq.s32.totalorder %s22, 1
    %p260 = por %p258, %p259
    %p262 = scmp.ne.s32.totalorder %s245, %s261
    %p263 = scmp.eq.s32.totalorder %s22, 0
    %p264 = por %p262, %p263
    %p265 = scmp.le.s32.totalorder 1, %s16
    %p266 = scmp.lt.s32.totalorder %s16, 3
    %p267 = pnand %p265, %p266
    %p268 = pneg %p267
    // Predicated region
    $region9: #{densenet_forward.8} parent=5 // pred_check
      _
    $region10: #{densenet_forward.8} parent=5 // pred_check_branch
      %270 = sbr.rel (%p267) target = $region12
    $region11: #{densenet_forward.8} parent=5 // pred_region
      %s271 = ssub.s32 %s16, 1
      // Predicated region
      $region13: #{densenet_forward.8} parent=11 // pred_check
        %p272 = pneg %p63
      $region14: #{densenet_forward.8} parent=11 // pred_check_branch
        %274 = sbr.rel (%p272) target = $region16
      $region15: #{densenet_forward.8} parent=11 // pred_region
        _
      $region16: #{densenet_forward.8} parent=11 // pred_fallthru
        _
      // Predicated region
      $region17: #{densenet_forward.8} parent=11 // pred_check
        %p275 = pneg %p84
      $region18: #{densenet_forward.8} parent=11 // pred_check_branch
        %277 = sbr.rel (%p275) target = $region20
      $region19: #{densenet_forward.8} parent=11 // pred_region
        _
      $region20: #{densenet_forward.8} parent=11 // pred_fallthru
        _
      // Predicated region
      $region21: #{densenet_forward.8} parent=11 // pred_check
        %p278 = pneg %p105
      $region22: #{densenet_forward.8} parent=11 // pred_check_branch
        %280 = sbr.rel (%p278) target = $region24
      $region23: #{densenet_forward.8} parent=11 // pred_region
        _
      $region24: #{densenet_forward.8} parent=11 // pred_fallthru
        _
      // Predicated region
      $region25: #{densenet_forward.8} parent=11 // pred_check
        %p281 = pneg %p126
      $region26: #{densenet_forward.8} parent=11 // pred_check_branch
        %283 = sbr.rel (%p281) target = $region28
      $region27: #{densenet_forward.8} parent=11 // pred_region
        _
      $region28: #{densenet_forward.8} parent=11 // pred_fallthru
        _
      // Predicated region
      $region29: #{densenet_forward.8} parent=11 // pred_check
        %p284 = pneg %p147
      $region30: #{densenet_forward.8} parent=11 // pred_check_branch
        %286 = sbr.rel (%p284) target = $region32
      $region31: #{densenet_forward.8} parent=11 // pred_region
        _
      $region32: #{densenet_forward.8} parent=11 // pred_fallthru
        _
      // Predicated region
      $region33: #{densenet_forward.8} parent=11 // pred_check
        %p287 = pneg %p168
      $region34: #{densenet_forward.8} parent=11 // pred_check_branch
        %289 = sbr.rel (%p287) target = $region36
      $region35: #{densenet_forward.8} parent=11 // pred_region
        _
      $region36: #{densenet_forward.8} parent=11 // pred_fallthru
        _
      // Predicated region
      $region37: #{densenet_forward.8} parent=11 // pred_check
        %p290 = pneg %p189
      $region38: #{densenet_forward.8} parent=11 // pred_check_branch
        %292 = sbr.rel (%p290) target = $region40
      $region39: #{densenet_forward.8} parent=11 // pred_region
        _
      $region40: #{densenet_forward.8} parent=11 // pred_fallthru
        _
      // Predicated region
      $region41: #{densenet_forward.8} parent=11 // pred_check
        %p293 = pneg %p210
      $region42: #{densenet_forward.8} parent=11 // pred_check_branch
        %295 = sbr.rel (%p293) target = $region44
      $region43: #{densenet_forward.8} parent=11 // pred_region
        _
      $region44: #{densenet_forward.8} parent=11 // pred_fallthru
        _
      // Predicated region
      $region45: #{densenet_forward.8} parent=11 // pred_check
        %p296 = pneg %p231
      $region46: #{densenet_forward.8} parent=11 // pred_check_branch
        %298 = sbr.rel (%p296) target = $region48
      $region47: #{densenet_forward.8} parent=11 // pred_region
        _
      $region48: #{densenet_forward.8} parent=11 // pred_fallthru
        _
    $region12: #{densenet_forward.8} parent=5 // pred_fallthru
      _
    %p299 = scmp.lt.s32.totalorder %s16, 2
    // Predicated region
    $region49: #{densenet_forward.8} parent=5 // pred_check
      %p300 = pneg %p299
    $region50: #{densenet_forward.8} parent=5 // pred_check_branch
      %302 = sbr.rel (%p300) target = $region52
    $region51: #{densenet_forward.8} parent=5 // pred_region
      // Predicated region
      $region53: #{densenet_forward.8} parent=51 // pred_check
        %p303 = pneg %p36
      $region54: #{densenet_forward.8} parent=51 // pred_check_branch
        %305 = sbr.rel (%p303) target = $region56
      $region55: #{densenet_forward.8} parent=51 // pred_region
        %p306 = scmp.lt.s32.totalorder %s16, 1
        %s307 = scalar_select %p306, %s16, 1
        %s308 = smul.addr %s307, 2
        %s309 = scalar_lea.vmem %s0, %s308
      $region56: #{densenet_forward.8} parent=51 // pred_fallthru
        _
    $region52: #{densenet_forward.8} parent=5 // pred_fallthru
      _
    %p310 = scmp.le.s32.totalorder 1, %s16
    %p311 = scmp.lt.s32.totalorder %s16, 3
    %p312 = pnand %p310, %p311
    %p313 = pneg %p312
    // Predicated region
    $region57: #{densenet_forward.8} parent=5 // pred_check
      _
    $region58: #{densenet_forward.8} parent=5 // pred_check_branch
      %315 = sbr.rel (%p312) target = $region60
    $region59: #{densenet_forward.8} parent=5 // pred_region
      %s316 = ssub.s32 %s16, 1
      %p317 = scmp.lt.s32.totalorder %s21, 1
      %s318 = scalar_select %p317, %s21, 1
      %s319 = smul.addr %s318, 2
      %s320 = scalar_lea.vmem %s0, %s319
      %p321 = pneg %p42
      %p322 = pneg %p39
      %p323 = pneg %p63
      %p324 = pneg %p60
      %p325 = pneg %p84
      %p326 = pneg %p81
      %p327 = pneg %p105
      %p328 = pneg %p102
      %p329 = pneg %p126
      %p330 = pneg %p123
      %p331 = pneg %p147
      %p332 = pneg %p144
      %p333 = pneg %p168
      %p334 = pneg %p165
      %p335 = pneg %p189
      %p336 = pneg %p186
      %p337 = pneg %p210
      %p338 = pneg %p207
      %p339 = pneg %p231
      %p340 = pneg %p228
      %p341 = pneg %p257
      %p342 = pneg %p254
      %p343 = scmp.lt.s32.totalorder %s21, 1
      %s344 = scalar_select %p343, %s21, 1
      %s345 = scalar_lea.vmem %s10, %s344
      %p346 = scmp.lt.s32.totalorder %s21, 1
      %s347 = scalar_select %p346, %s21, 1
      %s348 = smul.addr %s347, 2
      %s349 = scalar_lea.vmem %s0, %s348
      %p350 = scmp.lt.s32.totalorder %s21, 1
      %s351 = scalar_select %p350, %s21, 1
      %s352 = scalar_lea.vmem %s10, %s351
      %vm354 = vcmask 123904
      %355 = vst.msk [vmem:[#allocation2] sm:$0x3] %vm354, 0
      %s356 = scalar_lea.vmem [#allocation2], 6
      %357 = vst.msk [vmem:[%s356] sm:$0x3] %vm354, 0
      %vm358 = vcmask 122880
      %vm359 = vsmask.f32 256
      %vm360 = vmand %vm358, %vm359
      %v361 = vld [vmem:[#allocation2] sm:$0x1]
      %v362 = vsel %vm360, 0, %v361
      %363 = vst [vmem:[#allocation2] sm:$0x1] %v362
      %v364 = vld [vmem:[#allocation2 + $0x2] sm:$0x1]
      %v365 = vsel %vm360, 0, %v364
      %366 = vst [vmem:[#allocation2 + $0x2] sm:$0x1] %v365
      %v367 = vld [vmem:[#allocation2 + $0x4] sm:$0x1]
      %v368 = vsel %vm360, 0, %v367
      %369 = vst [vmem:[#allocation2 + $0x4] sm:$0x1] %v368
      %v370 = vld [vmem:[#allocation2 + $0x6] sm:$0x1]
      %v371 = vsel %vm360, 0, %v370
      %372 = vst [vmem:[#allocation2 + $0x6] sm:$0x1] %v371
      %vm373 = vcmask 123905
      %vm374 = vsmask.f32 7942
      %vm375 = vmand %vm373, %vm374
      %v376 = vld [vmem:[#allocation2] sm:$0x2]
      %v377 = vsel %vm375, 0, %v376
      %378 = vst [vmem:[#allocation2] sm:$0x2] %v377
      %v379 = vld [vmem:[#allocation2 + $0x2] sm:$0x2]
      %v380 = vsel %vm375, 0, %v379
      %381 = vst [vmem:[#allocation2 + $0x2] sm:$0x2] %v380
      %v382 = vld [vmem:[#allocation2 + $0x4] sm:$0x2]
      %v383 = vsel %vm375, 0, %v382
      %384 = vst [vmem:[#allocation2 + $0x4] sm:$0x2] %v383
      %v385 = vld [vmem:[#allocation2 + $0x6] sm:$0x2]
      %v386 = vsel %vm375, 0, %v385
      %387 = vst [vmem:[#allocation2 + $0x6] sm:$0x2] %v386
      %v388 = vld [vmem:[%s349] sm:$0x3]
      %v389 = vunpack.c.l.bf16 %v388
      %v390 = vld [vmem:[%s1] sm:$0x1]
      %v392 = vperm.slane %v390, 0
      %v394 = vmul.f32 %v389, %v392
      %v395 = vld [vmem:[%s2] sm:$0x1]
      %v397 = vperm.slane %v395, 0
      %v399 = vadd.f32 %v394, %v397
      %v400 = vmax.f32 %v399, 0.0
      %v401 = vpack.c.bf16 %v400, %v400
      %v402 = vld [vmem:[%s3] sm:$0x7]
      %vm403 = vcmask 39936
      %v405 = vsel %vm403, %v401, 0
      %vm407 = vcmask 1041408
      %vm408 = vcmask 1042432
      %v409 = vsel %vm407, 4294967295, 65535
      %v410 = vsel %vm408, %v409, 0
      %v412 = vand.u32 %v402, %v410
      %414 = vmatpush.bf16.msra.mxu0 0
      %415 = vmatpush.bf16.msra.mxu0 0
      %416 = vmatpush.bf16.msra.mxu0 0
      %417 = vmatpush.bf16.msra.mxu0 0
      %418 = vmatpush.bf16.msra.mxu0 0
      %419 = vmatpush.bf16.msra.mxu0 0
      %420 = vmatpush.bf16.msra.mxu0 0
      %421 = vmatpush.bf16.msra.mxu0 %v412
      %422 = vmatmul.bf16.gmra.mxu0 %v405
      %v423 = vpop.f32.mrf.mxu0
      %v424 = vadd.f32 0.0, %v423
      %v425 = vpop.f32.mrf.mxu0
      %426 = vdwg.mxu0
      %v427 = vld [vmem:[%s4] sm:$0x1]
      %v429 = vperm.slane %v427, 0
      %v431 = vmul.f32 %v424, %v429
      %v432 = vld [vmem:[%s5] sm:$0x1]
      %v434 = vperm.slane %v432, 0
      %v436 = vadd.f32 %v431, %v434
      %v437 = vmax.f32 %v436, 0.0
      %v439 = vrot.slane %v437, 2
      %v441 = vpack.c.bf16 %v437, %v437
      %v442 = vpack.c.bf16 %v439, %v439
      %v445 = vrot.slane %v441, 2
      %v446 = vrot.slane %v442, 2
      %v449 = vsel %vm407, %v441, %v445
      %v452 = vsel %vm407, %v442, %v446
      %v453 = vshrl.u32 %v449, 16
      %v455 = vrot.slane %v453, 7
      %v456 = vshll.u32 %v449, 16
      %v458 = vor.u32 %v455, %v456
      %v459 = vshrl.u32 %v452, 16
      %v461 = vrot.slane %v459, 7
      %v462 = vshll.u32 %v452, 16
      %v464 = vor.u32 %v461, %v462
      %s467 = scalar_lea.vmem [#allocation2], 2
      %vm468 = vcmask 123904
      %vm469 = vsmask.f32 1282
      %vm470 = vmand %vm468, %vm469
      %v471 = vld [vmem:[%s467] sm:$0x3]
      %v472 = vsel %vm470, %v458, %v471
      %473 = vst [vmem:[%s467] sm:$0x3] %v472
      %v474 = vld [vmem:[%s467 + $0x2] sm:$0x3]
      %v475 = vsel %vm470, %v464, %v474
      %476 = vst [vmem:[%s467 + $0x2] sm:$0x3] %v475
      %v477 = vld [vmem:[#allocation2] sm:$0x1]
      %v478 = vld [vmem:[#allocation2 + $0x2] sm:$0x1]
      %v479 = vld [vmem:[%s6] sm:$0xf]
      %v480 = vld [vmem:[%s6 + $0x4] sm:$0xf]
      %v481 = vld [vmem:[#allocation2] sm:$0x3]
      %v482 = vld [vmem:[#allocation2 + $0x2] sm:$0x3]
      %v485 = vrot.slane %v481, 1
      %v486 = vrot.slane %v481, 2
      %v487 = vrot.slane %v481, 3
      %v488 = vrot.slane %v482, 1
      %v489 = vrot.slane %v482, 2
      %v490 = vrot.slane %v482, 3
      %vm491 = vcmask 1040384
      %v494 = vsel %vm491, %v481, %v485
      %vm495 = vcmask 1042434
      %v498 = vsel %vm495, %v486, %v487
      %v499 = vsel %vm407, %v494, %v498
      %vm500 = vcmask 1041409
      %v501 = vsel %vm500, %v481, %v485
      %vm502 = vcmask 1043459
      %v503 = vsel %vm502, %v486, %v487
      %vm504 = vcmask 1042433
      %v505 = vsel %vm504, %v501, %v503
      %v507 = vrot.slane %v505, 1
      %v510 = vsel %vm491, %v482, %v488
      %v513 = vsel %vm495, %v489, %v490
      %v514 = vsel %vm407, %v510, %v513
      %v515 = vsel %vm500, %v482, %v488
      %v516 = vsel %vm502, %v489, %v490
      %v517 = vsel %vm504, %v515, %v516
      %v519 = vrot.slane %v517, 1
      %vm520 = vsmask.f32 1284
      %vm521 = vmor %vm359, %vm520
      %vm522 = vsmask.f32 2312
      %vm523 = vmor %vm521, %vm522
      %vm524 = vsmask.f32 3340
      %vm525 = vmor %vm523, %vm524
      %vm526 = vsmask.f32 4368
      %vm527 = vmor %vm525, %vm526
      %vm528 = vsmask.f32 5396
      %vm529 = vmor %vm527, %vm528
      %vm530 = vsmask.f32 6424
      %vm531 = vmor %vm529, %vm530
      %vm532 = vsmask.f32 7452
      %vm533 = vmor %vm531, %vm532
      %v534 = vshrl.u32 %v499, 16
      %v536 = vrot.slane %v534, 7
      %v537 = vrot.slane %v536, 1
      %v539 = vshll.u32 %v507, 16
      %v541 = vsel %vm533, %v537, %v539
      %v542 = vshrl.u32 %v514, 16
      %v544 = vrot.slane %v542, 7
      %v545 = vrot.slane %v544, 1
      %v547 = vshll.u32 %v519, 16
      %v549 = vsel %vm533, %v545, %v547
      %s550 = scalar_lea.vmem %s6, 8
      %v551 = vld [vmem:[%s550] sm:$0xf]
      %v552 = vld [vmem:[%s550 + $0x4] sm:$0xf]
      %554 = vst [vmem:[#allocation1] ss:$9 sm:$0xff] %v541
      %s556 = scalar_lea.vmem [#allocation1], 1
      %557 = vst [vmem:[%s556] ss:$9 sm:$0xff] %v549
      %v558 = vld [vmem:[#allocation1] sm:$0xff]
      %v561 = vunpack.c.l.b16 %v551
      %v562 = vunpack.c.l.b16 %v552
      %v563 = vpack.c.b16 %v562, %v561
      %vm565 = vcmask 130048
      %v566 = vsel %vm565, %v558, 0
      %568 = vmatpush.bf16.msra.mxu0 0
      %569 = vmatpush.bf16.msra.mxu0 0
      %570 = vmatpush.bf16.msra.mxu0 0
      %571 = vmatpush.bf16.msra.mxu0 0
      %572 = vmatpush.bf16.msra.mxu0 0
      %573 = vmatpush.bf16.msra.mxu0 0
      %574 = vmatpush.bf16.msra.mxu0 0
      %575 = vmatpush.bf16.msra.mxu0 %v563
      %576 = vmatmul.bf16.gmra.mxu0 %v566
      %v577 = vpop.f32.mrf.mxu0
      %v578 = vadd.f32 0.0, %v577
      %v579 = vpop.f32.mrf.mxu0
      %580 = vdwg.mxu0
      %582 = vst [vmem:[#allocation1] ss:$9 sm:$0xff] %v477
      %s584 = scalar_lea.vmem [#allocation1], 1
      %585 = vst [vmem:[%s584] ss:$9 sm:$0xff] %v478
      %v586 = vld [vmem:[#allocation1] sm:$0xff]
      %v589 = vunpack.c.l.b16 %v479
      %v590 = vunpack.c.l.b16 %v480
      %v591 = vpack.c.b16 %v590, %v589
      %v593 = vsel %vm565, %v586, 0
      %595 = vmatpush.bf16.msra.mxu0 0
      %596 = vmatpush.bf16.msra.mxu0 0
      %597 = vmatpush.bf16.msra.mxu0 0
      %598 = vmatpush.bf16.msra.mxu0 0
      %599 = vmatpush.bf16.msra.mxu0 0
      %600 = vmatpush.bf16.msra.mxu0 0
      %601 = vmatpush.bf16.msra.mxu0 0
      %602 = vmatpush.bf16.msra.mxu0 %v591
      %603 = vmatmul.bf16.gmra.mxu0 %v593
      %v604 = vpop.f32.mrf.mxu0
      %v605 = vadd.f32 %v578, %v604
      %v606 = vpop.f32.mrf.mxu0
      %607 = vdwg.mxu0
      %v608 = vld [vmem:[#allocation2] sm:$0x2]
      %v609 = vld [vmem:[#allocation2 + $0x2] sm:$0x2]
      %611 = vst [vmem:[#allocation1] sm:$0xff] %v608
      %s612 = scalar_lea.vmem [#allocation1], 1
      %v613 = vld [vmem:[%s612] ss:$2 sm:$0xff]
      %615 = vst [vmem:[#allocation1 + $0x10] sm:$0xff] %v609
      %s616 = scalar_lea.vmem [#allocation1], 17
      %v617 = vld [vmem:[%s616] ss:$2 sm:$0xff]
      %s618 = scalar_lea.vmem %s6, 16
      %v619 = vld [vmem:[%s618] sm:$0xf]
      %v620 = vld [vmem:[%s618 + $0x4] sm:$0xf]
      %621 = vst [vmem:[#allocation1] ss:$9 sm:$0xff] %v613
      %s622 = scalar_lea.vmem [#allocation1], 1
      %623 = vst [vmem:[%s622] ss:$9 sm:$0xff] %v617
      %v624 = vld [vmem:[#allocation1] sm:$0xff]
      %v627 = vunpack.c.l.b16 %v619
      %v628 = vunpack.c.l.b16 %v620
      %v629 = vpack.c.b16 %v628, %v627
      %v631 = vsel %vm565, %v624, 0
      %633 = vmatpush.bf16.msra.mxu0 0
      %634 = vmatpush.bf16.msra.mxu0 0
      %635 = vmatpush.bf16.msra.mxu0 0
      %636 = vmatpush.bf16.msra.mxu0 0
      %637 = vmatpush.bf16.msra.mxu0 0
      %638 = vmatpush.bf16.msra.mxu0 0
      %639 = vmatpush.bf16.msra.mxu0 0
      %640 = vmatpush.bf16.msra.mxu0 %v629
      %641 = vmatmul.bf16.gmra.mxu0 %v631
      %v642 = vpop.f32.mrf.mxu0
      %v643 = vadd.f32 0.0, %v642
      %v644 = vpop.f32.mrf.mxu0
      %645 = vdwg.mxu0
      %v646 = vadd.f32 %v605, %v643
      %v647 = vld [vmem:[%s467] sm:$0x1]
      %v648 = vld [vmem:[%s467 + $0x2] sm:$0x1]
      %s649 = scalar_lea.vmem %s6, 24
      %v650 = vld [vmem:[%s649] sm:$0xf]
      %v651 = vld [vmem:[%s649 + $0x4] sm:$0xf]
      %653 = vst [vmem:[#allocation1] ss:$9 sm:$0xff] %v647
      %s655 = scalar_lea.vmem [#allocation1], 1
      %656 = vst [vmem:[%s655] ss:$9 sm:$0xff] %v648
      %v657 = vld [vmem:[#allocation1] sm:$0xff]
      %v660 = vunpack.c.l.b16 %v650
      %v661 = vunpack.c.l.b16 %v651
      %v662 = vpack.c.b16 %v661, %v660
      %v664 = vsel %vm565, %v657, 0
      %666 = vmatpush.bf16.msra.mxu0 0
      %667 = vmatpush.bf16.msra.mxu0 0
      %668 = vmatpush.bf16.msra.mxu0 0
      %669 = vmatpush.bf16.msra.mxu0 0
      %670 = vmatpush.bf16.msra.mxu0 0
      %671 = vmatpush.bf16.msra.mxu0 0
      %672 = vmatpush.bf16.msra.mxu0 0
      %673 = vmatpush.bf16.msra.mxu0 %v662
      %674 = vmatmul.bf16.gmra.mxu0 %v664
      %v675 = vpop.f32.mrf.mxu0
      %v676 = vadd.f32 0.0, %v675
      %v677 = vpop.f32.mrf.mxu0
      %678 = vdwg.mxu0
      %v679 = vadd.f32 %v646, %v676
      %v680 = vld [vmem:[%s467] sm:$0x3]
      %v681 = vld [vmem:[%s467 + $0x2] sm:$0x3]
      %v684 = vrot.slane %v680, 1
      %v685 = vrot.slane %v680, 2
      %v686 = vrot.slane %v680, 3
      %v687 = vrot.slane %v681, 1
      %v688 = vrot.slane %v681, 2
      %v689 = vrot.slane %v681, 3
      %v692 = vsel %vm491, %v680, %v684
      %v695 = vsel %vm495, %v685, %v686
      %v696 = vsel %vm407, %v692, %v695
      %v697 = vsel %vm500, %v680, %v684
      %v698 = vsel %vm502, %v685, %v686
      %v699 = vsel %vm504, %v697, %v698
      %v701 = vrot.slane %v699, 1
      %v704 = vsel %vm491, %v681, %v687
      %v707 = vsel %vm495, %v688, %v689
      %v708 = vsel %vm407, %v704, %v707
      %v709 = vsel %vm500, %v681, %v687
      %v710 = vsel %vm502, %v688, %v689
      %v711 = vsel %vm504, %v709, %v710
      %v713 = vrot.slane %v711, 1
      %v714 = vshrl.u32 %v696, 16
      %v716 = vrot.slane %v714, 7
      %v717 = vrot.slane %v716, 1
      %v719 = vshll.u32 %v701, 16
      %v721 = vsel %vm533, %v717, %v719
      %v722 = vshrl.u32 %v708, 16
      %v724 = vrot.slane %v722, 7
      %v725 = vrot.slane %v724, 1
      %v727 = vshll.u32 %v713, 16
      %v729 = vsel %vm533, %v725, %v727
      %s730 = scalar_lea.vmem %s6, 32
      %v731 = vld [vmem:[%s730] sm:$0xf]
      %v732 = vld [vmem:[%s730 + $0x4] sm:$0xf]
      %734 = vst [vmem:[#allocation1] ss:$9 sm:$0xff] %v721
      %s736 = scalar_lea.vmem [#allocation1], 1
      %737 = vst [vmem:[%s736] ss:$9 sm:$0xff] %v729
      %v738 = vld [vmem:[#allocation1] sm:$0xff]
      %v741 = vunpack.c.l.b16 %v731
      %v742 = vunpack.c.l.b16 %v732
      %v743 = vpack.c.b16 %v742, %v741
      %v745 = vsel %vm565, %v738, 0
      %747 = vmatpush.bf16.msra.mxu0 0
      %748 = vmatpush.bf16.msra.mxu0 0
      %749 = vmatpush.bf16.msra.mxu0 0
      %750 = vmatpush.bf16.msra.mxu0 0
      %751 = vmatpush.bf16.msra.mxu0 0
      %752 = vmatpush.bf16.msra.mxu0 0
      %753 = vmatpush.bf16.msra.mxu0 0
      %754 = vmatpush.bf16.msra.mxu0 %v743
      %755 = vmatmul.bf16.gmra.mxu0 %v745
      %v756 = vpop.f32.mrf.mxu0
      %v757 = vadd.f32 0.0, %v756
      %v758 = vpop.f32.mrf.mxu0
      %759 = vdwg.mxu0
      %v760 = vadd.f32 %v679, %v757
      %v761 = vld [vmem:[%s467] sm:$0x2]
      %v762 = vld [vmem:[%s467 + $0x2] sm:$0x2]
      %764 = vst [vmem:[#allocation1] sm:$0xff] %v761
      %s765 = scalar_lea.vmem [#allocation1], 1
      %v766 = vld [vmem:[%s765] ss:$2 sm:$0xff]
      %768 = vst [vmem:[#allocation1 + $0x10] sm:$0xff] %v762
      %s769 = scalar_lea.vmem [#allocation1], 17
      %v770 = vld [vmem:[%s769] ss:$2 sm:$0xff]
      %s771 = scalar_lea.vmem %s6, 40
      %v772 = vld [vmem:[%s771] sm:$0xf]
      %v773 = vld [vmem:[%s771 + $0x4] sm:$0xf]
      %774 = vst [vmem:[#allocation1] ss:$9 sm:$0xff] %v766
      %s775 = scalar_lea.vmem [#allocation1], 1
      %776 = vst [vmem:[%s775] ss:$9 sm:$0xff] %v770
      %v777 = vld [vmem:[#allocation1] sm:$0xff]
      %v780 = vunpack.c.l.b16 %v772
      %v781 = vunpack.c.l.b16 %v773
      %v782 = vpack.c.b16 %v781, %v780
      %v784 = vsel %vm565, %v777, 0
      %786 = vmatpush.bf16.msra.mxu0 0
      %787 = vmatpush.bf16.msra.mxu0 0
      %788 = vmatpush.bf16.msra.mxu0 0
      %789 = vmatpush.bf16.msra.mxu0 0
      %790 = vmatpush.bf16.msra.mxu0 0
      %791 = vmatpush.bf16.msra.mxu0 0
      %792 = vmatpush.bf16.msra.mxu0 0
      %793 = vmatpush.bf16.msra.mxu0 %v782
      %794 = vmatmul.bf16.gmra.mxu0 %v784
      %v795 = vpop.f32.mrf.mxu0
      %v796 = vadd.f32 0.0, %v795
      %v797 = vpop.f32.mrf.mxu0
      %798 = vdwg.mxu0
      %v799 = vadd.f32 %v760, %v796
      %s800 = scalar_lea.vmem [#allocation2], 4
      %v801 = vld [vmem:[%s800] sm:$0x1]
      %v802 = vld [vmem:[%s800 + $0x2] sm:$0x1]
      %s803 = scalar_lea.vmem %s6, 48
      %v804 = vld [vmem:[%s803] sm:$0xf]
      %v805 = vld [vmem:[%s803 + $0x4] sm:$0xf]
      %807 = vst [vmem:[#allocation1] ss:$9 sm:$0xff] %v801
      %s809 = scalar_lea.vmem [#allocation1], 1
      %810 = vst [vmem:[%s809] ss:$9 sm:$0xff] %v802
      %v811 = vld [vmem:[#allocation1] sm:$0xff]
      %v814 = vunpack.c.l.b16 %v804
      %v815 = vunpack.c.l.b16 %v805
      %v816 = vpack.c.b16 %v815, %v814
      %v818 = vsel %vm565, %v811, 0
      %820 = vmatpush.bf16.msra.mxu0 0
      %821 = vmatpush.bf16.msra.mxu0 0
      %822 = vmatpush.bf16.msra.mxu0 0
      %823 = vmatpush.bf16.msra.mxu0 0
      %824 = vmatpush.bf16.msra.mxu0 0
      %825 = vmatpush.bf16.msra.mxu0 0
      %826 = vmatpush.bf16.msra.mxu0 0
      %827 = vmatpush.bf16.msra.mxu0 %v816
      %828 = vmatmul.bf16.gmra.mxu0 %v818
      %v829 = vpop.f32.mrf.mxu0
      %v830 = vadd.f32 0.0, %v829
      %v831 = vpop.f32.mrf.mxu0
      %832 = vdwg.mxu0
      %v833 = vadd.f32 %v799, %v830
      %v834 = vld [vmem:[%s800] sm:$0x3]
      %v835 = vld [vmem:[%s800 + $0x2] sm:$0x3]
      %v838 = vrot.slane %v834, 1
      %v839 = vrot.slane %v834, 2
      %v840 = vrot.slane %v834, 3
      %v841 = vrot.slane %v835, 1
      %v842 = vrot.slane %v835, 2
      %v843 = vrot.slane %v835, 3
      %v846 = vsel %vm491, %v834, %v838
      %v849 = vsel %vm495, %v839, %v840
      %v850 = vsel %vm407, %v846, %v849
      %v851 = vsel %vm500, %v834, %v838
      %v852 = vsel %vm502, %v839, %v840
      %v853 = vsel %vm504, %v851, %v852
      %v855 = vrot.slane %v853, 1
      %v858 = vsel %vm491, %v835, %v841
      %v861 = vsel %vm495, %v842, %v843
      %v862 = vsel %vm407, %v858, %v861
      %v863 = vsel %vm500, %v835, %v841
      %v864 = vsel %vm502, %v842, %v843
      %v865 = vsel %vm504, %v863, %v864
      %v867 = vrot.slane %v865, 1
      %v868 = vshrl.u32 %v850, 16
      %v870 = vrot.slane %v868, 7
      %v871 = vrot.slane %v870, 1
      %v873 = vshll.u32 %v855, 16
      %v875 = vsel %vm533, %v871, %v873
      %v876 = vshrl.u32 %v862, 16
      %v878 = vrot.slane %v876, 7
      %v879 = vrot.slane %v878, 1
      %v881 = vshll.u32 %v867, 16
      %v883 = vsel %vm533, %v879, %v881
      %s884 = scalar_lea.vmem %s6, 56
      %v885 = vld [vmem:[%s884] sm:$0xf]
      %v886 = vld [vmem:[%s884 + $0x4] sm:$0xf]
      %888 = vst [vmem:[#allocation1] ss:$9 sm:$0xff] %v875
      %s890 = scalar_lea.vmem [#allocation1], 1
      %891 = vst [vmem:[%s890] ss:$9 sm:$0xff] %v883
      %v892 = vld [vmem:[#allocation1] sm:$0xff]
      %v895 = vunpack.c.l.b16 %v885
      %v896 = vunpack.c.l.b16 %v886
      %v897 = vpack.c.b16 %v896, %v895
      %v899 = vsel %vm565, %v892, 0
      %901 = vmatpush.bf16.msra.mxu0 0
      %902 = vmatpush.bf16.msra.mxu0 0
      %903 = vmatpush.bf16.msra.mxu0 0
      %904 = vmatpush.bf16.msra.mxu0 0
      %905 = vmatpush.bf16.msra.mxu0 0
      %906 = vmatpush.bf16.msra.mxu0 0
      %907 = vmatpush.bf16.msra.mxu0 0
      %908 = vmatpush.bf16.msra.mxu0 %v897
      %909 = vmatmul.bf16.gmra.mxu0 %v899
      %v910 = vpop.f32.mrf.mxu0
      %v911 = vadd.f32 0.0, %v910
      %v912 = vpop.f32.mrf.mxu0
      %913 = vdwg.mxu0
      %v914 = vadd.f32 %v833, %v911
      %v915 = vld [vmem:[%s800] sm:$0x2]
      %v916 = vld [vmem:[%s800 + $0x2] sm:$0x2]
      %918 = vst [vmem:[#allocation1] sm:$0xff] %v915
      %s919 = scalar_lea.vmem [#allocation1], 1
      %v920 = vld [vmem:[%s919] ss:$2 sm:$0xff]
      %922 = vst [vmem:[#allocation1 + $0x10] sm:$0xff] %v916
      %s923 = scalar_lea.vmem [#allocation1], 17
      %v924 = vld [vmem:[%s923] ss:$2 sm:$0xff]
      %s925 = scalar_lea.vmem %s6, 64
      %v926 = vld [vmem:[%s925] sm:$0xf]
      %v927 = vld [vmem:[%s925 + $0x4] sm:$0xf]
      %928 = vst [vmem:[#allocation1] ss:$9 sm:$0xff] %v920
      %s929 = scalar_lea.vmem [#allocation1], 1
      %930 = vst [vmem:[%s929] ss:$9 sm:$0xff] %v924
      %v931 = vld [vmem:[#allocation1] sm:$0xff]
      %v934 = vunpack.c.l.b16 %v926
      %v935 = vunpack.c.l.b16 %v927
      %v936 = vpack.c.b16 %v935, %v934
      %v938 = vsel %vm565, %v931, 0
      %940 = vmatpush.bf16.msra.mxu0 0
      %941 = vmatpush.bf16.msra.mxu0 0
      %942 = vmatpush.bf16.msra.mxu0 0
      %943 = vmatpush.bf16.msra.mxu0 0
      %944 = vmatpush.bf16.msra.mxu0 0
      %945 = vmatpush.bf16.msra.mxu0 0
      %946 = vmatpush.bf16.msra.mxu0 0
      %947 = vmatpush.bf16.msra.mxu0 %v936
      %948 = vmatmul.bf16.gmra.mxu0 %v938
      %v949 = vpop.f32.mrf.mxu0
      %v950 = vadd.f32 0.0, %v949
      %v951 = vpop.f32.mrf.mxu0
      %952 = vdwg.mxu0
      %v953 = vadd.f32 %v914, %v950
      %955 = vrot.lane.b32.xlu0 %v953, 5
      %v956 = vpop.permute.xlu0 %955
      %v958 = vsel %vm403, %v389, %v956
      %v960 = vrot.slane %v958, 2
      %v962 = vadd.f32 %v958, %v960
      %v964 = vrot.slane %v962, 7
      %v965 = vrot.slane %v964, 2
      %v967 = vadd.f32 %v962, %v965
      %v968 = vmul.f32 %v967, 0.25
      %v969 = vld [vmem:[%s7] sm:$0x1]
      %v970 = vmul.f32 %v968, %v969
      %v971 = vld [vmem:[%s8] sm:$0x1]
      %v972 = vadd.f32 %v970, %v971
      %v973 = vpack.c.bf16 %v972, %v972
      %v974 = vld [vmem:[%s9] sm:$0xf]
      %v975 = vld [vmem:[%s9 + $0x4] sm:$0x1]
      %v978 = vunpack.c.l.b16 %v974
      %v979 = vunpack.c.l.b16 %v975
      %v980 = vpack.c.b16 %v979, %v978
      %vm981 = vcmask 72704
      %v983 = vsel %vm981, %v973, 0
      %vm985 = vcmask 1043456
      %vm986 = vcmask 1044480
      %v987 = vsel %vm985, 4294967295, 65535
      %v988 = vsel %vm986, %v987, 0
      %v990 = vand.u32 %v980, %v988
      %992 = vmatpush.bf16.msra.mxu0 0
      %993 = vmatpush.bf16.msra.mxu0 0
      %994 = vmatpush.bf16.msra.mxu0 0
      %995 = vmatpush.bf16.msra.mxu0 0
      %996 = vmatpush.bf16.msra.mxu0 0
      %997 = vmatpush.bf16.msra.mxu0 0
      %998 = vmatpush.bf16.msra.mxu0 0
      %999 = vmatpush.bf16.msra.mxu0 %v990
      %1000 = vmatmul.bf16.gmra.mxu0 %v983
      %v1001 = vpop.f32.mrf.mxu0
      %v1002 = vadd.f32 0.0, %v1001
      %v1003 = vpop.f32.mrf.mxu0
      %1004 = vdwg.mxu0
      %v1005 = vpack.c.bf16 %v1002, %v1002
      %vm1006 = vcmask 24576
      %vm1007 = vmand %vm1006, %vm359
      %v1008 = vld [vmem:[%s352] sm:$0x1]
      %v1009 = vsel %vm1007, %v1005, %v1008
      %1010 = vst [vmem:[%s352] sm:$0x1] %v1009
      %p1011 = scmp.lt.s32.totalorder %s21, 1
      %s1012 = scalar_select %p1011, %s21, 1
      %s1013 = scalar_lea.vmem %s10, %s1012
      // Predicated region
      $region61: #{densenet_forward.8} parent=59 // pred_check
        %p1014 = pneg %p254
      $region62: #{densenet_forward.8} parent=59 // pred_check_branch
        %1016 = sbr.rel (%p1014) target = $region64
      $region63: #{densenet_forward.8} parent=59 // pred_region
        _
      $region64: #{densenet_forward.8} parent=59 // pred_fallthru
        _
    $region60: #{densenet_forward.8} parent=5 // pred_fallthru
      _
    %p1017 = scmp.le.s32.totalorder 2, %s16
    // Predicated region
    $region65: #{densenet_forward.8} parent=5 // pred_check
      %p1018 = pneg %p1017
    $region66: #{densenet_forward.8} parent=5 // pred_check_branch
      %1020 = sbr.rel (%p1018) target = $region68
    $region67: #{densenet_forward.8} parent=5 // pred_region
      %s1021 = ssub.s32 %s16, 2
      // Predicated region
      $region69: #{densenet_forward.8} parent=67 // pred_check
        %p1022 = pneg %p260
      $region70: #{densenet_forward.8} parent=67 // pred_check_branch
        %1024 = sbr.rel (%p1022) target = $region72
      $region71: #{densenet_forward.8} parent=67 // pred_region
        %p1025 = scmp.lt.s32.totalorder %s22, 1
        %s1026 = scalar_select %p1025, %s22, 1
        %s1027 = scalar_lea.vmem %s10, %s1026
      $region72: #{densenet_forward.8} parent=67 // pred_fallthru
        _
    $region68: #{densenet_forward.8} parent=5 // pred_fallthru
      _
  $region6: #{densenet_forward.8} parent=0 // loop_footer
    %s20 = sadd.s32 1, %s16
  $region7: #{densenet_forward.8} parent=0 // loop_footer_branch
    %15 = sbr.rel target = $region3
  $region8: #{densenet_forward.8} parent=0 // loop_exit
    _

// kernel: densenet_forward.9
$region0: #{densenet_forward.9}
  #allocation0 [shape = 'u32[]', space=smem, size = 0x4, offset = 0x4, fixed_abs, tag = 'smem constant byte address 0x4 - core index']
  #allocation1 [shape = 'u32[72,128]{1,0:T(1,128)}', space=vmem, size = 0x9000, scoped, tag = 'internal scratch']
  #allocation2 [shape = 'bf16[3,3,16]{2,1,0:T(4,128)(2,1)}', space=vmem, size = 0xc00, scoped, tag = 'scratch operand']
  %s0 = inlined_call_operand.vmem [shape: bf16[2,1,4], index: 0, kind: input, shape index: {}]
  %s1 = inlined_call_operand.vmem [shape: f32[1,4], index: 1, kind: input, shape index: {}]
  %s2 = inlined_call_operand.vmem [shape: f32[1,4], index: 2, kind: input, shape index: {}]
  %s3 = inlined_call_operand.vmem [shape: bf16[4,16], index: 3, kind: input, shape index: {}]
  %s4 = inlined_call_operand.vmem [shape: f32[1,16], index: 4, kind: input, shape index: {}]
  %s5 = inlined_call_operand.vmem [shape: f32[1,16], index: 5, kind: input, shape index: {}]
  %s6 = inlined_call_operand.vmem [shape: bf16[9,16,4], index: 6, kind: input, shape index: {}]
  %s7 = inlined_call_operand.vmem [shape: f32[1,8], index: 7, kind: input, shape index: {}]
  %s8 = inlined_call_operand.vmem [shape: f32[1,8], index: 8, kind: input, shape index: {}]
  %s9 = inlined_call_operand.vmem [shape: f32[2,1,8], index: 9, kind: output, shape index: {}]
  %s10 = sld [smem:[#allocation0]]
  $region69: #{densenet_forward.9} parent=0
    _
  %s12 = ssub.s32 1, %s10
  %s13 = scalar_select 0, %s12, %s10
  loop: start=0, step=1, limit=4
  $region2: #{densenet_forward.9} parent=0 // loop_pre_header
    _
  $region3: #{densenet_forward.9} parent=0 // loop_header
    %s15 = sphi 0, %s19
    %p16 = scmp.ge.s32.totalorder %s15, 4
    %s25 = sphi 0, %s27
    %s28 = sphi 0, %s25
    %s29 = sphi 0, %s28
    %s45 = sphi 0, %s29
    %s49 = sphi 0, %s49
    %s51 = sphi 0, %s49
    %s52 = sphi 0, %s51
    %s66 = sphi 0, %s52
    %s70 = sphi 0, %s70
    %s72 = sphi 0, %s70
    %s73 = sphi 0, %s72
    %s87 = sphi 0, %s73
    %s91 = sphi 0, %s91
    %s93 = sphi 0, %s91
    %s94 = sphi 0, %s93
    %s108 = sphi 0, %s94
    %s112 = sphi 0, %s112
    %s114 = sphi 0, %s112
    %s115 = sphi 0, %s114
    %s129 = sphi 0, %s115
    %s133 = sphi 0, %s133
    %s135 = sphi 0, %s133
    %s136 = sphi 0, %s135
    %s150 = sphi 0, %s136
    %s154 = sphi 0, %s154
    %s156 = sphi 0, %s154
    %s157 = sphi 0, %s156
    %s171 = sphi 0, %s157
    %s175 = sphi 0, %s175
    %s177 = sphi 0, %s175
    %s178 = sphi 0, %s177
    %s192 = sphi 0, %s178
    %s196 = sphi 0, %s196
    %s198 = sphi 0, %s196
    %s199 = sphi 0, %s198
    %s213 = sphi 0, %s199
    %s219 = sphi 0, %s221
    %s222 = sphi 0, %s219
    %s223 = sphi 0, %s222
    %s239 = sphi 0, %s223
  $region4: #{densenet_forward.9} parent=0 // loop_header_branch
    %18 = sbr.rel (%p16) target = $region8
  $region5: #{densenet_forward.9} parent=0 // loop_body
    %s20 = ssub.s32 %s15, 1
    %s21 = ssub.s32 %s15, 2
    %s22 = sadd.s32 %s15, 1
    %s23 = ssub.s32 %s15, %s22
    %p24 = scmp.eq.s32.totalorder %s23, 0
    %s26 = sadd.s32 %s25, 1
    %s27 = scalar_select %p24, %s25, %s26
    %p30 = pneg %p24
    %p31 = scmp.eq.s32.totalorder %s15, 1
    %p32 = por %p30, %p31
    %p33 = scmp.ne.s32.totalorder %s25, %s28
    %p34 = scmp.eq.s32.totalorder %s15, 0
    %p35 = por %p33, %p34
    %p36 = scmp.ne.s32.totalorder %s25, %s28
    %p37 = scmp.eq.s32.totalorder %s20, 1
    %p38 = por %p36, %p37
    %p39 = scmp.ne.s32.totalorder %s28, %s29
    %p40 = scmp.eq.s32.totalorder %s20, 0
    %p41 = por %p39, %p40
    %p42 = scmp.ne.s32.totalorder %s28, %s29
    %p43 = scmp.eq.s32.totalorder %s21, 1
    %p44 = por %p42, %p43
    %p46 = scmp.ne.s32.totalorder %s29, %s45
    %p47 = scmp.eq.s32.totalorder %s21, 0
    %p48 = por %p46, %p47
    %s50 = sadd.s32 %s49, 1
    %p53 = scmp.eq.s32.totalorder %s15, 1
    %p54 = scmp.ne.s32.totalorder %s49, %s51
    %p55 = scmp.eq.s32.totalorder %s15, 0
    %p56 = por %p54, %p55
    %p57 = scmp.ne.s32.totalorder %s49, %s51
    %p58 = scmp.eq.s32.totalorder %s20, 1
    %p59 = por %p57, %p58
    %p60 = scmp.ne.s32.totalorder %s51, %s52
    %p61 = scmp.eq.s32.totalorder %s20, 0
    %p62 = por %p60, %p61
    %p63 = scmp.ne.s32.totalorder %s51, %s52
    %p64 = scmp.eq.s32.totalorder %s21, 1
    %p65 = por %p63, %p64
    %p67 = scmp.ne.s32.totalorder %s52, %s66
    %p68 = scmp.eq.s32.totalorder %s21, 0
    %p69 = por %p67, %p68
    %s71 = sadd.s32 %s70, 1
    %p74 = scmp.eq.s32.totalorder %s15, 1
    %p75 = scmp.ne.s32.totalorder %s70, %s72
    %p76 = scmp.eq.s32.totalorder %s15, 0
    %p77 = por %p75, %p76
    %p78 = scmp.ne.s32.totalorder %s70, %s72
    %p79 = scmp.eq.s32.totalorder %s20, 1
    %p80 = por %p78, %p79
    %p81 = scmp.ne.s32.totalorder %s72, %s73
    %p82 = scmp.eq.s32.totalorder %s20, 0
    %p83 = por %p81, %p82
    %p84 = scmp.ne.s32.totalorder %s72, %s73
    %p85 = scmp.eq.s32.totalorder %s21, 1
    %p86 = por %p84, %p85
    %p88 = scmp.ne.s32.totalorder %s73, %s87
    %p89 = scmp.eq.s32.totalorder %s21, 0
    %p90 = por %p88, %p89
    %s92 = sadd.s32 %s91, 1
    %p95 = scmp.eq.s32.totalorder %s15, 1
    %p96 = scmp.ne.s32.totalorder %s91, %s93
    %p97 = scmp.eq.s32.totalorder %s15, 0
    %p98 = por %p96, %p97
    %p99 = scmp.ne.s32.totalorder %s91, %s93
    %p100 = scmp.eq.s32.totalorder %s20, 1
    %p101 = por %p99, %p100
    %p102 = scmp.ne.s32.totalorder %s93, %s94
    %p103 = scmp.eq.s32.totalorder %s20, 0
    %p104 = por %p102, %p103
    %p105 = scmp.ne.s32.totalorder %s93, %s94
    %p106 = scmp.eq.s32.totalorder %s21, 1
    %p107 = por %p105, %p106
    %p109 = scmp.ne.s32.totalorder %s94, %s108
    %p110 = scmp.eq.s32.totalorder %s21, 0
    %p111 = por %p109, %p110
    %s113 = sadd.s32 %s112, 1
    %p116 = scmp.eq.s32.totalorder %s15, 1
    %p117 = scmp.ne.s32.totalorder %s112, %s114
    %p118 = scmp.eq.s32.totalorder %s15, 0
    %p119 = por %p117, %p118
    %p120 = scmp.ne.s32.totalorder %s112, %s114
    %p121 = scmp.eq.s32.totalorder %s20, 1
    %p122 = por %p120, %p121
    %p123 = scmp.ne.s32.totalorder %s114, %s115
    %p124 = scmp.eq.s32.totalorder %s20, 0
    %p125 = por %p123, %p124
    %p126 = scmp.ne.s32.totalorder %s114, %s115
    %p127 = scmp.eq.s32.totalorder %s21, 1
    %p128 = por %p126, %p127
    %p130 = scmp.ne.s32.totalorder %s115, %s129
    %p131 = scmp.eq.s32.totalorder %s21, 0
    %p132 = por %p130, %p131
    %s134 = sadd.s32 %s133, 1
    %p137 = scmp.eq.s32.totalorder %s15, 1
    %p138 = scmp.ne.s32.totalorder %s133, %s135
    %p139 = scmp.eq.s32.totalorder %s15, 0
    %p140 = por %p138, %p139
    %p141 = scmp.ne.s32.totalorder %s133, %s135
    %p142 = scmp.eq.s32.totalorder %s20, 1
    %p143 = por %p141, %p142
    %p144 = scmp.ne.s32.totalorder %s135, %s136
    %p145 = scmp.eq.s32.totalorder %s20, 0
    %p146 = por %p144, %p145
    %p147 = scmp.ne.s32.totalorder %s135, %s136
    %p148 = scmp.eq.s32.totalorder %s21, 1
    %p149 = por %p147, %p148
    %p151 = scmp.ne.s32.totalorder %s136, %s150
    %p152 = scmp.eq.s32.totalorder %s21, 0
    %p153 = por %p151, %p152
    %s155 = sadd.s32 %s154, 1
    %p158 = scmp.eq.s32.totalorder %s15, 1
    %p159 = scmp.ne.s32.totalorder %s154, %s156
    %p160 = scmp.eq.s32.totalorder %s15, 0
    %p161 = por %p159, %p160
    %p162 = scmp.ne.s32.totalorder %s154, %s156
    %p163 = scmp.eq.s32.totalorder %s20, 1
    %p164 = por %p162, %p163
    %p165 = scmp.ne.s32.totalorder %s156, %s157
    %p166 = scmp.eq.s32.totalorder %s20, 0
    %p167 = por %p165, %p166
    %p168 = scmp.ne.s32.totalorder %s156, %s157
    %p169 = scmp.eq.s32.totalorder %s21, 1
    %p170 = por %p168, %p169
    %p172 = scmp.ne.s32.totalorder %s157, %s171
    %p173 = scmp.eq.s32.totalorder %s21, 0
    %p174 = por %p172, %p173
    %s176 = sadd.s32 %s175, 1
    %p179 = scmp.eq.s32.totalorder %s15, 1
    %p180 = scmp.ne.s32.totalorder %s175, %s177
    %p181 = scmp.eq.s32.totalorder %s15, 0
    %p182 = por %p180, %p181
    %p183 = scmp.ne.s32.totalorder %s175, %s177
    %p184 = scmp.eq.s32.totalorder %s20, 1
    %p185 = por %p183, %p184
    %p186 = scmp.ne.s32.totalorder %s177, %s178
    %p187 = scmp.eq.s32.totalorder %s20, 0
    %p188 = por %p186, %p187
    %p189 = scmp.ne.s32.totalorder %s177, %s178
    %p190 = scmp.eq.s32.totalorder %s21, 1
    %p191 = por %p189, %p190
    %p193 = scmp.ne.s32.totalorder %s178, %s192
    %p194 = scmp.eq.s32.totalorder %s21, 0
    %p195 = por %p193, %p194
    %s197 = sadd.s32 %s196, 1
    %p200 = scmp.eq.s32.totalorder %s15, 1
    %p201 = scmp.ne.s32.totalorder %s196, %s198
    %p202 = scmp.eq.s32.totalorder %s15, 0
    %p203 = por %p201, %p202
    %p204 = scmp.ne.s32.totalorder %s196, %s198
    %p205 = scmp.eq.s32.totalorder %s20, 1
    %p206 = por %p204, %p205
    %p207 = scmp.ne.s32.totalorder %s198, %s199
    %p208 = scmp.eq.s32.totalorder %s20, 0
    %p209 = por %p207, %p208
    %p210 = scmp.ne.s32.totalorder %s198, %s199
    %p211 = scmp.eq.s32.totalorder %s21, 1
    %p212 = por %p210, %p211
    %p214 = scmp.ne.s32.totalorder %s199, %s213
    %p215 = scmp.eq.s32.totalorder %s21, 0
    %p216 = por %p214, %p215
    %s217 = ssub.s32 %s15, %s22
    %p218 = scmp.eq.s32.totalorder %s217, 0
    %s220 = sadd.s32 %s219, 1
    %s221 = scalar_select %p218, %s219, %s220
    %p224 = pneg %p218
    %p225 = scmp.eq.s32.totalorder %s15, 1
    %p226 = por %p224, %p225
    %p227 = scmp.ne.s32.totalorder %s219, %s222
    %p228 = scmp.eq.s32.totalorder %s15, 0
    %p229 = por %p227, %p228
    %p230 = scmp.ne.s32.totalorder %s219, %s222
    %p231 = scmp.eq.s32.totalorder %s20, 1
    %p232 = por %p230, %p231
    %p233 = scmp.ne.s32.totalorder %s222, %s223
    %p234 = scmp.eq.s32.totalorder %s20, 0
    %p235 = por %p233, %p234
    %p236 = scmp.ne.s32.totalorder %s222, %s223
    %p237 = scmp.eq.s32.totalorder %s21, 1
    %p238 = por %p236, %p237
    %p240 = scmp.ne.s32.totalorder %s223, %s239
    %p241 = scmp.eq.s32.totalorder %s21, 0
    %p242 = por %p240, %p241
    %p243 = scmp.le.s32.totalorder 1, %s15
    %p244 = scmp.lt.s32.totalorder %s15, 3
    %p245 = pnand %p243, %p244
    %p246 = pneg %p245
    // Predicated region
    $region9: #{densenet_forward.9} parent=5 // pred_check
      _
    $region10: #{densenet_forward.9} parent=5 // pred_check_branch
      %248 = sbr.rel (%p245) target = $region12
    $region11: #{densenet_forward.9} parent=5 // pred_region
      %s249 = ssub.s32 %s15, 1
      // Predicated region
      $region13: #{densenet_forward.9} parent=11 // pred_check
        %p250 = pneg %p62
      $region14: #{densenet_forward.9} parent=11 // pred_check_branch
        %252 = sbr.rel (%p250) target = $region16
      $region15: #{densenet_forward.9} parent=11 // pred_region
        _
      $region16: #{densenet_forward.9} parent=11 // pred_fallthru
        _
      // Predicated region
      $region17: #{densenet_forward.9} parent=11 // pred_check
        %p253 = pneg %p83
      $region18: #{densenet_forward.9} parent=11 // pred_check_branch
        %255 = sbr.rel (%p253) target = $region20
      $region19: #{densenet_forward.9} parent=11 // pred_region
        _
      $region20: #{densenet_forward.9} parent=11 // pred_fallthru
        _
      // Predicated region
      $region21: #{densenet_forward.9} parent=11 // pred_check
        %p256 = pneg %p104
      $region22: #{densenet_forward.9} parent=11 // pred_check_branch
        %258 = sbr.rel (%p256) target = $region24
      $region23: #{densenet_forward.9} parent=11 // pred_region
        _
      $region24: #{densenet_forward.9} parent=11 // pred_fallthru
        _
      // Predicated region
      $region25: #{densenet_forward.9} parent=11 // pred_check
        %p259 = pneg %p125
      $region26: #{densenet_forward.9} parent=11 // pred_check_branch
        %261 = sbr.rel (%p259) target = $region28
      $region27: #{densenet_forward.9} parent=11 // pred_region
        _
      $region28: #{densenet_forward.9} parent=11 // pred_fallthru
        _
      // Predicated region
      $region29: #{densenet_forward.9} parent=11 // pred_check
        %p262 = pneg %p146
      $region30: #{densenet_forward.9} parent=11 // pred_check_branch
        %264 = sbr.rel (%p262) target = $region32
      $region31: #{densenet_forward.9} parent=11 // pred_region
        _
      $region32: #{densenet_forward.9} parent=11 // pred_fallthru
        _
      // Predicated region
      $region33: #{densenet_forward.9} parent=11 // pred_check
        %p265 = pneg %p167
      $region34: #{densenet_forward.9} parent=11 // pred_check_branch
        %267 = sbr.rel (%p265) target = $region36
      $region35: #{densenet_forward.9} parent=11 // pred_region
        _
      $region36: #{densenet_forward.9} parent=11 // pred_fallthru
        _
      // Predicated region
      $region37: #{densenet_forward.9} parent=11 // pred_check
        %p268 = pneg %p188
      $region38: #{densenet_forward.9} parent=11 // pred_check_branch
        %270 = sbr.rel (%p268) target = $region40
      $region39: #{densenet_forward.9} parent=11 // pred_region
        _
      $region40: #{densenet_forward.9} parent=11 // pred_fallthru
        _
      // Predicated region
      $region41: #{densenet_forward.9} parent=11 // pred_check
        %p271 = pneg %p209
      $region42: #{densenet_forward.9} parent=11 // pred_check_branch
        %273 = sbr.rel (%p271) target = $region44
      $region43: #{densenet_forward.9} parent=11 // pred_region
        _
      $region44: #{densenet_forward.9} parent=11 // pred_fallthru
        _
    $region12: #{densenet_forward.9} parent=5 // pred_fallthru
      _
    %p274 = scmp.lt.s32.totalorder %s15, 2
    // Predicated region
    $region45: #{densenet_forward.9} parent=5 // pred_check
      %p275 = pneg %p274
    $region46: #{densenet_forward.9} parent=5 // pred_check_branch
      %277 = sbr.rel (%p275) target = $region48
    $region47: #{densenet_forward.9} parent=5 // pred_region
      // Predicated region
      $region49: #{densenet_forward.9} parent=47 // pred_check
        %p278 = pneg %p35
      $region50: #{densenet_forward.9} parent=47 // pred_check_branch
        %280 = sbr.rel (%p278) target = $region52
      $region51: #{densenet_forward.9} parent=47 // pred_region
        %p281 = scmp.lt.s32.totalorder %s15, 1
        %s282 = scalar_select %p281, %s15, 1
        %s283 = scalar_lea.vmem %s0, %s282
      $region52: #{densenet_forward.9} parent=47 // pred_fallthru
        _
    $region48: #{densenet_forward.9} parent=5 // pred_fallthru
      _
    %p284 = scmp.le.s32.totalorder 1, %s15
    %p285 = scmp.lt.s32.totalorder %s15, 3
    %p286 = pnand %p284, %p285
    %p287 = pneg %p286
    // Predicated region
    $region53: #{densenet_forward.9} parent=5 // pred_check
      _
    $region54: #{densenet_forward.9} parent=5 // pred_check_branch
      %289 = sbr.rel (%p286) target = $region56
    $region55: #{densenet_forward.9} parent=5 // pred_region
      %s290 = ssub.s32 %s15, 1
      %p291 = scmp.lt.s32.totalorder %s20, 1
      %s292 = scalar_select %p291, %s20, 1
      %s293 = scalar_lea.vmem %s0, %s292
      %p294 = pneg %p41
      %p295 = pneg %p38
      %p296 = pneg %p62
      %p297 = pneg %p59
      %p298 = pneg %p83
      %p299 = pneg %p80
      %p300 = pneg %p104
      %p301 = pneg %p101
      %p302 = pneg %p125
      %p303 = pneg %p122
      %p304 = pneg %p146
      %p305 = pneg %p143
      %p306 = pneg %p167
      %p307 = pneg %p164
      %p308 = pneg %p188
      %p309 = pneg %p185
      %p310 = pneg %p209
      %p311 = pneg %p206
      %p312 = pneg %p235
      %p313 = pneg %p232
      %p314 = scmp.lt.s32.totalorder %s20, 1
      %s315 = scalar_select %p314, %s20, 1
      %s316 = scalar_lea.vmem %s9, %s315
      %p317 = scmp.lt.s32.totalorder %s20, 1
      %s318 = scalar_select %p317, %s20, 1
      %s319 = scalar_lea.vmem %s0, %s318
      %p320 = scmp.lt.s32.totalorder %s20, 1
      %s321 = scalar_select %p320, %s20, 1
      %s322 = scalar_lea.vmem %s9, %s321
      %vm324 = vcmask 123904
      %vm325 = vsmask.f32 1280
      %vm326 = vmand %vm324, %vm325
      %v327 = vld [vmem:[#allocation2] sm:$0x3]
      %v328 = vsel %vm326, 0, %v327
      %329 = vst [vmem:[#allocation2] sm:$0x3] %v328
      %s330 = scalar_lea.vmem [#allocation2], 4
      %v331 = vld [vmem:[%s330] sm:$0x3]
      %v332 = vsel %vm326, 0, %v331
      %333 = vst [vmem:[%s330] sm:$0x3] %v332
      %vm334 = vcmask 122880
      %vm335 = vsmask.f32 256
      %vm336 = vmand %vm334, %vm335
      %v337 = vld [vmem:[#allocation2] sm:$0x1]
      %v338 = vsel %vm336, 0, %v337
      %339 = vst [vmem:[#allocation2] sm:$0x1] %v338
      %v340 = vld [vmem:[#allocation2 + $0x2] sm:$0x1]
      %v341 = vsel %vm336, 0, %v340
      %342 = vst [vmem:[#allocation2 + $0x2] sm:$0x1] %v341
      %v343 = vld [vmem:[#allocation2 + $0x4] sm:$0x1]
      %v344 = vsel %vm336, 0, %v343
      %345 = vst [vmem:[#allocation2 + $0x4] sm:$0x1] %v344
      %vm346 = vcmask 123905
      %vm347 = vmand %vm346, %vm325
      %v348 = vld [vmem:[#allocation2] sm:$0x2]
      %v349 = vsel %vm347, 0, %v348
      %350 = vst [vmem:[#allocation2] sm:$0x2] %v349
      %v351 = vld [vmem:[#allocation2 + $0x2] sm:$0x2]
      %v352 = vsel %vm347, 0, %v351
      %353 = vst [vmem:[#allocation2 + $0x2] sm:$0x2] %v352
      %v354 = vld [vmem:[#allocation2 + $0x4] sm:$0x2]
      %v355 = vsel %vm347, 0, %v354
      %356 = vst [vmem:[#allocation2 + $0x4] sm:$0x2] %v355
      %v357 = vld [vmem:[%s319] sm:$0x1]
      %v358 = vunpack.c.l.bf16 %v357
      %v359 = vld [vmem:[%s1] sm:$0x1]
      %v360 = vmul.f32 %v358, %v359
      %v361 = vld [vmem:[%s2] sm:$0x1]
      %v362 = vadd.f32 %v360, %v361
      %v363 = vmax.f32 %v362, 0.0
      %v364 = vpack.c.bf16 %v363, %v363
      %v365 = vld [vmem:[%s3] sm:$0x3]
      %vm366 = vcmask 31744
      %v368 = vsel %vm366, %v364, 0
      %vm370 = vcmask 1041408
      %v372 = vsel %vm370, %v365, 0
      %374 = vmatpush.bf16.msra.mxu0 0
      %375 = vmatpush.bf16.msra.mxu0 0
      %376 = vmatpush.bf16.msra.mxu0 0
      %377 = vmatpush.bf16.msra.mxu0 0
      %378 = vmatpush.bf16.msra.mxu0 0
      %379 = vmatpush.bf16.msra.mxu0 0
      %380 = vmatpush.bf16.msra.mxu0 0
      %381 = vmatpush.bf16.msra.mxu0 %v372
      %382 = vmatmul.bf16.gmra.mxu0 %v368
      %v383 = vpop.f32.mrf.mxu0
      %v384 = vadd.f32 0.0, %v383
      %v385 = vpop.f32.mrf.mxu0
      %386 = vdwg.mxu0
      %v387 = vld [vmem:[%s4] sm:$0x1]
      %v388 = vmul.f32 %v384, %v387
      %v389 = vld [vmem:[%s5] sm:$0x1]
      %v390 = vadd.f32 %v388, %v389
      %v391 = vmax.f32 %v390, 0.0
      %v392 = vpack.c.bf16 %v391, %v391
      %v394 = vrot.slane %v392, 2
      %v397 = vsel %vm370, %v392, %v394
      %v398 = vshll.u32 %v397, 16
      %s401 = scalar_lea.vmem [#allocation2], 2
      %vm402 = vsmask.f32 7938
      %vm403 = vmand %vm334, %vm402
      %v404 = vld [vmem:[%s401] sm:$0x1]
      %v405 = vsel %vm403, %v398, %v404
      %406 = vst [vmem:[%s401] sm:$0x1] %v405
      %v407 = vld [vmem:[#allocation2] sm:$0x1]
      %v408 = vld [vmem:[%s6] sm:$0xf]
      %v409 = vld [vmem:[%s6 + $0x4] sm:$0xf]
      %s410 = scalar_lea.vmem %s6, 8
      %v411 = vld [vmem:[%s410] sm:$0xf]
      %v412 = vld [vmem:[%s410 + $0x4] sm:$0xf]
      %414 = vst [vmem:[#allocation1] ss:$4 sm:$0xff] %v407
      %v415 = vld.sshfl [vmem:[#allocation1] sm:$0xff pattern:$0x73625140]
      %v416 = vshrl.u32 %v415, 16
      %v420 = vunpack.c.l.b16 %v411
      %v421 = vunpack.c.l.b16 %v412
      %v422 = vpack.c.b16 %v421, %v420
      %vm424 = vcmask 130048
      %v426 = vsel %vm424, %v416, 0
      %428 = vmatpush.bf16.msra.mxu0 0
      %429 = vmatpush.bf16.msra.mxu0 0
      %430 = vmatpush.bf16.msra.mxu0 0
      %431 = vmatpush.bf16.msra.mxu0 0
      %432 = vmatpush.bf16.msra.mxu0 0
      %433 = vmatpush.bf16.msra.mxu0 0
      %434 = vmatpush.bf16.msra.mxu0 0
      %435 = vmatpush.bf16.msra.mxu0 %v422
      %436 = vmatmul.bf16.gmra.mxu0 %v426
      %v437 = vpop.f32.mrf.mxu0
      %v438 = vadd.f32 0.0, %v437
      %v439 = vpop.f32.mrf.mxu0
      %440 = vdwg.mxu0
      %v443 = vunpack.c.l.b16 %v408
      %v444 = vunpack.c.l.b16 %v409
      %v445 = vpack.c.b16 %v444, %v443
      %v447 = vsel %vm424, %v407, 0
      %449 = vmatpush.bf16.msra.mxu0 0
      %450 = vmatpush.bf16.msra.mxu0 0
      %451 = vmatpush.bf16.msra.mxu0 0
      %452 = vmatpush.bf16.msra.mxu0 0
      %453 = vmatpush.bf16.msra.mxu0 0
      %454 = vmatpush.bf16.msra.mxu0 0
      %455 = vmatpush.bf16.msra.mxu0 0
      %456 = vmatpush.bf16.msra.mxu0 %v445
      %457 = vmatmul.bf16.gmra.mxu0 %v447
      %v458 = vpop.f32.mrf.mxu0
      %v459 = vadd.f32 %v438, %v458
      %v460 = vpop.f32.mrf.mxu0
      %461 = vdwg.mxu0
      %v462 = vld [vmem:[#allocation2] sm:$0x2]
      %s463 = scalar_lea.vmem %s6, 16
      %v464 = vld [vmem:[%s463] sm:$0xf]
      %v465 = vld [vmem:[%s463 + $0x4] sm:$0xf]
      %467 = vst [vmem:[#allocation1] ss:$4 sm:$0xff] %v462
      %v468 = vld.sshfl [vmem:[#allocation1] sm:$0xff pattern:$0x73625140]
      %v470 = vrot.slane %v468, 1
      %v473 = vunpack.c.l.b16 %v464
      %v474 = vunpack.c.l.b16 %v465
      %v475 = vpack.c.b16 %v474, %v473
      %v478 = vsel %vm424, %v470, 0
      %480 = vmatpush.bf16.msra.mxu0 0
      %481 = vmatpush.bf16.msra.mxu0 0
      %482 = vmatpush.bf16.msra.mxu0 0
      %483 = vmatpush.bf16.msra.mxu0 0
      %484 = vmatpush.bf16.msra.mxu0 0
      %485 = vmatpush.bf16.msra.mxu0 0
      %486 = vmatpush.bf16.msra.mxu0 0
      %487 = vmatpush.bf16.msra.mxu0 %v475
      %488 = vmatmul.bf16.gmra.mxu0 %v478
      %v489 = vpop.f32.mrf.mxu0
      %v490 = vadd.f32 0.0, %v489
      %v491 = vpop.f32.mrf.mxu0
      %492 = vdwg.mxu0
      %v493 = vadd.f32 %v459, %v490
      %v494 = vld [vmem:[%s401] sm:$0x1]
      %s495 = scalar_lea.vmem %s6, 24
      %v496 = vld [vmem:[%s495] sm:$0xf]
      %v497 = vld [vmem:[%s495 + $0x4] sm:$0xf]
      %v500 = vunpack.c.l.b16 %v496
      %v501 = vunpack.c.l.b16 %v497
      %v502 = vpack.c.b16 %v501, %v500
      %v505 = vsel %vm424, %v494, 0
      %507 = vmatpush.bf16.msra.mxu0 0
      %508 = vmatpush.bf16.msra.mxu0 0
      %509 = vmatpush.bf16.msra.mxu0 0
      %510 = vmatpush.bf16.msra.mxu0 0
      %511 = vmatpush.bf16.msra.mxu0 0
      %512 = vmatpush.bf16.msra.mxu0 0
      %513 = vmatpush.bf16.msra.mxu0 0
      %514 = vmatpush.bf16.msra.mxu0 %v502
      %515 = vmatmul.bf16.gmra.mxu0 %v505
      %v516 = vpop.f32.mrf.mxu0
      %v517 = vadd.f32 0.0, %v516
      %v518 = vpop.f32.mrf.mxu0
      %519 = vdwg.mxu0
      %v520 = vadd.f32 %v493, %v517
      %s521 = scalar_lea.vmem %s6, 32
      %v522 = vld [vmem:[%s521] sm:$0xf]
      %v523 = vld [vmem:[%s521 + $0x4] sm:$0xf]
      %524 = vst [vmem:[#allocation1] ss:$4 sm:$0xff] %v494
      %v525 = vld.sshfl [vmem:[#allocation1] sm:$0xff pattern:$0x73625140]
      %v526 = vshrl.u32 %v525, 16
      %v530 = vunpack.c.l.b16 %v522
      %v531 = vunpack.c.l.b16 %v523
      %v532 = vpack.c.b16 %v531, %v530
      %v535 = vsel %vm424, %v526, 0
      %537 = vmatpush.bf16.msra.mxu0 0
      %538 = vmatpush.bf16.msra.mxu0 0
      %539 = vmatpush.bf16.msra.mxu0 0
      %540 = vmatpush.bf16.msra.mxu0 0
      %541 = vmatpush.bf16.msra.mxu0 0
      %542 = vmatpush.bf16.msra.mxu0 0
      %543 = vmatpush.bf16.msra.mxu0 0
      %544 = vmatpush.bf16.msra.mxu0 %v532
      %545 = vmatmul.bf16.gmra.mxu0 %v535
      %v546 = vpop.f32.mrf.mxu0
      %v547 = vadd.f32 0.0, %v546
      %v548 = vpop.f32.mrf.mxu0
      %549 = vdwg.mxu0
      %v550 = vadd.f32 %v520, %v547
      %v551 = vld [vmem:[%s401] sm:$0x2]
      %s552 = scalar_lea.vmem %s6, 40
      %v553 = vld [vmem:[%s552] sm:$0xf]
      %v554 = vld [vmem:[%s552 + $0x4] sm:$0xf]
      %556 = vst [vmem:[#allocation1] ss:$4 sm:$0xff] %v551
      %v557 = vld.sshfl [vmem:[#allocation1] sm:$0xff pattern:$0x73625140]
      %v559 = vrot.slane %v557, 1
      %v562 = vunpack.c.l.b16 %v553
      %v563 = vunpack.c.l.b16 %v554
      %v564 = vpack.c.b16 %v563, %v562
      %v567 = vsel %vm424, %v559, 0
      %569 = vmatpush.bf16.msra.mxu0 0
      %570 = vmatpush.bf16.msra.mxu0 0
      %571 = vmatpush.bf16.msra.mxu0 0
      %572 = vmatpush.bf16.msra.mxu0 0
      %573 = vmatpush.bf16.msra.mxu0 0
      %574 = vmatpush.bf16.msra.mxu0 0
      %575 = vmatpush.bf16.msra.mxu0 0
      %576 = vmatpush.bf16.msra.mxu0 %v564
      %577 = vmatmul.bf16.gmra.mxu0 %v567
      %v578 = vpop.f32.mrf.mxu0
      %v579 = vadd.f32 0.0, %v578
      %v580 = vpop.f32.mrf.mxu0
      %581 = vdwg.mxu0
      %v582 = vadd.f32 %v550, %v579
      %v583 = vld [vmem:[%s330] sm:$0x1]
      %s584 = scalar_lea.vmem %s6, 48
      %v585 = vld [vmem:[%s584] sm:$0xf]
      %v586 = vld [vmem:[%s584 + $0x4] sm:$0xf]
      %v589 = vunpack.c.l.b16 %v585
      %v590 = vunpack.c.l.b16 %v586
      %v591 = vpack.c.b16 %v590, %v589
      %v594 = vsel %vm424, %v583, 0
      %596 = vmatpush.bf16.msra.mxu0 0
      %597 = vmatpush.bf16.msra.mxu0 0
      %598 = vmatpush.bf16.msra.mxu0 0
      %599 = vmatpush.bf16.msra.mxu0 0
      %600 = vmatpush.bf16.msra.mxu0 0
      %601 = vmatpush.bf16.msra.mxu0 0
      %602 = vmatpush.bf16.msra.mxu0 0
      %603 = vmatpush.bf16.msra.mxu0 %v591
      %604 = vmatmul.bf16.gmra.mxu0 %v594
      %v605 = vpop.f32.mrf.mxu0
      %v606 = vadd.f32 0.0, %v605
      %v607 = vpop.f32.mrf.mxu0
      %608 = vdwg.mxu0
      %v609 = vadd.f32 %v582, %v606
      %s610 = scalar_lea.vmem %s6, 56
      %v611 = vld [vmem:[%s610] sm:$0xf]
      %v612 = vld [vmem:[%s610 + $0x4] sm:$0xf]
      %613 = vst [vmem:[#allocation1] ss:$4 sm:$0xff] %v583
      %v614 = vld.sshfl [vmem:[#allocation1] sm:$0xff pattern:$0x73625140]
      %v615 = vshrl.u32 %v614, 16
      %v619 = vunpack.c.l.b16 %v611
      %v620 = vunpack.c.l.b16 %v612
      %v621 = vpack.c.b16 %v620, %v619
      %v624 = vsel %vm424, %v615, 0
      %626 = vmatpush.bf16.msra.mxu0 0
      %627 = vmatpush.bf16.msra.mxu0 0
      %628 = vmatpush.bf16.msra.mxu0 0
      %629 = vmatpush.bf16.msra.mxu0 0
      %630 = vmatpush.bf16.msra.mxu0 0
      %631 = vmatpush.bf16.msra.mxu0 0
      %632 = vmatpush.bf16.msra.mxu0 0
      %633 = vmatpush.bf16.msra.mxu0 %v621
      %634 = vmatmul.bf16.gmra.mxu0 %v624
      %v635 = vpop.f32.mrf.mxu0
      %v636 = vadd.f32 0.0, %v635
      %v637 = vpop.f32.mrf.mxu0
      %638 = vdwg.mxu0
      %v639 = vadd.f32 %v609, %v636
      %v640 = vld [vmem:[%s330] sm:$0x2]
      %s641 = scalar_lea.vmem %s6, 64
      %v642 = vld [vmem:[%s641] sm:$0xf]
      %v643 = vld [vmem:[%s641 + $0x4] sm:$0xf]
      %645 = vst [vmem:[#allocation1] ss:$4 sm:$0xff] %v640
      %v646 = vld.sshfl [vmem:[#allocation1] sm:$0xff pattern:$0x73625140]
      %v648 = vrot.slane %v646, 1
      %v651 = vunpack.c.l.b16 %v642
      %v652 = vunpack.c.l.b16 %v643
      %v653 = vpack.c.b16 %v652, %v651
      %v656 = vsel %vm424, %v648, 0
      %658 = vmatpush.bf16.msra.mxu0 0
      %659 = vmatpush.bf16.msra.mxu0 0
      %660 = vmatpush.bf16.msra.mxu0 0
      %661 = vmatpush.bf16.msra.mxu0 0
      %662 = vmatpush.bf16.msra.mxu0 0
      %663 = vmatpush.bf16.msra.mxu0 0
      %664 = vmatpush.bf16.msra.mxu0 0
      %665 = vmatpush.bf16.msra.mxu0 %v653
      %666 = vmatmul.bf16.gmra.mxu0 %v656
      %v667 = vpop.f32.mrf.mxu0
      %v668 = vadd.f32 0.0, %v667
      %v669 = vpop.f32.mrf.mxu0
      %670 = vdwg.mxu0
      %v671 = vadd.f32 %v639, %v668
      %673 = vrot.lane.b32.xlu0 %v671, 4
      %v674 = vpop.permute.xlu0 %673
      %v676 = vsel %vm366, %v358, %v674
      %v677 = vld [vmem:[%s7] sm:$0x1]
      %v678 = vmul.f32 %v676, %v677
      %v679 = vld [vmem:[%s8] sm:$0x1]
      %v680 = vadd.f32 %v678, %v679
      %v681 = vmax.f32 %v680, 0.0
      %v682 = vadd.f32 %v681, 0.0
      %vm683 = vcmask 57344
      %684 = vst.msk [vmem:[%s322] sm:$0x1] %vm683, %v682
      %p685 = scmp.lt.s32.totalorder %s20, 1
      %s686 = scalar_select %p685, %s20, 1
      %s687 = scalar_lea.vmem %s9, %s686
      // Predicated region
      $region57: #{densenet_forward.9} parent=55 // pred_check
        %p688 = pneg %p232
      $region58: #{densenet_forward.9} parent=55 // pred_check_branch
        %690 = sbr.rel (%p688) target = $region60
      $region59: #{densenet_forward.9} parent=55 // pred_region
        _
      $region60: #{densenet_forward.9} parent=55 // pred_fallthru
        _
    $region56: #{densenet_forward.9} parent=5 // pred_fallthru
      _
    %p691 = scmp.le.s32.totalorder 2, %s15
    // Predicated region
    $region61: #{densenet_forward.9} parent=5 // pred_check
      %p692 = pneg %p691
    $region62: #{densenet_forward.9} parent=5 // pred_check_branch
      %694 = sbr.rel (%p692) target = $region64
    $region63: #{densenet_forward.9} parent=5 // pred_region
      %s695 = ssub.s32 %s15, 2
      // Predicated region
      $region65: #{densenet_forward.9} parent=63 // pred_check
        %p696 = pneg %p238
      $region66: #{densenet_forward.9} parent=63 // pred_check_branch
        %698 = sbr.rel (%p696) target = $region68
      $region67: #{densenet_forward.9} parent=63 // pred_region
        %p699 = scmp.lt.s32.totalorder %s21, 1
        %s700 = scalar_select %p699, %s21, 1
        %s701 = scalar_lea.vmem %s9, %s700
      $region68: #{densenet_forward.9} parent=63 // pred_fallthru
        _
    $region64: #{densenet_forward.9} parent=5 // pred_fallthru
      _
  $region6: #{densenet_forward.9} parent=0 // loop_footer
    %s19 = sadd.s32 1, %s15
  $region7: #{densenet_forward.9} parent=0 // loop_footer_branch
    %14 = sbr.rel target = $region3
  $region8: #{densenet_forward.9} parent=0 // loop_exit
    _

</llo_original>
